<compile_context>
chip_gen: v6e
topology: v6e:2x2x1
jax: 0.10.0
libtpu: 0.0.40
codegen_flags: <defaults>
</compile_context>

<pallas_src>
import functools

import jax
import jax.numpy as jnp
from jax import lax
from jax.experimental import pallas as pl
from jax.experimental.pallas import tpu as pltpu

NHEADS = 8          # nn.TransformerEncoderLayer(nhead=8) in the reference module
LN_EPS = 1e-5       # nn.LayerNorm default eps


# ----------------------------------------------------------------------------
# small helpers
# ----------------------------------------------------------------------------
def _row_tile(m):
    """Largest row tile (multiple of 8, <=1024) that divides m; else full m."""
    for t in (1024, 512, 256, 128, 64, 32, 16, 8):
        if t <= m and m % t == 0:
            return t
    return m


def _layernorm(x, gamma, beta, eps):
    mean = jnp.mean(x, axis=-1, keepdims=True)
    var = jnp.mean(jnp.square(x - mean), axis=-1, keepdims=True)
    return (x - mean) * lax.rsqrt(var + eps) * gamma + beta


# ----------------------------------------------------------------------------
# Kernel 1: fused base-embedding + LSTM layer-0 gate projection
#           gx = relu(x @ We + be) @ W8 + b8     (both directions' gate columns)
# (Kept fully general; for strictly one-hot inputs this could be replaced by a
#  precomputed 4-row gate table — same single kernel launch either way.)
# ----------------------------------------------------------------------------
def _embed_gates_kernel(x_ref, we_ref, be_ref, w8_ref, b8_ref, o_ref):
    e = jnp.dot(x_ref[...], we_ref[...],
                preferred_element_type=jnp.float32) + be_ref[...]
    e = jnp.maximum(e, 0.0)
    o_ref[...] = jnp.dot(e, w8_ref[...],
                         preferred_element_type=jnp.float32) + b8_ref[...]


def embed_gates(x, we, be, w8, b8):
    m, kin = x.shape
    h = we.shape[1]
    n = w8.shape[1]
    tm = _row_tile(m)
    return pl.pallas_call(
        _embed_gates_kernel,
        out_shape=jax.ShapeDtypeStruct((m, n), jnp.float32),
        grid=(m // tm,),
        in_specs=[pl.BlockSpec((tm, kin), lambda i: (i, 0)),
                  pl.BlockSpec((kin, h), lambda i: (0, 0)),
                  pl.BlockSpec((1, h), lambda i: (0, 0)),
                  pl.BlockSpec((h, n), lambda i: (0, 0)),
                  pl.BlockSpec((1, n), lambda i: (0, 0))],
        out_specs=pl.BlockSpec((tm, n), lambda i: (i, 0)),
        compiler_params=pltpu.CompilerParams(dimension_semantics=("parallel",)),
    )(x, we, be, w8, b8)


# ----------------------------------------------------------------------------
# Kernel 2: LSTM layer-k (k>=1) gate projection.
#   Input rows are the previous layer's concatenated [fwd | bwd] hidden (2H),
#   so both directions' gates come from a single lane-dense matmul.
# ----------------------------------------------------------------------------
def _gates_kernel(x_ref, w_ref, b_ref, o_ref):
    o_ref[...] = jnp.dot(x_ref[...], w_ref[...],
                         preferred_element_type=jnp.float32) + b_ref[...]


def gates_proj(x, w, b):
    m, kin = x.shape
    n = w.shape[1]
    tm = _row_tile(m)
    return pl.pallas_call(
        _gates_kernel,
        out_shape=jax.ShapeDtypeStruct((m, n), jnp.float32),
        grid=(m // tm,),
        in_specs=[pl.BlockSpec((tm, kin), lambda i: (i, 0)),
                  pl.BlockSpec((kin, n), lambda i: (0, 0)),
                  pl.BlockSpec((1, n), lambda i: (0, 0))],
        out_specs=pl.BlockSpec((tm, n), lambda i: (i, 0)),
        compiler_params=pltpu.CompilerParams(dimension_semantics=("parallel",)),
    )(x, w, b)


# ----------------------------------------------------------------------------
# Kernel 3: bidirectional LSTM recurrence — both directions in ONE body.
#   gx is time-major (S, B, 8H), columns = [fwd i,f,g,o | bwd i,f,g,o].
#   Fully unrolled static time loop; per-step stores are static-index writes
#   into the VMEM-resident output block (single HBM writeback at the end).
#   The last layer writes batch-first (B, S, 2H) so the transformer needs no
#   wrapper concat/transpose.
# ----------------------------------------------------------------------------
def _bilstm_kernel(gx_ref, whhf_ref, whhb_ref, o_ref, *,
                   seq_len, hidden, batch, batch_first_out):
    H = hidden
    whh_f = whhf_ref[...]                      # (H, 4H)
    whh_b = whhb_ref[...]                      # (H, 4H)

    hf = jnp.zeros((batch, H), jnp.float32)
    cf = jnp.zeros((batch, H), jnp.float32)
    hb = jnp.zeros((batch, H), jnp.float32)
    cb = jnp.zeros((batch, H), jnp.float32)

    # TODO(synk): for long sequences, switch to lax.fori_loop(unroll=4..8) and
    # chunk S with carried (h, c) to bound VMEM on v7x.
    for j in range(seq_len):
        tb = seq_len - 1 - j
        # back-to-back recurrent matmuls (second hides the first's MXU latency)
        gf = gx_ref[j, :, 0:4 * H] + jnp.dot(
            hf, whh_f, preferred_element_type=jnp.float32)
        gb = gx_ref[tb, :, 4 * H:8 * H] + jnp.dot(
            hb, whh_b, preferred_element_type=jnp.float32)

        i_f = jax.nn.sigmoid(gf[:, 0 * H:1 * H])
        f_f = jax.nn.sigmoid(gf[:, 1 * H:2 * H])
        g_f = jnp.tanh(gf[:, 2 * H:3 * H])
        o_f = jax.nn.sigmoid(gf[:, 3 * H:4 * H])
        cf = f_f * cf + i_f * g_f
        hf = o_f * jnp.tanh(cf)

        i_b = jax.nn.sigmoid(gb[:, 0 * H:1 * H])
        f_b = jax.nn.sigmoid(gb[:, 1 * H:2 * H])
        g_b = jnp.tanh(gb[:, 2 * H:3 * H])
        o_b = jax.nn.sigmoid(gb[:, 3 * H:4 * H])
        cb = f_b * cb + i_b * g_b
        hb = o_b * jnp.tanh(cb)

        if batch_first_out:                    # (B, S, 2H) output layout
            o_ref[:, j, 0:H] = hf
            o_ref[:, tb, H:2 * H] = hb
        else:                                  # (S, B, 2H) output layout
            o_ref[j, :, 0:H] = hf
            o_ref[tb, :, H:2 * H] = hb


def bilstm_layer(gx_tm, whh_f, whh_b, *, batch_first_out=False):
    s, b, g8 = gx_tm.shape
    h = g8 // 8
    out_shape = (b, s, 2 * h) if batch_first_out else (s, b, 2 * h)
    return pl.pallas_call(
        functools.partial(_bilstm_kernel, seq_len=s, hidden=h, batch=b,
                          batch_first_out=batch_first_out),
        out_shape=jax.ShapeDtypeStruct(out_shape, jnp.float32),
        grid=(1,),
        in_specs=[pl.BlockSpec((s, b, g8), lambda i: (0, 0, 0)),
                  pl.BlockSpec((h, 4 * h), lambda i: (0, 0)),
                  pl.BlockSpec((h, 4 * h), lambda i: (0, 0))],
        out_specs=pl.BlockSpec(out_shape, lambda i: (0, 0, 0)),
    )(gx_tm, whh_f, whh_b)


# ----------------------------------------------------------------------------
# Kernel 4: fused transformer encoder layer + output_layer + coord_predictor.
#   grid = (batch,), "parallel".  Lane-dense QKV / out-proj / FFN / head
#   matmuls; per-head softmax·V as a short static loop on VMEM-resident data.
# ----------------------------------------------------------------------------
def _transformer_kernel(
        x_ref, wq_ref, wk_ref, wv_ref, bq_ref, bk_ref, bv_ref, wo_ref, bo_ref,
        ln1g_ref, ln1b_ref, ff1w_ref, ff1b_ref, ff2w_ref, ff2b_ref,
        ln2g_ref, ln2b_ref,
        o1w_ref, o1b_ref, o2w_ref, o2b_ref,
        c1w_ref, c1b_ref, c2w_ref, c2b_ref,
        enc_ref, coord_ref, *, nheads, scale, eps):
    x = x_ref[0]                                         # (S, d)
    d = x.shape[-1]
    hd = d // nheads

    # lane-dense projections for all heads at once
    q = jnp.dot(x, wq_ref[...], preferred_element_type=jnp.float32) + bq_ref[...]
    k = jnp.dot(x, wk_ref[...], preferred_element_type=jnp.float32) + bk_ref[...]
    v = jnp.dot(x, wv_ref[...], preferred_element_type=jnp.float32) + bv_ref[...]

    # per-head softmax(QK^T)V — tiny, stays in vregs
    # TODO(synk): flash-style KV tiling here for long S (bounds VMEM on v7x).
    heads = []
    for hh in range(nheads):
        sl = slice(hh * hd, (hh + 1) * hd)
        qh, kh, vh = q[:, sl], k[:, sl], v[:, sl]
        sc = lax.dot_general(qh, kh, (((1,), (1,)), ((), ())),
                             preferred_element_type=jnp.float32) * scale
        sc = sc - jnp.max(sc, axis=-1, keepdims=True)
        p = jnp.exp(sc)
        p = p / jnp.sum(p, axis=-1, keepdims=True)
        heads.append(jnp.dot(p, vh, preferred_element_type=jnp.float32))
    attn = jnp.concatenate(heads, axis=-1)               # (S, d)

    # residual + LN1, FFN, residual + LN2 (post-LN, ReLU — PyTorch defaults)
    y = _layernorm(
        x + jnp.dot(attn, wo_ref[...], preferred_element_type=jnp.float32)
        + bo_ref[...],
        ln1g_ref[...], ln1b_ref[...], eps)
    ffh = jnp.maximum(
        jnp.dot(y, ff1w_ref[...], preferred_element_type=jnp.float32)
        + ff1b_ref[...], 0.0)
    ffo = jnp.dot(ffh, ff2w_ref[...],
                  preferred_element_type=jnp.float32) + ff2b_ref[...]
    y = _layernorm(y + ffo, ln2g_ref[...], ln2b_ref[...], eps)

    # encoder output_layer: Linear -> ReLU -> Linear
    e1 = jnp.maximum(
        jnp.dot(y, o1w_ref[...], preferred_element_type=jnp.float32)
        + o1b_ref[...], 0.0)
    enc = jnp.dot(e1, o2w_ref[...],
                  preferred_element_type=jnp.float32) + o2b_ref[...]
    enc_ref[0] = enc

    # coord_predictor: Linear -> ReLU -> Linear (output zero-padded to 128 lanes)
    c1 = jnp.maximum(
        jnp.dot(enc, c1w_ref[...], preferred_element_type=jnp.float32)
        + c1b_ref[...], 0.0)
    coord_ref[0] = jnp.dot(c1, c2w_ref[...],
                           preferred_element_type=jnp.float32) + c2b_ref[...]


def transformer_and_heads(x_bsd, params):
    b, s, d = x_bsd.shape
    nheads = NHEADS
    ffd = params["ff1_w"].shape[1]
    cpad = params["coord2_w"].shape[1]
    scale = 1.0 / float(d // nheads) ** 0.5

    def xmap(bi):
        return (bi, 0, 0)

    def cmap(bi):
        return (0, 0)

    in_specs = [
        pl.BlockSpec((1, s, d), xmap),          # x
        pl.BlockSpec((d, d), cmap),             # wq
        pl.BlockSpec((d, d), cmap),             # wk
        pl.BlockSpec((d, d), cmap),             # wv
        pl.BlockSpec((1, d), cmap),             # bq
        pl.BlockSpec((1, d), cmap),             # bk
        pl.BlockSpec((1, d), cmap),             # bv
        pl.BlockSpec((d, d), cmap),             # wo
        pl.BlockSpec((1, d), cmap),             # bo
        pl.BlockSpec((1, d), cmap),             # ln1_g
        pl.BlockSpec((1, d), cmap),             # ln1_b
        pl.BlockSpec((d, ffd), cmap),           # ff1_w
        pl.BlockSpec((1, ffd), cmap),           # ff1_b
        pl.BlockSpec((ffd, d), cmap),           # ff2_w
        pl.BlockSpec((1, d), cmap),             # ff2_b
        pl.BlockSpec((1, d), cmap),             # ln2_g
        pl.BlockSpec((1, d), cmap),             # ln2_b
        pl.BlockSpec((d, d), cmap),             # out1_w
        pl.BlockSpec((1, d), cmap),             # out1_b
        pl.BlockSpec((d, d), cmap),             # out2_w
        pl.BlockSpec((1, d), cmap),             # out2_b
        pl.BlockSpec((d, d), cmap),             # coord1_w
        pl.BlockSpec((1, d), cmap),             # coord1_b
        pl.BlockSpec((d, cpad), cmap),          # coord2_w (lane-padded)
        pl.BlockSpec((1, cpad), cmap),          # coord2_b (lane-padded)
    ]
    out_specs = (pl.BlockSpec((1, s, d), xmap),
                 pl.BlockSpec((1, s, cpad), xmap))
    out_shape = (jax.ShapeDtypeStruct((b, s, d), jnp.float32),
                 jax.ShapeDtypeStruct((b, s, cpad), jnp.float32))

    return pl.pallas_call(
        functools.partial(_transformer_kernel, nheads=nheads, scale=scale,
                          eps=LN_EPS),
        out_shape=out_shape,
        grid=(b,),
        in_specs=in_specs,
        out_specs=out_specs,
        compiler_params=pltpu.CompilerParams(dimension_semantics=("parallel",)),
    )(x_bsd,
      params["wq"], params["wk"], params["wv"],
      params["bq"], params["bk"], params["bv"],
      params["wo"], params["bo"],
      params["ln1_g"], params["ln1_b"],
      params["ff1_w"], params["ff1_b"], params["ff2_w"], params["ff2_b"],
      params["ln2_g"], params["ln2_b"],
      params["out1_w"], params["out1_b"], params["out2_w"], params["out2_b"],
      params["coord1_w"], params["coord1_b"],
      params["coord2_w"], params["coord2_b"])


# ----------------------------------------------------------------------------
# Parameter initialization (deterministic, synthetic)
# ----------------------------------------------------------------------------
def init_params(key, input_dim=4, hidden=32, num_layers=3, nheads=NHEADS):
    h = hidden
    d = 2 * h                       # bidirectional LSTM output / d_model
    ff = 4 * d
    assert d % nheads == 0
    keys = iter(jax.random.split(key, 64))

    def w(shape, scale=0.1):
        return jax.random.normal(next(keys), shape, jnp.float32) * scale

    p = {}
    p["emb_w"], p["emb_b"] = w((input_dim, h)), w((1, h))

    lstm = []
    for layer in range(num_layers):
        in_dim = h if layer == 0 else 2 * h
        lstm.append({
            "w8": w((in_dim, 8 * h)),       # input->gates, cols [fwd ifgo | bwd ifgo]
            "b8": w((1, 8 * h)),            # b_ih + b_hh, both directions
            "whh_f": w((h, 4 * h)),         # forward recurrent weights
            "whh_b": w((h, 4 * h)),         # backward recurrent weights
        })
    p["lstm"] = lstm

    # transformer encoder layer (post-LN, ReLU FFN) — full-width QKV/out weights
    p["wq"], p["wk"], p["wv"] = w((d, d)), w((d, d)), w((d, d))
    p["bq"], p["bk"], p["bv"] = w((1, d)), w((1, d)), w((1, d))
    p["wo"], p["bo"] = w((d, d)), w((1, d))
    p["ln1_g"] = jnp.ones((1, d), jnp.float32)
    p["ln1_b"] = jnp.zeros((1, d), jnp.float32)
    p["ln2_g"] = jnp.ones((1, d), jnp.float32)
    p["ln2_b"] = jnp.zeros((1, d), jnp.float32)
    p["ff1_w"], p["ff1_b"] = w((d, ff)), w((1, ff))
    p["ff2_w"], p["ff2_b"] = w((ff, d)), w((1, d))

    # encoder output_layer and coord_predictor
    p["out1_w"], p["out1_b"] = w((d, d)), w((1, d))
    p["out2_w"], p["out2_b"] = w((d, d)), w((1, d))
    p["coord1_w"], p["coord1_b"] = w((d, d)), w((1, d))
    c2w, c2b = w((d, 3)), w((1, 3))
    p["coord2_w"] = jnp.pad(c2w, ((0, 0), (0, 128 - 3)))   # lane-dense output
    p["coord2_b"] = jnp.pad(c2b, ((0, 0), (0, 128 - 3)))
    return p


# ----------------------------------------------------------------------------
# Model forward
# ----------------------------------------------------------------------------
@jax.jit
def rna3d_forward(params, one_hot):
    """Mirrors RNA3DStructureModel.forward(one_hot) with msa/mask/lengths=None."""
    b, s, _ = one_hot.shape
    h = params["emb_w"].shape[1]
    lstm = params["lstm"]
    n_layers = len(lstm)

    # time-major flatten of the tiny input (B,S,4) -> (S*B,4)
    x_tm = jnp.transpose(one_hot, (1, 0, 2)).reshape(s * b, -1)

    gx = embed_gates(x_tm, params["emb_w"], params["emb_b"],
                     lstm[0]["w8"], lstm[0]["b8"])
    out = bilstm_layer(gx.reshape(s, b, 8 * h),
                       lstm[0]["whh_f"], lstm[0]["whh_b"],
                       batch_first_out=(n_layers == 1))

    for li in range(1, n_layers):
        lp = lstm[li]
        gx = gates_proj(out.reshape(s * b, 2 * h), lp["w8"], lp["b8"])
        out = bilstm_layer(gx.reshape(s, b, 8 * h), lp["whh_f"], lp["whh_b"],
                           batch_first_out=(li == n_layers - 1))

    # `out` is already batch-first (B, S, 2H) — no concat / transpose needed.
    enc, coords_pad = transformer_and_heads(out, params)
    coords = coords_pad[:, :, :3]          # strip lane padding

    # mask is None -> no masking of coords
    return {"coordinates": coords, "encodings": enc}
    # TODO(synk): predict_distances is not part of forward(); not implemented.


# ----------------------------------------------------------------------------
# Main
# ----------------------------------------------------------------------------
if __name__ == "__main__":
    key = jax.random.PRNGKey(0)
    k_param, k_data = jax.random.split(key)

    batch, seq_len, input_dim, hidden = 2, 8, 4, 32
    params = init_params(k_param, input_dim=input_dim, hidden=hidden,
                         num_layers=3, nheads=NHEADS)

    # deterministic one-hot RNA sequences (B, S, 4)
    base_idx = jax.random.randint(k_data, (batch, seq_len), 0, input_dim)
    one_hot = jax.nn.one_hot(base_idx, input_dim, dtype=jnp.float32)

    out = rna3d_forward(params, one_hot)
    jax.block_until_ready(out)

    assert out["coordinates"].shape == (batch, seq_len, 3)
    assert out["encodings"].shape == (batch, seq_len, 2 * hidden)
    assert bool(jnp.all(jnp.isfinite(out["coordinates"])))
    assert bool(jnp.all(jnp.isfinite(out["encodings"])))
    print("KERNEL_OK")
</pallas_src>

<mosaic_0001>
module attributes {stable_mosaic.version = 11 : i64} {
  func.func @_embed_gates_kernel(%arg0: i32, %arg1: memref<16x4xf32, #tpu.memory_space<vmem>>, %arg2: memref<4x32xf32, #tpu.memory_space<vmem>>, %arg3: memref<1x32xf32, #tpu.memory_space<vmem>>, %arg4: memref<32x256xf32, #tpu.memory_space<vmem>>, %arg5: memref<1x256xf32, #tpu.memory_space<vmem>>, %arg6: memref<16x256xf32, #tpu.memory_space<vmem>>) attributes {dimension_semantics = [#tpu.dimension_semantics<parallel>], iteration_bounds = array<i64: 1>, scalar_prefetch = 0 : i64, scratch_operands = 0 : i64, tpu.core_type = #tpu.core_type<tc>, window_params = [{transform_indices = @transform_0, window_bounds = array<i64: 16, 4>}, {pipeline_mode = #tpu.pipeline_mode<synchronous>, transform_indices = @transform_1, window_bounds = array<i64: 4, 32>}, {pipeline_mode = #tpu.pipeline_mode<synchronous>, transform_indices = @transform_2, window_bounds = array<i64: 1, 32>}, {pipeline_mode = #tpu.pipeline_mode<synchronous>, transform_indices = @transform_3, window_bounds = array<i64: 32, 256>}, {pipeline_mode = #tpu.pipeline_mode<synchronous>, transform_indices = @transform_4, window_bounds = array<i64: 1, 256>}, {transform_indices = @transform_5, window_bounds = array<i64: 16, 256>}]} {
    %c0 = arith.constant 0 : index
    %c0_0 = arith.constant 0 : index
    %0 = vector.load %arg1[%c0, %c0_0] : memref<16x4xf32, #tpu.memory_space<vmem>>, vector<16x4xf32>
    %c0_1 = arith.constant 0 : index
    %c0_2 = arith.constant 0 : index
    %1 = vector.load %arg2[%c0_1, %c0_2] : memref<4x32xf32, #tpu.memory_space<vmem>>, vector<4x32xf32>
    %cst = arith.constant dense<0.000000e+00> : vector<16x32xf32>
    %2 = tpu.matmul %0, %1, %cst {dimension_numbers = #tpu.dot_dimension_numbers<[1], [0], [0], [1], [0, 0, 1, 1], [], []>} : vector<16x4xf32>, vector<4x32xf32>, vector<16x32xf32> -> vector<16x32xf32>
    %c0_3 = arith.constant 0 : index
    %c0_4 = arith.constant 0 : index
    %3 = vector.load %arg3[%c0_3, %c0_4] : memref<1x32xf32, #tpu.memory_space<vmem>>, vector<1x32xf32>
    %4 = vector.broadcast %3 : vector<1x32xf32> to vector<16x32xf32>
    %5 = arith.addf %2, %4 : vector<16x32xf32>
    %cst_5 = arith.constant 0.000000e+00 : f32
    %6 = vector.broadcast %cst_5 : f32 to vector<16x32xf32>
    %7 = arith.maximumf %5, %6 : vector<16x32xf32>
    %c0_6 = arith.constant 0 : index
    %c0_7 = arith.constant 0 : index
    %8 = vector.load %arg4[%c0_6, %c0_7] : memref<32x256xf32, #tpu.memory_space<vmem>>, vector<32x256xf32>
    %cst_8 = arith.constant dense<0.000000e+00> : vector<16x256xf32>
    %9 = tpu.matmul %7, %8, %cst_8 {dimension_numbers = #tpu.dot_dimension_numbers<[1], [0], [0], [1], [0, 0, 1, 1], [], []>} : vector<16x32xf32>, vector<32x256xf32>, vector<16x256xf32> -> vector<16x256xf32>
    %c0_9 = arith.constant 0 : index
    %c0_10 = arith.constant 0 : index
    %10 = vector.load %arg5[%c0_9, %c0_10] : memref<1x256xf32, #tpu.memory_space<vmem>>, vector<1x256xf32>
    %11 = vector.broadcast %10 : vector<1x256xf32> to vector<16x256xf32>
    %12 = arith.addf %9, %11 : vector<16x256xf32>
    %c0_11 = arith.constant 0 : index
    %c0_12 = arith.constant 0 : index
    %13 = vector.load %arg6[%c0_11, %c0_12] : memref<16x256xf32, #tpu.memory_space<vmem>>, vector<16x256xf32>
    tpu.vector_store %arg6[%c0_11, %c0_12], %12 {strides = array<i32>} : memref<16x256xf32, #tpu.memory_space<vmem>>, vector<16x256xf32>,
    return
  }
  func.func @transform_0(%arg0: i32) -> (i32, i32) {
    %c0_i32 = arith.constant 0 : i32
    %c0_i32_0 = arith.constant 0 : i32
    return %arg0, %c0_i32 : i32, i32
  }
  func.func @transform_1(%arg0: i32) -> (i32, i32) {
    %c0_i32 = arith.constant 0 : i32
    %c0_i32_0 = arith.constant 0 : i32
    %c0_i32_1 = arith.constant 0 : i32
    return %c0_i32, %c0_i32_0 : i32, i32
  }
  func.func @transform_2(%arg0: i32) -> (i32, i32) {
    %c0_i32 = arith.constant 0 : i32
    %c0_i32_0 = arith.constant 0 : i32
    %c0_i32_1 = arith.constant 0 : i32
    return %c0_i32, %c0_i32_0 : i32, i32
  }
  func.func @transform_3(%arg0: i32) -> (i32, i32) {
    %c0_i32 = arith.constant 0 : i32
    %c0_i32_0 = arith.constant 0 : i32
    %c0_i32_1 = arith.constant 0 : i32
    return %c0_i32, %c0_i32_0 : i32, i32
  }
  func.func @transform_4(%arg0: i32) -> (i32, i32) {
    %c0_i32 = arith.constant 0 : i32
    %c0_i32_0 = arith.constant 0 : i32
    %c0_i32_1 = arith.constant 0 : i32
    return %c0_i32, %c0_i32_0 : i32, i32
  }
  func.func @transform_5(%arg0: i32) -> (i32, i32) {
    %c0_i32 = arith.constant 0 : i32
    %c0_i32_0 = arith.constant 0 : i32
    return %arg0, %c0_i32 : i32, i32
  }
}

module attributes {stable_mosaic.version = 11 : i64} {
  func.func @_bilstm_kernel(%arg0: i32, %arg1: memref<8x2x256xf32, #tpu.memory_space<vmem>>, %arg2: memref<32x128xf32, #tpu.memory_space<vmem>>, %arg3: memref<32x128xf32, #tpu.memory_space<vmem>>, %arg4: memref<8x2x64xf32, #tpu.memory_space<vmem>>) attributes {dimension_semantics = [#tpu.dimension_semantics<arbitrary>], iteration_bounds = array<i64: 1>, scalar_prefetch = 0 : i64, scratch_operands = 0 : i64, tpu.core_type = #tpu.core_type<tc>, window_params = [{pipeline_mode = #tpu.pipeline_mode<synchronous>, transform_indices = @transform_0, window_bounds = array<i64: 8, 2, 256>}, {pipeline_mode = #tpu.pipeline_mode<synchronous>, transform_indices = @transform_1, window_bounds = array<i64: 32, 128>}, {pipeline_mode = #tpu.pipeline_mode<synchronous>, transform_indices = @transform_2, window_bounds = array<i64: 32, 128>}, {pipeline_mode = #tpu.pipeline_mode<synchronous>, transform_indices = @transform_3, window_bounds = array<i64: 8, 2, 64>}]} {
    %c0 = arith.constant 0 : index
    %c0_0 = arith.constant 0 : index
    %0 = vector.load %arg2[%c0, %c0_0] : memref<32x128xf32, #tpu.memory_space<vmem>>, vector<32x128xf32>
    %c0_1 = arith.constant 0 : index
    %c0_2 = arith.constant 0 : index
    %1 = vector.load %arg3[%c0_1, %c0_2] : memref<32x128xf32, #tpu.memory_space<vmem>>, vector<32x128xf32>
    %cst = arith.constant 0.000000e+00 : f32
    %2 = vector.broadcast %cst : f32 to vector<2x32xf32>
    %cst_3 = arith.constant 0.000000e+00 : f32
    %3 = vector.broadcast %cst_3 : f32 to vector<2x32xf32>
    %cst_4 = arith.constant 0.000000e+00 : f32
    %4 = vector.broadcast %cst_4 : f32 to vector<2x32xf32>
    %cst_5 = arith.constant 0.000000e+00 : f32
    %5 = vector.broadcast %cst_5 : f32 to vector<2x32xf32>
    %c0_6 = arith.constant 0 : index
    %c0_7 = arith.constant 0 : index
    %c0_8 = arith.constant 0 : index
    %6 = vector.load %arg1[%c0_6, %c0_7, %c0_8] : memref<8x2x256xf32, #tpu.memory_space<vmem>>, vector<1x2x128xf32>
    %7 = vector.shape_cast %6 : vector<1x2x128xf32> to vector<2x128xf32>
    %cst_9 = arith.constant dense<0.000000e+00> : vector<2x128xf32>
    %8 = tpu.matmul %2, %0, %cst_9 {dimension_numbers = #tpu.dot_dimension_numbers<[1], [0], [0], [1], [0, 0, 1, 1], [], []>} : vector<2x32xf32>, vector<32x128xf32>, vector<2x128xf32> -> vector<2x128xf32>
    %9 = arith.addf %7, %8 : vector<2x128xf32>
    %c7 = arith.constant 7 : index
    %c0_10 = arith.constant 0 : index
    %c128 = arith.constant 128 : index
    %10 = vector.load %arg1[%c7, %c0_10, %c128] : memref<8x2x256xf32, #tpu.memory_space<vmem>>, vector<1x2x128xf32>
    %11 = vector.shape_cast %10 : vector<1x2x128xf32> to vector<2x128xf32>
    %cst_11 = arith.constant dense<0.000000e+00> : vector<2x128xf32>
    %12 = tpu.matmul %4, %1, %cst_11 {dimension_numbers = #tpu.dot_dimension_numbers<[1], [0], [0], [1], [0, 0, 1, 1], [], []>} : vector<2x32xf32>, vector<32x128xf32>, vector<2x128xf32> -> vector<2x128xf32>
    %13 = arith.addf %11, %12 : vector<2x128xf32>
    %14 = vector.extract_strided_slice %9 {offsets = [0, 0], sizes = [2, 32], strides = [1, 1]} : vector<2x128xf32> to vector<2x32xf32>
    %15 = arith.negf %14 : vector<2x32xf32>
    %16 = math.exp %15 : vector<2x32xf32>
    %cst_12 = arith.constant 1.000000e+00 : f32
    %17 = vector.broadcast %cst_12 : f32 to vector<2x32xf32>
    %18 = arith.addf %17, %16 : vector<2x32xf32>
    %19 = arith.divf %17, %18 : vector<2x32xf32>
    %20 = vector.extract_strided_slice %9 {offsets = [0, 32], sizes = [2, 32], strides = [1, 1]} : vector<2x128xf32> to vector<2x32xf32>
    %21 = arith.negf %20 : vector<2x32xf32>
    %22 = math.exp %21 : vector<2x32xf32>
    %cst_13 = arith.constant 1.000000e+00 : f32
    %23 = vector.broadcast %cst_13 : f32 to vector<2x32xf32>
    %24 = arith.addf %23, %22 : vector<2x32xf32>
    %25 = arith.divf %23, %24 : vector<2x32xf32>
    %26 = vector.extract_strided_slice %9 {offsets = [0, 64], sizes = [2, 32], strides = [1, 1]} : vector<2x128xf32> to vector<2x32xf32>
    %27 = math.tanh %26 : vector<2x32xf32>
    %28 = vector.extract_strided_slice %9 {offsets = [0, 96], sizes = [2, 32], strides = [1, 1]} : vector<2x128xf32> to vector<2x32xf32>
    %29 = arith.negf %28 : vector<2x32xf32>
    %30 = math.exp %29 : vector<2x32xf32>
    %cst_14 = arith.constant 1.000000e+00 : f32
    %31 = vector.broadcast %cst_14 : f32 to vector<2x32xf32>
    %32 = arith.addf %31, %30 : vector<2x32xf32>
    %33 = arith.divf %31, %32 : vector<2x32xf32>
    %34 = arith.mulf %25, %3 : vector<2x32xf32>
    %35 = arith.mulf %19, %27 : vector<2x32xf32>
    %36 = arith.addf %34, %35 : vector<2x32xf32>
    %37 = math.tanh %36 : vector<2x32xf32>
    %38 = arith.mulf %33, %37 : vector<2x32xf32>
    %39 = vector.extract_strided_slice %13 {offsets = [0, 0], sizes = [2, 32], strides = [1, 1]} : vector<2x128xf32> to vector<2x32xf32>
    %40 = arith.negf %39 : vector<2x32xf32>
    %41 = math.exp %40 : vector<2x32xf32>
    %cst_15 = arith.constant 1.000000e+00 : f32
    %42 = vector.broadcast %cst_15 : f32 to vector<2x32xf32>
    %43 = arith.addf %42, %41 : vector<2x32xf32>
    %44 = arith.divf %42, %43 : vector<2x32xf32>
    %45 = vector.extract_strided_slice %13 {offsets = [0, 32], sizes = [2, 32], strides = [1, 1]} : vector<2x128xf32> to vector<2x32xf32>
    %46 = arith.negf %45 : vector<2x32xf32>
    %47 = math.exp %46 : vector<2x32xf32>
    %cst_16 = arith.constant 1.000000e+00 : f32
    %48 = vector.broadcast %cst_16 : f32 to vector<2x32xf32>
    %49 = arith.addf %48, %47 : vector<2x32xf32>
    %50 = arith.divf %48, %49 : vector<2x32xf32>
    %51 = vector.extract_strided_slice %13 {offsets = [0, 64], sizes = [2, 32], strides = [1, 1]} : vector<2x128xf32> to vector<2x32xf32>
    %52 = math.tanh %51 : vector<2x32xf32>
    %53 = vector.extract_strided_slice %13 {offsets = [0, 96], sizes = [2, 32], strides = [1, 1]} : vector<2x128xf32> to vector<2x32xf32>
    %54 = arith.negf %53 : vector<2x32xf32>
    %55 = math.exp %54 : vector<2x32xf32>
    %cst_17 = arith.constant 1.000000e+00 : f32
    %56 = vector.broadcast %cst_17 : f32 to vector<2x32xf32>
    %57 = arith.addf %56, %55 : vector<2x32xf32>
    %58 = arith.divf %56, %57 : vector<2x32xf32>
    %59 = arith.mulf %50, %5 : vector<2x32xf32>
    %60 = arith.mulf %44, %52 : vector<2x32xf32>
    %61 = arith.addf %59, %60 : vector<2x32xf32>
    %62 = math.tanh %61 : vector<2x32xf32>
    %63 = arith.mulf %58, %62 : vector<2x32xf32>
    %c0_18 = arith.constant 0 : index
    %c0_19 = arith.constant 0 : index
    %c0_20 = arith.constant 0 : index
    %64 = vector.load %arg4[%c0_18, %c0_19, %c0_20] : memref<8x2x64xf32, #tpu.memory_space<vmem>>, vector<1x2x32xf32>
    %65 = vector.shape_cast %64 : vector<1x2x32xf32> to vector<2x32xf32>
    %66 = vector.shape_cast %38 : vector<2x32xf32> to vector<1x2x32xf32>
    tpu.vector_store %arg4[%c0_18, %c0_19, %c0_20], %66 {strides = array<i32>} : memref<8x2x64xf32, #tpu.memory_space<vmem>>, vector<1x2x32xf32>,
    %c7_21 = arith.constant 7 : index
    %c0_22 = arith.constant 0 : index
    %c32 = arith.constant 32 : index
    %67 = vector.load %arg4[%c7_21, %c0_22, %c32] : memref<8x2x64xf32, #tpu.memory_space<vmem>>, vector<1x2x32xf32>
    %68 = vector.shape_cast %67 : vector<1x2x32xf32> to vector<2x32xf32>
    %69 = vector.shape_cast %63 : vector<2x32xf32> to vector<1x2x32xf32>
    tpu.vector_store %arg4[%c7_21, %c0_22, %c32], %69 {strides = array<i32>} : memref<8x2x64xf32, #tpu.memory_space<vmem>>, vector<1x2x32xf32>,
    %c1 = arith.constant 1 : index
    %c0_23 = arith.constant 0 : index
    %c0_24 = arith.constant 0 : index
    %70 = vector.load %arg1[%c1, %c0_23, %c0_24] : memref<8x2x256xf32, #tpu.memory_space<vmem>>, vector<1x2x128xf32>
    %71 = vector.shape_cast %70 : vector<1x2x128xf32> to vector<2x128xf32>
    %cst_25 = arith.constant dense<0.000000e+00> : vector<2x128xf32>
    %72 = tpu.matmul %38, %0, %cst_25 {dimension_numbers = #tpu.dot_dimension_numbers<[1], [0], [0], [1], [0, 0, 1, 1], [], []>} : vector<2x32xf32>, vector<32x128xf32>, vector<2x128xf32> -> vector<2x128xf32>
    %73 = arith.addf %71, %72 : vector<2x128xf32>
    %c6 = arith.constant 6 : index
    %c0_26 = arith.constant 0 : index
    %c128_27 = arith.constant 128 : index
    %74 = vector.load %arg1[%c6, %c0_26, %c128_27] : memref<8x2x256xf32, #tpu.memory_space<vmem>>, vector<1x2x128xf32>
    %75 = vector.shape_cast %74 : vector<1x2x128xf32> to vector<2x128xf32>
    %cst_28 = arith.constant dense<0.000000e+00> : vector<2x128xf32>
    %76 = tpu.matmul %63, %1, %cst_28 {dimension_numbers = #tpu.dot_dimension_numbers<[1], [0], [0], [1], [0, 0, 1, 1], [], []>} : vector<2x32xf32>, vector<32x128xf32>, vector<2x128xf32> -> vector<2x128xf32>
    %77 = arith.addf %75, %76 : vector<2x128xf32>
    %78 = vector.extract_strided_slice %73 {offsets = [0, 0], sizes = [2, 32], strides = [1, 1]} : vector<2x128xf32> to vector<2x32xf32>
    %79 = arith.negf %78 : vector<2x32xf32>
    %80 = math.exp %79 : vector<2x32xf32>
    %cst_29 = arith.constant 1.000000e+00 : f32
    %81 = vector.broadcast %cst_29 : f32 to vector<2x32xf32>
    %82 = arith.addf %81, %80 : vector<2x32xf32>
    %83 = arith.divf %81, %82 : vector<2x32xf32>
    %84 = vector.extract_strided_slice %73 {offsets = [0, 32], sizes = [2, 32], strides = [1, 1]} : vector<2x128xf32> to vector<2x32xf32>
    %85 = arith.negf %84 : vector<2x32xf32>
    %86 = math.exp %85 : vector<2x32xf32>
    %cst_30 = arith.constant 1.000000e+00 : f32
    %87 = vector.broadcast %cst_30 : f32 to vector<2x32xf32>
    %88 = arith.addf %87, %86 : vector<2x32xf32>
    %89 = arith.divf %87, %88 : vector<2x32xf32>
    %90 = vector.extract_strided_slice %73 {offsets = [0, 64], sizes = [2, 32], strides = [1, 1]} : vector<2x128xf32> to vector<2x32xf32>
    %91 = math.tanh %90 : vector<2x32xf32>
    %92 = vector.extract_strided_slice %73 {offsets = [0, 96], sizes = [2, 32], strides = [1, 1]} : vector<2x128xf32> to vector<2x32xf32>
    %93 = arith.negf %92 : vector<2x32xf32>
    %94 = math.exp %93 : vector<2x32xf32>
    %cst_31 = arith.constant 1.000000e+00 : f32
    %95 = vector.broadcast %cst_31 : f32 to vector<2x32xf32>
    %96 = arith.addf %95, %94 : vector<2x32xf32>
    %97 = arith.divf %95, %96 : vector<2x32xf32>
    %98 = arith.mulf %89, %36 : vector<2x32xf32>
    %99 = arith.mulf %83, %91 : vector<2x32xf32>
    %100 = arith.addf %98, %99 : vector<2x32xf32>
    %101 = math.tanh %100 : vector<2x32xf32>
    %102 = arith.mulf %97, %101 : vector<2x32xf32>
    %103 = vector.extract_strided_slice %77 {offsets = [0, 0], sizes = [2, 32], strides = [1, 1]} : vector<2x128xf32> to vector<2x32xf32>
    %104 = arith.negf %103 : vector<2x32xf32>
    %105 = math.exp %104 : vector<2x32xf32>
    %cst_32 = arith.constant 1.000000e+00 : f32
    %106 = vector.broadcast %cst_32 : f32 to vector<2x32xf32>
    %107 = arith.addf %106, %105 : vector<2x32xf32>
    %108 = arith.divf %106, %107 : vector<2x32xf32>
    %109 = vector.extract_strided_slice %77 {offsets = [0, 32], sizes = [2, 32], strides = [1, 1]} : vector<2x128xf32> to vector<2x32xf32>
    %110 = arith.negf %109 : vector<2x32xf32>
    %111 = math.exp %110 : vector<2x32xf32>
    %cst_33 = arith.constant 1.000000e+00 : f32
    %112 = vector.broadcast %cst_33 : f32 to vector<2x32xf32>
    %113 = arith.addf %112, %111 : vector<2x32xf32>
    %114 = arith.divf %112, %113 : vector<2x32xf32>
    %115 = vector.extract_strided_slice %77 {offsets = [0, 64], sizes = [2, 32], strides = [1, 1]} : vector<2x128xf32> to vector<2x32xf32>
    %116 = math.tanh %115 : vector<2x32xf32>
    %117 = vector.extract_strided_slice %77 {offsets = [0, 96], sizes = [2, 32], strides = [1, 1]} : vector<2x128xf32> to vector<2x32xf32>
    %118 = arith.negf %117 : vector<2x32xf32>
    %119 = math.exp %118 : vector<2x32xf32>
    %cst_34 = arith.constant 1.000000e+00 : f32
    %120 = vector.broadcast %cst_34 : f32 to vector<2x32xf32>
    %121 = arith.addf %120, %119 : vector<2x32xf32>
    %122 = arith.divf %120, %121 : vector<2x32xf32>
    %123 = arith.mulf %114, %61 : vector<2x32xf32>
    %124 = arith.mulf %108, %116 : vector<2x32xf32>
    %125 = arith.addf %123, %124 : vector<2x32xf32>
    %126 = math.tanh %125 : vector<2x32xf32>
    %127 = arith.mulf %122, %126 : vector<2x32xf32>
    %c1_35 = arith.constant 1 : index
    %c0_36 = arith.constant 0 : index
    %c0_37 = arith.constant 0 : index
    %128 = vector.load %arg4[%c1_35, %c0_36, %c0_37] : memref<8x2x64xf32, #tpu.memory_space<vmem>>, vector<1x2x32xf32>
    %129 = vector.shape_cast %128 : vector<1x2x32xf32> to vector<2x32xf32>
    %130 = vector.shape_cast %102 : vector<2x32xf32> to vector<1x2x32xf32>
    tpu.vector_store %arg4[%c1_35, %c0_36, %c0_37], %130 {strides = array<i32>} : memref<8x2x64xf32, #tpu.memory_space<vmem>>, vector<1x2x32xf32>,
    %c6_38 = arith.constant 6 : index
    %c0_39 = arith.constant 0 : index
    %c32_40 = arith.constant 32 : index
    %131 = vector.load %arg4[%c6_38, %c0_39, %c32_40] : memref<8x2x64xf32, #tpu.memory_space<vmem>>, vector<1x2x32xf32>
    %132 = vector.shape_cast %131 : vector<1x2x32xf32> to vector<2x32xf32>
    %133 = vector.shape_cast %127 : vector<2x32xf32> to vector<1x2x32xf32>
    tpu.vector_store %arg4[%c6_38, %c0_39, %c32_40], %133 {strides = array<i32>} : memref<8x2x64xf32, #tpu.memory_space<vmem>>, vector<1x2x32xf32>,
    %c2 = arith.constant 2 : index
    %c0_41 = arith.constant 0 : index
    %c0_42 = arith.constant 0 : index
    %134 = vector.load %arg1[%c2, %c0_41, %c0_42] : memref<8x2x256xf32, #tpu.memory_space<vmem>>, vector<1x2x128xf32>
    %135 = vector.shape_cast %134 : vector<1x2x128xf32> to vector<2x128xf32>
    %cst_43 = arith.constant dense<0.000000e+00> : vector<2x128xf32>
    %136 = tpu.matmul %102, %0, %cst_43 {dimension_numbers = #tpu.dot_dimension_numbers<[1], [0], [0], [1], [0, 0, 1, 1], [], []>} : vector<2x32xf32>, vector<32x128xf32>, vector<2x128xf32> -> vector<2x128xf32>
    %137 = arith.addf %135, %136 : vector<2x128xf32>
    %c5 = arith.constant 5 : index
    %c0_44 = arith.constant 0 : index
    %c128_45 = arith.constant 128 : index
    %138 = vector.load %arg1[%c5, %c0_44, %c128_45] : memref<8x2x256xf32, #tpu.memory_space<vmem>>, vector<1x2x128xf32>
    %139 = vector.shape_cast %138 : vector<1x2x128xf32> to vector<2x128xf32>
    %cst_46 = arith.constant dense<0.000000e+00> : vector<2x128xf32>
    %140 = tpu.matmul %127, %1, %cst_46 {dimension_numbers = #tpu.dot_dimension_numbers<[1], [0], [0], [1], [0, 0, 1, 1], [], []>} : vector<2x32xf32>, vector<32x128xf32>, vector<2x128xf32> -> vector<2x128xf32>
    %141 = arith.addf %139, %140 : vector<2x128xf32>
    %142 = vector.extract_strided_slice %137 {offsets = [0, 0], sizes = [2, 32], strides = [1, 1]} : vector<2x128xf32> to vector<2x32xf32>
    %143 = arith.negf %142 : vector<2x32xf32>
    %144 = math.exp %143 : vector<2x32xf32>
    %cst_47 = arith.constant 1.000000e+00 : f32
    %145 = vector.broadcast %cst_47 : f32 to vector<2x32xf32>
    %146 = arith.addf %145, %144 : vector<2x32xf32>
    %147 = arith.divf %145, %146 : vector<2x32xf32>
    %148 = vector.extract_strided_slice %137 {offsets = [0, 32], sizes = [2, 32], strides = [1, 1]} : vector<2x128xf32> to vector<2x32xf32>
    %149 = arith.negf %148 : vector<2x32xf32>
    %150 = math.exp %149 : vector<2x32xf32>
    %cst_48 = arith.constant 1.000000e+00 : f32
    %151 = vector.broadcast %cst_48 : f32 to vector<2x32xf32>
    %152 = arith.addf %151, %150 : vector<2x32xf32>
    %153 = arith.divf %151, %152 : vector<2x32xf32>
    %154 = vector.extract_strided_slice %137 {offsets = [0, 64], sizes = [2, 32], strides = [1, 1]} : vector<2x128xf32> to vector<2x32xf32>
    %155 = math.tanh %154 : vector<2x32xf32>
    %156 = vector.extract_strided_slice %137 {offsets = [0, 96], sizes = [2, 32], strides = [1, 1]} : vector<2x128xf32> to vector<2x32xf32>
    %157 = arith.negf %156 : vector<2x32xf32>
    %158 = math.exp %157 : vector<2x32xf32>
    %cst_49 = arith.constant 1.000000e+00 : f32
    %159 = vector.broadcast %cst_49 : f32 to vector<2x32xf32>
    %160 = arith.addf %159, %158 : vector<2x32xf32>
    %161 = arith.divf %159, %160 : vector<2x32xf32>
    %162 = arith.mulf %153, %100 : vector<2x32xf32>
    %163 = arith.mulf %147, %155 : vector<2x32xf32>
    %164 = arith.addf %162, %163 : vector<2x32xf32>
    %165 = math.tanh %164 : vector<2x32xf32>
    %166 = arith.mulf %161, %165 : vector<2x32xf32>
    %167 = vector.extract_strided_slice %141 {offsets = [0, 0], sizes = [2, 32], strides = [1, 1]} : vector<2x128xf32> to vector<2x32xf32>
    %168 = arith.negf %167 : vector<2x32xf32>
    %169 = math.exp %168 : vector<2x32xf32>
    %cst_50 = arith.constant 1.000000e+00 : f32
    %170 = vector.broadcast %cst_50 : f32 to vector<2x32xf32>
    %171 = arith.addf %170, %169 : vector<2x32xf32>
    %172 = arith.divf %170, %171 : vector<2x32xf32>
    %173 = vector.extract_strided_slice %141 {offsets = [0, 32], sizes = [2, 32], strides = [1, 1]} : vector<2x128xf32> to vector<2x32xf32>
    %174 = arith.negf %173 : vector<2x32xf32>
    %175 = math.exp %174 : vector<2x32xf32>
    %cst_51 = arith.constant 1.000000e+00 : f32
    %176 = vector.broadcast %cst_51 : f32 to vector<2x32xf32>
    %177 = arith.addf %176, %175 : vector<2x32xf32>
    %178 = arith.divf %176, %177 : vector<2x32xf32>
    %179 = vector.extract_strided_slice %141 {offsets = [0, 64], sizes = [2, 32], strides = [1, 1]} : vector<2x128xf32> to vector<2x32xf32>
    %180 = math.tanh %179 : vector<2x32xf32>
    %181 = vector.extract_strided_slice %141 {offsets = [0, 96], sizes = [2, 32], strides = [1, 1]} : vector<2x128xf32> to vector<2x32xf32>
    %182 = arith.negf %181 : vector<2x32xf32>
    %183 = math.exp %182 : vector<2x32xf32>
    %cst_52 = arith.constant 1.000000e+00 : f32
    %184 = vector.broadcast %cst_52 : f32 to vector<2x32xf32>
    %185 = arith.addf %184, %183 : vector<2x32xf32>
    %186 = arith.divf %184, %185 : vector<2x32xf32>
    %187 = arith.mulf %178, %125 : vector<2x32xf32>
    %188 = arith.mulf %172, %180 : vector<2x32xf32>
    %189 = arith.addf %187, %188 : vector<2x32xf32>
    %190 = math.tanh %189 : vector<2x32xf32>
    %191 = arith.mulf %186, %190 : vector<2x32xf32>
    %c2_53 = arith.constant 2 : index
    %c0_54 = arith.constant 0 : index
    %c0_55 = arith.constant 0 : index
    %192 = vector.load %arg4[%c2_53, %c0_54, %c0_55] : memref<8x2x64xf32, #tpu.memory_space<vmem>>, vector<1x2x32xf32>
    %193 = vector.shape_cast %192 : vector<1x2x32xf32> to vector<2x32xf32>
    %194 = vector.shape_cast %166 : vector<2x32xf32> to vector<1x2x32xf32>
    tpu.vector_store %arg4[%c2_53, %c0_54, %c0_55], %194 {strides = array<i32>} : memref<8x2x64xf32, #tpu.memory_space<vmem>>, vector<1x2x32xf32>,
    %c5_56 = arith.constant 5 : index
    %c0_57 = arith.constant 0 : index
    %c32_58 = arith.constant 32 : index
    %195 = vector.load %arg4[%c5_56, %c0_57, %c32_58] : memref<8x2x64xf32, #tpu.memory_space<vmem>>, vector<1x2x32xf32>
    %196 = vector.shape_cast %195 : vector<1x2x32xf32> to vector<2x32xf32>
    %197 = vector.shape_cast %191 : vector<2x32xf32> to vector<1x2x32xf32>
    tpu.vector_store %arg4[%c5_56, %c0_57, %c32_58], %197 {strides = array<i32>} : memref<8x2x64xf32, #tpu.memory_space<vmem>>, vector<1x2x32xf32>,
    %c3 = arith.constant 3 : index
    %c0_59 = arith.constant 0 : index
    %c0_60 = arith.constant 0 : index
    %198 = vector.load %arg1[%c3, %c0_59, %c0_60] : memref<8x2x256xf32, #tpu.memory_space<vmem>>, vector<1x2x128xf32>
    %199 = vector.shape_cast %198 : vector<1x2x128xf32> to vector<2x128xf32>
    %cst_61 = arith.constant dense<0.000000e+00> : vector<2x128xf32>
    %200 = tpu.matmul %166, %0, %cst_61 {dimension_numbers = #tpu.dot_dimension_numbers<[1], [0], [0], [1], [0, 0, 1, 1], [], []>} : vector<2x32xf32>, vector<32x128xf32>, vector<2x128xf32> -> vector<2x128xf32>
    %201 = arith.addf %199, %200 : vector<2x128xf32>
    %c4 = arith.constant 4 : index
    %c0_62 = arith.constant 0 : index
    %c128_63 = arith.constant 128 : index
    %202 = vector.load %arg1[%c4, %c0_62, %c128_63] : memref<8x2x256xf32, #tpu.memory_space<vmem>>, vector<1x2x128xf32>
    %203 = vector.shape_cast %202 : vector<1x2x128xf32> to vector<2x128xf32>
    %cst_64 = arith.constant dense<0.000000e+00> : vector<2x128xf32>
    %204 = tpu.matmul %191, %1, %cst_64 {dimension_numbers = #tpu.dot_dimension_numbers<[1], [0], [0], [1], [0, 0, 1, 1], [], []>} : vector<2x32xf32>, vector<32x128xf32>, vector<2x128xf32> -> vector<2x128xf32>
    %205 = arith.addf %203, %204 : vector<2x128xf32>
    %206 = vector.extract_strided_slice %201 {offsets = [0, 0], sizes = [2, 32], strides = [1, 1]} : vector<2x128xf32> to vector<2x32xf32>
    %207 = arith.negf %206 : vector<2x32xf32>
    %208 = math.exp %207 : vector<2x32xf32>
    %cst_65 = arith.constant 1.000000e+00 : f32
    %209 = vector.broadcast %cst_65 : f32 to vector<2x32xf32>
    %210 = arith.addf %209, %208 : vector<2x32xf32>
    %211 = arith.divf %209, %210 : vector<2x32xf32>
    %212 = vector.extract_strided_slice %201 {offsets = [0, 32], sizes = [2, 32], strides = [1, 1]} : vector<2x128xf32> to vector<2x32xf32>
    %213 = arith.negf %212 : vector<2x32xf32>
    %214 = math.exp %213 : vector<2x32xf32>
    %cst_66 = arith.constant 1.000000e+00 : f32
    %215 = vector.broadcast %cst_66 : f32 to vector<2x32xf32>
    %216 = arith.addf %215, %214 : vector<2x32xf32>
    %217 = arith.divf %215, %216 : vector<2x32xf32>
    %218 = vector.extract_strided_slice %201 {offsets = [0, 64], sizes = [2, 32], strides = [1, 1]} : vector<2x128xf32> to vector<2x32xf32>
    %219 = math.tanh %218 : vector<2x32xf32>
    %220 = vector.extract_strided_slice %201 {offsets = [0, 96], sizes = [2, 32], strides = [1, 1]} : vector<2x128xf32> to vector<2x32xf32>
    %221 = arith.negf %220 : vector<2x32xf32>
    %222 = math.exp %221 : vector<2x32xf32>
    %cst_67 = arith.constant 1.000000e+00 : f32
    %223 = vector.broadcast %cst_67 : f32 to vector<2x32xf32>
    %224 = arith.addf %223, %222 : vector<2x32xf32>
    %225 = arith.divf %223, %224 : vector<2x32xf32>
    %226 = arith.mulf %217, %164 : vector<2x32xf32>
    %227 = arith.mulf %211, %219 : vector<2x32xf32>
    %228 = arith.addf %226, %227 : vector<2x32xf32>
    %229 = math.tanh %228 : vector<2x32xf32>
    %230 = arith.mulf %225, %229 : vector<2x32xf32>
    %231 = vector.extract_strided_slice %205 {offsets = [0, 0], sizes = [2, 32], strides = [1, 1]} : vector<2x128xf32> to vector<2x32xf32>
    %232 = arith.negf %231 : vector<2x32xf32>
    %233 = math.exp %232 : vector<2x32xf32>
    %cst_68 = arith.constant 1.000000e+00 : f32
    %234 = vector.broadcast %cst_68 : f32 to vector<2x32xf32>
    %235 = arith.addf %234, %233 : vector<2x32xf32>
    %236 = arith.divf %234, %235 : vector<2x32xf32>
    %237 = vector.extract_strided_slice %205 {offsets = [0, 32], sizes = [2, 32], strides = [1, 1]} : vector<2x128xf32> to vector<2x32xf32>
    %238 = arith.negf %237 : vector<2x32xf32>
    %239 = math.exp %238 : vector<2x32xf32>
    %cst_69 = arith.constant 1.000000e+00 : f32
    %240 = vector.broadcast %cst_69 : f32 to vector<2x32xf32>
    %241 = arith.addf %240, %239 : vector<2x32xf32>
    %242 = arith.divf %240, %241 : vector<2x32xf32>
    %243 = vector.extract_strided_slice %205 {offsets = [0, 64], sizes = [2, 32], strides = [1, 1]} : vector<2x128xf32> to vector<2x32xf32>
    %244 = math.tanh %243 : vector<2x32xf32>
    %245 = vector.extract_strided_slice %205 {offsets = [0, 96], sizes = [2, 32], strides = [1, 1]} : vector<2x128xf32> to vector<2x32xf32>
    %246 = arith.negf %245 : vector<2x32xf32>
    %247 = math.exp %246 : vector<2x32xf32>
    %cst_70 = arith.constant 1.000000e+00 : f32
    %248 = vector.broadcast %cst_70 : f32 to vector<2x32xf32>
    %249 = arith.addf %248, %247 : vector<2x32xf32>
    %250 = arith.divf %248, %249 : vector<2x32xf32>
    %251 = arith.mulf %242, %189 : vector<2x32xf32>
    %252 = arith.mulf %236, %244 : vector<2x32xf32>
    %253 = arith.addf %251, %252 : vector<2x32xf32>
    %254 = math.tanh %253 : vector<2x32xf32>
    %255 = arith.mulf %250, %254 : vector<2x32xf32>
    %c3_71 = arith.constant 3 : index
    %c0_72 = arith.constant 0 : index
    %c0_73 = arith.constant 0 : index
    %256 = vector.load %arg4[%c3_71, %c0_72, %c0_73] : memref<8x2x64xf32, #tpu.memory_space<vmem>>, vector<1x2x32xf32>
    %257 = vector.shape_cast %256 : vector<1x2x32xf32> to vector<2x32xf32>
    %258 = vector.shape_cast %230 : vector<2x32xf32> to vector<1x2x32xf32>
    tpu.vector_store %arg4[%c3_71, %c0_72, %c0_73], %258 {strides = array<i32>} : memref<8x2x64xf32, #tpu.memory_space<vmem>>, vector<1x2x32xf32>,
    %c4_74 = arith.constant 4 : index
    %c0_75 = arith.constant 0 : index
    %c32_76 = arith.constant 32 : index
    %259 = vector.load %arg4[%c4_74, %c0_75, %c32_76] : memref<8x2x64xf32, #tpu.memory_space<vmem>>, vector<1x2x32xf32>
    %260 = vector.shape_cast %259 : vector<1x2x32xf32> to vector<2x32xf32>
    %261 = vector.shape_cast %255 : vector<2x32xf32> to vector<1x2x32xf32>
    tpu.vector_store %arg4[%c4_74, %c0_75, %c32_76], %261 {strides = array<i32>} : memref<8x2x64xf32, #tpu.memory_space<vmem>>, vector<1x2x32xf32>,
    %c4_77 = arith.constant 4 : index
    %c0_78 = arith.constant 0 : index
    %c0_79 = arith.constant 0 : index
    %262 = vector.load %arg1[%c4_77, %c0_78, %c0_79] : memref<8x2x256xf32, #tpu.memory_space<vmem>>, vector<1x2x128xf32>
    %263 = vector.shape_cast %262 : vector<1x2x128xf32> to vector<2x128xf32>
    %cst_80 = arith.constant dense<0.000000e+00> : vector<2x128xf32>
    %264 = tpu.matmul %230, %0, %cst_80 {dimension_numbers = #tpu.dot_dimension_numbers<[1], [0], [0], [1], [0, 0, 1, 1], [], []>} : vector<2x32xf32>, vector<32x128xf32>, vector<2x128xf32> -> vector<2x128xf32>
    %265 = arith.addf %263, %264 : vector<2x128xf32>
    %c3_81 = arith.constant 3 : index
    %c0_82 = arith.constant 0 : index
    %c128_83 = arith.constant 128 : index
    %266 = vector.load %arg1[%c3_81, %c0_82, %c128_83] : memref<8x2x256xf32, #tpu.memory_space<vmem>>, vector<1x2x128xf32>
    %267 = vector.shape_cast %266 : vector<1x2x128xf32> to vector<2x128xf32>
    %cst_84 = arith.constant dense<0.000000e+00> : vector<2x128xf32>
    %268 = tpu.matmul %255, %1, %cst_84 {dimension_numbers = #tpu.dot_dimension_numbers<[1], [0], [0], [1], [0, 0, 1, 1], [], []>} : vector<2x32xf32>, vector<32x128xf32>, vector<2x128xf32> -> vector<2x128xf32>
    %269 = arith.addf %267, %268 : vector<2x128xf32>
    %270 = vector.extract_strided_slice %265 {offsets = [0, 0], sizes = [2, 32], strides = [1, 1]} : vector<2x128xf32> to vector<2x32xf32>
    %271 = arith.negf %270 : vector<2x32xf32>
    %272 = math.exp %271 : vector<2x32xf32>
    %cst_85 = arith.constant 1.000000e+00 : f32
    %273 = vector.broadcast %cst_85 : f32 to vector<2x32xf32>
    %274 = arith.addf %273, %272 : vector<2x32xf32>
    %275 = arith.divf %273, %274 : vector<2x32xf32>
    %276 = vector.extract_strided_slice %265 {offsets = [0, 32], sizes = [2, 32], strides = [1, 1]} : vector<2x128xf32> to vector<2x32xf32>
    %277 = arith.negf %276 : vector<2x32xf32>
    %278 = math.exp %277 : vector<2x32xf32>
    %cst_86 = arith.constant 1.000000e+00 : f32
    %279 = vector.broadcast %cst_86 : f32 to vector<2x32xf32>
    %280 = arith.addf %279, %278 : vector<2x32xf32>
    %281 = arith.divf %279, %280 : vector<2x32xf32>
    %282 = vector.extract_strided_slice %265 {offsets = [0, 64], sizes = [2, 32], strides = [1, 1]} : vector<2x128xf32> to vector<2x32xf32>
    %283 = math.tanh %282 : vector<2x32xf32>
    %284 = vector.extract_strided_slice %265 {offsets = [0, 96], sizes = [2, 32], strides = [1, 1]} : vector<2x128xf32> to vector<2x32xf32>
    %285 = arith.negf %284 : vector<2x32xf32>
    %286 = math.exp %285 : vector<2x32xf32>
    %cst_87 = arith.constant 1.000000e+00 : f32
    %287 = vector.broadcast %cst_87 : f32 to vector<2x32xf32>
    %288 = arith.addf %287, %286 : vector<2x32xf32>
    %289 = arith.divf %287, %288 : vector<2x32xf32>
    %290 = arith.mulf %281, %228 : vector<2x32xf32>
    %291 = arith.mulf %275, %283 : vector<2x32xf32>
    %292 = arith.addf %290, %291 : vector<2x32xf32>
    %293 = math.tanh %292 : vector<2x32xf32>
    %294 = arith.mulf %289, %293 : vector<2x32xf32>
    %295 = vector.extract_strided_slice %269 {offsets = [0, 0], sizes = [2, 32], strides = [1, 1]} : vector<2x128xf32> to vector<2x32xf32>
    %296 = arith.negf %295 : vector<2x32xf32>
    %297 = math.exp %296 : vector<2x32xf32>
    %cst_88 = arith.constant 1.000000e+00 : f32
    %298 = vector.broadcast %cst_88 : f32 to vector<2x32xf32>
    %299 = arith.addf %298, %297 : vector<2x32xf32>
    %300 = arith.divf %298, %299 : vector<2x32xf32>
    %301 = vector.extract_strided_slice %269 {offsets = [0, 32], sizes = [2, 32], strides = [1, 1]} : vector<2x128xf32> to vector<2x32xf32>
    %302 = arith.negf %301 : vector<2x32xf32>
    %303 = math.exp %302 : vector<2x32xf32>
    %cst_89 = arith.constant 1.000000e+00 : f32
    %304 = vector.broadcast %cst_89 : f32 to vector<2x32xf32>
    %305 = arith.addf %304, %303 : vector<2x32xf32>
    %306 = arith.divf %304, %305 : vector<2x32xf32>
    %307 = vector.extract_strided_slice %269 {offsets = [0, 64], sizes = [2, 32], strides = [1, 1]} : vector<2x128xf32> to vector<2x32xf32>
    %308 = math.tanh %307 : vector<2x32xf32>
    %309 = vector.extract_strided_slice %269 {offsets = [0, 96], sizes = [2, 32], strides = [1, 1]} : vector<2x128xf32> to vector<2x32xf32>
    %310 = arith.negf %309 : vector<2x32xf32>
    %311 = math.exp %310 : vector<2x32xf32>
    %cst_90 = arith.constant 1.000000e+00 : f32
    %312 = vector.broadcast %cst_90 : f32 to vector<2x32xf32>
    %313 = arith.addf %312, %311 : vector<2x32xf32>
    %314 = arith.divf %312, %313 : vector<2x32xf32>
    %315 = arith.mulf %306, %253 : vector<2x32xf32>
    %316 = arith.mulf %300, %308 : vector<2x32xf32>
    %317 = arith.addf %315, %316 : vector<2x32xf32>
    %318 = math.tanh %317 : vector<2x32xf32>
    %319 = arith.mulf %314, %318 : vector<2x32xf32>
    %c4_91 = arith.constant 4 : index
    %c0_92 = arith.constant 0 : index
    %c0_93 = arith.constant 0 : index
    %320 = vector.load %arg4[%c4_91, %c0_92, %c0_93] : memref<8x2x64xf32, #tpu.memory_space<vmem>>, vector<1x2x32xf32>
    %321 = vector.shape_cast %320 : vector<1x2x32xf32> to vector<2x32xf32>
    %322 = vector.shape_cast %294 : vector<2x32xf32> to vector<1x2x32xf32>
    tpu.vector_store %arg4[%c4_91, %c0_92, %c0_93], %322 {strides = array<i32>} : memref<8x2x64xf32, #tpu.memory_space<vmem>>, vector<1x2x32xf32>,
    %c3_94 = arith.constant 3 : index
    %c0_95 = arith.constant 0 : index
    %c32_96 = arith.constant 32 : index
    %323 = vector.load %arg4[%c3_94, %c0_95, %c32_96] : memref<8x2x64xf32, #tpu.memory_space<vmem>>, vector<1x2x32xf32>
    %324 = vector.shape_cast %323 : vector<1x2x32xf32> to vector<2x32xf32>
    %325 = vector.shape_cast %319 : vector<2x32xf32> to vector<1x2x32xf32>
    tpu.vector_store %arg4[%c3_94, %c0_95, %c32_96], %325 {strides = array<i32>} : memref<8x2x64xf32, #tpu.memory_space<vmem>>, vector<1x2x32xf32>,
    %c5_97 = arith.constant 5 : index
    %c0_98 = arith.constant 0 : index
    %c0_99 = arith.constant 0 : index
    %326 = vector.load %arg1[%c5_97, %c0_98, %c0_99] : memref<8x2x256xf32, #tpu.memory_space<vmem>>, vector<1x2x128xf32>
    %327 = vector.shape_cast %326 : vector<1x2x128xf32> to vector<2x128xf32>
    %cst_100 = arith.constant dense<0.000000e+00> : vector<2x128xf32>
    %328 = tpu.matmul %294, %0, %cst_100 {dimension_numbers = #tpu.dot_dimension_numbers<[1], [0], [0], [1], [0, 0, 1, 1], [], []>} : vector<2x32xf32>, vector<32x128xf32>, vector<2x128xf32> -> vector<2x128xf32>
    %329 = arith.addf %327, %328 : vector<2x128xf32>
    %c2_101 = arith.constant 2 : index
    %c0_102 = arith.constant 0 : index
    %c128_103 = arith.constant 128 : index
    %330 = vector.load %arg1[%c2_101, %c0_102, %c128_103] : memref<8x2x256xf32, #tpu.memory_space<vmem>>, vector<1x2x128xf32>
    %331 = vector.shape_cast %330 : vector<1x2x128xf32> to vector<2x128xf32>
    %cst_104 = arith.constant dense<0.000000e+00> : vector<2x128xf32>
    %332 = tpu.matmul %319, %1, %cst_104 {dimension_numbers = #tpu.dot_dimension_numbers<[1], [0], [0], [1], [0, 0, 1, 1], [], []>} : vector<2x32xf32>, vector<32x128xf32>, vector<2x128xf32> -> vector<2x128xf32>
    %333 = arith.addf %331, %332 : vector<2x128xf32>
    %334 = vector.extract_strided_slice %329 {offsets = [0, 0], sizes = [2, 32], strides = [1, 1]} : vector<2x128xf32> to vector<2x32xf32>
    %335 = arith.negf %334 : vector<2x32xf32>
    %336 = math.exp %335 : vector<2x32xf32>
    %cst_105 = arith.constant 1.000000e+00 : f32
    %337 = vector.broadcast %cst_105 : f32 to vector<2x32xf32>
    %338 = arith.addf %337, %336 : vector<2x32xf32>
    %339 = arith.divf %337, %338 : vector<2x32xf32>
    %340 = vector.extract_strided_slice %329 {offsets = [0, 32], sizes = [2, 32], strides = [1, 1]} : vector<2x128xf32> to vector<2x32xf32>
    %341 = arith.negf %340 : vector<2x32xf32>
    %342 = math.exp %341 : vector<2x32xf32>
    %cst_106 = arith.constant 1.000000e+00 : f32
    %343 = vector.broadcast %cst_106 : f32 to vector<2x32xf32>
    %344 = arith.addf %343, %342 : vector<2x32xf32>
    %345 = arith.divf %343, %344 : vector<2x32xf32>
    %346 = vector.extract_strided_slice %329 {offsets = [0, 64], sizes = [2, 32], strides = [1, 1]} : vector<2x128xf32> to vector<2x32xf32>
    %347 = math.tanh %346 : vector<2x32xf32>
    %348 = vector.extract_strided_slice %329 {offsets = [0, 96], sizes = [2, 32], strides = [1, 1]} : vector<2x128xf32> to vector<2x32xf32>
    %349 = arith.negf %348 : vector<2x32xf32>
    %350 = math.exp %349 : vector<2x32xf32>
    %cst_107 = arith.constant 1.000000e+00 : f32
    %351 = vector.broadcast %cst_107 : f32 to vector<2x32xf32>
    %352 = arith.addf %351, %350 : vector<2x32xf32>
    %353 = arith.divf %351, %352 : vector<2x32xf32>
    %354 = arith.mulf %345, %292 : vector<2x32xf32>
    %355 = arith.mulf %339, %347 : vector<2x32xf32>
    %356 = arith.addf %354, %355 : vector<2x32xf32>
    %357 = math.tanh %356 : vector<2x32xf32>
    %358 = arith.mulf %353, %357 : vector<2x32xf32>
    %359 = vector.extract_strided_slice %333 {offsets = [0, 0], sizes = [2, 32], strides = [1, 1]} : vector<2x128xf32> to vector<2x32xf32>
    %360 = arith.negf %359 : vector<2x32xf32>
    %361 = math.exp %360 : vector<2x32xf32>
    %cst_108 = arith.constant 1.000000e+00 : f32
    %362 = vector.broadcast %cst_108 : f32 to vector<2x32xf32>
    %363 = arith.addf %362, %361 : vector<2x32xf32>
    %364 = arith.divf %362, %363 : vector<2x32xf32>
    %365 = vector.extract_strided_slice %333 {offsets = [0, 32], sizes = [2, 32], strides = [1, 1]} : vector<2x128xf32> to vector<2x32xf32>
    %366 = arith.negf %365 : vector<2x32xf32>
    %367 = math.exp %366 : vector<2x32xf32>
    %cst_109 = arith.constant 1.000000e+00 : f32
    %368 = vector.broadcast %cst_109 : f32 to vector<2x32xf32>
    %369 = arith.addf %368, %367 : vector<2x32xf32>
    %370 = arith.divf %368, %369 : vector<2x32xf32>
    %371 = vector.extract_strided_slice %333 {offsets = [0, 64], sizes = [2, 32], strides = [1, 1]} : vector<2x128xf32> to vector<2x32xf32>
    %372 = math.tanh %371 : vector<2x32xf32>
    %373 = vector.extract_strided_slice %333 {offsets = [0, 96], sizes = [2, 32], strides = [1, 1]} : vector<2x128xf32> to vector<2x32xf32>
    %374 = arith.negf %373 : vector<2x32xf32>
    %375 = math.exp %374 : vector<2x32xf32>
    %cst_110 = arith.constant 1.000000e+00 : f32
    %376 = vector.broadcast %cst_110 : f32 to vector<2x32xf32>
    %377 = arith.addf %376, %375 : vector<2x32xf32>
    %378 = arith.divf %376, %377 : vector<2x32xf32>
    %379 = arith.mulf %370, %317 : vector<2x32xf32>
    %380 = arith.mulf %364, %372 : vector<2x32xf32>
    %381 = arith.addf %379, %380 : vector<2x32xf32>
    %382 = math.tanh %381 : vector<2x32xf32>
    %383 = arith.mulf %378, %382 : vector<2x32xf32>
    %c5_111 = arith.constant 5 : index
    %c0_112 = arith.constant 0 : index
    %c0_113 = arith.constant 0 : index
    %384 = vector.load %arg4[%c5_111, %c0_112, %c0_113] : memref<8x2x64xf32, #tpu.memory_space<vmem>>, vector<1x2x32xf32>
    %385 = vector.shape_cast %384 : vector<1x2x32xf32> to vector<2x32xf32>
    %386 = vector.shape_cast %358 : vector<2x32xf32> to vector<1x2x32xf32>
    tpu.vector_store %arg4[%c5_111, %c0_112, %c0_113], %386 {strides = array<i32>} : memref<8x2x64xf32, #tpu.memory_space<vmem>>, vector<1x2x32xf32>,
    %c2_114 = arith.constant 2 : index
    %c0_115 = arith.constant 0 : index
    %c32_116 = arith.constant 32 : index
    %387 = vector.load %arg4[%c2_114, %c0_115, %c32_116] : memref<8x2x64xf32, #tpu.memory_space<vmem>>, vector<1x2x32xf32>
    %388 = vector.shape_cast %387 : vector<1x2x32xf32> to vector<2x32xf32>
    %389 = vector.shape_cast %383 : vector<2x32xf32> to vector<1x2x32xf32>
    tpu.vector_store %arg4[%c2_114, %c0_115, %c32_116], %389 {strides = array<i32>} : memref<8x2x64xf32, #tpu.memory_space<vmem>>, vector<1x2x32xf32>,
    %c6_117 = arith.constant 6 : index
    %c0_118 = arith.constant 0 : index
    %c0_119 = arith.constant 0 : index
    %390 = vector.load %arg1[%c6_117, %c0_118, %c0_119] : memref<8x2x256xf32, #tpu.memory_space<vmem>>, vector<1x2x128xf32>
    %391 = vector.shape_cast %390 : vector<1x2x128xf32> to vector<2x128xf32>
    %cst_120 = arith.constant dense<0.000000e+00> : vector<2x128xf32>
    %392 = tpu.matmul %358, %0, %cst_120 {dimension_numbers = #tpu.dot_dimension_numbers<[1], [0], [0], [1], [0, 0, 1, 1], [], []>} : vector<2x32xf32>, vector<32x128xf32>, vector<2x128xf32> -> vector<2x128xf32>
    %393 = arith.addf %391, %392 : vector<2x128xf32>
    %c1_121 = arith.constant 1 : index
    %c0_122 = arith.constant 0 : index
    %c128_123 = arith.constant 128 : index
    %394 = vector.load %arg1[%c1_121, %c0_122, %c128_123] : memref<8x2x256xf32, #tpu.memory_space<vmem>>, vector<1x2x128xf32>
    %395 = vector.shape_cast %394 : vector<1x2x128xf32> to vector<2x128xf32>
    %cst_124 = arith.constant dense<0.000000e+00> : vector<2x128xf32>
    %396 = tpu.matmul %383, %1, %cst_124 {dimension_numbers = #tpu.dot_dimension_numbers<[1], [0], [0], [1], [0, 0, 1, 1], [], []>} : vector<2x32xf32>, vector<32x128xf32>, vector<2x128xf32> -> vector<2x128xf32>
    %397 = arith.addf %395, %396 : vector<2x128xf32>
    %398 = vector.extract_strided_slice %393 {offsets = [0, 0], sizes = [2, 32], strides = [1, 1]} : vector<2x128xf32> to vector<2x32xf32>
    %399 = arith.negf %398 : vector<2x32xf32>
    %400 = math.exp %399 : vector<2x32xf32>
    %cst_125 = arith.constant 1.000000e+00 : f32
    %401 = vector.broadcast %cst_125 : f32 to vector<2x32xf32>
    %402 = arith.addf %401, %400 : vector<2x32xf32>
    %403 = arith.divf %401, %402 : vector<2x32xf32>
    %404 = vector.extract_strided_slice %393 {offsets = [0, 32], sizes = [2, 32], strides = [1, 1]} : vector<2x128xf32> to vector<2x32xf32>
    %405 = arith.negf %404 : vector<2x32xf32>
    %406 = math.exp %405 : vector<2x32xf32>
    %cst_126 = arith.constant 1.000000e+00 : f32
    %407 = vector.broadcast %cst_126 : f32 to vector<2x32xf32>
    %408 = arith.addf %407, %406 : vector<2x32xf32>
    %409 = arith.divf %407, %408 : vector<2x32xf32>
    %410 = vector.extract_strided_slice %393 {offsets = [0, 64], sizes = [2, 32], strides = [1, 1]} : vector<2x128xf32> to vector<2x32xf32>
    %411 = math.tanh %410 : vector<2x32xf32>
    %412 = vector.extract_strided_slice %393 {offsets = [0, 96], sizes = [2, 32], strides = [1, 1]} : vector<2x128xf32> to vector<2x32xf32>
    %413 = arith.negf %412 : vector<2x32xf32>
    %414 = math.exp %413 : vector<2x32xf32>
    %cst_127 = arith.constant 1.000000e+00 : f32
    %415 = vector.broadcast %cst_127 : f32 to vector<2x32xf32>
    %416 = arith.addf %415, %414 : vector<2x32xf32>
    %417 = arith.divf %415, %416 : vector<2x32xf32>
    %418 = arith.mulf %409, %356 : vector<2x32xf32>
    %419 = arith.mulf %403, %411 : vector<2x32xf32>
    %420 = arith.addf %418, %419 : vector<2x32xf32>
    %421 = math.tanh %420 : vector<2x32xf32>
    %422 = arith.mulf %417, %421 : vector<2x32xf32>
    %423 = vector.extract_strided_slice %397 {offsets = [0, 0], sizes = [2, 32], strides = [1, 1]} : vector<2x128xf32> to vector<2x32xf32>
    %424 = arith.negf %423 : vector<2x32xf32>
    %425 = math.exp %424 : vector<2x32xf32>
    %cst_128 = arith.constant 1.000000e+00 : f32
    %426 = vector.broadcast %cst_128 : f32 to vector<2x32xf32>
    %427 = arith.addf %426, %425 : vector<2x32xf32>
    %428 = arith.divf %426, %427 : vector<2x32xf32>
    %429 = vector.extract_strided_slice %397 {offsets = [0, 32], sizes = [2, 32], strides = [1, 1]} : vector<2x128xf32> to vector<2x32xf32>
    %430 = arith.negf %429 : vector<2x32xf32>
    %431 = math.exp %430 : vector<2x32xf32>
    %cst_129 = arith.constant 1.000000e+00 : f32
    %432 = vector.broadcast %cst_129 : f32 to vector<2x32xf32>
    %433 = arith.addf %432, %431 : vector<2x32xf32>
    %434 = arith.divf %432, %433 : vector<2x32xf32>
    %435 = vector.extract_strided_slice %397 {offsets = [0, 64], sizes = [2, 32], strides = [1, 1]} : vector<2x128xf32> to vector<2x32xf32>
    %436 = math.tanh %435 : vector<2x32xf32>
    %437 = vector.extract_strided_slice %397 {offsets = [0, 96], sizes = [2, 32], strides = [1, 1]} : vector<2x128xf32> to vector<2x32xf32>
    %438 = arith.negf %437 : vector<2x32xf32>
    %439 = math.exp %438 : vector<2x32xf32>
    %cst_130 = arith.constant 1.000000e+00 : f32
    %440 = vector.broadcast %cst_130 : f32 to vector<2x32xf32>
    %441 = arith.addf %440, %439 : vector<2x32xf32>
    %442 = arith.divf %440, %441 : vector<2x32xf32>
    %443 = arith.mulf %434, %381 : vector<2x32xf32>
    %444 = arith.mulf %428, %436 : vector<2x32xf32>
    %445 = arith.addf %443, %444 : vector<2x32xf32>
    %446 = math.tanh %445 : vector<2x32xf32>
    %447 = arith.mulf %442, %446 : vector<2x32xf32>
    %c6_131 = arith.constant 6 : index
    %c0_132 = arith.constant 0 : index
    %c0_133 = arith.constant 0 : index
    %448 = vector.load %arg4[%c6_131, %c0_132, %c0_133] : memref<8x2x64xf32, #tpu.memory_space<vmem>>, vector<1x2x32xf32>
    %449 = vector.shape_cast %448 : vector<1x2x32xf32> to vector<2x32xf32>
    %450 = vector.shape_cast %422 : vector<2x32xf32> to vector<1x2x32xf32>
    tpu.vector_store %arg4[%c6_131, %c0_132, %c0_133], %450 {strides = array<i32>} : memref<8x2x64xf32, #tpu.memory_space<vmem>>, vector<1x2x32xf32>,
    %c1_134 = arith.constant 1 : index
    %c0_135 = arith.constant 0 : index
    %c32_136 = arith.constant 32 : index
    %451 = vector.load %arg4[%c1_134, %c0_135, %c32_136] : memref<8x2x64xf32, #tpu.memory_space<vmem>>, vector<1x2x32xf32>
    %452 = vector.shape_cast %451 : vector<1x2x32xf32> to vector<2x32xf32>
    %453 = vector.shape_cast %447 : vector<2x32xf32> to vector<1x2x32xf32>
    tpu.vector_store %arg4[%c1_134, %c0_135, %c32_136], %453 {strides = array<i32>} : memref<8x2x64xf32, #tpu.memory_space<vmem>>, vector<1x2x32xf32>,
    %c7_137 = arith.constant 7 : index
    %c0_138 = arith.constant 0 : index
    %c0_139 = arith.constant 0 : index
    %454 = vector.load %arg1[%c7_137, %c0_138, %c0_139] : memref<8x2x256xf32, #tpu.memory_space<vmem>>, vector<1x2x128xf32>
    %455 = vector.shape_cast %454 : vector<1x2x128xf32> to vector<2x128xf32>
    %cst_140 = arith.constant dense<0.000000e+00> : vector<2x128xf32>
    %456 = tpu.matmul %422, %0, %cst_140 {dimension_numbers = #tpu.dot_dimension_numbers<[1], [0], [0], [1], [0, 0, 1, 1], [], []>} : vector<2x32xf32>, vector<32x128xf32>, vector<2x128xf32> -> vector<2x128xf32>
    %457 = arith.addf %455, %456 : vector<2x128xf32>
    %c0_141 = arith.constant 0 : index
    %c0_142 = arith.constant 0 : index
    %c128_143 = arith.constant 128 : index
    %458 = vector.load %arg1[%c0_141, %c0_142, %c128_143] : memref<8x2x256xf32, #tpu.memory_space<vmem>>, vector<1x2x128xf32>
    %459 = vector.shape_cast %458 : vector<1x2x128xf32> to vector<2x128xf32>
    %cst_144 = arith.constant dense<0.000000e+00> : vector<2x128xf32>
    %460 = tpu.matmul %447, %1, %cst_144 {dimension_numbers = #tpu.dot_dimension_numbers<[1], [0], [0], [1], [0, 0, 1, 1], [], []>} : vector<2x32xf32>, vector<32x128xf32>, vector<2x128xf32> -> vector<2x128xf32>
    %461 = arith.addf %459, %460 : vector<2x128xf32>
    %462 = vector.extract_strided_slice %457 {offsets = [0, 0], sizes = [2, 32], strides = [1, 1]} : vector<2x128xf32> to vector<2x32xf32>
    %463 = arith.negf %462 : vector<2x32xf32>
    %464 = math.exp %463 : vector<2x32xf32>
    %cst_145 = arith.constant 1.000000e+00 : f32
    %465 = vector.broadcast %cst_145 : f32 to vector<2x32xf32>
    %466 = arith.addf %465, %464 : vector<2x32xf32>
    %467 = arith.divf %465, %466 : vector<2x32xf32>
    %468 = vector.extract_strided_slice %457 {offsets = [0, 32], sizes = [2, 32], strides = [1, 1]} : vector<2x128xf32> to vector<2x32xf32>
    %469 = arith.negf %468 : vector<2x32xf32>
    %470 = math.exp %469 : vector<2x32xf32>
    %cst_146 = arith.constant 1.000000e+00 : f32
    %471 = vector.broadcast %cst_146 : f32 to vector<2x32xf32>
    %472 = arith.addf %471, %470 : vector<2x32xf32>
    %473 = arith.divf %471, %472 : vector<2x32xf32>
    %474 = vector.extract_strided_slice %457 {offsets = [0, 64], sizes = [2, 32], strides = [1, 1]} : vector<2x128xf32> to vector<2x32xf32>
    %475 = math.tanh %474 : vector<2x32xf32>
    %476 = vector.extract_strided_slice %457 {offsets = [0, 96], sizes = [2, 32], strides = [1, 1]} : vector<2x128xf32> to vector<2x32xf32>
    %477 = arith.negf %476 : vector<2x32xf32>
    %478 = math.exp %477 : vector<2x32xf32>
    %cst_147 = arith.constant 1.000000e+00 : f32
    %479 = vector.broadcast %cst_147 : f32 to vector<2x32xf32>
    %480 = arith.addf %479, %478 : vector<2x32xf32>
    %481 = arith.divf %479, %480 : vector<2x32xf32>
    %482 = arith.mulf %473, %420 : vector<2x32xf32>
    %483 = arith.mulf %467, %475 : vector<2x32xf32>
    %484 = arith.addf %482, %483 : vector<2x32xf32>
    %485 = math.tanh %484 : vector<2x32xf32>
    %486 = arith.mulf %481, %485 : vector<2x32xf32>
    %487 = vector.extract_strided_slice %461 {offsets = [0, 0], sizes = [2, 32], strides = [1, 1]} : vector<2x128xf32> to vector<2x32xf32>
    %488 = arith.negf %487 : vector<2x32xf32>
    %489 = math.exp %488 : vector<2x32xf32>
    %cst_148 = arith.constant 1.000000e+00 : f32
    %490 = vector.broadcast %cst_148 : f32 to vector<2x32xf32>
    %491 = arith.addf %490, %489 : vector<2x32xf32>
    %492 = arith.divf %490, %491 : vector<2x32xf32>
    %493 = vector.extract_strided_slice %461 {offsets = [0, 32], sizes = [2, 32], strides = [1, 1]} : vector<2x128xf32> to vector<2x32xf32>
    %494 = arith.negf %493 : vector<2x32xf32>
    %495 = math.exp %494 : vector<2x32xf32>
    %cst_149 = arith.constant 1.000000e+00 : f32
    %496 = vector.broadcast %cst_149 : f32 to vector<2x32xf32>
    %497 = arith.addf %496, %495 : vector<2x32xf32>
    %498 = arith.divf %496, %497 : vector<2x32xf32>
    %499 = vector.extract_strided_slice %461 {offsets = [0, 64], sizes = [2, 32], strides = [1, 1]} : vector<2x128xf32> to vector<2x32xf32>
    %500 = math.tanh %499 : vector<2x32xf32>
    %501 = vector.extract_strided_slice %461 {offsets = [0, 96], sizes = [2, 32], strides = [1, 1]} : vector<2x128xf32> to vector<2x32xf32>
    %502 = arith.negf %501 : vector<2x32xf32>
    %503 = math.exp %502 : vector<2x32xf32>
    %cst_150 = arith.constant 1.000000e+00 : f32
    %504 = vector.broadcast %cst_150 : f32 to vector<2x32xf32>
    %505 = arith.addf %504, %503 : vector<2x32xf32>
    %506 = arith.divf %504, %505 : vector<2x32xf32>
    %507 = arith.mulf %498, %445 : vector<2x32xf32>
    %508 = arith.mulf %492, %500 : vector<2x32xf32>
    %509 = arith.addf %507, %508 : vector<2x32xf32>
    %510 = math.tanh %509 : vector<2x32xf32>
    %511 = arith.mulf %506, %510 : vector<2x32xf32>
    %c7_151 = arith.constant 7 : index
    %c0_152 = arith.constant 0 : index
    %c0_153 = arith.constant 0 : index
    %512 = vector.load %arg4[%c7_151, %c0_152, %c0_153] : memref<8x2x64xf32, #tpu.memory_space<vmem>>, vector<1x2x32xf32>
    %513 = vector.shape_cast %512 : vector<1x2x32xf32> to vector<2x32xf32>
    %514 = vector.shape_cast %486 : vector<2x32xf32> to vector<1x2x32xf32>
    tpu.vector_store %arg4[%c7_151, %c0_152, %c0_153], %514 {strides = array<i32>} : memref<8x2x64xf32, #tpu.memory_space<vmem>>, vector<1x2x32xf32>,
    %c0_154 = arith.constant 0 : index
    %c0_155 = arith.constant 0 : index
    %c32_156 = arith.constant 32 : index
    %515 = vector.load %arg4[%c0_154, %c0_155, %c32_156] : memref<8x2x64xf32, #tpu.memory_space<vmem>>, vector<1x2x32xf32>
    %516 = vector.shape_cast %515 : vector<1x2x32xf32> to vector<2x32xf32>
    %517 = vector.shape_cast %511 : vector<2x32xf32> to vector<1x2x32xf32>
    tpu.vector_store %arg4[%c0_154, %c0_155, %c32_156], %517 {strides = array<i32>} : memref<8x2x64xf32, #tpu.memory_space<vmem>>, vector<1x2x32xf32>,
    return
  }
  func.func @transform_0(%arg0: i32) -> (i32, i32, i32) {
    %c0_i32 = arith.constant 0 : i32
    %c0_i32_0 = arith.constant 0 : i32
    %c0_i32_1 = arith.constant 0 : i32
    %c0_i32_2 = arith.constant 0 : i32
    return %c0_i32, %c0_i32_0, %c0_i32_1 : i32, i32, i32
  }
  func.func @transform_1(%arg0: i32) -> (i32, i32) {
    %c0_i32 = arith.constant 0 : i32
    %c0_i32_0 = arith.constant 0 : i32
    %c0_i32_1 = arith.constant 0 : i32
    return %c0_i32, %c0_i32_0 : i32, i32
  }
  func.func @transform_2(%arg0: i32) -> (i32, i32) {
    %c0_i32 = arith.constant 0 : i32
    %c0_i32_0 = arith.constant 0 : i32
    %c0_i32_1 = arith.constant 0 : i32
    return %c0_i32, %c0_i32_0 : i32, i32
  }
  func.func @transform_3(%arg0: i32) -> (i32, i32, i32) {
    %c0_i32 = arith.constant 0 : i32
    %c0_i32_0 = arith.constant 0 : i32
    %c0_i32_1 = arith.constant 0 : i32
    %c0_i32_2 = arith.constant 0 : i32
    return %c0_i32, %c0_i32_0, %c0_i32_1 : i32, i32, i32
  }
}

module attributes {stable_mosaic.version = 11 : i64} {
  func.func @_gates_kernel(%arg0: i32, %arg1: memref<16x64xf32, #tpu.memory_space<vmem>>, %arg2: memref<64x256xf32, #tpu.memory_space<vmem>>, %arg3: memref<1x256xf32, #tpu.memory_space<vmem>>, %arg4: memref<16x256xf32, #tpu.memory_space<vmem>>) attributes {dimension_semantics = [#tpu.dimension_semantics<parallel>], iteration_bounds = array<i64: 1>, scalar_prefetch = 0 : i64, scratch_operands = 0 : i64, tpu.core_type = #tpu.core_type<tc>, window_params = [{transform_indices = @transform_0, window_bounds = array<i64: 16, 64>}, {pipeline_mode = #tpu.pipeline_mode<synchronous>, transform_indices = @transform_1, window_bounds = array<i64: 64, 256>}, {pipeline_mode = #tpu.pipeline_mode<synchronous>, transform_indices = @transform_2, window_bounds = array<i64: 1, 256>}, {transform_indices = @transform_3, window_bounds = array<i64: 16, 256>}]} {
    %c0 = arith.constant 0 : index
    %c0_0 = arith.constant 0 : index
    %0 = vector.load %arg1[%c0, %c0_0] : memref<16x64xf32, #tpu.memory_space<vmem>>, vector<16x64xf32>
    %c0_1 = arith.constant 0 : index
    %c0_2 = arith.constant 0 : index
    %1 = vector.load %arg2[%c0_1, %c0_2] : memref<64x256xf32, #tpu.memory_space<vmem>>, vector<64x256xf32>
    %cst = arith.constant dense<0.000000e+00> : vector<16x256xf32>
    %2 = tpu.matmul %0, %1, %cst {dimension_numbers = #tpu.dot_dimension_numbers<[1], [0], [0], [1], [0, 0, 1, 1], [], []>} : vector<16x64xf32>, vector<64x256xf32>, vector<16x256xf32> -> vector<16x256xf32>
    %c0_3 = arith.constant 0 : index
    %c0_4 = arith.constant 0 : index
    %3 = vector.load %arg3[%c0_3, %c0_4] : memref<1x256xf32, #tpu.memory_space<vmem>>, vector<1x256xf32>
    %4 = vector.broadcast %3 : vector<1x256xf32> to vector<16x256xf32>
    %5 = arith.addf %2, %4 : vector<16x256xf32>
    %c0_5 = arith.constant 0 : index
    %c0_6 = arith.constant 0 : index
    %6 = vector.load %arg4[%c0_5, %c0_6] : memref<16x256xf32, #tpu.memory_space<vmem>>, vector<16x256xf32>
    tpu.vector_store %arg4[%c0_5, %c0_6], %5 {strides = array<i32>} : memref<16x256xf32, #tpu.memory_space<vmem>>, vector<16x256xf32>,
    return
  }
  func.func @transform_0(%arg0: i32) -> (i32, i32) {
    %c0_i32 = arith.constant 0 : i32
    %c0_i32_0 = arith.constant 0 : i32
    return %arg0, %c0_i32 : i32, i32
  }
  func.func @transform_1(%arg0: i32) -> (i32, i32) {
    %c0_i32 = arith.constant 0 : i32
    %c0_i32_0 = arith.constant 0 : i32
    %c0_i32_1 = arith.constant 0 : i32
    return %c0_i32, %c0_i32_0 : i32, i32
  }
  func.func @transform_2(%arg0: i32) -> (i32, i32) {
    %c0_i32 = arith.constant 0 : i32
    %c0_i32_0 = arith.constant 0 : i32
    %c0_i32_1 = arith.constant 0 : i32
    return %c0_i32, %c0_i32_0 : i32, i32
  }
  func.func @transform_3(%arg0: i32) -> (i32, i32) {
    %c0_i32 = arith.constant 0 : i32
    %c0_i32_0 = arith.constant 0 : i32
    return %arg0, %c0_i32 : i32, i32
  }
}

module attributes {stable_mosaic.version = 11 : i64} {
  func.func @_bilstm_kernel(%arg0: i32, %arg1: memref<8x2x256xf32, #tpu.memory_space<vmem>>, %arg2: memref<32x128xf32, #tpu.memory_space<vmem>>, %arg3: memref<32x128xf32, #tpu.memory_space<vmem>>, %arg4: memref<2x8x64xf32, #tpu.memory_space<vmem>>) attributes {dimension_semantics = [#tpu.dimension_semantics<arbitrary>], iteration_bounds = array<i64: 1>, scalar_prefetch = 0 : i64, scratch_operands = 0 : i64, tpu.core_type = #tpu.core_type<tc>, window_params = [{pipeline_mode = #tpu.pipeline_mode<synchronous>, transform_indices = @transform_0, window_bounds = array<i64: 8, 2, 256>}, {pipeline_mode = #tpu.pipeline_mode<synchronous>, transform_indices = @transform_1, window_bounds = array<i64: 32, 128>}, {pipeline_mode = #tpu.pipeline_mode<synchronous>, transform_indices = @transform_2, window_bounds = array<i64: 32, 128>}, {pipeline_mode = #tpu.pipeline_mode<synchronous>, transform_indices = @transform_3, window_bounds = array<i64: 2, 8, 64>}]} {
    %c0 = arith.constant 0 : index
    %c0_0 = arith.constant 0 : index
    %0 = vector.load %arg2[%c0, %c0_0] : memref<32x128xf32, #tpu.memory_space<vmem>>, vector<32x128xf32>
    %c0_1 = arith.constant 0 : index
    %c0_2 = arith.constant 0 : index
    %1 = vector.load %arg3[%c0_1, %c0_2] : memref<32x128xf32, #tpu.memory_space<vmem>>, vector<32x128xf32>
    %cst = arith.constant 0.000000e+00 : f32
    %2 = vector.broadcast %cst : f32 to vector<2x32xf32>
    %cst_3 = arith.constant 0.000000e+00 : f32
    %3 = vector.broadcast %cst_3 : f32 to vector<2x32xf32>
    %cst_4 = arith.constant 0.000000e+00 : f32
    %4 = vector.broadcast %cst_4 : f32 to vector<2x32xf32>
    %cst_5 = arith.constant 0.000000e+00 : f32
    %5 = vector.broadcast %cst_5 : f32 to vector<2x32xf32>
    %c0_6 = arith.constant 0 : index
    %c0_7 = arith.constant 0 : index
    %c0_8 = arith.constant 0 : index
    %6 = vector.load %arg1[%c0_6, %c0_7, %c0_8] : memref<8x2x256xf32, #tpu.memory_space<vmem>>, vector<1x2x128xf32>
    %7 = vector.shape_cast %6 : vector<1x2x128xf32> to vector<2x128xf32>
    %cst_9 = arith.constant dense<0.000000e+00> : vector<2x128xf32>
    %8 = tpu.matmul %2, %0, %cst_9 {dimension_numbers = #tpu.dot_dimension_numbers<[1], [0], [0], [1], [0, 0, 1, 1], [], []>} : vector<2x32xf32>, vector<32x128xf32>, vector<2x128xf32> -> vector<2x128xf32>
    %9 = arith.addf %7, %8 : vector<2x128xf32>
    %c7 = arith.constant 7 : index
    %c0_10 = arith.constant 0 : index
    %c128 = arith.constant 128 : index
    %10 = vector.load %arg1[%c7, %c0_10, %c128] : memref<8x2x256xf32, #tpu.memory_space<vmem>>, vector<1x2x128xf32>
    %11 = vector.shape_cast %10 : vector<1x2x128xf32> to vector<2x128xf32>
    %cst_11 = arith.constant dense<0.000000e+00> : vector<2x128xf32>
    %12 = tpu.matmul %4, %1, %cst_11 {dimension_numbers = #tpu.dot_dimension_numbers<[1], [0], [0], [1], [0, 0, 1, 1], [], []>} : vector<2x32xf32>, vector<32x128xf32>, vector<2x128xf32> -> vector<2x128xf32>
    %13 = arith.addf %11, %12 : vector<2x128xf32>
    %14 = vector.extract_strided_slice %9 {offsets = [0, 0], sizes = [2, 32], strides = [1, 1]} : vector<2x128xf32> to vector<2x32xf32>
    %15 = arith.negf %14 : vector<2x32xf32>
    %16 = math.exp %15 : vector<2x32xf32>
    %cst_12 = arith.constant 1.000000e+00 : f32
    %17 = vector.broadcast %cst_12 : f32 to vector<2x32xf32>
    %18 = arith.addf %17, %16 : vector<2x32xf32>
    %19 = arith.divf %17, %18 : vector<2x32xf32>
    %20 = vector.extract_strided_slice %9 {offsets = [0, 32], sizes = [2, 32], strides = [1, 1]} : vector<2x128xf32> to vector<2x32xf32>
    %21 = arith.negf %20 : vector<2x32xf32>
    %22 = math.exp %21 : vector<2x32xf32>
    %cst_13 = arith.constant 1.000000e+00 : f32
    %23 = vector.broadcast %cst_13 : f32 to vector<2x32xf32>
    %24 = arith.addf %23, %22 : vector<2x32xf32>
    %25 = arith.divf %23, %24 : vector<2x32xf32>
    %26 = vector.extract_strided_slice %9 {offsets = [0, 64], sizes = [2, 32], strides = [1, 1]} : vector<2x128xf32> to vector<2x32xf32>
    %27 = math.tanh %26 : vector<2x32xf32>
    %28 = vector.extract_strided_slice %9 {offsets = [0, 96], sizes = [2, 32], strides = [1, 1]} : vector<2x128xf32> to vector<2x32xf32>
    %29 = arith.negf %28 : vector<2x32xf32>
    %30 = math.exp %29 : vector<2x32xf32>
    %cst_14 = arith.constant 1.000000e+00 : f32
    %31 = vector.broadcast %cst_14 : f32 to vector<2x32xf32>
    %32 = arith.addf %31, %30 : vector<2x32xf32>
    %33 = arith.divf %31, %32 : vector<2x32xf32>
    %34 = arith.mulf %25, %3 : vector<2x32xf32>
    %35 = arith.mulf %19, %27 : vector<2x32xf32>
    %36 = arith.addf %34, %35 : vector<2x32xf32>
    %37 = math.tanh %36 : vector<2x32xf32>
    %38 = arith.mulf %33, %37 : vector<2x32xf32>
    %39 = vector.extract_strided_slice %13 {offsets = [0, 0], sizes = [2, 32], strides = [1, 1]} : vector<2x128xf32> to vector<2x32xf32>
    %40 = arith.negf %39 : vector<2x32xf32>
    %41 = math.exp %40 : vector<2x32xf32>
    %cst_15 = arith.constant 1.000000e+00 : f32
    %42 = vector.broadcast %cst_15 : f32 to vector<2x32xf32>
    %43 = arith.addf %42, %41 : vector<2x32xf32>
    %44 = arith.divf %42, %43 : vector<2x32xf32>
    %45 = vector.extract_strided_slice %13 {offsets = [0, 32], sizes = [2, 32], strides = [1, 1]} : vector<2x128xf32> to vector<2x32xf32>
    %46 = arith.negf %45 : vector<2x32xf32>
    %47 = math.exp %46 : vector<2x32xf32>
    %cst_16 = arith.constant 1.000000e+00 : f32
    %48 = vector.broadcast %cst_16 : f32 to vector<2x32xf32>
    %49 = arith.addf %48, %47 : vector<2x32xf32>
    %50 = arith.divf %48, %49 : vector<2x32xf32>
    %51 = vector.extract_strided_slice %13 {offsets = [0, 64], sizes = [2, 32], strides = [1, 1]} : vector<2x128xf32> to vector<2x32xf32>
    %52 = math.tanh %51 : vector<2x32xf32>
    %53 = vector.extract_strided_slice %13 {offsets = [0, 96], sizes = [2, 32], strides = [1, 1]} : vector<2x128xf32> to vector<2x32xf32>
    %54 = arith.negf %53 : vector<2x32xf32>
    %55 = math.exp %54 : vector<2x32xf32>
    %cst_17 = arith.constant 1.000000e+00 : f32
    %56 = vector.broadcast %cst_17 : f32 to vector<2x32xf32>
    %57 = arith.addf %56, %55 : vector<2x32xf32>
    %58 = arith.divf %56, %57 : vector<2x32xf32>
    %59 = arith.mulf %50, %5 : vector<2x32xf32>
    %60 = arith.mulf %44, %52 : vector<2x32xf32>
    %61 = arith.addf %59, %60 : vector<2x32xf32>
    %62 = math.tanh %61 : vector<2x32xf32>
    %63 = arith.mulf %58, %62 : vector<2x32xf32>
    %c0_18 = arith.constant 0 : index
    %c0_19 = arith.constant 0 : index
    %c0_20 = arith.constant 0 : index
    %64 = vector.load %arg4[%c0_18, %c0_19, %c0_20] : memref<2x8x64xf32, #tpu.memory_space<vmem>>, vector<2x1x32xf32>
    %65 = vector.shape_cast %64 : vector<2x1x32xf32> to vector<2x32xf32>
    %66 = vector.shape_cast %38 : vector<2x32xf32> to vector<2x1x32xf32>
    tpu.vector_store %arg4[%c0_18, %c0_19, %c0_20], %66 {strides = array<i32>} : memref<2x8x64xf32, #tpu.memory_space<vmem>>, vector<2x1x32xf32>,
    %c0_21 = arith.constant 0 : index
    %c7_22 = arith.constant 7 : index
    %c32 = arith.constant 32 : index
    %67 = vector.load %arg4[%c0_21, %c7_22, %c32] : memref<2x8x64xf32, #tpu.memory_space<vmem>>, vector<2x1x32xf32>
    %68 = vector.shape_cast %67 : vector<2x1x32xf32> to vector<2x32xf32>
    %69 = vector.shape_cast %63 : vector<2x32xf32> to vector<2x1x32xf32>
    tpu.vector_store %arg4[%c0_21, %c7_22, %c32], %69 {strides = array<i32>} : memref<2x8x64xf32, #tpu.memory_space<vmem>>, vector<2x1x32xf32>,
    %c1 = arith.constant 1 : index
    %c0_23 = arith.constant 0 : index
    %c0_24 = arith.constant 0 : index
    %70 = vector.load %arg1[%c1, %c0_23, %c0_24] : memref<8x2x256xf32, #tpu.memory_space<vmem>>, vector<1x2x128xf32>
    %71 = vector.shape_cast %70 : vector<1x2x128xf32> to vector<2x128xf32>
    %cst_25 = arith.constant dense<0.000000e+00> : vector<2x128xf32>
    %72 = tpu.matmul %38, %0, %cst_25 {dimension_numbers = #tpu.dot_dimension_numbers<[1], [0], [0], [1], [0, 0, 1, 1], [], []>} : vector<2x32xf32>, vector<32x128xf32>, vector<2x128xf32> -> vector<2x128xf32>
    %73 = arith.addf %71, %72 : vector<2x128xf32>
    %c6 = arith.constant 6 : index
    %c0_26 = arith.constant 0 : index
    %c128_27 = arith.constant 128 : index
    %74 = vector.load %arg1[%c6, %c0_26, %c128_27] : memref<8x2x256xf32, #tpu.memory_space<vmem>>, vector<1x2x128xf32>
    %75 = vector.shape_cast %74 : vector<1x2x128xf32> to vector<2x128xf32>
    %cst_28 = arith.constant dense<0.000000e+00> : vector<2x128xf32>
    %76 = tpu.matmul %63, %1, %cst_28 {dimension_numbers = #tpu.dot_dimension_numbers<[1], [0], [0], [1], [0, 0, 1, 1], [], []>} : vector<2x32xf32>, vector<32x128xf32>, vector<2x128xf32> -> vector<2x128xf32>
    %77 = arith.addf %75, %76 : vector<2x128xf32>
    %78 = vector.extract_strided_slice %73 {offsets = [0, 0], sizes = [2, 32], strides = [1, 1]} : vector<2x128xf32> to vector<2x32xf32>
    %79 = arith.negf %78 : vector<2x32xf32>
    %80 = math.exp %79 : vector<2x32xf32>
    %cst_29 = arith.constant 1.000000e+00 : f32
    %81 = vector.broadcast %cst_29 : f32 to vector<2x32xf32>
    %82 = arith.addf %81, %80 : vector<2x32xf32>
    %83 = arith.divf %81, %82 : vector<2x32xf32>
    %84 = vector.extract_strided_slice %73 {offsets = [0, 32], sizes = [2, 32], strides = [1, 1]} : vector<2x128xf32> to vector<2x32xf32>
    %85 = arith.negf %84 : vector<2x32xf32>
    %86 = math.exp %85 : vector<2x32xf32>
    %cst_30 = arith.constant 1.000000e+00 : f32
    %87 = vector.broadcast %cst_30 : f32 to vector<2x32xf32>
    %88 = arith.addf %87, %86 : vector<2x32xf32>
    %89 = arith.divf %87, %88 : vector<2x32xf32>
    %90 = vector.extract_strided_slice %73 {offsets = [0, 64], sizes = [2, 32], strides = [1, 1]} : vector<2x128xf32> to vector<2x32xf32>
    %91 = math.tanh %90 : vector<2x32xf32>
    %92 = vector.extract_strided_slice %73 {offsets = [0, 96], sizes = [2, 32], strides = [1, 1]} : vector<2x128xf32> to vector<2x32xf32>
    %93 = arith.negf %92 : vector<2x32xf32>
    %94 = math.exp %93 : vector<2x32xf32>
    %cst_31 = arith.constant 1.000000e+00 : f32
    %95 = vector.broadcast %cst_31 : f32 to vector<2x32xf32>
    %96 = arith.addf %95, %94 : vector<2x32xf32>
    %97 = arith.divf %95, %96 : vector<2x32xf32>
    %98 = arith.mulf %89, %36 : vector<2x32xf32>
    %99 = arith.mulf %83, %91 : vector<2x32xf32>
    %100 = arith.addf %98, %99 : vector<2x32xf32>
    %101 = math.tanh %100 : vector<2x32xf32>
    %102 = arith.mulf %97, %101 : vector<2x32xf32>
    %103 = vector.extract_strided_slice %77 {offsets = [0, 0], sizes = [2, 32], strides = [1, 1]} : vector<2x128xf32> to vector<2x32xf32>
    %104 = arith.negf %103 : vector<2x32xf32>
    %105 = math.exp %104 : vector<2x32xf32>
    %cst_32 = arith.constant 1.000000e+00 : f32
    %106 = vector.broadcast %cst_32 : f32 to vector<2x32xf32>
    %107 = arith.addf %106, %105 : vector<2x32xf32>
    %108 = arith.divf %106, %107 : vector<2x32xf32>
    %109 = vector.extract_strided_slice %77 {offsets = [0, 32], sizes = [2, 32], strides = [1, 1]} : vector<2x128xf32> to vector<2x32xf32>
    %110 = arith.negf %109 : vector<2x32xf32>
    %111 = math.exp %110 : vector<2x32xf32>
    %cst_33 = arith.constant 1.000000e+00 : f32
    %112 = vector.broadcast %cst_33 : f32 to vector<2x32xf32>
    %113 = arith.addf %112, %111 : vector<2x32xf32>
    %114 = arith.divf %112, %113 : vector<2x32xf32>
    %115 = vector.extract_strided_slice %77 {offsets = [0, 64], sizes = [2, 32], strides = [1, 1]} : vector<2x128xf32> to vector<2x32xf32>
    %116 = math.tanh %115 : vector<2x32xf32>
    %117 = vector.extract_strided_slice %77 {offsets = [0, 96], sizes = [2, 32], strides = [1, 1]} : vector<2x128xf32> to vector<2x32xf32>
    %118 = arith.negf %117 : vector<2x32xf32>
    %119 = math.exp %118 : vector<2x32xf32>
    %cst_34 = arith.constant 1.000000e+00 : f32
    %120 = vector.broadcast %cst_34 : f32 to vector<2x32xf32>
    %121 = arith.addf %120, %119 : vector<2x32xf32>
    %122 = arith.divf %120, %121 : vector<2x32xf32>
    %123 = arith.mulf %114, %61 : vector<2x32xf32>
    %124 = arith.mulf %108, %116 : vector<2x32xf32>
    %125 = arith.addf %123, %124 : vector<2x32xf32>
    %126 = math.tanh %125 : vector<2x32xf32>
    %127 = arith.mulf %122, %126 : vector<2x32xf32>
    %c0_35 = arith.constant 0 : index
    %c1_36 = arith.constant 1 : index
    %c0_37 = arith.constant 0 : index
    %128 = vector.load %arg4[%c0_35, %c1_36, %c0_37] : memref<2x8x64xf32, #tpu.memory_space<vmem>>, vector<2x1x32xf32>
    %129 = vector.shape_cast %128 : vector<2x1x32xf32> to vector<2x32xf32>
    %130 = vector.shape_cast %102 : vector<2x32xf32> to vector<2x1x32xf32>
    tpu.vector_store %arg4[%c0_35, %c1_36, %c0_37], %130 {strides = array<i32>} : memref<2x8x64xf32, #tpu.memory_space<vmem>>, vector<2x1x32xf32>,
    %c0_38 = arith.constant 0 : index
    %c6_39 = arith.constant 6 : index
    %c32_40 = arith.constant 32 : index
    %131 = vector.load %arg4[%c0_38, %c6_39, %c32_40] : memref<2x8x64xf32, #tpu.memory_space<vmem>>, vector<2x1x32xf32>
    %132 = vector.shape_cast %131 : vector<2x1x32xf32> to vector<2x32xf32>
    %133 = vector.shape_cast %127 : vector<2x32xf32> to vector<2x1x32xf32>
    tpu.vector_store %arg4[%c0_38, %c6_39, %c32_40], %133 {strides = array<i32>} : memref<2x8x64xf32, #tpu.memory_space<vmem>>, vector<2x1x32xf32>,
    %c2 = arith.constant 2 : index
    %c0_41 = arith.constant 0 : index
    %c0_42 = arith.constant 0 : index
    %134 = vector.load %arg1[%c2, %c0_41, %c0_42] : memref<8x2x256xf32, #tpu.memory_space<vmem>>, vector<1x2x128xf32>
    %135 = vector.shape_cast %134 : vector<1x2x128xf32> to vector<2x128xf32>
    %cst_43 = arith.constant dense<0.000000e+00> : vector<2x128xf32>
    %136 = tpu.matmul %102, %0, %cst_43 {dimension_numbers = #tpu.dot_dimension_numbers<[1], [0], [0], [1], [0, 0, 1, 1], [], []>} : vector<2x32xf32>, vector<32x128xf32>, vector<2x128xf32> -> vector<2x128xf32>
    %137 = arith.addf %135, %136 : vector<2x128xf32>
    %c5 = arith.constant 5 : index
    %c0_44 = arith.constant 0 : index
    %c128_45 = arith.constant 128 : index
    %138 = vector.load %arg1[%c5, %c0_44, %c128_45] : memref<8x2x256xf32, #tpu.memory_space<vmem>>, vector<1x2x128xf32>
    %139 = vector.shape_cast %138 : vector<1x2x128xf32> to vector<2x128xf32>
    %cst_46 = arith.constant dense<0.000000e+00> : vector<2x128xf32>
    %140 = tpu.matmul %127, %1, %cst_46 {dimension_numbers = #tpu.dot_dimension_numbers<[1], [0], [0], [1], [0, 0, 1, 1], [], []>} : vector<2x32xf32>, vector<32x128xf32>, vector<2x128xf32> -> vector<2x128xf32>
    %141 = arith.addf %139, %140 : vector<2x128xf32>
    %142 = vector.extract_strided_slice %137 {offsets = [0, 0], sizes = [2, 32], strides = [1, 1]} : vector<2x128xf32> to vector<2x32xf32>
    %143 = arith.negf %142 : vector<2x32xf32>
    %144 = math.exp %143 : vector<2x32xf32>
    %cst_47 = arith.constant 1.000000e+00 : f32
    %145 = vector.broadcast %cst_47 : f32 to vector<2x32xf32>
    %146 = arith.addf %145, %144 : vector<2x32xf32>
    %147 = arith.divf %145, %146 : vector<2x32xf32>
    %148 = vector.extract_strided_slice %137 {offsets = [0, 32], sizes = [2, 32], strides = [1, 1]} : vector<2x128xf32> to vector<2x32xf32>
    %149 = arith.negf %148 : vector<2x32xf32>
    %150 = math.exp %149 : vector<2x32xf32>
    %cst_48 = arith.constant 1.000000e+00 : f32
    %151 = vector.broadcast %cst_48 : f32 to vector<2x32xf32>
    %152 = arith.addf %151, %150 : vector<2x32xf32>
    %153 = arith.divf %151, %152 : vector<2x32xf32>
    %154 = vector.extract_strided_slice %137 {offsets = [0, 64], sizes = [2, 32], strides = [1, 1]} : vector<2x128xf32> to vector<2x32xf32>
    %155 = math.tanh %154 : vector<2x32xf32>
    %156 = vector.extract_strided_slice %137 {offsets = [0, 96], sizes = [2, 32], strides = [1, 1]} : vector<2x128xf32> to vector<2x32xf32>
    %157 = arith.negf %156 : vector<2x32xf32>
    %158 = math.exp %157 : vector<2x32xf32>
    %cst_49 = arith.constant 1.000000e+00 : f32
    %159 = vector.broadcast %cst_49 : f32 to vector<2x32xf32>
    %160 = arith.addf %159, %158 : vector<2x32xf32>
    %161 = arith.divf %159, %160 : vector<2x32xf32>
    %162 = arith.mulf %153, %100 : vector<2x32xf32>
    %163 = arith.mulf %147, %155 : vector<2x32xf32>
    %164 = arith.addf %162, %163 : vector<2x32xf32>
    %165 = math.tanh %164 : vector<2x32xf32>
    %166 = arith.mulf %161, %165 : vector<2x32xf32>
    %167 = vector.extract_strided_slice %141 {offsets = [0, 0], sizes = [2, 32], strides = [1, 1]} : vector<2x128xf32> to vector<2x32xf32>
    %168 = arith.negf %167 : vector<2x32xf32>
    %169 = math.exp %168 : vector<2x32xf32>
    %cst_50 = arith.constant 1.000000e+00 : f32
    %170 = vector.broadcast %cst_50 : f32 to vector<2x32xf32>
    %171 = arith.addf %170, %169 : vector<2x32xf32>
    %172 = arith.divf %170, %171 : vector<2x32xf32>
    %173 = vector.extract_strided_slice %141 {offsets = [0, 32], sizes = [2, 32], strides = [1, 1]} : vector<2x128xf32> to vector<2x32xf32>
    %174 = arith.negf %173 : vector<2x32xf32>
    %175 = math.exp %174 : vector<2x32xf32>
    %cst_51 = arith.constant 1.000000e+00 : f32
    %176 = vector.broadcast %cst_51 : f32 to vector<2x32xf32>
    %177 = arith.addf %176, %175 : vector<2x32xf32>
    %178 = arith.divf %176, %177 : vector<2x32xf32>
    %179 = vector.extract_strided_slice %141 {offsets = [0, 64], sizes = [2, 32], strides = [1, 1]} : vector<2x128xf32> to vector<2x32xf32>
    %180 = math.tanh %179 : vector<2x32xf32>
    %181 = vector.extract_strided_slice %141 {offsets = [0, 96], sizes = [2, 32], strides = [1, 1]} : vector<2x128xf32> to vector<2x32xf32>
    %182 = arith.negf %181 : vector<2x32xf32>
    %183 = math.exp %182 : vector<2x32xf32>
    %cst_52 = arith.constant 1.000000e+00 : f32
    %184 = vector.broadcast %cst_52 : f32 to vector<2x32xf32>
    %185 = arith.addf %184, %183 : vector<2x32xf32>
    %186 = arith.divf %184, %185 : vector<2x32xf32>
    %187 = arith.mulf %178, %125 : vector<2x32xf32>
    %188 = arith.mulf %172, %180 : vector<2x32xf32>
    %189 = arith.addf %187, %188 : vector<2x32xf32>
    %190 = math.tanh %189 : vector<2x32xf32>
    %191 = arith.mulf %186, %190 : vector<2x32xf32>
    %c0_53 = arith.constant 0 : index
    %c2_54 = arith.constant 2 : index
    %c0_55 = arith.constant 0 : index
    %192 = vector.load %arg4[%c0_53, %c2_54, %c0_55] : memref<2x8x64xf32, #tpu.memory_space<vmem>>, vector<2x1x32xf32>
    %193 = vector.shape_cast %192 : vector<2x1x32xf32> to vector<2x32xf32>
    %194 = vector.shape_cast %166 : vector<2x32xf32> to vector<2x1x32xf32>
    tpu.vector_store %arg4[%c0_53, %c2_54, %c0_55], %194 {strides = array<i32>} : memref<2x8x64xf32, #tpu.memory_space<vmem>>, vector<2x1x32xf32>,
    %c0_56 = arith.constant 0 : index
    %c5_57 = arith.constant 5 : index
    %c32_58 = arith.constant 32 : index
    %195 = vector.load %arg4[%c0_56, %c5_57, %c32_58] : memref<2x8x64xf32, #tpu.memory_space<vmem>>, vector<2x1x32xf32>
    %196 = vector.shape_cast %195 : vector<2x1x32xf32> to vector<2x32xf32>
    %197 = vector.shape_cast %191 : vector<2x32xf32> to vector<2x1x32xf32>
    tpu.vector_store %arg4[%c0_56, %c5_57, %c32_58], %197 {strides = array<i32>} : memref<2x8x64xf32, #tpu.memory_space<vmem>>, vector<2x1x32xf32>,
    %c3 = arith.constant 3 : index
    %c0_59 = arith.constant 0 : index
    %c0_60 = arith.constant 0 : index
    %198 = vector.load %arg1[%c3, %c0_59, %c0_60] : memref<8x2x256xf32, #tpu.memory_space<vmem>>, vector<1x2x128xf32>
    %199 = vector.shape_cast %198 : vector<1x2x128xf32> to vector<2x128xf32>
    %cst_61 = arith.constant dense<0.000000e+00> : vector<2x128xf32>
    %200 = tpu.matmul %166, %0, %cst_61 {dimension_numbers = #tpu.dot_dimension_numbers<[1], [0], [0], [1], [0, 0, 1, 1], [], []>} : vector<2x32xf32>, vector<32x128xf32>, vector<2x128xf32> -> vector<2x128xf32>
    %201 = arith.addf %199, %200 : vector<2x128xf32>
    %c4 = arith.constant 4 : index
    %c0_62 = arith.constant 0 : index
    %c128_63 = arith.constant 128 : index
    %202 = vector.load %arg1[%c4, %c0_62, %c128_63] : memref<8x2x256xf32, #tpu.memory_space<vmem>>, vector<1x2x128xf32>
    %203 = vector.shape_cast %202 : vector<1x2x128xf32> to vector<2x128xf32>
    %cst_64 = arith.constant dense<0.000000e+00> : vector<2x128xf32>
    %204 = tpu.matmul %191, %1, %cst_64 {dimension_numbers = #tpu.dot_dimension_numbers<[1], [0], [0], [1], [0, 0, 1, 1], [], []>} : vector<2x32xf32>, vector<32x128xf32>, vector<2x128xf32> -> vector<2x128xf32>
    %205 = arith.addf %203, %204 : vector<2x128xf32>
    %206 = vector.extract_strided_slice %201 {offsets = [0, 0], sizes = [2, 32], strides = [1, 1]} : vector<2x128xf32> to vector<2x32xf32>
    %207 = arith.negf %206 : vector<2x32xf32>
    %208 = math.exp %207 : vector<2x32xf32>
    %cst_65 = arith.constant 1.000000e+00 : f32
    %209 = vector.broadcast %cst_65 : f32 to vector<2x32xf32>
    %210 = arith.addf %209, %208 : vector<2x32xf32>
    %211 = arith.divf %209, %210 : vector<2x32xf32>
    %212 = vector.extract_strided_slice %201 {offsets = [0, 32], sizes = [2, 32], strides = [1, 1]} : vector<2x128xf32> to vector<2x32xf32>
    %213 = arith.negf %212 : vector<2x32xf32>
    %214 = math.exp %213 : vector<2x32xf32>
    %cst_66 = arith.constant 1.000000e+00 : f32
    %215 = vector.broadcast %cst_66 : f32 to vector<2x32xf32>
    %216 = arith.addf %215, %214 : vector<2x32xf32>
    %217 = arith.divf %215, %216 : vector<2x32xf32>
    %218 = vector.extract_strided_slice %201 {offsets = [0, 64], sizes = [2, 32], strides = [1, 1]} : vector<2x128xf32> to vector<2x32xf32>
    %219 = math.tanh %218 : vector<2x32xf32>
    %220 = vector.extract_strided_slice %201 {offsets = [0, 96], sizes = [2, 32], strides = [1, 1]} : vector<2x128xf32> to vector<2x32xf32>
    %221 = arith.negf %220 : vector<2x32xf32>
    %222 = math.exp %221 : vector<2x32xf32>
    %cst_67 = arith.constant 1.000000e+00 : f32
    %223 = vector.broadcast %cst_67 : f32 to vector<2x32xf32>
    %224 = arith.addf %223, %222 : vector<2x32xf32>
    %225 = arith.divf %223, %224 : vector<2x32xf32>
    %226 = arith.mulf %217, %164 : vector<2x32xf32>
    %227 = arith.mulf %211, %219 : vector<2x32xf32>
    %228 = arith.addf %226, %227 : vector<2x32xf32>
    %229 = math.tanh %228 : vector<2x32xf32>
    %230 = arith.mulf %225, %229 : vector<2x32xf32>
    %231 = vector.extract_strided_slice %205 {offsets = [0, 0], sizes = [2, 32], strides = [1, 1]} : vector<2x128xf32> to vector<2x32xf32>
    %232 = arith.negf %231 : vector<2x32xf32>
    %233 = math.exp %232 : vector<2x32xf32>
    %cst_68 = arith.constant 1.000000e+00 : f32
    %234 = vector.broadcast %cst_68 : f32 to vector<2x32xf32>
    %235 = arith.addf %234, %233 : vector<2x32xf32>
    %236 = arith.divf %234, %235 : vector<2x32xf32>
    %237 = vector.extract_strided_slice %205 {offsets = [0, 32], sizes = [2, 32], strides = [1, 1]} : vector<2x128xf32> to vector<2x32xf32>
    %238 = arith.negf %237 : vector<2x32xf32>
    %239 = math.exp %238 : vector<2x32xf32>
    %cst_69 = arith.constant 1.000000e+00 : f32
    %240 = vector.broadcast %cst_69 : f32 to vector<2x32xf32>
    %241 = arith.addf %240, %239 : vector<2x32xf32>
    %242 = arith.divf %240, %241 : vector<2x32xf32>
    %243 = vector.extract_strided_slice %205 {offsets = [0, 64], sizes = [2, 32], strides = [1, 1]} : vector<2x128xf32> to vector<2x32xf32>
    %244 = math.tanh %243 : vector<2x32xf32>
    %245 = vector.extract_strided_slice %205 {offsets = [0, 96], sizes = [2, 32], strides = [1, 1]} : vector<2x128xf32> to vector<2x32xf32>
    %246 = arith.negf %245 : vector<2x32xf32>
    %247 = math.exp %246 : vector<2x32xf32>
    %cst_70 = arith.constant 1.000000e+00 : f32
    %248 = vector.broadcast %cst_70 : f32 to vector<2x32xf32>
    %249 = arith.addf %248, %247 : vector<2x32xf32>
    %250 = arith.divf %248, %249 : vector<2x32xf32>
    %251 = arith.mulf %242, %189 : vector<2x32xf32>
    %252 = arith.mulf %236, %244 : vector<2x32xf32>
    %253 = arith.addf %251, %252 : vector<2x32xf32>
    %254 = math.tanh %253 : vector<2x32xf32>
    %255 = arith.mulf %250, %254 : vector<2x32xf32>
    %c0_71 = arith.constant 0 : index
    %c3_72 = arith.constant 3 : index
    %c0_73 = arith.constant 0 : index
    %256 = vector.load %arg4[%c0_71, %c3_72, %c0_73] : memref<2x8x64xf32, #tpu.memory_space<vmem>>, vector<2x1x32xf32>
    %257 = vector.shape_cast %256 : vector<2x1x32xf32> to vector<2x32xf32>
    %258 = vector.shape_cast %230 : vector<2x32xf32> to vector<2x1x32xf32>
    tpu.vector_store %arg4[%c0_71, %c3_72, %c0_73], %258 {strides = array<i32>} : memref<2x8x64xf32, #tpu.memory_space<vmem>>, vector<2x1x32xf32>,
    %c0_74 = arith.constant 0 : index
    %c4_75 = arith.constant 4 : index
    %c32_76 = arith.constant 32 : index
    %259 = vector.load %arg4[%c0_74, %c4_75, %c32_76] : memref<2x8x64xf32, #tpu.memory_space<vmem>>, vector<2x1x32xf32>
    %260 = vector.shape_cast %259 : vector<2x1x32xf32> to vector<2x32xf32>
    %261 = vector.shape_cast %255 : vector<2x32xf32> to vector<2x1x32xf32>
    tpu.vector_store %arg4[%c0_74, %c4_75, %c32_76], %261 {strides = array<i32>} : memref<2x8x64xf32, #tpu.memory_space<vmem>>, vector<2x1x32xf32>,
    %c4_77 = arith.constant 4 : index
    %c0_78 = arith.constant 0 : index
    %c0_79 = arith.constant 0 : index
    %262 = vector.load %arg1[%c4_77, %c0_78, %c0_79] : memref<8x2x256xf32, #tpu.memory_space<vmem>>, vector<1x2x128xf32>
    %263 = vector.shape_cast %262 : vector<1x2x128xf32> to vector<2x128xf32>
    %cst_80 = arith.constant dense<0.000000e+00> : vector<2x128xf32>
    %264 = tpu.matmul %230, %0, %cst_80 {dimension_numbers = #tpu.dot_dimension_numbers<[1], [0], [0], [1], [0, 0, 1, 1], [], []>} : vector<2x32xf32>, vector<32x128xf32>, vector<2x128xf32> -> vector<2x128xf32>
    %265 = arith.addf %263, %264 : vector<2x128xf32>
    %c3_81 = arith.constant 3 : index
    %c0_82 = arith.constant 0 : index
    %c128_83 = arith.constant 128 : index
    %266 = vector.load %arg1[%c3_81, %c0_82, %c128_83] : memref<8x2x256xf32, #tpu.memory_space<vmem>>, vector<1x2x128xf32>
    %267 = vector.shape_cast %266 : vector<1x2x128xf32> to vector<2x128xf32>
    %cst_84 = arith.constant dense<0.000000e+00> : vector<2x128xf32>
    %268 = tpu.matmul %255, %1, %cst_84 {dimension_numbers = #tpu.dot_dimension_numbers<[1], [0], [0], [1], [0, 0, 1, 1], [], []>} : vector<2x32xf32>, vector<32x128xf32>, vector<2x128xf32> -> vector<2x128xf32>
    %269 = arith.addf %267, %268 : vector<2x128xf32>
    %270 = vector.extract_strided_slice %265 {offsets = [0, 0], sizes = [2, 32], strides = [1, 1]} : vector<2x128xf32> to vector<2x32xf32>
    %271 = arith.negf %270 : vector<2x32xf32>
    %272 = math.exp %271 : vector<2x32xf32>
    %cst_85 = arith.constant 1.000000e+00 : f32
    %273 = vector.broadcast %cst_85 : f32 to vector<2x32xf32>
    %274 = arith.addf %273, %272 : vector<2x32xf32>
    %275 = arith.divf %273, %274 : vector<2x32xf32>
    %276 = vector.extract_strided_slice %265 {offsets = [0, 32], sizes = [2, 32], strides = [1, 1]} : vector<2x128xf32> to vector<2x32xf32>
    %277 = arith.negf %276 : vector<2x32xf32>
    %278 = math.exp %277 : vector<2x32xf32>
    %cst_86 = arith.constant 1.000000e+00 : f32
    %279 = vector.broadcast %cst_86 : f32 to vector<2x32xf32>
    %280 = arith.addf %279, %278 : vector<2x32xf32>
    %281 = arith.divf %279, %280 : vector<2x32xf32>
    %282 = vector.extract_strided_slice %265 {offsets = [0, 64], sizes = [2, 32], strides = [1, 1]} : vector<2x128xf32> to vector<2x32xf32>
    %283 = math.tanh %282 : vector<2x32xf32>
    %284 = vector.extract_strided_slice %265 {offsets = [0, 96], sizes = [2, 32], strides = [1, 1]} : vector<2x128xf32> to vector<2x32xf32>
    %285 = arith.negf %284 : vector<2x32xf32>
    %286 = math.exp %285 : vector<2x32xf32>
    %cst_87 = arith.constant 1.000000e+00 : f32
    %287 = vector.broadcast %cst_87 : f32 to vector<2x32xf32>
    %288 = arith.addf %287, %286 : vector<2x32xf32>
    %289 = arith.divf %287, %288 : vector<2x32xf32>
    %290 = arith.mulf %281, %228 : vector<2x32xf32>
    %291 = arith.mulf %275, %283 : vector<2x32xf32>
    %292 = arith.addf %290, %291 : vector<2x32xf32>
    %293 = math.tanh %292 : vector<2x32xf32>
    %294 = arith.mulf %289, %293 : vector<2x32xf32>
    %295 = vector.extract_strided_slice %269 {offsets = [0, 0], sizes = [2, 32], strides = [1, 1]} : vector<2x128xf32> to vector<2x32xf32>
    %296 = arith.negf %295 : vector<2x32xf32>
    %297 = math.exp %296 : vector<2x32xf32>
    %cst_88 = arith.constant 1.000000e+00 : f32
    %298 = vector.broadcast %cst_88 : f32 to vector<2x32xf32>
    %299 = arith.addf %298, %297 : vector<2x32xf32>
    %300 = arith.divf %298, %299 : vector<2x32xf32>
    %301 = vector.extract_strided_slice %269 {offsets = [0, 32], sizes = [2, 32], strides = [1, 1]} : vector<2x128xf32> to vector<2x32xf32>
    %302 = arith.negf %301 : vector<2x32xf32>
    %303 = math.exp %302 : vector<2x32xf32>
    %cst_89 = arith.constant 1.000000e+00 : f32
    %304 = vector.broadcast %cst_89 : f32 to vector<2x32xf32>
    %305 = arith.addf %304, %303 : vector<2x32xf32>
    %306 = arith.divf %304, %305 : vector<2x32xf32>
    %307 = vector.extract_strided_slice %269 {offsets = [0, 64], sizes = [2, 32], strides = [1, 1]} : vector<2x128xf32> to vector<2x32xf32>
    %308 = math.tanh %307 : vector<2x32xf32>
    %309 = vector.extract_strided_slice %269 {offsets = [0, 96], sizes = [2, 32], strides = [1, 1]} : vector<2x128xf32> to vector<2x32xf32>
    %310 = arith.negf %309 : vector<2x32xf32>
    %311 = math.exp %310 : vector<2x32xf32>
    %cst_90 = arith.constant 1.000000e+00 : f32
    %312 = vector.broadcast %cst_90 : f32 to vector<2x32xf32>
    %313 = arith.addf %312, %311 : vector<2x32xf32>
    %314 = arith.divf %312, %313 : vector<2x32xf32>
    %315 = arith.mulf %306, %253 : vector<2x32xf32>
    %316 = arith.mulf %300, %308 : vector<2x32xf32>
    %317 = arith.addf %315, %316 : vector<2x32xf32>
    %318 = math.tanh %317 : vector<2x32xf32>
    %319 = arith.mulf %314, %318 : vector<2x32xf32>
    %c0_91 = arith.constant 0 : index
    %c4_92 = arith.constant 4 : index
    %c0_93 = arith.constant 0 : index
    %320 = vector.load %arg4[%c0_91, %c4_92, %c0_93] : memref<2x8x64xf32, #tpu.memory_space<vmem>>, vector<2x1x32xf32>
    %321 = vector.shape_cast %320 : vector<2x1x32xf32> to vector<2x32xf32>
    %322 = vector.shape_cast %294 : vector<2x32xf32> to vector<2x1x32xf32>
    tpu.vector_store %arg4[%c0_91, %c4_92, %c0_93], %322 {strides = array<i32>} : memref<2x8x64xf32, #tpu.memory_space<vmem>>, vector<2x1x32xf32>,
    %c0_94 = arith.constant 0 : index
    %c3_95 = arith.constant 3 : index
    %c32_96 = arith.constant 32 : index
    %323 = vector.load %arg4[%c0_94, %c3_95, %c32_96] : memref<2x8x64xf32, #tpu.memory_space<vmem>>, vector<2x1x32xf32>
    %324 = vector.shape_cast %323 : vector<2x1x32xf32> to vector<2x32xf32>
    %325 = vector.shape_cast %319 : vector<2x32xf32> to vector<2x1x32xf32>
    tpu.vector_store %arg4[%c0_94, %c3_95, %c32_96], %325 {strides = array<i32>} : memref<2x8x64xf32, #tpu.memory_space<vmem>>, vector<2x1x32xf32>,
    %c5_97 = arith.constant 5 : index
    %c0_98 = arith.constant 0 : index
    %c0_99 = arith.constant 0 : index
    %326 = vector.load %arg1[%c5_97, %c0_98, %c0_99] : memref<8x2x256xf32, #tpu.memory_space<vmem>>, vector<1x2x128xf32>
    %327 = vector.shape_cast %326 : vector<1x2x128xf32> to vector<2x128xf32>
    %cst_100 = arith.constant dense<0.000000e+00> : vector<2x128xf32>
    %328 = tpu.matmul %294, %0, %cst_100 {dimension_numbers = #tpu.dot_dimension_numbers<[1], [0], [0], [1], [0, 0, 1, 1], [], []>} : vector<2x32xf32>, vector<32x128xf32>, vector<2x128xf32> -> vector<2x128xf32>
    %329 = arith.addf %327, %328 : vector<2x128xf32>
    %c2_101 = arith.constant 2 : index
    %c0_102 = arith.constant 0 : index
    %c128_103 = arith.constant 128 : index
    %330 = vector.load %arg1[%c2_101, %c0_102, %c128_103] : memref<8x2x256xf32, #tpu.memory_space<vmem>>, vector<1x2x128xf32>
    %331 = vector.shape_cast %330 : vector<1x2x128xf32> to vector<2x128xf32>
    %cst_104 = arith.constant dense<0.000000e+00> : vector<2x128xf32>
    %332 = tpu.matmul %319, %1, %cst_104 {dimension_numbers = #tpu.dot_dimension_numbers<[1], [0], [0], [1], [0, 0, 1, 1], [], []>} : vector<2x32xf32>, vector<32x128xf32>, vector<2x128xf32> -> vector<2x128xf32>
    %333 = arith.addf %331, %332 : vector<2x128xf32>
    %334 = vector.extract_strided_slice %329 {offsets = [0, 0], sizes = [2, 32], strides = [1, 1]} : vector<2x128xf32> to vector<2x32xf32>
    %335 = arith.negf %334 : vector<2x32xf32>
    %336 = math.exp %335 : vector<2x32xf32>
    %cst_105 = arith.constant 1.000000e+00 : f32
    %337 = vector.broadcast %cst_105 : f32 to vector<2x32xf32>
    %338 = arith.addf %337, %336 : vector<2x32xf32>
    %339 = arith.divf %337, %338 : vector<2x32xf32>
    %340 = vector.extract_strided_slice %329 {offsets = [0, 32], sizes = [2, 32], strides = [1, 1]} : vector<2x128xf32> to vector<2x32xf32>
    %341 = arith.negf %340 : vector<2x32xf32>
    %342 = math.exp %341 : vector<2x32xf32>
    %cst_106 = arith.constant 1.000000e+00 : f32
    %343 = vector.broadcast %cst_106 : f32 to vector<2x32xf32>
    %344 = arith.addf %343, %342 : vector<2x32xf32>
    %345 = arith.divf %343, %344 : vector<2x32xf32>
    %346 = vector.extract_strided_slice %329 {offsets = [0, 64], sizes = [2, 32], strides = [1, 1]} : vector<2x128xf32> to vector<2x32xf32>
    %347 = math.tanh %346 : vector<2x32xf32>
    %348 = vector.extract_strided_slice %329 {offsets = [0, 96], sizes = [2, 32], strides = [1, 1]} : vector<2x128xf32> to vector<2x32xf32>
    %349 = arith.negf %348 : vector<2x32xf32>
    %350 = math.exp %349 : vector<2x32xf32>
    %cst_107 = arith.constant 1.000000e+00 : f32
    %351 = vector.broadcast %cst_107 : f32 to vector<2x32xf32>
    %352 = arith.addf %351, %350 : vector<2x32xf32>
    %353 = arith.divf %351, %352 : vector<2x32xf32>
    %354 = arith.mulf %345, %292 : vector<2x32xf32>
    %355 = arith.mulf %339, %347 : vector<2x32xf32>
    %356 = arith.addf %354, %355 : vector<2x32xf32>
    %357 = math.tanh %356 : vector<2x32xf32>
    %358 = arith.mulf %353, %357 : vector<2x32xf32>
    %359 = vector.extract_strided_slice %333 {offsets = [0, 0], sizes = [2, 32], strides = [1, 1]} : vector<2x128xf32> to vector<2x32xf32>
    %360 = arith.negf %359 : vector<2x32xf32>
    %361 = math.exp %360 : vector<2x32xf32>
    %cst_108 = arith.constant 1.000000e+00 : f32
    %362 = vector.broadcast %cst_108 : f32 to vector<2x32xf32>
    %363 = arith.addf %362, %361 : vector<2x32xf32>
    %364 = arith.divf %362, %363 : vector<2x32xf32>
    %365 = vector.extract_strided_slice %333 {offsets = [0, 32], sizes = [2, 32], strides = [1, 1]} : vector<2x128xf32> to vector<2x32xf32>
    %366 = arith.negf %365 : vector<2x32xf32>
    %367 = math.exp %366 : vector<2x32xf32>
    %cst_109 = arith.constant 1.000000e+00 : f32
    %368 = vector.broadcast %cst_109 : f32 to vector<2x32xf32>
    %369 = arith.addf %368, %367 : vector<2x32xf32>
    %370 = arith.divf %368, %369 : vector<2x32xf32>
    %371 = vector.extract_strided_slice %333 {offsets = [0, 64], sizes = [2, 32], strides = [1, 1]} : vector<2x128xf32> to vector<2x32xf32>
    %372 = math.tanh %371 : vector<2x32xf32>
    %373 = vector.extract_strided_slice %333 {offsets = [0, 96], sizes = [2, 32], strides = [1, 1]} : vector<2x128xf32> to vector<2x32xf32>
    %374 = arith.negf %373 : vector<2x32xf32>
    %375 = math.exp %374 : vector<2x32xf32>
    %cst_110 = arith.constant 1.000000e+00 : f32
    %376 = vector.broadcast %cst_110 : f32 to vector<2x32xf32>
    %377 = arith.addf %376, %375 : vector<2x32xf32>
    %378 = arith.divf %376, %377 : vector<2x32xf32>
    %379 = arith.mulf %370, %317 : vector<2x32xf32>
    %380 = arith.mulf %364, %372 : vector<2x32xf32>
    %381 = arith.addf %379, %380 : vector<2x32xf32>
    %382 = math.tanh %381 : vector<2x32xf32>
    %383 = arith.mulf %378, %382 : vector<2x32xf32>
    %c0_111 = arith.constant 0 : index
    %c5_112 = arith.constant 5 : index
    %c0_113 = arith.constant 0 : index
    %384 = vector.load %arg4[%c0_111, %c5_112, %c0_113] : memref<2x8x64xf32, #tpu.memory_space<vmem>>, vector<2x1x32xf32>
    %385 = vector.shape_cast %384 : vector<2x1x32xf32> to vector<2x32xf32>
    %386 = vector.shape_cast %358 : vector<2x32xf32> to vector<2x1x32xf32>
    tpu.vector_store %arg4[%c0_111, %c5_112, %c0_113], %386 {strides = array<i32>} : memref<2x8x64xf32, #tpu.memory_space<vmem>>, vector<2x1x32xf32>,
    %c0_114 = arith.constant 0 : index
    %c2_115 = arith.constant 2 : index
    %c32_116 = arith.constant 32 : index
    %387 = vector.load %arg4[%c0_114, %c2_115, %c32_116] : memref<2x8x64xf32, #tpu.memory_space<vmem>>, vector<2x1x32xf32>
    %388 = vector.shape_cast %387 : vector<2x1x32xf32> to vector<2x32xf32>
    %389 = vector.shape_cast %383 : vector<2x32xf32> to vector<2x1x32xf32>
    tpu.vector_store %arg4[%c0_114, %c2_115, %c32_116], %389 {strides = array<i32>} : memref<2x8x64xf32, #tpu.memory_space<vmem>>, vector<2x1x32xf32>,
    %c6_117 = arith.constant 6 : index
    %c0_118 = arith.constant 0 : index
    %c0_119 = arith.constant 0 : index
    %390 = vector.load %arg1[%c6_117, %c0_118, %c0_119] : memref<8x2x256xf32, #tpu.memory_space<vmem>>, vector<1x2x128xf32>
    %391 = vector.shape_cast %390 : vector<1x2x128xf32> to vector<2x128xf32>
    %cst_120 = arith.constant dense<0.000000e+00> : vector<2x128xf32>
    %392 = tpu.matmul %358, %0, %cst_120 {dimension_numbers = #tpu.dot_dimension_numbers<[1], [0], [0], [1], [0, 0, 1, 1], [], []>} : vector<2x32xf32>, vector<32x128xf32>, vector<2x128xf32> -> vector<2x128xf32>
    %393 = arith.addf %391, %392 : vector<2x128xf32>
    %c1_121 = arith.constant 1 : index
    %c0_122 = arith.constant 0 : index
    %c128_123 = arith.constant 128 : index
    %394 = vector.load %arg1[%c1_121, %c0_122, %c128_123] : memref<8x2x256xf32, #tpu.memory_space<vmem>>, vector<1x2x128xf32>
    %395 = vector.shape_cast %394 : vector<1x2x128xf32> to vector<2x128xf32>
    %cst_124 = arith.constant dense<0.000000e+00> : vector<2x128xf32>
    %396 = tpu.matmul %383, %1, %cst_124 {dimension_numbers = #tpu.dot_dimension_numbers<[1], [0], [0], [1], [0, 0, 1, 1], [], []>} : vector<2x32xf32>, vector<32x128xf32>, vector<2x128xf32> -> vector<2x128xf32>
    %397 = arith.addf %395, %396 : vector<2x128xf32>
    %398 = vector.extract_strided_slice %393 {offsets = [0, 0], sizes = [2, 32], strides = [1, 1]} : vector<2x128xf32> to vector<2x32xf32>
    %399 = arith.negf %398 : vector<2x32xf32>
    %400 = math.exp %399 : vector<2x32xf32>
    %cst_125 = arith.constant 1.000000e+00 : f32
    %401 = vector.broadcast %cst_125 : f32 to vector<2x32xf32>
    %402 = arith.addf %401, %400 : vector<2x32xf32>
    %403 = arith.divf %401, %402 : vector<2x32xf32>
    %404 = vector.extract_strided_slice %393 {offsets = [0, 32], sizes = [2, 32], strides = [1, 1]} : vector<2x128xf32> to vector<2x32xf32>
    %405 = arith.negf %404 : vector<2x32xf32>
    %406 = math.exp %405 : vector<2x32xf32>
    %cst_126 = arith.constant 1.000000e+00 : f32
    %407 = vector.broadcast %cst_126 : f32 to vector<2x32xf32>
    %408 = arith.addf %407, %406 : vector<2x32xf32>
    %409 = arith.divf %407, %408 : vector<2x32xf32>
    %410 = vector.extract_strided_slice %393 {offsets = [0, 64], sizes = [2, 32], strides = [1, 1]} : vector<2x128xf32> to vector<2x32xf32>
    %411 = math.tanh %410 : vector<2x32xf32>
    %412 = vector.extract_strided_slice %393 {offsets = [0, 96], sizes = [2, 32], strides = [1, 1]} : vector<2x128xf32> to vector<2x32xf32>
    %413 = arith.negf %412 : vector<2x32xf32>
    %414 = math.exp %413 : vector<2x32xf32>
    %cst_127 = arith.constant 1.000000e+00 : f32
    %415 = vector.broadcast %cst_127 : f32 to vector<2x32xf32>
    %416 = arith.addf %415, %414 : vector<2x32xf32>
    %417 = arith.divf %415, %416 : vector<2x32xf32>
    %418 = arith.mulf %409, %356 : vector<2x32xf32>
    %419 = arith.mulf %403, %411 : vector<2x32xf32>
    %420 = arith.addf %418, %419 : vector<2x32xf32>
    %421 = math.tanh %420 : vector<2x32xf32>
    %422 = arith.mulf %417, %421 : vector<2x32xf32>
    %423 = vector.extract_strided_slice %397 {offsets = [0, 0], sizes = [2, 32], strides = [1, 1]} : vector<2x128xf32> to vector<2x32xf32>
    %424 = arith.negf %423 : vector<2x32xf32>
    %425 = math.exp %424 : vector<2x32xf32>
    %cst_128 = arith.constant 1.000000e+00 : f32
    %426 = vector.broadcast %cst_128 : f32 to vector<2x32xf32>
    %427 = arith.addf %426, %425 : vector<2x32xf32>
    %428 = arith.divf %426, %427 : vector<2x32xf32>
    %429 = vector.extract_strided_slice %397 {offsets = [0, 32], sizes = [2, 32], strides = [1, 1]} : vector<2x128xf32> to vector<2x32xf32>
    %430 = arith.negf %429 : vector<2x32xf32>
    %431 = math.exp %430 : vector<2x32xf32>
    %cst_129 = arith.constant 1.000000e+00 : f32
    %432 = vector.broadcast %cst_129 : f32 to vector<2x32xf32>
    %433 = arith.addf %432, %431 : vector<2x32xf32>
    %434 = arith.divf %432, %433 : vector<2x32xf32>
    %435 = vector.extract_strided_slice %397 {offsets = [0, 64], sizes = [2, 32], strides = [1, 1]} : vector<2x128xf32> to vector<2x32xf32>
    %436 = math.tanh %435 : vector<2x32xf32>
    %437 = vector.extract_strided_slice %397 {offsets = [0, 96], sizes = [2, 32], strides = [1, 1]} : vector<2x128xf32> to vector<2x32xf32>
    %438 = arith.negf %437 : vector<2x32xf32>
    %439 = math.exp %438 : vector<2x32xf32>
    %cst_130 = arith.constant 1.000000e+00 : f32
    %440 = vector.broadcast %cst_130 : f32 to vector<2x32xf32>
    %441 = arith.addf %440, %439 : vector<2x32xf32>
    %442 = arith.divf %440, %441 : vector<2x32xf32>
    %443 = arith.mulf %434, %381 : vector<2x32xf32>
    %444 = arith.mulf %428, %436 : vector<2x32xf32>
    %445 = arith.addf %443, %444 : vector<2x32xf32>
    %446 = math.tanh %445 : vector<2x32xf32>
    %447 = arith.mulf %442, %446 : vector<2x32xf32>
    %c0_131 = arith.constant 0 : index
    %c6_132 = arith.constant 6 : index
    %c0_133 = arith.constant 0 : index
    %448 = vector.load %arg4[%c0_131, %c6_132, %c0_133] : memref<2x8x64xf32, #tpu.memory_space<vmem>>, vector<2x1x32xf32>
    %449 = vector.shape_cast %448 : vector<2x1x32xf32> to vector<2x32xf32>
    %450 = vector.shape_cast %422 : vector<2x32xf32> to vector<2x1x32xf32>
    tpu.vector_store %arg4[%c0_131, %c6_132, %c0_133], %450 {strides = array<i32>} : memref<2x8x64xf32, #tpu.memory_space<vmem>>, vector<2x1x32xf32>,
    %c0_134 = arith.constant 0 : index
    %c1_135 = arith.constant 1 : index
    %c32_136 = arith.constant 32 : index
    %451 = vector.load %arg4[%c0_134, %c1_135, %c32_136] : memref<2x8x64xf32, #tpu.memory_space<vmem>>, vector<2x1x32xf32>
    %452 = vector.shape_cast %451 : vector<2x1x32xf32> to vector<2x32xf32>
    %453 = vector.shape_cast %447 : vector<2x32xf32> to vector<2x1x32xf32>
    tpu.vector_store %arg4[%c0_134, %c1_135, %c32_136], %453 {strides = array<i32>} : memref<2x8x64xf32, #tpu.memory_space<vmem>>, vector<2x1x32xf32>,
    %c7_137 = arith.constant 7 : index
    %c0_138 = arith.constant 0 : index
    %c0_139 = arith.constant 0 : index
    %454 = vector.load %arg1[%c7_137, %c0_138, %c0_139] : memref<8x2x256xf32, #tpu.memory_space<vmem>>, vector<1x2x128xf32>
    %455 = vector.shape_cast %454 : vector<1x2x128xf32> to vector<2x128xf32>
    %cst_140 = arith.constant dense<0.000000e+00> : vector<2x128xf32>
    %456 = tpu.matmul %422, %0, %cst_140 {dimension_numbers = #tpu.dot_dimension_numbers<[1], [0], [0], [1], [0, 0, 1, 1], [], []>} : vector<2x32xf32>, vector<32x128xf32>, vector<2x128xf32> -> vector<2x128xf32>
    %457 = arith.addf %455, %456 : vector<2x128xf32>
    %c0_141 = arith.constant 0 : index
    %c0_142 = arith.constant 0 : index
    %c128_143 = arith.constant 128 : index
    %458 = vector.load %arg1[%c0_141, %c0_142, %c128_143] : memref<8x2x256xf32, #tpu.memory_space<vmem>>, vector<1x2x128xf32>
    %459 = vector.shape_cast %458 : vector<1x2x128xf32> to vector<2x128xf32>
    %cst_144 = arith.constant dense<0.000000e+00> : vector<2x128xf32>
    %460 = tpu.matmul %447, %1, %cst_144 {dimension_numbers = #tpu.dot_dimension_numbers<[1], [0], [0], [1], [0, 0, 1, 1], [], []>} : vector<2x32xf32>, vector<32x128xf32>, vector<2x128xf32> -> vector<2x128xf32>
    %461 = arith.addf %459, %460 : vector<2x128xf32>
    %462 = vector.extract_strided_slice %457 {offsets = [0, 0], sizes = [2, 32], strides = [1, 1]} : vector<2x128xf32> to vector<2x32xf32>
    %463 = arith.negf %462 : vector<2x32xf32>
    %464 = math.exp %463 : vector<2x32xf32>
    %cst_145 = arith.constant 1.000000e+00 : f32
    %465 = vector.broadcast %cst_145 : f32 to vector<2x32xf32>
    %466 = arith.addf %465, %464 : vector<2x32xf32>
    %467 = arith.divf %465, %466 : vector<2x32xf32>
    %468 = vector.extract_strided_slice %457 {offsets = [0, 32], sizes = [2, 32], strides = [1, 1]} : vector<2x128xf32> to vector<2x32xf32>
    %469 = arith.negf %468 : vector<2x32xf32>
    %470 = math.exp %469 : vector<2x32xf32>
    %cst_146 = arith.constant 1.000000e+00 : f32
    %471 = vector.broadcast %cst_146 : f32 to vector<2x32xf32>
    %472 = arith.addf %471, %470 : vector<2x32xf32>
    %473 = arith.divf %471, %472 : vector<2x32xf32>
    %474 = vector.extract_strided_slice %457 {offsets = [0, 64], sizes = [2, 32], strides = [1, 1]} : vector<2x128xf32> to vector<2x32xf32>
    %475 = math.tanh %474 : vector<2x32xf32>
    %476 = vector.extract_strided_slice %457 {offsets = [0, 96], sizes = [2, 32], strides = [1, 1]} : vector<2x128xf32> to vector<2x32xf32>
    %477 = arith.negf %476 : vector<2x32xf32>
    %478 = math.exp %477 : vector<2x32xf32>
    %cst_147 = arith.constant 1.000000e+00 : f32
    %479 = vector.broadcast %cst_147 : f32 to vector<2x32xf32>
    %480 = arith.addf %479, %478 : vector<2x32xf32>
    %481 = arith.divf %479, %480 : vector<2x32xf32>
    %482 = arith.mulf %473, %420 : vector<2x32xf32>
    %483 = arith.mulf %467, %475 : vector<2x32xf32>
    %484 = arith.addf %482, %483 : vector<2x32xf32>
    %485 = math.tanh %484 : vector<2x32xf32>
    %486 = arith.mulf %481, %485 : vector<2x32xf32>
    %487 = vector.extract_strided_slice %461 {offsets = [0, 0], sizes = [2, 32], strides = [1, 1]} : vector<2x128xf32> to vector<2x32xf32>
    %488 = arith.negf %487 : vector<2x32xf32>
    %489 = math.exp %488 : vector<2x32xf32>
    %cst_148 = arith.constant 1.000000e+00 : f32
    %490 = vector.broadcast %cst_148 : f32 to vector<2x32xf32>
    %491 = arith.addf %490, %489 : vector<2x32xf32>
    %492 = arith.divf %490, %491 : vector<2x32xf32>
    %493 = vector.extract_strided_slice %461 {offsets = [0, 32], sizes = [2, 32], strides = [1, 1]} : vector<2x128xf32> to vector<2x32xf32>
    %494 = arith.negf %493 : vector<2x32xf32>
    %495 = math.exp %494 : vector<2x32xf32>
    %cst_149 = arith.constant 1.000000e+00 : f32
    %496 = vector.broadcast %cst_149 : f32 to vector<2x32xf32>
    %497 = arith.addf %496, %495 : vector<2x32xf32>
    %498 = arith.divf %496, %497 : vector<2x32xf32>
    %499 = vector.extract_strided_slice %461 {offsets = [0, 64], sizes = [2, 32], strides = [1, 1]} : vector<2x128xf32> to vector<2x32xf32>
    %500 = math.tanh %499 : vector<2x32xf32>
    %501 = vector.extract_strided_slice %461 {offsets = [0, 96], sizes = [2, 32], strides = [1, 1]} : vector<2x128xf32> to vector<2x32xf32>
    %502 = arith.negf %501 : vector<2x32xf32>
    %503 = math.exp %502 : vector<2x32xf32>
    %cst_150 = arith.constant 1.000000e+00 : f32
    %504 = vector.broadcast %cst_150 : f32 to vector<2x32xf32>
    %505 = arith.addf %504, %503 : vector<2x32xf32>
    %506 = arith.divf %504, %505 : vector<2x32xf32>
    %507 = arith.mulf %498, %445 : vector<2x32xf32>
    %508 = arith.mulf %492, %500 : vector<2x32xf32>
    %509 = arith.addf %507, %508 : vector<2x32xf32>
    %510 = math.tanh %509 : vector<2x32xf32>
    %511 = arith.mulf %506, %510 : vector<2x32xf32>
    %c0_151 = arith.constant 0 : index
    %c7_152 = arith.constant 7 : index
    %c0_153 = arith.constant 0 : index
    %512 = vector.load %arg4[%c0_151, %c7_152, %c0_153] : memref<2x8x64xf32, #tpu.memory_space<vmem>>, vector<2x1x32xf32>
    %513 = vector.shape_cast %512 : vector<2x1x32xf32> to vector<2x32xf32>
    %514 = vector.shape_cast %486 : vector<2x32xf32> to vector<2x1x32xf32>
    tpu.vector_store %arg4[%c0_151, %c7_152, %c0_153], %514 {strides = array<i32>} : memref<2x8x64xf32, #tpu.memory_space<vmem>>, vector<2x1x32xf32>,
    %c0_154 = arith.constant 0 : index
    %c0_155 = arith.constant 0 : index
    %c32_156 = arith.constant 32 : index
    %515 = vector.load %arg4[%c0_154, %c0_155, %c32_156] : memref<2x8x64xf32, #tpu.memory_space<vmem>>, vector<2x1x32xf32>
    %516 = vector.shape_cast %515 : vector<2x1x32xf32> to vector<2x32xf32>
    %517 = vector.shape_cast %511 : vector<2x32xf32> to vector<2x1x32xf32>
    tpu.vector_store %arg4[%c0_154, %c0_155, %c32_156], %517 {strides = array<i32>} : memref<2x8x64xf32, #tpu.memory_space<vmem>>, vector<2x1x32xf32>,
    return
  }
  func.func @transform_0(%arg0: i32) -> (i32, i32, i32) {
    %c0_i32 = arith.constant 0 : i32
    %c0_i32_0 = arith.constant 0 : i32
    %c0_i32_1 = arith.constant 0 : i32
    %c0_i32_2 = arith.constant 0 : i32
    return %c0_i32, %c0_i32_0, %c0_i32_1 : i32, i32, i32
  }
  func.func @transform_1(%arg0: i32) -> (i32, i32) {
    %c0_i32 = arith.constant 0 : i32
    %c0_i32_0 = arith.constant 0 : i32
    %c0_i32_1 = arith.constant 0 : i32
    return %c0_i32, %c0_i32_0 : i32, i32
  }
  func.func @transform_2(%arg0: i32) -> (i32, i32) {
    %c0_i32 = arith.constant 0 : i32
    %c0_i32_0 = arith.constant 0 : i32
    %c0_i32_1 = arith.constant 0 : i32
    return %c0_i32, %c0_i32_0 : i32, i32
  }
  func.func @transform_3(%arg0: i32) -> (i32, i32, i32) {
    %c0_i32 = arith.constant 0 : i32
    %c0_i32_0 = arith.constant 0 : i32
    %c0_i32_1 = arith.constant 0 : i32
    %c0_i32_2 = arith.constant 0 : i32
    return %c0_i32, %c0_i32_0, %c0_i32_1 : i32, i32, i32
  }
}

module attributes {stable_mosaic.version = 11 : i64} {
  func.func @_transformer_kernel(%arg0: i32, %arg1: memref<1x8x64xf32, #tpu.memory_space<vmem>>, %arg2: memref<64x64xf32, #tpu.memory_space<vmem>>, %arg3: memref<64x64xf32, #tpu.memory_space<vmem>>, %arg4: memref<64x64xf32, #tpu.memory_space<vmem>>, %arg5: memref<1x64xf32, #tpu.memory_space<vmem>>, %arg6: memref<1x64xf32, #tpu.memory_space<vmem>>, %arg7: memref<1x64xf32, #tpu.memory_space<vmem>>, %arg8: memref<64x64xf32, #tpu.memory_space<vmem>>, %arg9: memref<1x64xf32, #tpu.memory_space<vmem>>, %arg10: memref<1x64xf32, #tpu.memory_space<vmem>>, %arg11: memref<1x64xf32, #tpu.memory_space<vmem>>, %arg12: memref<64x256xf32, #tpu.memory_space<vmem>>, %arg13: memref<1x256xf32, #tpu.memory_space<vmem>>, %arg14: memref<256x64xf32, #tpu.memory_space<vmem>>, %arg15: memref<1x64xf32, #tpu.memory_space<vmem>>, %arg16: memref<1x64xf32, #tpu.memory_space<vmem>>, %arg17: memref<1x64xf32, #tpu.memory_space<vmem>>, %arg18: memref<64x64xf32, #tpu.memory_space<vmem>>, %arg19: memref<1x64xf32, #tpu.memory_space<vmem>>, %arg20: memref<64x64xf32, #tpu.memory_space<vmem>>, %arg21: memref<1x64xf32, #tpu.memory_space<vmem>>, %arg22: memref<64x64xf32, #tpu.memory_space<vmem>>, %arg23: memref<1x64xf32, #tpu.memory_space<vmem>>, %arg24: memref<64x128xf32, #tpu.memory_space<vmem>>, %arg25: memref<1x128xf32, #tpu.memory_space<vmem>>, %arg26: memref<1x8x64xf32, #tpu.memory_space<vmem>>, %arg27: memref<1x8x128xf32, #tpu.memory_space<vmem>>) attributes {dimension_semantics = [#tpu.dimension_semantics<parallel>], iteration_bounds = array<i64: 2>, scalar_prefetch = 0 : i64, scratch_operands = 0 : i64, tpu.core_type = #tpu.core_type<tc>, window_params = [{transform_indices = @transform_0, window_bounds = array<i64: 1, 8, 64>}, {pipeline_mode = #tpu.pipeline_mode<synchronous>, transform_indices = @transform_1, window_bounds = array<i64: 64, 64>}, {pipeline_mode = #tpu.pipeline_mode<synchronous>, transform_indices = @transform_2, window_bounds = array<i64: 64, 64>}, {pipeline_mode = #tpu.pipeline_mode<synchronous>, transform_indices = @transform_3, window_bounds = array<i64: 64, 64>}, {pipeline_mode = #tpu.pipeline_mode<synchronous>, transform_indices = @transform_4, window_bounds = array<i64: 1, 64>}, {pipeline_mode = #tpu.pipeline_mode<synchronous>, transform_indices = @transform_5, window_bounds = array<i64: 1, 64>}, {pipeline_mode = #tpu.pipeline_mode<synchronous>, transform_indices = @transform_6, window_bounds = array<i64: 1, 64>}, {pipeline_mode = #tpu.pipeline_mode<synchronous>, transform_indices = @transform_7, window_bounds = array<i64: 64, 64>}, {pipeline_mode = #tpu.pipeline_mode<synchronous>, transform_indices = @transform_8, window_bounds = array<i64: 1, 64>}, {pipeline_mode = #tpu.pipeline_mode<synchronous>, transform_indices = @transform_9, window_bounds = array<i64: 1, 64>}, {pipeline_mode = #tpu.pipeline_mode<synchronous>, transform_indices = @transform_10, window_bounds = array<i64: 1, 64>}, {pipeline_mode = #tpu.pipeline_mode<synchronous>, transform_indices = @transform_11, window_bounds = array<i64: 64, 256>}, {pipeline_mode = #tpu.pipeline_mode<synchronous>, transform_indices = @transform_12, window_bounds = array<i64: 1, 256>}, {pipeline_mode = #tpu.pipeline_mode<synchronous>, transform_indices = @transform_13, window_bounds = array<i64: 256, 64>}, {pipeline_mode = #tpu.pipeline_mode<synchronous>, transform_indices = @transform_14, window_bounds = array<i64: 1, 64>}, {pipeline_mode = #tpu.pipeline_mode<synchronous>, transform_indices = @transform_15, window_bounds = array<i64: 1, 64>}, {pipeline_mode = #tpu.pipeline_mode<synchronous>, transform_indices = @transform_16, window_bounds = array<i64: 1, 64>}, {pipeline_mode = #tpu.pipeline_mode<synchronous>, transform_indices = @transform_17, window_bounds = array<i64: 64, 64>}, {pipeline_mode = #tpu.pipeline_mode<synchronous>, transform_indices = @transform_18, window_bounds = array<i64: 1, 64>}, {pipeline_mode = #tpu.pipeline_mode<synchronous>, transform_indices = @transform_19, window_bounds = array<i64: 64, 64>}, {pipeline_mode = #tpu.pipeline_mode<synchronous>, transform_indices = @transform_20, window_bounds = array<i64: 1, 64>}, {pipeline_mode = #tpu.pipeline_mode<synchronous>, transform_indices = @transform_21, window_bounds = array<i64: 64, 64>}, {pipeline_mode = #tpu.pipeline_mode<synchronous>, transform_indices = @transform_22, window_bounds = array<i64: 1, 64>}, {pipeline_mode = #tpu.pipeline_mode<synchronous>, transform_indices = @transform_23, window_bounds = array<i64: 64, 128>}, {pipeline_mode = #tpu.pipeline_mode<synchronous>, transform_indices = @transform_24, window_bounds = array<i64: 1, 128>}, {transform_indices = @transform_25, window_bounds = array<i64: 1, 8, 64>}, {transform_indices = @transform_26, window_bounds = array<i64: 1, 8, 128>}]} {
    %c0 = arith.constant 0 : index
    %c0_0 = arith.constant 0 : index
    %c0_1 = arith.constant 0 : index
    %0 = vector.load %arg1[%c0, %c0_0, %c0_1] : memref<1x8x64xf32, #tpu.memory_space<vmem>>, vector<1x8x64xf32>
    %1 = vector.shape_cast %0 : vector<1x8x64xf32> to vector<8x64xf32>
    %c0_2 = arith.constant 0 : index
    %c0_3 = arith.constant 0 : index
    %2 = vector.load %arg2[%c0_2, %c0_3] : memref<64x64xf32, #tpu.memory_space<vmem>>, vector<64x64xf32>
    %cst = arith.constant dense<0.000000e+00> : vector<8x64xf32>
    %3 = tpu.matmul %1, %2, %cst {dimension_numbers = #tpu.dot_dimension_numbers<[1], [0], [0], [1], [0, 0, 1, 1], [], []>} : vector<8x64xf32>, vector<64x64xf32>, vector<8x64xf32> -> vector<8x64xf32>
    %c0_4 = arith.constant 0 : index
    %c0_5 = arith.constant 0 : index
    %4 = vector.load %arg5[%c0_4, %c0_5] : memref<1x64xf32, #tpu.memory_space<vmem>>, vector<1x64xf32>
    %5 = vector.broadcast %4 : vector<1x64xf32> to vector<8x64xf32>
    %6 = arith.addf %3, %5 : vector<8x64xf32>
    %c0_6 = arith.constant 0 : index
    %c0_7 = arith.constant 0 : index
    %7 = vector.load %arg3[%c0_6, %c0_7] : memref<64x64xf32, #tpu.memory_space<vmem>>, vector<64x64xf32>
    %cst_8 = arith.constant dense<0.000000e+00> : vector<8x64xf32>
    %8 = tpu.matmul %1, %7, %cst_8 {dimension_numbers = #tpu.dot_dimension_numbers<[1], [0], [0], [1], [0, 0, 1, 1], [], []>} : vector<8x64xf32>, vector<64x64xf32>, vector<8x64xf32> -> vector<8x64xf32>
    %c0_9 = arith.constant 0 : index
    %c0_10 = arith.constant 0 : index
    %9 = vector.load %arg6[%c0_9, %c0_10] : memref<1x64xf32, #tpu.memory_space<vmem>>, vector<1x64xf32>
    %10 = vector.broadcast %9 : vector<1x64xf32> to vector<8x64xf32>
    %11 = arith.addf %8, %10 : vector<8x64xf32>
    %c0_11 = arith.constant 0 : index
    %c0_12 = arith.constant 0 : index
    %12 = vector.load %arg4[%c0_11, %c0_12] : memref<64x64xf32, #tpu.memory_space<vmem>>, vector<64x64xf32>
    %cst_13 = arith.constant dense<0.000000e+00> : vector<8x64xf32>
    %13 = tpu.matmul %1, %12, %cst_13 {dimension_numbers = #tpu.dot_dimension_numbers<[1], [0], [0], [1], [0, 0, 1, 1], [], []>} : vector<8x64xf32>, vector<64x64xf32>, vector<8x64xf32> -> vector<8x64xf32>
    %c0_14 = arith.constant 0 : index
    %c0_15 = arith.constant 0 : index
    %14 = vector.load %arg7[%c0_14, %c0_15] : memref<1x64xf32, #tpu.memory_space<vmem>>, vector<1x64xf32>
    %15 = vector.broadcast %14 : vector<1x64xf32> to vector<8x64xf32>
    %16 = arith.addf %13, %15 : vector<8x64xf32>
    %17 = vector.extract_strided_slice %6 {offsets = [0, 0], sizes = [8, 8], strides = [1, 1]} : vector<8x64xf32> to vector<8x8xf32>
    %18 = vector.extract_strided_slice %11 {offsets = [0, 0], sizes = [8, 8], strides = [1, 1]} : vector<8x64xf32> to vector<8x8xf32>
    %19 = vector.extract_strided_slice %16 {offsets = [0, 0], sizes = [8, 8], strides = [1, 1]} : vector<8x64xf32> to vector<8x8xf32>
    %cst_16 = arith.constant dense<0.000000e+00> : vector<8x8xf32>
    %20 = tpu.matmul %17, %18, %cst_16 {dimension_numbers = #tpu.dot_dimension_numbers<[1], [1], [0], [0], [0, 0, 1, 0], [], []>} : vector<8x8xf32>, vector<8x8xf32>, vector<8x8xf32> -> vector<8x8xf32>
    %cst_17 = arith.constant 0.353553385 : f32
    %21 = vector.broadcast %cst_17 : f32 to vector<8x8xf32>
    %22 = arith.mulf %20, %21 : vector<8x8xf32>
    %cst_18 = arith.constant dense<0xFF800000> : vector<8xf32>
    %23 = vector.multi_reduction <maximumf>, %22, %cst_18 [1] : vector<8x8xf32> to vector<8xf32>
    %24 = vector.shape_cast %23 : vector<8xf32> to vector<8x1xf32>
    %25 = vector.broadcast %24 : vector<8x1xf32> to vector<8x8xf32>
    %26 = arith.subf %22, %25 : vector<8x8xf32>
    %27 = math.exp %26 : vector<8x8xf32>
    %cst_19 = arith.constant dense<0.000000e+00> : vector<8xf32>
    %28 = vector.multi_reduction <add>, %27, %cst_19 [1] : vector<8x8xf32> to vector<8xf32>
    %29 = vector.shape_cast %28 : vector<8xf32> to vector<8x1xf32>
    %30 = vector.broadcast %29 : vector<8x1xf32> to vector<8x8xf32>
    %31 = arith.divf %27, %30 : vector<8x8xf32>
    %cst_20 = arith.constant dense<0.000000e+00> : vector<8x8xf32>
    %32 = tpu.matmul %31, %19, %cst_20 {dimension_numbers = #tpu.dot_dimension_numbers<[1], [0], [0], [1], [0, 0, 1, 1], [], []>} : vector<8x8xf32>, vector<8x8xf32>, vector<8x8xf32> -> vector<8x8xf32>
    %33 = vector.extract_strided_slice %6 {offsets = [0, 8], sizes = [8, 8], strides = [1, 1]} : vector<8x64xf32> to vector<8x8xf32>
    %34 = vector.extract_strided_slice %11 {offsets = [0, 8], sizes = [8, 8], strides = [1, 1]} : vector<8x64xf32> to vector<8x8xf32>
    %35 = vector.extract_strided_slice %16 {offsets = [0, 8], sizes = [8, 8], strides = [1, 1]} : vector<8x64xf32> to vector<8x8xf32>
    %cst_21 = arith.constant dense<0.000000e+00> : vector<8x8xf32>
    %36 = tpu.matmul %33, %34, %cst_21 {dimension_numbers = #tpu.dot_dimension_numbers<[1], [1], [0], [0], [0, 0, 1, 0], [], []>} : vector<8x8xf32>, vector<8x8xf32>, vector<8x8xf32> -> vector<8x8xf32>
    %cst_22 = arith.constant 0.353553385 : f32
    %37 = vector.broadcast %cst_22 : f32 to vector<8x8xf32>
    %38 = arith.mulf %36, %37 : vector<8x8xf32>
    %cst_23 = arith.constant dense<0xFF800000> : vector<8xf32>
    %39 = vector.multi_reduction <maximumf>, %38, %cst_23 [1] : vector<8x8xf32> to vector<8xf32>
    %40 = vector.shape_cast %39 : vector<8xf32> to vector<8x1xf32>
    %41 = vector.broadcast %40 : vector<8x1xf32> to vector<8x8xf32>
    %42 = arith.subf %38, %41 : vector<8x8xf32>
    %43 = math.exp %42 : vector<8x8xf32>
    %cst_24 = arith.constant dense<0.000000e+00> : vector<8xf32>
    %44 = vector.multi_reduction <add>, %43, %cst_24 [1] : vector<8x8xf32> to vector<8xf32>
    %45 = vector.shape_cast %44 : vector<8xf32> to vector<8x1xf32>
    %46 = vector.broadcast %45 : vector<8x1xf32> to vector<8x8xf32>
    %47 = arith.divf %43, %46 : vector<8x8xf32>
    %cst_25 = arith.constant dense<0.000000e+00> : vector<8x8xf32>
    %48 = tpu.matmul %47, %35, %cst_25 {dimension_numbers = #tpu.dot_dimension_numbers<[1], [0], [0], [1], [0, 0, 1, 1], [], []>} : vector<8x8xf32>, vector<8x8xf32>, vector<8x8xf32> -> vector<8x8xf32>
    %49 = vector.extract_strided_slice %6 {offsets = [0, 16], sizes = [8, 8], strides = [1, 1]} : vector<8x64xf32> to vector<8x8xf32>
    %50 = vector.extract_strided_slice %11 {offsets = [0, 16], sizes = [8, 8], strides = [1, 1]} : vector<8x64xf32> to vector<8x8xf32>
    %51 = vector.extract_strided_slice %16 {offsets = [0, 16], sizes = [8, 8], strides = [1, 1]} : vector<8x64xf32> to vector<8x8xf32>
    %cst_26 = arith.constant dense<0.000000e+00> : vector<8x8xf32>
    %52 = tpu.matmul %49, %50, %cst_26 {dimension_numbers = #tpu.dot_dimension_numbers<[1], [1], [0], [0], [0, 0, 1, 0], [], []>} : vector<8x8xf32>, vector<8x8xf32>, vector<8x8xf32> -> vector<8x8xf32>
    %cst_27 = arith.constant 0.353553385 : f32
    %53 = vector.broadcast %cst_27 : f32 to vector<8x8xf32>
    %54 = arith.mulf %52, %53 : vector<8x8xf32>
    %cst_28 = arith.constant dense<0xFF800000> : vector<8xf32>
    %55 = vector.multi_reduction <maximumf>, %54, %cst_28 [1] : vector<8x8xf32> to vector<8xf32>
    %56 = vector.shape_cast %55 : vector<8xf32> to vector<8x1xf32>
    %57 = vector.broadcast %56 : vector<8x1xf32> to vector<8x8xf32>
    %58 = arith.subf %54, %57 : vector<8x8xf32>
    %59 = math.exp %58 : vector<8x8xf32>
    %cst_29 = arith.constant dense<0.000000e+00> : vector<8xf32>
    %60 = vector.multi_reduction <add>, %59, %cst_29 [1] : vector<8x8xf32> to vector<8xf32>
    %61 = vector.shape_cast %60 : vector<8xf32> to vector<8x1xf32>
    %62 = vector.broadcast %61 : vector<8x1xf32> to vector<8x8xf32>
    %63 = arith.divf %59, %62 : vector<8x8xf32>
    %cst_30 = arith.constant dense<0.000000e+00> : vector<8x8xf32>
    %64 = tpu.matmul %63, %51, %cst_30 {dimension_numbers = #tpu.dot_dimension_numbers<[1], [0], [0], [1], [0, 0, 1, 1], [], []>} : vector<8x8xf32>, vector<8x8xf32>, vector<8x8xf32> -> vector<8x8xf32>
    %65 = vector.extract_strided_slice %6 {offsets = [0, 24], sizes = [8, 8], strides = [1, 1]} : vector<8x64xf32> to vector<8x8xf32>
    %66 = vector.extract_strided_slice %11 {offsets = [0, 24], sizes = [8, 8], strides = [1, 1]} : vector<8x64xf32> to vector<8x8xf32>
    %67 = vector.extract_strided_slice %16 {offsets = [0, 24], sizes = [8, 8], strides = [1, 1]} : vector<8x64xf32> to vector<8x8xf32>
    %cst_31 = arith.constant dense<0.000000e+00> : vector<8x8xf32>
    %68 = tpu.matmul %65, %66, %cst_31 {dimension_numbers = #tpu.dot_dimension_numbers<[1], [1], [0], [0], [0, 0, 1, 0], [], []>} : vector<8x8xf32>, vector<8x8xf32>, vector<8x8xf32> -> vector<8x8xf32>
    %cst_32 = arith.constant 0.353553385 : f32
    %69 = vector.broadcast %cst_32 : f32 to vector<8x8xf32>
    %70 = arith.mulf %68, %69 : vector<8x8xf32>
    %cst_33 = arith.constant dense<0xFF800000> : vector<8xf32>
    %71 = vector.multi_reduction <maximumf>, %70, %cst_33 [1] : vector<8x8xf32> to vector<8xf32>
    %72 = vector.shape_cast %71 : vector<8xf32> to vector<8x1xf32>
    %73 = vector.broadcast %72 : vector<8x1xf32> to vector<8x8xf32>
    %74 = arith.subf %70, %73 : vector<8x8xf32>
    %75 = math.exp %74 : vector<8x8xf32>
    %cst_34 = arith.constant dense<0.000000e+00> : vector<8xf32>
    %76 = vector.multi_reduction <add>, %75, %cst_34 [1] : vector<8x8xf32> to vector<8xf32>
    %77 = vector.shape_cast %76 : vector<8xf32> to vector<8x1xf32>
    %78 = vector.broadcast %77 : vector<8x1xf32> to vector<8x8xf32>
    %79 = arith.divf %75, %78 : vector<8x8xf32>
    %cst_35 = arith.constant dense<0.000000e+00> : vector<8x8xf32>
    %80 = tpu.matmul %79, %67, %cst_35 {dimension_numbers = #tpu.dot_dimension_numbers<[1], [0], [0], [1], [0, 0, 1, 1], [], []>} : vector<8x8xf32>, vector<8x8xf32>, vector<8x8xf32> -> vector<8x8xf32>
    %81 = vector.extract_strided_slice %6 {offsets = [0, 32], sizes = [8, 8], strides = [1, 1]} : vector<8x64xf32> to vector<8x8xf32>
    %82 = vector.extract_strided_slice %11 {offsets = [0, 32], sizes = [8, 8], strides = [1, 1]} : vector<8x64xf32> to vector<8x8xf32>
    %83 = vector.extract_strided_slice %16 {offsets = [0, 32], sizes = [8, 8], strides = [1, 1]} : vector<8x64xf32> to vector<8x8xf32>
    %cst_36 = arith.constant dense<0.000000e+00> : vector<8x8xf32>
    %84 = tpu.matmul %81, %82, %cst_36 {dimension_numbers = #tpu.dot_dimension_numbers<[1], [1], [0], [0], [0, 0, 1, 0], [], []>} : vector<8x8xf32>, vector<8x8xf32>, vector<8x8xf32> -> vector<8x8xf32>
    %cst_37 = arith.constant 0.353553385 : f32
    %85 = vector.broadcast %cst_37 : f32 to vector<8x8xf32>
    %86 = arith.mulf %84, %85 : vector<8x8xf32>
    %cst_38 = arith.constant dense<0xFF800000> : vector<8xf32>
    %87 = vector.multi_reduction <maximumf>, %86, %cst_38 [1] : vector<8x8xf32> to vector<8xf32>
    %88 = vector.shape_cast %87 : vector<8xf32> to vector<8x1xf32>
    %89 = vector.broadcast %88 : vector<8x1xf32> to vector<8x8xf32>
    %90 = arith.subf %86, %89 : vector<8x8xf32>
    %91 = math.exp %90 : vector<8x8xf32>
    %cst_39 = arith.constant dense<0.000000e+00> : vector<8xf32>
    %92 = vector.multi_reduction <add>, %91, %cst_39 [1] : vector<8x8xf32> to vector<8xf32>
    %93 = vector.shape_cast %92 : vector<8xf32> to vector<8x1xf32>
    %94 = vector.broadcast %93 : vector<8x1xf32> to vector<8x8xf32>
    %95 = arith.divf %91, %94 : vector<8x8xf32>
    %cst_40 = arith.constant dense<0.000000e+00> : vector<8x8xf32>
    %96 = tpu.matmul %95, %83, %cst_40 {dimension_numbers = #tpu.dot_dimension_numbers<[1], [0], [0], [1], [0, 0, 1, 1], [], []>} : vector<8x8xf32>, vector<8x8xf32>, vector<8x8xf32> -> vector<8x8xf32>
    %97 = vector.extract_strided_slice %6 {offsets = [0, 40], sizes = [8, 8], strides = [1, 1]} : vector<8x64xf32> to vector<8x8xf32>
    %98 = vector.extract_strided_slice %11 {offsets = [0, 40], sizes = [8, 8], strides = [1, 1]} : vector<8x64xf32> to vector<8x8xf32>
    %99 = vector.extract_strided_slice %16 {offsets = [0, 40], sizes = [8, 8], strides = [1, 1]} : vector<8x64xf32> to vector<8x8xf32>
    %cst_41 = arith.constant dense<0.000000e+00> : vector<8x8xf32>
    %100 = tpu.matmul %97, %98, %cst_41 {dimension_numbers = #tpu.dot_dimension_numbers<[1], [1], [0], [0], [0, 0, 1, 0], [], []>} : vector<8x8xf32>, vector<8x8xf32>, vector<8x8xf32> -> vector<8x8xf32>
    %cst_42 = arith.constant 0.353553385 : f32
    %101 = vector.broadcast %cst_42 : f32 to vector<8x8xf32>
    %102 = arith.mulf %100, %101 : vector<8x8xf32>
    %cst_43 = arith.constant dense<0xFF800000> : vector<8xf32>
    %103 = vector.multi_reduction <maximumf>, %102, %cst_43 [1] : vector<8x8xf32> to vector<8xf32>
    %104 = vector.shape_cast %103 : vector<8xf32> to vector<8x1xf32>
    %105 = vector.broadcast %104 : vector<8x1xf32> to vector<8x8xf32>
    %106 = arith.subf %102, %105 : vector<8x8xf32>
    %107 = math.exp %106 : vector<8x8xf32>
    %cst_44 = arith.constant dense<0.000000e+00> : vector<8xf32>
    %108 = vector.multi_reduction <add>, %107, %cst_44 [1] : vector<8x8xf32> to vector<8xf32>
    %109 = vector.shape_cast %108 : vector<8xf32> to vector<8x1xf32>
    %110 = vector.broadcast %109 : vector<8x1xf32> to vector<8x8xf32>
    %111 = arith.divf %107, %110 : vector<8x8xf32>
    %cst_45 = arith.constant dense<0.000000e+00> : vector<8x8xf32>
    %112 = tpu.matmul %111, %99, %cst_45 {dimension_numbers = #tpu.dot_dimension_numbers<[1], [0], [0], [1], [0, 0, 1, 1], [], []>} : vector<8x8xf32>, vector<8x8xf32>, vector<8x8xf32> -> vector<8x8xf32>
    %113 = vector.extract_strided_slice %6 {offsets = [0, 48], sizes = [8, 8], strides = [1, 1]} : vector<8x64xf32> to vector<8x8xf32>
    %114 = vector.extract_strided_slice %11 {offsets = [0, 48], sizes = [8, 8], strides = [1, 1]} : vector<8x64xf32> to vector<8x8xf32>
    %115 = vector.extract_strided_slice %16 {offsets = [0, 48], sizes = [8, 8], strides = [1, 1]} : vector<8x64xf32> to vector<8x8xf32>
    %cst_46 = arith.constant dense<0.000000e+00> : vector<8x8xf32>
    %116 = tpu.matmul %113, %114, %cst_46 {dimension_numbers = #tpu.dot_dimension_numbers<[1], [1], [0], [0], [0, 0, 1, 0], [], []>} : vector<8x8xf32>, vector<8x8xf32>, vector<8x8xf32> -> vector<8x8xf32>
    %cst_47 = arith.constant 0.353553385 : f32
    %117 = vector.broadcast %cst_47 : f32 to vector<8x8xf32>
    %118 = arith.mulf %116, %117 : vector<8x8xf32>
    %cst_48 = arith.constant dense<0xFF800000> : vector<8xf32>
    %119 = vector.multi_reduction <maximumf>, %118, %cst_48 [1] : vector<8x8xf32> to vector<8xf32>
    %120 = vector.shape_cast %119 : vector<8xf32> to vector<8x1xf32>
    %121 = vector.broadcast %120 : vector<8x1xf32> to vector<8x8xf32>
    %122 = arith.subf %118, %121 : vector<8x8xf32>
    %123 = math.exp %122 : vector<8x8xf32>
    %cst_49 = arith.constant dense<0.000000e+00> : vector<8xf32>
    %124 = vector.multi_reduction <add>, %123, %cst_49 [1] : vector<8x8xf32> to vector<8xf32>
    %125 = vector.shape_cast %124 : vector<8xf32> to vector<8x1xf32>
    %126 = vector.broadcast %125 : vector<8x1xf32> to vector<8x8xf32>
    %127 = arith.divf %123, %126 : vector<8x8xf32>
    %cst_50 = arith.constant dense<0.000000e+00> : vector<8x8xf32>
    %128 = tpu.matmul %127, %115, %cst_50 {dimension_numbers = #tpu.dot_dimension_numbers<[1], [0], [0], [1], [0, 0, 1, 1], [], []>} : vector<8x8xf32>, vector<8x8xf32>, vector<8x8xf32> -> vector<8x8xf32>
    %129 = vector.extract_strided_slice %6 {offsets = [0, 56], sizes = [8, 8], strides = [1, 1]} : vector<8x64xf32> to vector<8x8xf32>
    %130 = vector.extract_strided_slice %11 {offsets = [0, 56], sizes = [8, 8], strides = [1, 1]} : vector<8x64xf32> to vector<8x8xf32>
    %131 = vector.extract_strided_slice %16 {offsets = [0, 56], sizes = [8, 8], strides = [1, 1]} : vector<8x64xf32> to vector<8x8xf32>
    %cst_51 = arith.constant dense<0.000000e+00> : vector<8x8xf32>
    %132 = tpu.matmul %129, %130, %cst_51 {dimension_numbers = #tpu.dot_dimension_numbers<[1], [1], [0], [0], [0, 0, 1, 0], [], []>} : vector<8x8xf32>, vector<8x8xf32>, vector<8x8xf32> -> vector<8x8xf32>
    %cst_52 = arith.constant 0.353553385 : f32
    %133 = vector.broadcast %cst_52 : f32 to vector<8x8xf32>
    %134 = arith.mulf %132, %133 : vector<8x8xf32>
    %cst_53 = arith.constant dense<0xFF800000> : vector<8xf32>
    %135 = vector.multi_reduction <maximumf>, %134, %cst_53 [1] : vector<8x8xf32> to vector<8xf32>
    %136 = vector.shape_cast %135 : vector<8xf32> to vector<8x1xf32>
    %137 = vector.broadcast %136 : vector<8x1xf32> to vector<8x8xf32>
    %138 = arith.subf %134, %137 : vector<8x8xf32>
    %139 = math.exp %138 : vector<8x8xf32>
    %cst_54 = arith.constant dense<0.000000e+00> : vector<8xf32>
    %140 = vector.multi_reduction <add>, %139, %cst_54 [1] : vector<8x8xf32> to vector<8xf32>
    %141 = vector.shape_cast %140 : vector<8xf32> to vector<8x1xf32>
    %142 = vector.broadcast %141 : vector<8x1xf32> to vector<8x8xf32>
    %143 = arith.divf %139, %142 : vector<8x8xf32>
    %cst_55 = arith.constant dense<0.000000e+00> : vector<8x8xf32>
    %144 = tpu.matmul %143, %131, %cst_55 {dimension_numbers = #tpu.dot_dimension_numbers<[1], [0], [0], [1], [0, 0, 1, 1], [], []>} : vector<8x8xf32>, vector<8x8xf32>, vector<8x8xf32> -> vector<8x8xf32>
    %145 = tpu.concatenate %32, %48, %64, %80, %96, %112, %128, %144 in 1 : vector<8x8xf32>, vector<8x8xf32>, vector<8x8xf32>, vector<8x8xf32>, vector<8x8xf32>, vector<8x8xf32>, vector<8x8xf32>, vector<8x8xf32> -> vector<8x64xf32>
    %c0_56 = arith.constant 0 : index
    %c0_57 = arith.constant 0 : index
    %146 = vector.load %arg8[%c0_56, %c0_57] : memref<64x64xf32, #tpu.memory_space<vmem>>, vector<64x64xf32>
    %cst_58 = arith.constant dense<0.000000e+00> : vector<8x64xf32>
    %147 = tpu.matmul %145, %146, %cst_58 {dimension_numbers = #tpu.dot_dimension_numbers<[1], [0], [0], [1], [0, 0, 1, 1], [], []>} : vector<8x64xf32>, vector<64x64xf32>, vector<8x64xf32> -> vector<8x64xf32>
    %148 = arith.addf %1, %147 : vector<8x64xf32>
    %c0_59 = arith.constant 0 : index
    %c0_60 = arith.constant 0 : index
    %149 = vector.load %arg9[%c0_59, %c0_60] : memref<1x64xf32, #tpu.memory_space<vmem>>, vector<1x64xf32>
    %150 = vector.broadcast %149 : vector<1x64xf32> to vector<8x64xf32>
    %151 = arith.addf %148, %150 : vector<8x64xf32>
    %c0_61 = arith.constant 0 : index
    %c0_62 = arith.constant 0 : index
    %152 = vector.load %arg10[%c0_61, %c0_62] : memref<1x64xf32, #tpu.memory_space<vmem>>, vector<1x64xf32>
    %c0_63 = arith.constant 0 : index
    %c0_64 = arith.constant 0 : index
    %153 = vector.load %arg11[%c0_63, %c0_64] : memref<1x64xf32, #tpu.memory_space<vmem>>, vector<1x64xf32>
    %cst_65 = arith.constant dense<0.000000e+00> : vector<8xf32>
    %154 = vector.multi_reduction <add>, %151, %cst_65 [1] : vector<8x64xf32> to vector<8xf32>
    %155 = vector.shape_cast %154 : vector<8xf32> to vector<8x1xf32>
    %cst_66 = arith.constant 6.400000e+01 : f32
    %156 = vector.broadcast %cst_66 : f32 to vector<8x1xf32>
    %157 = arith.divf %155, %156 : vector<8x1xf32>
    %158 = vector.broadcast %157 : vector<8x1xf32> to vector<8x64xf32>
    %159 = arith.subf %151, %158 : vector<8x64xf32>
    %160 = arith.mulf %159, %159 : vector<8x64xf32>
    %cst_67 = arith.constant dense<0.000000e+00> : vector<8xf32>
    %161 = vector.multi_reduction <add>, %160, %cst_67 [1] : vector<8x64xf32> to vector<8xf32>
    %162 = vector.shape_cast %161 : vector<8xf32> to vector<8x1xf32>
    %cst_68 = arith.constant 6.400000e+01 : f32
    %163 = vector.broadcast %cst_68 : f32 to vector<8x1xf32>
    %164 = arith.divf %162, %163 : vector<8x1xf32>
    %165 = vector.broadcast %157 : vector<8x1xf32> to vector<8x64xf32>
    %166 = arith.subf %151, %165 : vector<8x64xf32>
    %cst_69 = arith.constant 9.99999974E-6 : f32
    %167 = vector.broadcast %cst_69 : f32 to vector<8x1xf32>
    %168 = arith.addf %164, %167 : vector<8x1xf32>
    %169 = math.rsqrt %168 : vector<8x1xf32>
    %170 = vector.broadcast %169 : vector<8x1xf32> to vector<8x64xf32>
    %171 = arith.mulf %166, %170 : vector<8x64xf32>
    %172 = vector.broadcast %152 : vector<1x64xf32> to vector<8x64xf32>
    %173 = arith.mulf %171, %172 : vector<8x64xf32>
    %174 = vector.broadcast %153 : vector<1x64xf32> to vector<8x64xf32>
    %175 = arith.addf %173, %174 : vector<8x64xf32>
    %c0_70 = arith.constant 0 : index
    %c0_71 = arith.constant 0 : index
    %176 = vector.load %arg12[%c0_70, %c0_71] : memref<64x256xf32, #tpu.memory_space<vmem>>, vector<64x256xf32>
    %cst_72 = arith.constant dense<0.000000e+00> : vector<8x256xf32>
    %177 = tpu.matmul %175, %176, %cst_72 {dimension_numbers = #tpu.dot_dimension_numbers<[1], [0], [0], [1], [0, 0, 1, 1], [], []>} : vector<8x64xf32>, vector<64x256xf32>, vector<8x256xf32> -> vector<8x256xf32>
    %c0_73 = arith.constant 0 : index
    %c0_74 = arith.constant 0 : index
    %178 = vector.load %arg13[%c0_73, %c0_74] : memref<1x256xf32, #tpu.memory_space<vmem>>, vector<1x256xf32>
    %179 = vector.broadcast %178 : vector<1x256xf32> to vector<8x256xf32>
    %180 = arith.addf %177, %179 : vector<8x256xf32>
    %cst_75 = arith.constant 0.000000e+00 : f32
    %181 = vector.broadcast %cst_75 : f32 to vector<8x256xf32>
    %182 = arith.maximumf %180, %181 : vector<8x256xf32>
    %c0_76 = arith.constant 0 : index
    %c0_77 = arith.constant 0 : index
    %183 = vector.load %arg14[%c0_76, %c0_77] : memref<256x64xf32, #tpu.memory_space<vmem>>, vector<256x64xf32>
    %cst_78 = arith.constant dense<0.000000e+00> : vector<8x64xf32>
    %184 = tpu.matmul %182, %183, %cst_78 {dimension_numbers = #tpu.dot_dimension_numbers<[1], [0], [0], [1], [0, 0, 1, 1], [], []>} : vector<8x256xf32>, vector<256x64xf32>, vector<8x64xf32> -> vector<8x64xf32>
    %c0_79 = arith.constant 0 : index
    %c0_80 = arith.constant 0 : index
    %185 = vector.load %arg15[%c0_79, %c0_80] : memref<1x64xf32, #tpu.memory_space<vmem>>, vector<1x64xf32>
    %186 = vector.broadcast %185 : vector<1x64xf32> to vector<8x64xf32>
    %187 = arith.addf %184, %186 : vector<8x64xf32>
    %188 = arith.addf %175, %187 : vector<8x64xf32>
    %c0_81 = arith.constant 0 : index
    %c0_82 = arith.constant 0 : index
    %189 = vector.load %arg16[%c0_81, %c0_82] : memref<1x64xf32, #tpu.memory_space<vmem>>, vector<1x64xf32>
    %c0_83 = arith.constant 0 : index
    %c0_84 = arith.constant 0 : index
    %190 = vector.load %arg17[%c0_83, %c0_84] : memref<1x64xf32, #tpu.memory_space<vmem>>, vector<1x64xf32>
    %cst_85 = arith.constant dense<0.000000e+00> : vector<8xf32>
    %191 = vector.multi_reduction <add>, %188, %cst_85 [1] : vector<8x64xf32> to vector<8xf32>
    %192 = vector.shape_cast %191 : vector<8xf32> to vector<8x1xf32>
    %cst_86 = arith.constant 6.400000e+01 : f32
    %193 = vector.broadcast %cst_86 : f32 to vector<8x1xf32>
    %194 = arith.divf %192, %193 : vector<8x1xf32>
    %195 = vector.broadcast %194 : vector<8x1xf32> to vector<8x64xf32>
    %196 = arith.subf %188, %195 : vector<8x64xf32>
    %197 = arith.mulf %196, %196 : vector<8x64xf32>
    %cst_87 = arith.constant dense<0.000000e+00> : vector<8xf32>
    %198 = vector.multi_reduction <add>, %197, %cst_87 [1] : vector<8x64xf32> to vector<8xf32>
    %199 = vector.shape_cast %198 : vector<8xf32> to vector<8x1xf32>
    %cst_88 = arith.constant 6.400000e+01 : f32
    %200 = vector.broadcast %cst_88 : f32 to vector<8x1xf32>
    %201 = arith.divf %199, %200 : vector<8x1xf32>
    %202 = vector.broadcast %194 : vector<8x1xf32> to vector<8x64xf32>
    %203 = arith.subf %188, %202 : vector<8x64xf32>
    %cst_89 = arith.constant 9.99999974E-6 : f32
    %204 = vector.broadcast %cst_89 : f32 to vector<8x1xf32>
    %205 = arith.addf %201, %204 : vector<8x1xf32>
    %206 = math.rsqrt %205 : vector<8x1xf32>
    %207 = vector.broadcast %206 : vector<8x1xf32> to vector<8x64xf32>
    %208 = arith.mulf %203, %207 : vector<8x64xf32>
    %209 = vector.broadcast %189 : vector<1x64xf32> to vector<8x64xf32>
    %210 = arith.mulf %208, %209 : vector<8x64xf32>
    %211 = vector.broadcast %190 : vector<1x64xf32> to vector<8x64xf32>
    %212 = arith.addf %210, %211 : vector<8x64xf32>
    %c0_90 = arith.constant 0 : index
    %c0_91 = arith.constant 0 : index
    %213 = vector.load %arg18[%c0_90, %c0_91] : memref<64x64xf32, #tpu.memory_space<vmem>>, vector<64x64xf32>
    %cst_92 = arith.constant dense<0.000000e+00> : vector<8x64xf32>
    %214 = tpu.matmul %212, %213, %cst_92 {dimension_numbers = #tpu.dot_dimension_numbers<[1], [0], [0], [1], [0, 0, 1, 1], [], []>} : vector<8x64xf32>, vector<64x64xf32>, vector<8x64xf32> -> vector<8x64xf32>
    %c0_93 = arith.constant 0 : index
    %c0_94 = arith.constant 0 : index
    %215 = vector.load %arg19[%c0_93, %c0_94] : memref<1x64xf32, #tpu.memory_space<vmem>>, vector<1x64xf32>
    %216 = vector.broadcast %215 : vector<1x64xf32> to vector<8x64xf32>
    %217 = arith.addf %214, %216 : vector<8x64xf32>
    %cst_95 = arith.constant 0.000000e+00 : f32
    %218 = vector.broadcast %cst_95 : f32 to vector<8x64xf32>
    %219 = arith.maximumf %217, %218 : vector<8x64xf32>
    %c0_96 = arith.constant 0 : index
    %c0_97 = arith.constant 0 : index
    %220 = vector.load %arg20[%c0_96, %c0_97] : memref<64x64xf32, #tpu.memory_space<vmem>>, vector<64x64xf32>
    %cst_98 = arith.constant dense<0.000000e+00> : vector<8x64xf32>
    %221 = tpu.matmul %219, %220, %cst_98 {dimension_numbers = #tpu.dot_dimension_numbers<[1], [0], [0], [1], [0, 0, 1, 1], [], []>} : vector<8x64xf32>, vector<64x64xf32>, vector<8x64xf32> -> vector<8x64xf32>
    %c0_99 = arith.constant 0 : index
    %c0_100 = arith.constant 0 : index
    %222 = vector.load %arg21[%c0_99, %c0_100] : memref<1x64xf32, #tpu.memory_space<vmem>>, vector<1x64xf32>
    %223 = vector.broadcast %222 : vector<1x64xf32> to vector<8x64xf32>
    %224 = arith.addf %221, %223 : vector<8x64xf32>
    %c0_101 = arith.constant 0 : index
    %c0_102 = arith.constant 0 : index
    %c0_103 = arith.constant 0 : index
    %225 = vector.load %arg26[%c0_101, %c0_102, %c0_103] : memref<1x8x64xf32, #tpu.memory_space<vmem>>, vector<1x8x64xf32>
    %226 = vector.shape_cast %225 : vector<1x8x64xf32> to vector<8x64xf32>
    %227 = vector.shape_cast %224 : vector<8x64xf32> to vector<1x8x64xf32>
    tpu.vector_store %arg26[%c0_101, %c0_102, %c0_103], %227 {strides = array<i32>} : memref<1x8x64xf32, #tpu.memory_space<vmem>>, vector<1x8x64xf32>,
    %c0_104 = arith.constant 0 : index
    %c0_105 = arith.constant 0 : index
    %228 = vector.load %arg22[%c0_104, %c0_105] : memref<64x64xf32, #tpu.memory_space<vmem>>, vector<64x64xf32>
    %cst_106 = arith.constant dense<0.000000e+00> : vector<8x64xf32>
    %229 = tpu.matmul %224, %228, %cst_106 {dimension_numbers = #tpu.dot_dimension_numbers<[1], [0], [0], [1], [0, 0, 1, 1], [], []>} : vector<8x64xf32>, vector<64x64xf32>, vector<8x64xf32> -> vector<8x64xf32>
    %c0_107 = arith.constant 0 : index
    %c0_108 = arith.constant 0 : index
    %230 = vector.load %arg23[%c0_107, %c0_108] : memref<1x64xf32, #tpu.memory_space<vmem>>, vector<1x64xf32>
    %231 = vector.broadcast %230 : vector<1x64xf32> to vector<8x64xf32>
    %232 = arith.addf %229, %231 : vector<8x64xf32>
    %cst_109 = arith.constant 0.000000e+00 : f32
    %233 = vector.broadcast %cst_109 : f32 to vector<8x64xf32>
    %234 = arith.maximumf %232, %233 : vector<8x64xf32>
    %c0_110 = arith.constant 0 : index
    %c0_111 = arith.constant 0 : index
    %235 = vector.load %arg24[%c0_110, %c0_111] : memref<64x128xf32, #tpu.memory_space<vmem>>, vector<64x128xf32>
    %cst_112 = arith.constant dense<0.000000e+00> : vector<8x128xf32>
    %236 = tpu.matmul %234, %235, %cst_112 {dimension_numbers = #tpu.dot_dimension_numbers<[1], [0], [0], [1], [0, 0, 1, 1], [], []>} : vector<8x64xf32>, vector<64x128xf32>, vector<8x128xf32> -> vector<8x128xf32>
    %c0_113 = arith.constant 0 : index
    %c0_114 = arith.constant 0 : index
    %237 = vector.load %arg25[%c0_113, %c0_114] : memref<1x128xf32, #tpu.memory_space<vmem>>, vector<1x128xf32>
    %238 = vector.broadcast %237 : vector<1x128xf32> to vector<8x128xf32>
    %239 = arith.addf %236, %238 : vector<8x128xf32>
    %c0_115 = arith.constant 0 : index
    %c0_116 = arith.constant 0 : index
    %c0_117 = arith.constant 0 : index
    %240 = vector.load %arg27[%c0_115, %c0_116, %c0_117] : memref<1x8x128xf32, #tpu.memory_space<vmem>>, vector<1x8x128xf32>
    %241 = vector.shape_cast %240 : vector<1x8x128xf32> to vector<8x128xf32>
    %242 = vector.shape_cast %239 : vector<8x128xf32> to vector<1x8x128xf32>
    tpu.vector_store %arg27[%c0_115, %c0_116, %c0_117], %242 {strides = array<i32>} : memref<1x8x128xf32, #tpu.memory_space<vmem>>, vector<1x8x128xf32>,
    return
  }
  func.func @transform_0(%arg0: i32) -> (i32, i32, i32) {
    %c0_i32 = arith.constant 0 : i32
    %c0_i32_0 = arith.constant 0 : i32
    %c0_i32_1 = arith.constant 0 : i32
    return %arg0, %c0_i32, %c0_i32_0 : i32, i32, i32
  }
  func.func @transform_1(%arg0: i32) -> (i32, i32) {
    %c0_i32 = arith.constant 0 : i32
    %c0_i32_0 = arith.constant 0 : i32
    %c0_i32_1 = arith.constant 0 : i32
    return %c0_i32, %c0_i32_0 : i32, i32
  }
  func.func @transform_2(%arg0: i32) -> (i32, i32) {
    %c0_i32 = arith.constant 0 : i32
    %c0_i32_0 = arith.constant 0 : i32
    %c0_i32_1 = arith.constant 0 : i32
    return %c0_i32, %c0_i32_0 : i32, i32
  }
  func.func @transform_3(%arg0: i32) -> (i32, i32) {
    %c0_i32 = arith.constant 0 : i32
    %c0_i32_0 = arith.constant 0 : i32
    %c0_i32_1 = arith.constant 0 : i32
    return %c0_i32, %c0_i32_0 : i32, i32
  }
  func.func @transform_4(%arg0: i32) -> (i32, i32) {
    %c0_i32 = arith.constant 0 : i32
    %c0_i32_0 = arith.constant 0 : i32
    %c0_i32_1 = arith.constant 0 : i32
    return %c0_i32, %c0_i32_0 : i32, i32
  }
  func.func @transform_5(%arg0: i32) -> (i32, i32) {
    %c0_i32 = arith.constant 0 : i32
    %c0_i32_0 = arith.constant 0 : i32
    %c0_i32_1 = arith.constant 0 : i32
    return %c0_i32, %c0_i32_0 : i32, i32
  }
  func.func @transform_6(%arg0: i32) -> (i32, i32) {
    %c0_i32 = arith.constant 0 : i32
    %c0_i32_0 = arith.constant 0 : i32
    %c0_i32_1 = arith.constant 0 : i32
    return %c0_i32, %c0_i32_0 : i32, i32
  }
  func.func @transform_7(%arg0: i32) -> (i32, i32) {
    %c0_i32 = arith.constant 0 : i32
    %c0_i32_0 = arith.constant 0 : i32
    %c0_i32_1 = arith.constant 0 : i32
    return %c0_i32, %c0_i32_0 : i32, i32
  }
  func.func @transform_8(%arg0: i32) -> (i32, i32) {
    %c0_i32 = arith.constant 0 : i32
    %c0_i32_0 = arith.constant 0 : i32
    %c0_i32_1 = arith.constant 0 : i32
    return %c0_i32, %c0_i32_0 : i32, i32
  }
  func.func @transform_9(%arg0: i32) -> (i32, i32) {
    %c0_i32 = arith.constant 0 : i32
    %c0_i32_0 = arith.constant 0 : i32
    %c0_i32_1 = arith.constant 0 : i32
    return %c0_i32, %c0_i32_0 : i32, i32
  }
  func.func @transform_10(%arg0: i32) -> (i32, i32) {
    %c0_i32 = arith.constant 0 : i32
    %c0_i32_0 = arith.constant 0 : i32
    %c0_i32_1 = arith.constant 0 : i32
    return %c0_i32, %c0_i32_0 : i32, i32
  }
  func.func @transform_11(%arg0: i32) -> (i32, i32) {
    %c0_i32 = arith.constant 0 : i32
    %c0_i32_0 = arith.constant 0 : i32
    %c0_i32_1 = arith.constant 0 : i32
    return %c0_i32, %c0_i32_0 : i32, i32
  }
  func.func @transform_12(%arg0: i32) -> (i32, i32) {
    %c0_i32 = arith.constant 0 : i32
    %c0_i32_0 = arith.constant 0 : i32
    %c0_i32_1 = arith.constant 0 : i32
    return %c0_i32, %c0_i32_0 : i32, i32
  }
  func.func @transform_13(%arg0: i32) -> (i32, i32) {
    %c0_i32 = arith.constant 0 : i32
    %c0_i32_0 = arith.constant 0 : i32
    %c0_i32_1 = arith.constant 0 : i32
    return %c0_i32, %c0_i32_0 : i32, i32
  }
  func.func @transform_14(%arg0: i32) -> (i32, i32) {
    %c0_i32 = arith.constant 0 : i32
    %c0_i32_0 = arith.constant 0 : i32
    %c0_i32_1 = arith.constant 0 : i32
    return %c0_i32, %c0_i32_0 : i32, i32
  }
  func.func @transform_15(%arg0: i32) -> (i32, i32) {
    %c0_i32 = arith.constant 0 : i32
    %c0_i32_0 = arith.constant 0 : i32
    %c0_i32_1 = arith.constant 0 : i32
    return %c0_i32, %c0_i32_0 : i32, i32
  }
  func.func @transform_16(%arg0: i32) -> (i32, i32) {
    %c0_i32 = arith.constant 0 : i32
    %c0_i32_0 = arith.constant 0 : i32
    %c0_i32_1 = arith.constant 0 : i32
    return %c0_i32, %c0_i32_0 : i32, i32
  }
  func.func @transform_17(%arg0: i32) -> (i32, i32) {
    %c0_i32 = arith.constant 0 : i32
    %c0_i32_0 = arith.constant 0 : i32
    %c0_i32_1 = arith.constant 0 : i32
    return %c0_i32, %c0_i32_0 : i32, i32
  }
  func.func @transform_18(%arg0: i32) -> (i32, i32) {
    %c0_i32 = arith.constant 0 : i32
    %c0_i32_0 = arith.constant 0 : i32
    %c0_i32_1 = arith.constant 0 : i32
    return %c0_i32, %c0_i32_0 : i32, i32
  }
  func.func @transform_19(%arg0: i32) -> (i32, i32) {
    %c0_i32 = arith.constant 0 : i32
    %c0_i32_0 = arith.constant 0 : i32
    %c0_i32_1 = arith.constant 0 : i32
    return %c0_i32, %c0_i32_0 : i32, i32
  }
  func.func @transform_20(%arg0: i32) -> (i32, i32) {
    %c0_i32 = arith.constant 0 : i32
    %c0_i32_0 = arith.constant 0 : i32
    %c0_i32_1 = arith.constant 0 : i32
    return %c0_i32, %c0_i32_0 : i32, i32
  }
  func.func @transform_21(%arg0: i32) -> (i32, i32) {
    %c0_i32 = arith.constant 0 : i32
    %c0_i32_0 = arith.constant 0 : i32
    %c0_i32_1 = arith.constant 0 : i32
    return %c0_i32, %c0_i32_0 : i32, i32
  }
  func.func @transform_22(%arg0: i32) -> (i32, i32) {
    %c0_i32 = arith.constant 0 : i32
    %c0_i32_0 = arith.constant 0 : i32
    %c0_i32_1 = arith.constant 0 : i32
    return %c0_i32, %c0_i32_0 : i32, i32
  }
  func.func @transform_23(%arg0: i32) -> (i32, i32) {
    %c0_i32 = arith.constant 0 : i32
    %c0_i32_0 = arith.constant 0 : i32
    %c0_i32_1 = arith.constant 0 : i32
    return %c0_i32, %c0_i32_0 : i32, i32
  }
  func.func @transform_24(%arg0: i32) -> (i32, i32) {
    %c0_i32 = arith.constant 0 : i32
    %c0_i32_0 = arith.constant 0 : i32
    %c0_i32_1 = arith.constant 0 : i32
    return %c0_i32, %c0_i32_0 : i32, i32
  }
  func.func @transform_25(%arg0: i32) -> (i32, i32, i32) {
    %c0_i32 = arith.constant 0 : i32
    %c0_i32_0 = arith.constant 0 : i32
    %c0_i32_1 = arith.constant 0 : i32
    return %arg0, %c0_i32, %c0_i32_0 : i32, i32, i32
  }
  func.func @transform_26(%arg0: i32) -> (i32, i32, i32) {
    %c0_i32 = arith.constant 0 : i32
    %c0_i32_0 = arith.constant 0 : i32
    %c0_i32_1 = arith.constant 0 : i32
    return %arg0, %c0_i32, %c0_i32_0 : i32, i32, i32
  }
}

</mosaic_0001>

<llo_original>
// kernel: rna3d_forward.7
$region0: #{rna3d_forward.7}
  #allocation0 [shape = 'u32[]', space=smem, size = 0x4, offset = 0x4, fixed_abs, tag = 'smem constant byte address 0x4 - core index']
  #allocation1 [shape = 'u32[144,128]{1,0:T(1,128)}', space=vmem, size = 0x12000, scoped, tag = 'internal scratch']
  %s0 = inlined_call_operand.vmem [shape: f32[16,4], index: 0, kind: input, shape index: {}]
  %s1 = inlined_call_operand.vmem [shape: f32[4,32], index: 1, kind: input, shape index: {}]
  %s2 = inlined_call_operand.vmem [shape: f32[1,32], index: 2, kind: input, shape index: {}]
  %s3 = inlined_call_operand.hbm [shape: f32[32,256], index: 3, kind: input, shape index: {}]
  %s4 = inlined_call_operand.vmem [shape: f32[1,256], index: 4, kind: input, shape index: {}]
  %s5 = inlined_call_operand.vmem [shape: f32[16,256], index: 5, kind: output, shape index: {}]
  %s6 = sld [smem:[#allocation0]]
  $region34: #{rna3d_forward.7} parent=0
    _
  %s8 = ssub.s32 1, %s6
  %s9 = scalar_select 0, %s8, %s6
  $region1: #{rna3d_forward.7} parent=0
    #allocation2 [shape = 'u8[32768]{0}', space=vmem, size = 0x8000, scoped, tag = 'input window, operand 3, single buffered']
    #allocation3 [shape = 's32[1]{0}', space=sflag, size = 0x4, scoped, tag = 'scoped memory for rna3d_forward.7']
    %10 = vsyncpa [#allocation3], 0
    // Predicated region
    $region2: #{rna3d_forward.7} parent=1 // pred_check
      _
    $region3: #{rna3d_forward.7} parent=1 // pred_check_branch
      %12 = sbr.rel (0) target = $region5
    $region4: #{rna3d_forward.7} parent=1 // pred_region
      _
    $region5: #{rna3d_forward.7} parent=1 // pred_fallthru
      _
    // Predicated region
    $region6: #{rna3d_forward.7} parent=1 // pred_check
      _
    $region7: #{rna3d_forward.7} parent=1 // pred_check_branch
      %14 = sbr.rel (0) target = $region9
    $region8: #{rna3d_forward.7} parent=1 // pred_region
      _
    $region9: #{rna3d_forward.7} parent=1 // pred_fallthru
      _
    // Predicated region
    $region10: #{rna3d_forward.7} parent=1 // pred_check
      _
    $region11: #{rna3d_forward.7} parent=1 // pred_check_branch
      %16 = sbr.rel (0) target = $region13
    $region12: #{rna3d_forward.7} parent=1 // pred_region
      _
    $region13: #{rna3d_forward.7} parent=1 // pred_fallthru
      _
    // Predicated region
    $region14: #{rna3d_forward.7} parent=1 // pred_check
      _
    $region15: #{rna3d_forward.7} parent=1 // pred_check_branch
      %18 = sbr.rel (0) target = $region17
    $region16: #{rna3d_forward.7} parent=1 // pred_region
      %s20 = ssub.s32 1024, 1024
      %21 = vsyncadd [#allocation3], %s20
      %s22 = sshll.u32 [#allocation2], 4
      %s23 = int_to_ptr.vmem [resolvable:$true] %s22
      %28 = dma.hbm_to_vmem [thread:$0]  %s3, 1024, %s23, [#allocation3], 256, 256, 16
    $region17: #{rna3d_forward.7} parent=1 // pred_fallthru
      _
    // Predicated region
    $region18: #{rna3d_forward.7} parent=1 // pred_check
      _
    $region19: #{rna3d_forward.7} parent=1 // pred_check_branch
      %30 = sbr.rel (0) target = $region21
    $region20: #{rna3d_forward.7} parent=1 // pred_region
      _
    $region21: #{rna3d_forward.7} parent=1 // pred_fallthru
      _
    // Predicated region
    $region22: #{rna3d_forward.7} parent=1 // pred_check
      _
    $region23: #{rna3d_forward.7} parent=1 // pred_check_branch
      %32 = sbr.rel (0) target = $region25
    $region24: #{rna3d_forward.7} parent=1 // pred_region
      %33 = dma.done [#allocation3], 1024
    $region25: #{rna3d_forward.7} parent=1 // pred_fallthru
      _
    %v34 = vld [vmem:[%s0] sm:$0xff]
    %v35 = vld [vmem:[%s0 + $0x8] sm:$0xff]
    %v36 = vld [vmem:[%s1] sm:$0xf]
    %v37 = vld [vmem:[%s2] sm:$0x1]
    %v39 = vlaneseq
    %v40 = vshrl.u32 %v39, 7
    %v41 = vsub.s32 0, %v40
    %v42 = vrot.slane %v37, %v41
    %vm44 = vcmask 31744
    %v46 = vsel %vm44, %v34, 0
    %v49 = vsel %vm44, %v35, 0
    %vm51 = vcmask 1043456
    %v53 = vsel %vm51, %v36, 0
    %55 = vmatprep.subr.mxu0 0.0
    %56 = vmatpush1.msra.mxu0 0.0
    %57 = vmatprep.subr.mxu0 0.0
    %58 = vmatpush1.msra.mxu0 0.0
    %59 = vmatprep.subr.mxu0 0.0
    %60 = vmatpush1.msra.mxu0 0.0
    %61 = vmatprep.subr.mxu0 0.0
    %62 = vmatpush1.msra.mxu0 0.0
    %63 = vmatprep.subr.mxu0 0.0
    %64 = vmatpush1.msra.mxu0 0.0
    %65 = vmatprep.subr.mxu0 0.0
    %66 = vmatpush1.msra.mxu0 0.0
    %67 = vmatprep.subr.mxu0 0.0
    %68 = vmatpush1.msra.mxu0 0.0
    %69 = vmatprep.subr.mxu0 0.0
    %70 = vmatpush1.msra.mxu0 0.0
    %71 = vmatprep.subr.mxu0 0.0
    %72 = vmatpush1.msra.mxu0 0.0
    %73 = vmatprep.subr.mxu0 0.0
    %74 = vmatpush1.msra.mxu0 0.0
    %75 = vmatprep.subr.mxu0 0.0
    %76 = vmatpush1.msra.mxu0 0.0
    %77 = vmatprep.subr.mxu0 0.0
    %78 = vmatpush1.msra.mxu0 0.0
    %79 = vmatprep.subr.mxu0 0.0
    %80 = vmatpush1.msra.mxu0 0.0
    %81 = vmatprep.subr.mxu0 0.0
    %82 = vmatpush1.msra.mxu0 0.0
    %83 = vmatprep.subr.mxu0 0.0
    %84 = vmatpush1.msra.mxu0 0.0
    %85 = vmatprep.subr.mxu0 0.0
    %86 = vmatpush1.msra.mxu0 %v53
    %87 = vmatprep.subr.mxu0 0.0
    %88 = vmatpush2.msra.mxu0 0.0
    %89 = vmatprep.subr.mxu0 0.0
    %90 = vmatpush2.msra.mxu0 0.0
    %91 = vmatprep.subr.mxu0 0.0
    %92 = vmatpush2.msra.mxu0 0.0
    %93 = vmatprep.subr.mxu0 0.0
    %94 = vmatpush2.msra.mxu0 0.0
    %95 = vmatprep.subr.mxu0 0.0
    %96 = vmatpush2.msra.mxu0 0.0
    %97 = vmatprep.subr.mxu0 0.0
    %98 = vmatpush2.msra.mxu0 0.0
    %99 = vmatprep.subr.mxu0 0.0
    %100 = vmatpush2.msra.mxu0 0.0
    %101 = vmatprep.subr.mxu0 0.0
    %102 = vmatpush2.msra.mxu0 0.0
    %103 = vmatprep.subr.mxu0 0.0
    %104 = vmatpush2.msra.mxu0 0.0
    %105 = vmatprep.subr.mxu0 0.0
    %106 = vmatpush2.msra.mxu0 0.0
    %107 = vmatprep.subr.mxu0 0.0
    %108 = vmatpush2.msra.mxu0 0.0
    %109 = vmatprep.subr.mxu0 0.0
    %110 = vmatpush2.msra.mxu0 0.0
    %111 = vmatprep.subr.mxu0 0.0
    %112 = vmatpush2.msra.mxu0 0.0
    %113 = vmatprep.subr.mxu0 0.0
    %114 = vmatpush2.msra.mxu0 0.0
    %115 = vmatprep.subr.mxu0 0.0
    %116 = vmatpush2.msra.mxu0 0.0
    %117 = vmatprep.subr.mxu0 0.0
    %118 = vmatpush2.msra.mxu0 0.0
    %119 = vmatprep.mubr.f32.mxu0 0.0
    %120 = vmatmul.mubr.f32.gmra.mxu0 %v46
    %v121 = vpop.f32.mrf.mxu0
    %v122 = vadd.f32 %v42, %v121
    %v123 = vpop.f32.mrf.mxu0
    %124 = vmatprep.mubr.f32.mxu0 0.0
    %125 = vmatmul.mubr.f32.gmra.mxu0 %v49
    %v126 = vpop.f32.mrf.mxu0
    %v127 = vadd.f32 %v42, %v126
    %v128 = vpop.f32.mrf.mxu0
    %129 = vdwg.mxu0
    %v130 = vmax.f32 %v122, 0.0
    %v131 = vmax.f32 %v127, 0.0
    %v132 = vld [vmem:[#allocation2] sm:$0xff]
    %v133 = vld [vmem:[#allocation2 + $0x8] sm:$0xff]
    %v134 = vld [vmem:[#allocation2 + $0x10] sm:$0xff]
    %v135 = vld [vmem:[#allocation2 + $0x18] sm:$0xff]
    %v136 = vld [vmem:[#allocation2 + $0x20] sm:$0xff]
    %v137 = vld [vmem:[#allocation2 + $0x28] sm:$0xff]
    %v138 = vld [vmem:[#allocation2 + $0x30] sm:$0xff]
    %v139 = vld [vmem:[#allocation2 + $0x38] sm:$0xff]
    %v140 = vld [vmem:[%s4] sm:$0x3]
    %v142 = vlaneseq
    %v143 = vshrl.u32 %v142, 7
    %v144 = vsub.s32 0, %v143
    %v145 = vrot.slane %v140, %v144
    %v146 = vlaneseq
    %v147 = vshrl.u32 %v146, 7
    %v148 = vsub.s32 1, %v147
    %v149 = vrot.slane %v140, %v148
    %vm152 = vcmask 261120
    %v154 = vsel %vm152, %v130, 0
    %v157 = vsel %vm152, %v131, 0
    %159 = vmatprep.subr.mxu0 0.0
    %160 = vmatpush1.msra.mxu0 0.0
    %161 = vmatprep.subr.mxu0 0.0
    %162 = vmatpush1.msra.mxu0 0.0
    %163 = vmatprep.subr.mxu0 0.0
    %164 = vmatpush1.msra.mxu0 0.0
    %165 = vmatprep.subr.mxu0 0.0
    %166 = vmatpush1.msra.mxu0 0.0
    %167 = vmatprep.subr.mxu0 0.0
    %168 = vmatpush1.msra.mxu0 0.0
    %169 = vmatprep.subr.mxu0 0.0
    %170 = vmatpush1.msra.mxu0 0.0
    %171 = vmatprep.subr.mxu0 0.0
    %172 = vmatpush1.msra.mxu0 0.0
    %173 = vmatprep.subr.mxu0 0.0
    %174 = vmatpush1.msra.mxu0 0.0
    %175 = vmatprep.subr.mxu0 0.0
    %176 = vmatpush1.msra.mxu0 0.0
    %177 = vmatprep.subr.mxu0 0.0
    %178 = vmatpush1.msra.mxu0 0.0
    %179 = vmatprep.subr.mxu0 0.0
    %180 = vmatpush1.msra.mxu0 0.0
    %181 = vmatprep.subr.mxu0 0.0
    %182 = vmatpush1.msra.mxu0 0.0
    %183 = vmatprep.subr.mxu0 %v139
    %184 = vmatpush1.msra.mxu0 %v138
    %185 = vmatprep.subr.mxu0 %v137
    %186 = vmatpush1.msra.mxu0 %v136
    %187 = vmatprep.subr.mxu0 %v135
    %188 = vmatpush1.msra.mxu0 %v134
    %189 = vmatprep.subr.mxu0 %v133
    %190 = vmatpush1.msra.mxu0 %v132
    %191 = vmatprep.subr.mxu0 0.0
    %192 = vmatpush2.msra.mxu0 0.0
    %193 = vmatprep.subr.mxu0 0.0
    %194 = vmatpush2.msra.mxu0 0.0
    %195 = vmatprep.subr.mxu0 0.0
    %196 = vmatpush2.msra.mxu0 0.0
    %197 = vmatprep.subr.mxu0 0.0
    %198 = vmatpush2.msra.mxu0 0.0
    %199 = vmatprep.subr.mxu0 0.0
    %200 = vmatpush2.msra.mxu0 0.0
    %201 = vmatprep.subr.mxu0 0.0
    %202 = vmatpush2.msra.mxu0 0.0
    %203 = vmatprep.subr.mxu0 0.0
    %204 = vmatpush2.msra.mxu0 0.0
    %205 = vmatprep.subr.mxu0 0.0
    %206 = vmatpush2.msra.mxu0 0.0
    %207 = vmatprep.subr.mxu0 0.0
    %208 = vmatpush2.msra.mxu0 0.0
    %209 = vmatprep.subr.mxu0 0.0
    %210 = vmatpush2.msra.mxu0 0.0
    %211 = vmatprep.subr.mxu0 0.0
    %212 = vmatpush2.msra.mxu0 0.0
    %213 = vmatprep.subr.mxu0 0.0
    %214 = vmatpush2.msra.mxu0 0.0
    %215 = vmatprep.subr.mxu0 0.0
    %216 = vmatpush2.msra.mxu0 0.0
    %217 = vmatprep.subr.mxu0 0.0
    %218 = vmatpush2.msra.mxu0 0.0
    %219 = vmatprep.subr.mxu0 0.0
    %220 = vmatpush2.msra.mxu0 0.0
    %221 = vmatprep.subr.mxu0 0.0
    %222 = vmatpush2.msra.mxu0 0.0
    %223 = vmatprep.mubr.f32.mxu0 0.0
    %224 = vmatmul.mubr.f32.gmra.mxu0 %v154
    %v225 = vpop.f32.mrf.mxu0
    %v226 = vadd.f32 %v145, %v225
    %v227 = vpop.f32.mrf.mxu0
    %v228 = vadd.f32 %v149, %v227
    %229 = vmatprep.mubr.f32.mxu0 0.0
    %230 = vmatmul.mubr.f32.gmra.mxu0 %v157
    %v231 = vpop.f32.mrf.mxu0
    %v232 = vadd.f32 %v145, %v231
    %v233 = vpop.f32.mrf.mxu0
    %v234 = vadd.f32 %v149, %v233
    %235 = vdwg.mxu0
    %236 = vst [vmem:[%s5] sm:$0xff] %v226
    %237 = vst [vmem:[%s5 + $0x8] sm:$0xff] %v228
    %238 = vst [vmem:[%s5 + $0x10] sm:$0xff] %v232
    %239 = vst [vmem:[%s5 + $0x18] sm:$0xff] %v234
    // Predicated region
    $region26: #{rna3d_forward.7} parent=1 // pred_check
      _
    $region27: #{rna3d_forward.7} parent=1 // pred_check_branch
      %241 = sbr.rel (0) target = $region29
    $region28: #{rna3d_forward.7} parent=1 // pred_region
      _
    $region29: #{rna3d_forward.7} parent=1 // pred_fallthru
      _
    // Predicated region
    $region30: #{rna3d_forward.7} parent=1 // pred_check
      _
    $region31: #{rna3d_forward.7} parent=1 // pred_check_branch
      %243 = sbr.rel (0) target = $region33
    $region32: #{rna3d_forward.7} parent=1 // pred_region
      _
    $region33: #{rna3d_forward.7} parent=1 // pred_fallthru
      _
    %244 = vsyncpa [#allocation3], 1

// kernel: rna3d_forward.9
$region0: #{rna3d_forward.9}
  #allocation0 [shape = 'u32[]', space=smem, size = 0x4, offset = 0x4, fixed_abs, tag = 'smem constant byte address 0x4 - core index']
  #allocation1 [shape = 'u32[144,128]{1,0:T(1,128)}', space=vmem, size = 0x12000, scoped, tag = 'internal scratch']
  %s0 = inlined_call_operand.vmem [shape: f32[16,64], index: 0, kind: input, shape index: {}]
  %s1 = inlined_call_operand.vmem [shape: f32[64,256], index: 1, kind: input, shape index: {}]
  %s2 = inlined_call_operand.vmem [shape: f32[1,256], index: 2, kind: input, shape index: {}]
  %s3 = inlined_call_operand.vmem [shape: f32[16,256], index: 3, kind: output, shape index: {}]
  %s4 = sld [smem:[#allocation0]]
  $region22: #{rna3d_forward.9} parent=0
    _
  %s6 = ssub.s32 1, %s4
  %s7 = scalar_select 0, %s6, %s4
  // Predicated region
  $region2: #{rna3d_forward.9} parent=0 // pred_check
    _
  $region3: #{rna3d_forward.9} parent=0 // pred_check_branch
    %9 = sbr.rel (0) target = $region5
  $region4: #{rna3d_forward.9} parent=0 // pred_region
    _
  $region5: #{rna3d_forward.9} parent=0 // pred_fallthru
    _
  // Predicated region
  $region6: #{rna3d_forward.9} parent=0 // pred_check
    _
  $region7: #{rna3d_forward.9} parent=0 // pred_check_branch
    %11 = sbr.rel (0) target = $region9
  $region8: #{rna3d_forward.9} parent=0 // pred_region
    _
  $region9: #{rna3d_forward.9} parent=0 // pred_fallthru
    _
  // Predicated region
  $region10: #{rna3d_forward.9} parent=0 // pred_check
    _
  $region11: #{rna3d_forward.9} parent=0 // pred_check_branch
    %13 = sbr.rel (0) target = $region13
  $region12: #{rna3d_forward.9} parent=0 // pred_region
    _
  $region13: #{rna3d_forward.9} parent=0 // pred_fallthru
    _
  %v14 = vld [vmem:[%s0] sm:$0xff]
  %v15 = vld [vmem:[%s0 + $0x8] sm:$0xff]
  %v16 = vld [vmem:[%s1] sm:$0xff]
  %v17 = vld [vmem:[%s1 + $0x8] sm:$0xff]
  %v18 = vld [vmem:[%s1 + $0x10] sm:$0xff]
  %v19 = vld [vmem:[%s1 + $0x18] sm:$0xff]
  %v20 = vld [vmem:[%s1 + $0x20] sm:$0xff]
  %v21 = vld [vmem:[%s1 + $0x28] sm:$0xff]
  %v22 = vld [vmem:[%s1 + $0x30] sm:$0xff]
  %v23 = vld [vmem:[%s1 + $0x38] sm:$0xff]
  %v24 = vld [vmem:[%s1 + $0x40] sm:$0xff]
  %v25 = vld [vmem:[%s1 + $0x48] sm:$0xff]
  %v26 = vld [vmem:[%s1 + $0x50] sm:$0xff]
  %v27 = vld [vmem:[%s1 + $0x58] sm:$0xff]
  %v28 = vld [vmem:[%s1 + $0x60] sm:$0xff]
  %v29 = vld [vmem:[%s1 + $0x68] sm:$0xff]
  %v30 = vld [vmem:[%s1 + $0x70] sm:$0xff]
  %v31 = vld [vmem:[%s1 + $0x78] sm:$0xff]
  %v32 = vld [vmem:[%s2] sm:$0x3]
  %v34 = vlaneseq
  %v35 = vshrl.u32 %v34, 7
  %v36 = vsub.s32 0, %v35
  %v37 = vrot.slane %v32, %v36
  %v38 = vlaneseq
  %v39 = vshrl.u32 %v38, 7
  %v40 = vsub.s32 1, %v39
  %v41 = vrot.slane %v32, %v40
  %vm44 = vcmask 523264
  %v46 = vsel %vm44, %v14, 0
  %v49 = vsel %vm44, %v15, 0
  %51 = vmatprep.subr.mxu0 0.0
  %52 = vmatpush1.msra.mxu0 0.0
  %53 = vmatprep.subr.mxu0 0.0
  %54 = vmatpush1.msra.mxu0 0.0
  %55 = vmatprep.subr.mxu0 0.0
  %56 = vmatpush1.msra.mxu0 0.0
  %57 = vmatprep.subr.mxu0 0.0
  %58 = vmatpush1.msra.mxu0 0.0
  %59 = vmatprep.subr.mxu0 0.0
  %60 = vmatpush1.msra.mxu0 0.0
  %61 = vmatprep.subr.mxu0 0.0
  %62 = vmatpush1.msra.mxu0 0.0
  %63 = vmatprep.subr.mxu0 0.0
  %64 = vmatpush1.msra.mxu0 0.0
  %65 = vmatprep.subr.mxu0 0.0
  %66 = vmatpush1.msra.mxu0 0.0
  %67 = vmatprep.subr.mxu0 %v31
  %68 = vmatpush1.msra.mxu0 %v30
  %69 = vmatprep.subr.mxu0 %v29
  %70 = vmatpush1.msra.mxu0 %v28
  %71 = vmatprep.subr.mxu0 %v27
  %72 = vmatpush1.msra.mxu0 %v26
  %73 = vmatprep.subr.mxu0 %v25
  %74 = vmatpush1.msra.mxu0 %v24
  %75 = vmatprep.subr.mxu0 %v23
  %76 = vmatpush1.msra.mxu0 %v22
  %77 = vmatprep.subr.mxu0 %v21
  %78 = vmatpush1.msra.mxu0 %v20
  %79 = vmatprep.subr.mxu0 %v19
  %80 = vmatpush1.msra.mxu0 %v18
  %81 = vmatprep.subr.mxu0 %v17
  %82 = vmatpush1.msra.mxu0 %v16
  %83 = vmatprep.subr.mxu0 0.0
  %84 = vmatpush2.msra.mxu0 0.0
  %85 = vmatprep.subr.mxu0 0.0
  %86 = vmatpush2.msra.mxu0 0.0
  %87 = vmatprep.subr.mxu0 0.0
  %88 = vmatpush2.msra.mxu0 0.0
  %89 = vmatprep.subr.mxu0 0.0
  %90 = vmatpush2.msra.mxu0 0.0
  %91 = vmatprep.subr.mxu0 0.0
  %92 = vmatpush2.msra.mxu0 0.0
  %93 = vmatprep.subr.mxu0 0.0
  %94 = vmatpush2.msra.mxu0 0.0
  %95 = vmatprep.subr.mxu0 0.0
  %96 = vmatpush2.msra.mxu0 0.0
  %97 = vmatprep.subr.mxu0 0.0
  %98 = vmatpush2.msra.mxu0 0.0
  %99 = vmatprep.subr.mxu0 0.0
  %100 = vmatpush2.msra.mxu0 0.0
  %101 = vmatprep.subr.mxu0 0.0
  %102 = vmatpush2.msra.mxu0 0.0
  %103 = vmatprep.subr.mxu0 0.0
  %104 = vmatpush2.msra.mxu0 0.0
  %105 = vmatprep.subr.mxu0 0.0
  %106 = vmatpush2.msra.mxu0 0.0
  %107 = vmatprep.subr.mxu0 0.0
  %108 = vmatpush2.msra.mxu0 0.0
  %109 = vmatprep.subr.mxu0 0.0
  %110 = vmatpush2.msra.mxu0 0.0
  %111 = vmatprep.subr.mxu0 0.0
  %112 = vmatpush2.msra.mxu0 0.0
  %113 = vmatprep.subr.mxu0 0.0
  %114 = vmatpush2.msra.mxu0 0.0
  %115 = vmatprep.mubr.f32.mxu0 0.0
  %116 = vmatmul.mubr.f32.gmra.mxu0 %v46
  %v117 = vpop.f32.mrf.mxu0
  %v118 = vadd.f32 %v37, %v117
  %v119 = vpop.f32.mrf.mxu0
  %v120 = vadd.f32 %v41, %v119
  %121 = vmatprep.mubr.f32.mxu0 0.0
  %122 = vmatmul.mubr.f32.gmra.mxu0 %v49
  %v123 = vpop.f32.mrf.mxu0
  %v124 = vadd.f32 %v37, %v123
  %v125 = vpop.f32.mrf.mxu0
  %v126 = vadd.f32 %v41, %v125
  %127 = vdwg.mxu0
  %128 = vst [vmem:[%s3] sm:$0xff] %v118
  %129 = vst [vmem:[%s3 + $0x8] sm:$0xff] %v120
  %130 = vst [vmem:[%s3 + $0x10] sm:$0xff] %v124
  %131 = vst [vmem:[%s3 + $0x18] sm:$0xff] %v126
  // Predicated region
  $region14: #{rna3d_forward.9} parent=0 // pred_check
    _
  $region15: #{rna3d_forward.9} parent=0 // pred_check_branch
    %133 = sbr.rel (0) target = $region17
  $region16: #{rna3d_forward.9} parent=0 // pred_region
    _
  $region17: #{rna3d_forward.9} parent=0 // pred_fallthru
    _
  // Predicated region
  $region18: #{rna3d_forward.9} parent=0 // pred_check
    _
  $region19: #{rna3d_forward.9} parent=0 // pred_check_branch
    %135 = sbr.rel (0) target = $region21
  $region20: #{rna3d_forward.9} parent=0 // pred_region
    _
  $region21: #{rna3d_forward.9} parent=0 // pred_fallthru
    _

// kernel: rna3d_forward.8
$region0: #{rna3d_forward.8}
  #allocation0 [shape = 'u32[]', space=smem, size = 0x4, offset = 0x4, fixed_abs, tag = 'smem constant byte address 0x4 - core index']
  #allocation1 [shape = 'u32[144,128]{1,0:T(1,128)}', space=vmem, size = 0x12000, scoped, tag = 'internal scratch']
  %s0 = inlined_call_operand.vmem [shape: f32[8,2,256], index: 0, kind: input, shape index: {}]
  %s1 = inlined_call_operand.vmem [shape: f32[32,128], index: 1, kind: input, shape index: {}]
  %s2 = inlined_call_operand.vmem [shape: f32[32,128], index: 2, kind: input, shape index: {}]
  %s3 = inlined_call_operand.vmem [shape: f32[8,2,64], index: 3, kind: output, shape index: {}]
  %s4 = sld [smem:[#allocation0]]
  $region22: #{rna3d_forward.8} parent=0
    _
  %s6 = ssub.s32 1, %s4
  %s7 = scalar_select 0, %s6, %s4
  // Predicated region
  $region2: #{rna3d_forward.8} parent=0 // pred_check
    _
  $region3: #{rna3d_forward.8} parent=0 // pred_check_branch
    %9 = sbr.rel (0) target = $region5
  $region4: #{rna3d_forward.8} parent=0 // pred_region
    _
  $region5: #{rna3d_forward.8} parent=0 // pred_fallthru
    _
  // Predicated region
  $region6: #{rna3d_forward.8} parent=0 // pred_check
    _
  $region7: #{rna3d_forward.8} parent=0 // pred_check_branch
    %11 = sbr.rel (0) target = $region9
  $region8: #{rna3d_forward.8} parent=0 // pred_region
    _
  $region9: #{rna3d_forward.8} parent=0 // pred_fallthru
    _
  // Predicated region
  $region10: #{rna3d_forward.8} parent=0 // pred_check
    _
  $region11: #{rna3d_forward.8} parent=0 // pred_check_branch
    %13 = sbr.rel (0) target = $region13
  $region12: #{rna3d_forward.8} parent=0 // pred_region
    _
  $region13: #{rna3d_forward.8} parent=0 // pred_fallthru
    _
  %v14 = vld [vmem:[%s1] sm:$0xff]
  %v15 = vld [vmem:[%s1 + $0x8] sm:$0xff]
  %v16 = vld [vmem:[%s1 + $0x10] sm:$0xff]
  %v17 = vld [vmem:[%s1 + $0x18] sm:$0xff]
  %v18 = vld [vmem:[%s2] sm:$0xff]
  %v19 = vld [vmem:[%s2 + $0x8] sm:$0xff]
  %v20 = vld [vmem:[%s2 + $0x10] sm:$0xff]
  %v21 = vld [vmem:[%s2 + $0x18] sm:$0xff]
  %v22 = vld [vmem:[%s0] sm:$0x3]
  %vm23 = vcmask 261120
  %v25 = vsel %vm23, 0.0, 0
  %27 = vmatprep.subr.mxu0 0.0
  %28 = vmatpush1.msra.mxu0 0.0
  %29 = vmatprep.subr.mxu0 0.0
  %30 = vmatpush1.msra.mxu0 0.0
  %31 = vmatprep.subr.mxu0 0.0
  %32 = vmatpush1.msra.mxu0 0.0
  %33 = vmatprep.subr.mxu0 0.0
  %34 = vmatpush1.msra.mxu0 0.0
  %35 = vmatprep.subr.mxu0 0.0
  %36 = vmatpush1.msra.mxu0 0.0
  %37 = vmatprep.subr.mxu0 0.0
  %38 = vmatpush1.msra.mxu0 0.0
  %39 = vmatprep.subr.mxu0 0.0
  %40 = vmatpush1.msra.mxu0 0.0
  %41 = vmatprep.subr.mxu0 0.0
  %42 = vmatpush1.msra.mxu0 0.0
  %43 = vmatprep.subr.mxu0 0.0
  %44 = vmatpush1.msra.mxu0 0.0
  %45 = vmatprep.subr.mxu0 0.0
  %46 = vmatpush1.msra.mxu0 0.0
  %47 = vmatprep.subr.mxu0 0.0
  %48 = vmatpush1.msra.mxu0 0.0
  %49 = vmatprep.subr.mxu0 0.0
  %50 = vmatpush1.msra.mxu0 0.0
  %51 = vmatprep.subr.mxu0 0.0
  %52 = vmatpush1.msra.mxu0 %v17
  %53 = vmatprep.subr.mxu0 0.0
  %54 = vmatpush1.msra.mxu0 %v16
  %55 = vmatprep.subr.mxu0 0.0
  %56 = vmatpush1.msra.mxu0 %v15
  %57 = vmatprep.subr.mxu0 0.0
  %58 = vmatpush1.msra.mxu0 %v14
  %59 = vmatprep.subr.mxu0 0.0
  %60 = vmatpush2.msra.mxu0 0.0
  %61 = vmatprep.subr.mxu0 0.0
  %62 = vmatpush2.msra.mxu0 0.0
  %63 = vmatprep.subr.mxu0 0.0
  %64 = vmatpush2.msra.mxu0 0.0
  %65 = vmatprep.subr.mxu0 0.0
  %66 = vmatpush2.msra.mxu0 0.0
  %67 = vmatprep.subr.mxu0 0.0
  %68 = vmatpush2.msra.mxu0 0.0
  %69 = vmatprep.subr.mxu0 0.0
  %70 = vmatpush2.msra.mxu0 0.0
  %71 = vmatprep.subr.mxu0 0.0
  %72 = vmatpush2.msra.mxu0 0.0
  %73 = vmatprep.subr.mxu0 0.0
  %74 = vmatpush2.msra.mxu0 0.0
  %75 = vmatprep.subr.mxu0 0.0
  %76 = vmatpush2.msra.mxu0 0.0
  %77 = vmatprep.subr.mxu0 0.0
  %78 = vmatpush2.msra.mxu0 0.0
  %79 = vmatprep.subr.mxu0 0.0
  %80 = vmatpush2.msra.mxu0 0.0
  %81 = vmatprep.subr.mxu0 0.0
  %82 = vmatpush2.msra.mxu0 0.0
  %83 = vmatprep.subr.mxu0 0.0
  %84 = vmatpush2.msra.mxu0 0.0
  %85 = vmatprep.subr.mxu0 0.0
  %86 = vmatpush2.msra.mxu0 0.0
  %87 = vmatprep.subr.mxu0 0.0
  %88 = vmatpush2.msra.mxu0 0.0
  %89 = vmatprep.subr.mxu0 0.0
  %90 = vmatpush2.msra.mxu0 0.0
  %91 = vmatprep.mubr.f32.mxu0 0.0
  %92 = vmatmul.mubr.f32.gmra.mxu0 %v25
  %v93 = vpop.f32.mrf.mxu0
  %v94 = vadd.f32 0.0, %v93
  %v95 = vpop.f32.mrf.mxu0
  %96 = vdwg.mxu0
  %v97 = vadd.f32 %v22, %v94
  %s98 = scalar_lea.vmem %s0, 28
  %v99 = vld [vmem:[%s98 + $0x2] sm:$0x3]
  %100 = vmatprep.subr.mxu0 0.0
  %101 = vmatpush1.msra.mxu0 0.0
  %102 = vmatprep.subr.mxu0 0.0
  %103 = vmatpush1.msra.mxu0 0.0
  %104 = vmatprep.subr.mxu0 0.0
  %105 = vmatpush1.msra.mxu0 0.0
  %106 = vmatprep.subr.mxu0 0.0
  %107 = vmatpush1.msra.mxu0 0.0
  %108 = vmatprep.subr.mxu0 0.0
  %109 = vmatpush1.msra.mxu0 0.0
  %110 = vmatprep.subr.mxu0 0.0
  %111 = vmatpush1.msra.mxu0 0.0
  %112 = vmatprep.subr.mxu0 0.0
  %113 = vmatpush1.msra.mxu0 0.0
  %114 = vmatprep.subr.mxu0 0.0
  %115 = vmatpush1.msra.mxu0 0.0
  %116 = vmatprep.subr.mxu0 0.0
  %117 = vmatpush1.msra.mxu0 0.0
  %118 = vmatprep.subr.mxu0 0.0
  %119 = vmatpush1.msra.mxu0 0.0
  %120 = vmatprep.subr.mxu0 0.0
  %121 = vmatpush1.msra.mxu0 0.0
  %122 = vmatprep.subr.mxu0 0.0
  %123 = vmatpush1.msra.mxu0 0.0
  %124 = vmatprep.subr.mxu0 0.0
  %125 = vmatpush1.msra.mxu0 %v21
  %126 = vmatprep.subr.mxu0 0.0
  %127 = vmatpush1.msra.mxu0 %v20
  %128 = vmatprep.subr.mxu0 0.0
  %129 = vmatpush1.msra.mxu0 %v19
  %130 = vmatprep.subr.mxu0 0.0
  %131 = vmatpush1.msra.mxu0 %v18
  %132 = vmatprep.subr.mxu0 0.0
  %133 = vmatpush2.msra.mxu0 0.0
  %134 = vmatprep.subr.mxu0 0.0
  %135 = vmatpush2.msra.mxu0 0.0
  %136 = vmatprep.subr.mxu0 0.0
  %137 = vmatpush2.msra.mxu0 0.0
  %138 = vmatprep.subr.mxu0 0.0
  %139 = vmatpush2.msra.mxu0 0.0
  %140 = vmatprep.subr.mxu0 0.0
  %141 = vmatpush2.msra.mxu0 0.0
  %142 = vmatprep.subr.mxu0 0.0
  %143 = vmatpush2.msra.mxu0 0.0
  %144 = vmatprep.subr.mxu0 0.0
  %145 = vmatpush2.msra.mxu0 0.0
  %146 = vmatprep.subr.mxu0 0.0
  %147 = vmatpush2.msra.mxu0 0.0
  %148 = vmatprep.subr.mxu0 0.0
  %149 = vmatpush2.msra.mxu0 0.0
  %150 = vmatprep.subr.mxu0 0.0
  %151 = vmatpush2.msra.mxu0 0.0
  %152 = vmatprep.subr.mxu0 0.0
  %153 = vmatpush2.msra.mxu0 0.0
  %154 = vmatprep.subr.mxu0 0.0
  %155 = vmatpush2.msra.mxu0 0.0
  %156 = vmatprep.subr.mxu0 0.0
  %157 = vmatpush2.msra.mxu0 0.0
  %158 = vmatprep.subr.mxu0 0.0
  %159 = vmatpush2.msra.mxu0 0.0
  %160 = vmatprep.subr.mxu0 0.0
  %161 = vmatpush2.msra.mxu0 0.0
  %162 = vmatprep.subr.mxu0 0.0
  %163 = vmatpush2.msra.mxu0 0.0
  %164 = vmatprep.mubr.f32.mxu0 0.0
  %165 = vmatmul.mubr.f32.gmra.mxu0 %v25
  %v166 = vpop.f32.mrf.mxu0
  %v167 = vadd.f32 0.0, %v166
  %v168 = vpop.f32.mrf.mxu0
  %169 = vdwg.mxu0
  %v170 = vadd.f32 %v99, %v167
  %v171 = vxor.u32 %v97, 2147483648
  %v172 = vmul.f32 %v171, 1.442695
  %v173 = vpow.pop %v172
  %v174 = vadd.f32 %v173, 1.0
  %v175 = vrcp.pop %v174
  %v176 = vmul.f32 1.0, %v175
  %v177 = vtanh.pop %v97
  %v178 = vmul.f32 %v176, 0.0
  %180 = vrot.lane.b32.xlu0 %v177, 64
  %v181 = vpop.permute.xlu0 %180
  %v183 = vmul.f32 %v176, %v181
  %185 = vrot.lane.b32.xlu0 %v183, 32
  %v186 = vpop.permute.xlu0 %185
  %v188 = vadd.f32 %v178, %v186
  %v189 = vtanh.pop %v188
  %191 = vrot.lane.b32.xlu0 %v189, 64
  %v192 = vpop.permute.xlu0 %191
  %v194 = vmul.f32 %v176, %v192
  %v195 = vxor.u32 %v170, 2147483648
  %v196 = vmul.f32 %v195, 1.442695
  %v197 = vpow.pop %v196
  %v198 = vadd.f32 %v197, 1.0
  %v199 = vrcp.pop %v198
  %v200 = vmul.f32 1.0, %v199
  %v201 = vtanh.pop %v170
  %v202 = vmul.f32 %v200, 0.0
  %204 = vrot.lane.b32.xlu0 %v201, 64
  %v205 = vpop.permute.xlu0 %204
  %v207 = vmul.f32 %v200, %v205
  %209 = vrot.lane.b32.xlu0 %v207, 32
  %v210 = vpop.permute.xlu0 %209
  %v212 = vadd.f32 %v202, %v210
  %v213 = vtanh.pop %v212
  %215 = vrot.lane.b32.xlu0 %v213, 64
  %v216 = vpop.permute.xlu0 %215
  %v218 = vmul.f32 %v200, %v216
  %v221 = vunpack.c.l.s4 1983009808
  %v222 = vunpack.c.0.s8 %v221
  %v223 = vlaneseq
  %v224 = vshrl.u32 %v223, 7
  %v225 = vsub.s32 %v222, %v224
  %v226 = vrot.slane %v194, %v225
  %227 = vrot.lane.b32.xlu0 %v226, 32
  %v228 = vpop.permute.xlu0 %227
  %vm230 = vcmask 254976
  %231 = vst.msk [vmem:[%s3] sm:$0x3] %vm230, %v228
  %v234 = vunpack.c.l.s4 1983009808
  %v235 = vunpack.c.0.s8 %v234
  %v236 = vlaneseq
  %v237 = vshrl.u32 %v236, 7
  %v238 = vsub.s32 %v235, %v237
  %v239 = vrot.slane %v218, %v238
  %240 = vrot.lane.b32.xlu0 %v239, 64
  %v241 = vpop.permute.xlu0 %240
  %s243 = scalar_lea.vmem %s3, 14
  %vm244 = vcmask 517376
  %245 = vst.msk [vmem:[%s243] sm:$0x3] %vm244, %v241
  %s246 = scalar_lea.vmem %s0, 4
  %v247 = vld [vmem:[%s246] sm:$0x3]
  %v248 = vsel %vm23, %v228, 0
  %250 = vmatprep.subr.mxu0 0.0
  %251 = vmatpush1.msra.mxu0 0.0
  %252 = vmatprep.subr.mxu0 0.0
  %253 = vmatpush1.msra.mxu0 0.0
  %254 = vmatprep.subr.mxu0 0.0
  %255 = vmatpush1.msra.mxu0 0.0
  %256 = vmatprep.subr.mxu0 0.0
  %257 = vmatpush1.msra.mxu0 0.0
  %258 = vmatprep.subr.mxu0 0.0
  %259 = vmatpush1.msra.mxu0 0.0
  %260 = vmatprep.subr.mxu0 0.0
  %261 = vmatpush1.msra.mxu0 0.0
  %262 = vmatprep.subr.mxu0 0.0
  %263 = vmatpush1.msra.mxu0 0.0
  %264 = vmatprep.subr.mxu0 0.0
  %265 = vmatpush1.msra.mxu0 0.0
  %266 = vmatprep.subr.mxu0 0.0
  %267 = vmatpush1.msra.mxu0 0.0
  %268 = vmatprep.subr.mxu0 0.0
  %269 = vmatpush1.msra.mxu0 0.0
  %270 = vmatprep.subr.mxu0 0.0
  %271 = vmatpush1.msra.mxu0 0.0
  %272 = vmatprep.subr.mxu0 0.0
  %273 = vmatpush1.msra.mxu0 0.0
  %274 = vmatprep.subr.mxu0 0.0
  %275 = vmatpush1.msra.mxu0 %v17
  %276 = vmatprep.subr.mxu0 0.0
  %277 = vmatpush1.msra.mxu0 %v16
  %278 = vmatprep.subr.mxu0 0.0
  %279 = vmatpush1.msra.mxu0 %v15
  %280 = vmatprep.subr.mxu0 0.0
  %281 = vmatpush1.msra.mxu0 %v14
  %282 = vmatprep.subr.mxu0 0.0
  %283 = vmatpush2.msra.mxu0 0.0
  %284 = vmatprep.subr.mxu0 0.0
  %285 = vmatpush2.msra.mxu0 0.0
  %286 = vmatprep.subr.mxu0 0.0
  %287 = vmatpush2.msra.mxu0 0.0
  %288 = vmatprep.subr.mxu0 0.0
  %289 = vmatpush2.msra.mxu0 0.0
  %290 = vmatprep.subr.mxu0 0.0
  %291 = vmatpush2.msra.mxu0 0.0
  %292 = vmatprep.subr.mxu0 0.0
  %293 = vmatpush2.msra.mxu0 0.0
  %294 = vmatprep.subr.mxu0 0.0
  %295 = vmatpush2.msra.mxu0 0.0
  %296 = vmatprep.subr.mxu0 0.0
  %297 = vmatpush2.msra.mxu0 0.0
  %298 = vmatprep.subr.mxu0 0.0
  %299 = vmatpush2.msra.mxu0 0.0
  %300 = vmatprep.subr.mxu0 0.0
  %301 = vmatpush2.msra.mxu0 0.0
  %302 = vmatprep.subr.mxu0 0.0
  %303 = vmatpush2.msra.mxu0 0.0
  %304 = vmatprep.subr.mxu0 0.0
  %305 = vmatpush2.msra.mxu0 0.0
  %306 = vmatprep.subr.mxu0 0.0
  %307 = vmatpush2.msra.mxu0 0.0
  %308 = vmatprep.subr.mxu0 0.0
  %309 = vmatpush2.msra.mxu0 0.0
  %310 = vmatprep.subr.mxu0 0.0
  %311 = vmatpush2.msra.mxu0 0.0
  %312 = vmatprep.subr.mxu0 0.0
  %313 = vmatpush2.msra.mxu0 0.0
  %314 = vmatprep.mubr.f32.mxu0 0.0
  %315 = vmatmul.mubr.f32.gmra.mxu0 %v248
  %v316 = vpop.f32.mrf.mxu0
  %v317 = vadd.f32 0.0, %v316
  %v318 = vpop.f32.mrf.mxu0
  %319 = vdwg.mxu0
  %v320 = vadd.f32 %v247, %v317
  %s321 = scalar_lea.vmem %s0, 24
  %v322 = vld [vmem:[%s321 + $0x2] sm:$0x3]
  %323 = vrot.lane.b32.xlu0 %v239, 32
  %v324 = vpop.permute.xlu0 %323
  %v325 = vsel %vm23, %v324, 0
  %327 = vmatprep.subr.mxu0 0.0
  %328 = vmatpush1.msra.mxu0 0.0
  %329 = vmatprep.subr.mxu0 0.0
  %330 = vmatpush1.msra.mxu0 0.0
  %331 = vmatprep.subr.mxu0 0.0
  %332 = vmatpush1.msra.mxu0 0.0
  %333 = vmatprep.subr.mxu0 0.0
  %334 = vmatpush1.msra.mxu0 0.0
  %335 = vmatprep.subr.mxu0 0.0
  %336 = vmatpush1.msra.mxu0 0.0
  %337 = vmatprep.subr.mxu0 0.0
  %338 = vmatpush1.msra.mxu0 0.0
  %339 = vmatprep.subr.mxu0 0.0
  %340 = vmatpush1.msra.mxu0 0.0
  %341 = vmatprep.subr.mxu0 0.0
  %342 = vmatpush1.msra.mxu0 0.0
  %343 = vmatprep.subr.mxu0 0.0
  %344 = vmatpush1.msra.mxu0 0.0
  %345 = vmatprep.subr.mxu0 0.0
  %346 = vmatpush1.msra.mxu0 0.0
  %347 = vmatprep.subr.mxu0 0.0
  %348 = vmatpush1.msra.mxu0 0.0
  %349 = vmatprep.subr.mxu0 0.0
  %350 = vmatpush1.msra.mxu0 0.0
  %351 = vmatprep.subr.mxu0 0.0
  %352 = vmatpush1.msra.mxu0 %v21
  %353 = vmatprep.subr.mxu0 0.0
  %354 = vmatpush1.msra.mxu0 %v20
  %355 = vmatprep.subr.mxu0 0.0
  %356 = vmatpush1.msra.mxu0 %v19
  %357 = vmatprep.subr.mxu0 0.0
  %358 = vmatpush1.msra.mxu0 %v18
  %359 = vmatprep.subr.mxu0 0.0
  %360 = vmatpush2.msra.mxu0 0.0
  %361 = vmatprep.subr.mxu0 0.0
  %362 = vmatpush2.msra.mxu0 0.0
  %363 = vmatprep.subr.mxu0 0.0
  %364 = vmatpush2.msra.mxu0 0.0
  %365 = vmatprep.subr.mxu0 0.0
  %366 = vmatpush2.msra.mxu0 0.0
  %367 = vmatprep.subr.mxu0 0.0
  %368 = vmatpush2.msra.mxu0 0.0
  %369 = vmatprep.subr.mxu0 0.0
  %370 = vmatpush2.msra.mxu0 0.0
  %371 = vmatprep.subr.mxu0 0.0
  %372 = vmatpush2.msra.mxu0 0.0
  %373 = vmatprep.subr.mxu0 0.0
  %374 = vmatpush2.msra.mxu0 0.0
  %375 = vmatprep.subr.mxu0 0.0
  %376 = vmatpush2.msra.mxu0 0.0
  %377 = vmatprep.subr.mxu0 0.0
  %378 = vmatpush2.msra.mxu0 0.0
  %379 = vmatprep.subr.mxu0 0.0
  %380 = vmatpush2.msra.mxu0 0.0
  %381 = vmatprep.subr.mxu0 0.0
  %382 = vmatpush2.msra.mxu0 0.0
  %383 = vmatprep.subr.mxu0 0.0
  %384 = vmatpush2.msra.mxu0 0.0
  %385 = vmatprep.subr.mxu0 0.0
  %386 = vmatpush2.msra.mxu0 0.0
  %387 = vmatprep.subr.mxu0 0.0
  %388 = vmatpush2.msra.mxu0 0.0
  %389 = vmatprep.subr.mxu0 0.0
  %390 = vmatpush2.msra.mxu0 0.0
  %391 = vmatprep.mubr.f32.mxu0 0.0
  %392 = vmatmul.mubr.f32.gmra.mxu0 %v325
  %v393 = vpop.f32.mrf.mxu0
  %v394 = vadd.f32 0.0, %v393
  %v395 = vpop.f32.mrf.mxu0
  %396 = vdwg.mxu0
  %v397 = vadd.f32 %v322, %v394
  %v398 = vxor.u32 %v320, 2147483648
  %v399 = vmul.f32 %v398, 1.442695
  %v400 = vpow.pop %v399
  %v401 = vadd.f32 %v400, 1.0
  %v402 = vrcp.pop %v401
  %v403 = vmul.f32 1.0, %v402
  %v404 = vtanh.pop %v320
  %v405 = vmul.f32 %v403, %v188
  %407 = vrot.lane.b32.xlu0 %v404, 64
  %v408 = vpop.permute.xlu0 %407
  %v410 = vmul.f32 %v403, %v408
  %412 = vrot.lane.b32.xlu0 %v410, 32
  %v413 = vpop.permute.xlu0 %412
  %v415 = vadd.f32 %v405, %v413
  %v416 = vtanh.pop %v415
  %418 = vrot.lane.b32.xlu0 %v416, 64
  %v419 = vpop.permute.xlu0 %418
  %v421 = vmul.f32 %v403, %v419
  %v422 = vxor.u32 %v397, 2147483648
  %v423 = vmul.f32 %v422, 1.442695
  %v424 = vpow.pop %v423
  %v425 = vadd.f32 %v424, 1.0
  %v426 = vrcp.pop %v425
  %v427 = vmul.f32 1.0, %v426
  %v428 = vtanh.pop %v397
  %v429 = vmul.f32 %v427, %v212
  %431 = vrot.lane.b32.xlu0 %v428, 64
  %v432 = vpop.permute.xlu0 %431
  %v434 = vmul.f32 %v427, %v432
  %436 = vrot.lane.b32.xlu0 %v434, 32
  %v437 = vpop.permute.xlu0 %436
  %v439 = vadd.f32 %v429, %v437
  %v440 = vtanh.pop %v439
  %442 = vrot.lane.b32.xlu0 %v440, 64
  %v443 = vpop.permute.xlu0 %442
  %v445 = vmul.f32 %v427, %v443
  %v448 = vunpack.c.l.s4 1983009808
  %v449 = vunpack.c.0.s8 %v448
  %v450 = vlaneseq
  %v451 = vshrl.u32 %v450, 7
  %v452 = vsub.s32 %v449, %v451
  %v453 = vrot.slane %v421, %v452
  %454 = vrot.lane.b32.xlu0 %v453, 32
  %v455 = vpop.permute.xlu0 %454
  %s457 = scalar_lea.vmem %s3, 2
  %458 = vst.msk [vmem:[%s457] sm:$0x3] %vm230, %v455
  %v461 = vunpack.c.l.s4 1983009808
  %v462 = vunpack.c.0.s8 %v461
  %v463 = vlaneseq
  %v464 = vshrl.u32 %v463, 7
  %v465 = vsub.s32 %v462, %v464
  %v466 = vrot.slane %v445, %v465
  %467 = vrot.lane.b32.xlu0 %v466, 64
  %v468 = vpop.permute.xlu0 %467
  %s470 = scalar_lea.vmem %s3, 12
  %471 = vst.msk [vmem:[%s470] sm:$0x3] %vm244, %v468
  %s472 = scalar_lea.vmem %s0, 8
  %v473 = vld [vmem:[%s472] sm:$0x3]
  %v474 = vsel %vm23, %v455, 0
  %476 = vmatprep.subr.mxu0 0.0
  %477 = vmatpush1.msra.mxu0 0.0
  %478 = vmatprep.subr.mxu0 0.0
  %479 = vmatpush1.msra.mxu0 0.0
  %480 = vmatprep.subr.mxu0 0.0
  %481 = vmatpush1.msra.mxu0 0.0
  %482 = vmatprep.subr.mxu0 0.0
  %483 = vmatpush1.msra.mxu0 0.0
  %484 = vmatprep.subr.mxu0 0.0
  %485 = vmatpush1.msra.mxu0 0.0
  %486 = vmatprep.subr.mxu0 0.0
  %487 = vmatpush1.msra.mxu0 0.0
  %488 = vmatprep.subr.mxu0 0.0
  %489 = vmatpush1.msra.mxu0 0.0
  %490 = vmatprep.subr.mxu0 0.0
  %491 = vmatpush1.msra.mxu0 0.0
  %492 = vmatprep.subr.mxu0 0.0
  %493 = vmatpush1.msra.mxu0 0.0
  %494 = vmatprep.subr.mxu0 0.0
  %495 = vmatpush1.msra.mxu0 0.0
  %496 = vmatprep.subr.mxu0 0.0
  %497 = vmatpush1.msra.mxu0 0.0
  %498 = vmatprep.subr.mxu0 0.0
  %499 = vmatpush1.msra.mxu0 0.0
  %500 = vmatprep.subr.mxu0 0.0
  %501 = vmatpush1.msra.mxu0 %v17
  %502 = vmatprep.subr.mxu0 0.0
  %503 = vmatpush1.msra.mxu0 %v16
  %504 = vmatprep.subr.mxu0 0.0
  %505 = vmatpush1.msra.mxu0 %v15
  %506 = vmatprep.subr.mxu0 0.0
  %507 = vmatpush1.msra.mxu0 %v14
  %508 = vmatprep.subr.mxu0 0.0
  %509 = vmatpush2.msra.mxu0 0.0
  %510 = vmatprep.subr.mxu0 0.0
  %511 = vmatpush2.msra.mxu0 0.0
  %512 = vmatprep.subr.mxu0 0.0
  %513 = vmatpush2.msra.mxu0 0.0
  %514 = vmatprep.subr.mxu0 0.0
  %515 = vmatpush2.msra.mxu0 0.0
  %516 = vmatprep.subr.mxu0 0.0
  %517 = vmatpush2.msra.mxu0 0.0
  %518 = vmatprep.subr.mxu0 0.0
  %519 = vmatpush2.msra.mxu0 0.0
  %520 = vmatprep.subr.mxu0 0.0
  %521 = vmatpush2.msra.mxu0 0.0
  %522 = vmatprep.subr.mxu0 0.0
  %523 = vmatpush2.msra.mxu0 0.0
  %524 = vmatprep.subr.mxu0 0.0
  %525 = vmatpush2.msra.mxu0 0.0
  %526 = vmatprep.subr.mxu0 0.0
  %527 = vmatpush2.msra.mxu0 0.0
  %528 = vmatprep.subr.mxu0 0.0
  %529 = vmatpush2.msra.mxu0 0.0
  %530 = vmatprep.subr.mxu0 0.0
  %531 = vmatpush2.msra.mxu0 0.0
  %532 = vmatprep.subr.mxu0 0.0
  %533 = vmatpush2.msra.mxu0 0.0
  %534 = vmatprep.subr.mxu0 0.0
  %535 = vmatpush2.msra.mxu0 0.0
  %536 = vmatprep.subr.mxu0 0.0
  %537 = vmatpush2.msra.mxu0 0.0
  %538 = vmatprep.subr.mxu0 0.0
  %539 = vmatpush2.msra.mxu0 0.0
  %540 = vmatprep.mubr.f32.mxu0 0.0
  %541 = vmatmul.mubr.f32.gmra.mxu0 %v474
  %v542 = vpop.f32.mrf.mxu0
  %v543 = vadd.f32 0.0, %v542
  %v544 = vpop.f32.mrf.mxu0
  %545 = vdwg.mxu0
  %v546 = vadd.f32 %v473, %v543
  %s547 = scalar_lea.vmem %s0, 20
  %v548 = vld [vmem:[%s547 + $0x2] sm:$0x3]
  %549 = vrot.lane.b32.xlu0 %v466, 32
  %v550 = vpop.permute.xlu0 %549
  %v551 = vsel %vm23, %v550, 0
  %553 = vmatprep.subr.mxu0 0.0
  %554 = vmatpush1.msra.mxu0 0.0
  %555 = vmatprep.subr.mxu0 0.0
  %556 = vmatpush1.msra.mxu0 0.0
  %557 = vmatprep.subr.mxu0 0.0
  %558 = vmatpush1.msra.mxu0 0.0
  %559 = vmatprep.subr.mxu0 0.0
  %560 = vmatpush1.msra.mxu0 0.0
  %561 = vmatprep.subr.mxu0 0.0
  %562 = vmatpush1.msra.mxu0 0.0
  %563 = vmatprep.subr.mxu0 0.0
  %564 = vmatpush1.msra.mxu0 0.0
  %565 = vmatprep.subr.mxu0 0.0
  %566 = vmatpush1.msra.mxu0 0.0
  %567 = vmatprep.subr.mxu0 0.0
  %568 = vmatpush1.msra.mxu0 0.0
  %569 = vmatprep.subr.mxu0 0.0
  %570 = vmatpush1.msra.mxu0 0.0
  %571 = vmatprep.subr.mxu0 0.0
  %572 = vmatpush1.msra.mxu0 0.0
  %573 = vmatprep.subr.mxu0 0.0
  %574 = vmatpush1.msra.mxu0 0.0
  %575 = vmatprep.subr.mxu0 0.0
  %576 = vmatpush1.msra.mxu0 0.0
  %577 = vmatprep.subr.mxu0 0.0
  %578 = vmatpush1.msra.mxu0 %v21
  %579 = vmatprep.subr.mxu0 0.0
  %580 = vmatpush1.msra.mxu0 %v20
  %581 = vmatprep.subr.mxu0 0.0
  %582 = vmatpush1.msra.mxu0 %v19
  %583 = vmatprep.subr.mxu0 0.0
  %584 = vmatpush1.msra.mxu0 %v18
  %585 = vmatprep.subr.mxu0 0.0
  %586 = vmatpush2.msra.mxu0 0.0
  %587 = vmatprep.subr.mxu0 0.0
  %588 = vmatpush2.msra.mxu0 0.0
  %589 = vmatprep.subr.mxu0 0.0
  %590 = vmatpush2.msra.mxu0 0.0
  %591 = vmatprep.subr.mxu0 0.0
  %592 = vmatpush2.msra.mxu0 0.0
  %593 = vmatprep.subr.mxu0 0.0
  %594 = vmatpush2.msra.mxu0 0.0
  %595 = vmatprep.subr.mxu0 0.0
  %596 = vmatpush2.msra.mxu0 0.0
  %597 = vmatprep.subr.mxu0 0.0
  %598 = vmatpush2.msra.mxu0 0.0
  %599 = vmatprep.subr.mxu0 0.0
  %600 = vmatpush2.msra.mxu0 0.0
  %601 = vmatprep.subr.mxu0 0.0
  %602 = vmatpush2.msra.mxu0 0.0
  %603 = vmatprep.subr.mxu0 0.0
  %604 = vmatpush2.msra.mxu0 0.0
  %605 = vmatprep.subr.mxu0 0.0
  %606 = vmatpush2.msra.mxu0 0.0
  %607 = vmatprep.subr.mxu0 0.0
  %608 = vmatpush2.msra.mxu0 0.0
  %609 = vmatprep.subr.mxu0 0.0
  %610 = vmatpush2.msra.mxu0 0.0
  %611 = vmatprep.subr.mxu0 0.0
  %612 = vmatpush2.msra.mxu0 0.0
  %613 = vmatprep.subr.mxu0 0.0
  %614 = vmatpush2.msra.mxu0 0.0
  %615 = vmatprep.subr.mxu0 0.0
  %616 = vmatpush2.msra.mxu0 0.0
  %617 = vmatprep.mubr.f32.mxu0 0.0
  %618 = vmatmul.mubr.f32.gmra.mxu0 %v551
  %v619 = vpop.f32.mrf.mxu0
  %v620 = vadd.f32 0.0, %v619
  %v621 = vpop.f32.mrf.mxu0
  %622 = vdwg.mxu0
  %v623 = vadd.f32 %v548, %v620
  %v624 = vxor.u32 %v546, 2147483648
  %v625 = vmul.f32 %v624, 1.442695
  %v626 = vpow.pop %v625
  %v627 = vadd.f32 %v626, 1.0
  %v628 = vrcp.pop %v627
  %v629 = vmul.f32 1.0, %v628
  %v630 = vtanh.pop %v546
  %v631 = vmul.f32 %v629, %v415
  %633 = vrot.lane.b32.xlu0 %v630, 64
  %v634 = vpop.permute.xlu0 %633
  %v636 = vmul.f32 %v629, %v634
  %638 = vrot.lane.b32.xlu0 %v636, 32
  %v639 = vpop.permute.xlu0 %638
  %v641 = vadd.f32 %v631, %v639
  %v642 = vtanh.pop %v641
  %644 = vrot.lane.b32.xlu0 %v642, 64
  %v645 = vpop.permute.xlu0 %644
  %v647 = vmul.f32 %v629, %v645
  %v648 = vxor.u32 %v623, 2147483648
  %v649 = vmul.f32 %v648, 1.442695
  %v650 = vpow.pop %v649
  %v651 = vadd.f32 %v650, 1.0
  %v652 = vrcp.pop %v651
  %v653 = vmul.f32 1.0, %v652
  %v654 = vtanh.pop %v623
  %v655 = vmul.f32 %v653, %v439
  %657 = vrot.lane.b32.xlu0 %v654, 64
  %v658 = vpop.permute.xlu0 %657
  %v660 = vmul.f32 %v653, %v658
  %662 = vrot.lane.b32.xlu0 %v660, 32
  %v663 = vpop.permute.xlu0 %662
  %v665 = vadd.f32 %v655, %v663
  %v666 = vtanh.pop %v665
  %668 = vrot.lane.b32.xlu0 %v666, 64
  %v669 = vpop.permute.xlu0 %668
  %v671 = vmul.f32 %v653, %v669
  %v674 = vunpack.c.l.s4 1983009808
  %v675 = vunpack.c.0.s8 %v674
  %v676 = vlaneseq
  %v677 = vshrl.u32 %v676, 7
  %v678 = vsub.s32 %v675, %v677
  %v679 = vrot.slane %v647, %v678
  %680 = vrot.lane.b32.xlu0 %v679, 32
  %v681 = vpop.permute.xlu0 %680
  %s683 = scalar_lea.vmem %s3, 4
  %684 = vst.msk [vmem:[%s683] sm:$0x3] %vm230, %v681
  %v687 = vunpack.c.l.s4 1983009808
  %v688 = vunpack.c.0.s8 %v687
  %v689 = vlaneseq
  %v690 = vshrl.u32 %v689, 7
  %v691 = vsub.s32 %v688, %v690
  %v692 = vrot.slane %v671, %v691
  %693 = vrot.lane.b32.xlu0 %v692, 64
  %v694 = vpop.permute.xlu0 %693
  %s696 = scalar_lea.vmem %s3, 10
  %697 = vst.msk [vmem:[%s696] sm:$0x3] %vm244, %v694
  %s698 = scalar_lea.vmem %s0, 12
  %v699 = vld [vmem:[%s698] sm:$0x3]
  %v700 = vsel %vm23, %v681, 0
  %702 = vmatprep.subr.mxu0 0.0
  %703 = vmatpush1.msra.mxu0 0.0
  %704 = vmatprep.subr.mxu0 0.0
  %705 = vmatpush1.msra.mxu0 0.0
  %706 = vmatprep.subr.mxu0 0.0
  %707 = vmatpush1.msra.mxu0 0.0
  %708 = vmatprep.subr.mxu0 0.0
  %709 = vmatpush1.msra.mxu0 0.0
  %710 = vmatprep.subr.mxu0 0.0
  %711 = vmatpush1.msra.mxu0 0.0
  %712 = vmatprep.subr.mxu0 0.0
  %713 = vmatpush1.msra.mxu0 0.0
  %714 = vmatprep.subr.mxu0 0.0
  %715 = vmatpush1.msra.mxu0 0.0
  %716 = vmatprep.subr.mxu0 0.0
  %717 = vmatpush1.msra.mxu0 0.0
  %718 = vmatprep.subr.mxu0 0.0
  %719 = vmatpush1.msra.mxu0 0.0
  %720 = vmatprep.subr.mxu0 0.0
  %721 = vmatpush1.msra.mxu0 0.0
  %722 = vmatprep.subr.mxu0 0.0
  %723 = vmatpush1.msra.mxu0 0.0
  %724 = vmatprep.subr.mxu0 0.0
  %725 = vmatpush1.msra.mxu0 0.0
  %726 = vmatprep.subr.mxu0 0.0
  %727 = vmatpush1.msra.mxu0 %v17
  %728 = vmatprep.subr.mxu0 0.0
  %729 = vmatpush1.msra.mxu0 %v16
  %730 = vmatprep.subr.mxu0 0.0
  %731 = vmatpush1.msra.mxu0 %v15
  %732 = vmatprep.subr.mxu0 0.0
  %733 = vmatpush1.msra.mxu0 %v14
  %734 = vmatprep.subr.mxu0 0.0
  %735 = vmatpush2.msra.mxu0 0.0
  %736 = vmatprep.subr.mxu0 0.0
  %737 = vmatpush2.msra.mxu0 0.0
  %738 = vmatprep.subr.mxu0 0.0
  %739 = vmatpush2.msra.mxu0 0.0
  %740 = vmatprep.subr.mxu0 0.0
  %741 = vmatpush2.msra.mxu0 0.0
  %742 = vmatprep.subr.mxu0 0.0
  %743 = vmatpush2.msra.mxu0 0.0
  %744 = vmatprep.subr.mxu0 0.0
  %745 = vmatpush2.msra.mxu0 0.0
  %746 = vmatprep.subr.mxu0 0.0
  %747 = vmatpush2.msra.mxu0 0.0
  %748 = vmatprep.subr.mxu0 0.0
  %749 = vmatpush2.msra.mxu0 0.0
  %750 = vmatprep.subr.mxu0 0.0
  %751 = vmatpush2.msra.mxu0 0.0
  %752 = vmatprep.subr.mxu0 0.0
  %753 = vmatpush2.msra.mxu0 0.0
  %754 = vmatprep.subr.mxu0 0.0
  %755 = vmatpush2.msra.mxu0 0.0
  %756 = vmatprep.subr.mxu0 0.0
  %757 = vmatpush2.msra.mxu0 0.0
  %758 = vmatprep.subr.mxu0 0.0
  %759 = vmatpush2.msra.mxu0 0.0
  %760 = vmatprep.subr.mxu0 0.0
  %761 = vmatpush2.msra.mxu0 0.0
  %762 = vmatprep.subr.mxu0 0.0
  %763 = vmatpush2.msra.mxu0 0.0
  %764 = vmatprep.subr.mxu0 0.0
  %765 = vmatpush2.msra.mxu0 0.0
  %766 = vmatprep.mubr.f32.mxu0 0.0
  %767 = vmatmul.mubr.f32.gmra.mxu0 %v700
  %v768 = vpop.f32.mrf.mxu0
  %v769 = vadd.f32 0.0, %v768
  %v770 = vpop.f32.mrf.mxu0
  %771 = vdwg.mxu0
  %v772 = vadd.f32 %v699, %v769
  %s773 = scalar_lea.vmem %s0, 16
  %v774 = vld [vmem:[%s773 + $0x2] sm:$0x3]
  %775 = vrot.lane.b32.xlu0 %v692, 32
  %v776 = vpop.permute.xlu0 %775
  %v777 = vsel %vm23, %v776, 0
  %779 = vmatprep.subr.mxu0 0.0
  %780 = vmatpush1.msra.mxu0 0.0
  %781 = vmatprep.subr.mxu0 0.0
  %782 = vmatpush1.msra.mxu0 0.0
  %783 = vmatprep.subr.mxu0 0.0
  %784 = vmatpush1.msra.mxu0 0.0
  %785 = vmatprep.subr.mxu0 0.0
  %786 = vmatpush1.msra.mxu0 0.0
  %787 = vmatprep.subr.mxu0 0.0
  %788 = vmatpush1.msra.mxu0 0.0
  %789 = vmatprep.subr.mxu0 0.0
  %790 = vmatpush1.msra.mxu0 0.0
  %791 = vmatprep.subr.mxu0 0.0
  %792 = vmatpush1.msra.mxu0 0.0
  %793 = vmatprep.subr.mxu0 0.0
  %794 = vmatpush1.msra.mxu0 0.0
  %795 = vmatprep.subr.mxu0 0.0
  %796 = vmatpush1.msra.mxu0 0.0
  %797 = vmatprep.subr.mxu0 0.0
  %798 = vmatpush1.msra.mxu0 0.0
  %799 = vmatprep.subr.mxu0 0.0
  %800 = vmatpush1.msra.mxu0 0.0
  %801 = vmatprep.subr.mxu0 0.0
  %802 = vmatpush1.msra.mxu0 0.0
  %803 = vmatprep.subr.mxu0 0.0
  %804 = vmatpush1.msra.mxu0 %v21
  %805 = vmatprep.subr.mxu0 0.0
  %806 = vmatpush1.msra.mxu0 %v20
  %807 = vmatprep.subr.mxu0 0.0
  %808 = vmatpush1.msra.mxu0 %v19
  %809 = vmatprep.subr.mxu0 0.0
  %810 = vmatpush1.msra.mxu0 %v18
  %811 = vmatprep.subr.mxu0 0.0
  %812 = vmatpush2.msra.mxu0 0.0
  %813 = vmatprep.subr.mxu0 0.0
  %814 = vmatpush2.msra.mxu0 0.0
  %815 = vmatprep.subr.mxu0 0.0
  %816 = vmatpush2.msra.mxu0 0.0
  %817 = vmatprep.subr.mxu0 0.0
  %818 = vmatpush2.msra.mxu0 0.0
  %819 = vmatprep.subr.mxu0 0.0
  %820 = vmatpush2.msra.mxu0 0.0
  %821 = vmatprep.subr.mxu0 0.0
  %822 = vmatpush2.msra.mxu0 0.0
  %823 = vmatprep.subr.mxu0 0.0
  %824 = vmatpush2.msra.mxu0 0.0
  %825 = vmatprep.subr.mxu0 0.0
  %826 = vmatpush2.msra.mxu0 0.0
  %827 = vmatprep.subr.mxu0 0.0
  %828 = vmatpush2.msra.mxu0 0.0
  %829 = vmatprep.subr.mxu0 0.0
  %830 = vmatpush2.msra.mxu0 0.0
  %831 = vmatprep.subr.mxu0 0.0
  %832 = vmatpush2.msra.mxu0 0.0
  %833 = vmatprep.subr.mxu0 0.0
  %834 = vmatpush2.msra.mxu0 0.0
  %835 = vmatprep.subr.mxu0 0.0
  %836 = vmatpush2.msra.mxu0 0.0
  %837 = vmatprep.subr.mxu0 0.0
  %838 = vmatpush2.msra.mxu0 0.0
  %839 = vmatprep.subr.mxu0 0.0
  %840 = vmatpush2.msra.mxu0 0.0
  %841 = vmatprep.subr.mxu0 0.0
  %842 = vmatpush2.msra.mxu0 0.0
  %843 = vmatprep.mubr.f32.mxu0 0.0
  %844 = vmatmul.mubr.f32.gmra.mxu0 %v777
  %v845 = vpop.f32.mrf.mxu0
  %v846 = vadd.f32 0.0, %v845
  %v847 = vpop.f32.mrf.mxu0
  %848 = vdwg.mxu0
  %v849 = vadd.f32 %v774, %v846
  %v850 = vxor.u32 %v772, 2147483648
  %v851 = vmul.f32 %v850, 1.442695
  %v852 = vpow.pop %v851
  %v853 = vadd.f32 %v852, 1.0
  %v854 = vrcp.pop %v853
  %v855 = vmul.f32 1.0, %v854
  %v856 = vtanh.pop %v772
  %v857 = vmul.f32 %v855, %v641
  %859 = vrot.lane.b32.xlu0 %v856, 64
  %v860 = vpop.permute.xlu0 %859
  %v862 = vmul.f32 %v855, %v860
  %864 = vrot.lane.b32.xlu0 %v862, 32
  %v865 = vpop.permute.xlu0 %864
  %v867 = vadd.f32 %v857, %v865
  %v868 = vtanh.pop %v867
  %870 = vrot.lane.b32.xlu0 %v868, 64
  %v871 = vpop.permute.xlu0 %870
  %v873 = vmul.f32 %v855, %v871
  %v874 = vxor.u32 %v849, 2147483648
  %v875 = vmul.f32 %v874, 1.442695
  %v876 = vpow.pop %v875
  %v877 = vadd.f32 %v876, 1.0
  %v878 = vrcp.pop %v877
  %v879 = vmul.f32 1.0, %v878
  %v880 = vtanh.pop %v849
  %v881 = vmul.f32 %v879, %v665
  %883 = vrot.lane.b32.xlu0 %v880, 64
  %v884 = vpop.permute.xlu0 %883
  %v886 = vmul.f32 %v879, %v884
  %888 = vrot.lane.b32.xlu0 %v886, 32
  %v889 = vpop.permute.xlu0 %888
  %v891 = vadd.f32 %v881, %v889
  %v892 = vtanh.pop %v891
  %894 = vrot.lane.b32.xlu0 %v892, 64
  %v895 = vpop.permute.xlu0 %894
  %v897 = vmul.f32 %v879, %v895
  %v900 = vunpack.c.l.s4 1983009808
  %v901 = vunpack.c.0.s8 %v900
  %v902 = vlaneseq
  %v903 = vshrl.u32 %v902, 7
  %v904 = vsub.s32 %v901, %v903
  %v905 = vrot.slane %v873, %v904
  %906 = vrot.lane.b32.xlu0 %v905, 32
  %v907 = vpop.permute.xlu0 %906
  %s909 = scalar_lea.vmem %s3, 6
  %910 = vst.msk [vmem:[%s909] sm:$0x3] %vm230, %v907
  %v913 = vunpack.c.l.s4 1983009808
  %v914 = vunpack.c.0.s8 %v913
  %v915 = vlaneseq
  %v916 = vshrl.u32 %v915, 7
  %v917 = vsub.s32 %v914, %v916
  %v918 = vrot.slane %v897, %v917
  %919 = vrot.lane.b32.xlu0 %v918, 64
  %v920 = vpop.permute.xlu0 %919
  %s922 = scalar_lea.vmem %s3, 8
  %923 = vst.msk [vmem:[%s922] sm:$0x3] %vm244, %v920
  %v924 = vld [vmem:[%s773] sm:$0x3]
  %v925 = vsel %vm23, %v907, 0
  %927 = vmatprep.subr.mxu0 0.0
  %928 = vmatpush1.msra.mxu0 0.0
  %929 = vmatprep.subr.mxu0 0.0
  %930 = vmatpush1.msra.mxu0 0.0
  %931 = vmatprep.subr.mxu0 0.0
  %932 = vmatpush1.msra.mxu0 0.0
  %933 = vmatprep.subr.mxu0 0.0
  %934 = vmatpush1.msra.mxu0 0.0
  %935 = vmatprep.subr.mxu0 0.0
  %936 = vmatpush1.msra.mxu0 0.0
  %937 = vmatprep.subr.mxu0 0.0
  %938 = vmatpush1.msra.mxu0 0.0
  %939 = vmatprep.subr.mxu0 0.0
  %940 = vmatpush1.msra.mxu0 0.0
  %941 = vmatprep.subr.mxu0 0.0
  %942 = vmatpush1.msra.mxu0 0.0
  %943 = vmatprep.subr.mxu0 0.0
  %944 = vmatpush1.msra.mxu0 0.0
  %945 = vmatprep.subr.mxu0 0.0
  %946 = vmatpush1.msra.mxu0 0.0
  %947 = vmatprep.subr.mxu0 0.0
  %948 = vmatpush1.msra.mxu0 0.0
  %949 = vmatprep.subr.mxu0 0.0
  %950 = vmatpush1.msra.mxu0 0.0
  %951 = vmatprep.subr.mxu0 0.0
  %952 = vmatpush1.msra.mxu0 %v17
  %953 = vmatprep.subr.mxu0 0.0
  %954 = vmatpush1.msra.mxu0 %v16
  %955 = vmatprep.subr.mxu0 0.0
  %956 = vmatpush1.msra.mxu0 %v15
  %957 = vmatprep.subr.mxu0 0.0
  %958 = vmatpush1.msra.mxu0 %v14
  %959 = vmatprep.subr.mxu0 0.0
  %960 = vmatpush2.msra.mxu0 0.0
  %961 = vmatprep.subr.mxu0 0.0
  %962 = vmatpush2.msra.mxu0 0.0
  %963 = vmatprep.subr.mxu0 0.0
  %964 = vmatpush2.msra.mxu0 0.0
  %965 = vmatprep.subr.mxu0 0.0
  %966 = vmatpush2.msra.mxu0 0.0
  %967 = vmatprep.subr.mxu0 0.0
  %968 = vmatpush2.msra.mxu0 0.0
  %969 = vmatprep.subr.mxu0 0.0
  %970 = vmatpush2.msra.mxu0 0.0
  %971 = vmatprep.subr.mxu0 0.0
  %972 = vmatpush2.msra.mxu0 0.0
  %973 = vmatprep.subr.mxu0 0.0
  %974 = vmatpush2.msra.mxu0 0.0
  %975 = vmatprep.subr.mxu0 0.0
  %976 = vmatpush2.msra.mxu0 0.0
  %977 = vmatprep.subr.mxu0 0.0
  %978 = vmatpush2.msra.mxu0 0.0
  %979 = vmatprep.subr.mxu0 0.0
  %980 = vmatpush2.msra.mxu0 0.0
  %981 = vmatprep.subr.mxu0 0.0
  %982 = vmatpush2.msra.mxu0 0.0
  %983 = vmatprep.subr.mxu0 0.0
  %984 = vmatpush2.msra.mxu0 0.0
  %985 = vmatprep.subr.mxu0 0.0
  %986 = vmatpush2.msra.mxu0 0.0
  %987 = vmatprep.subr.mxu0 0.0
  %988 = vmatpush2.msra.mxu0 0.0
  %989 = vmatprep.subr.mxu0 0.0
  %990 = vmatpush2.msra.mxu0 0.0
  %991 = vmatprep.mubr.f32.mxu0 0.0
  %992 = vmatmul.mubr.f32.gmra.mxu0 %v925
  %v993 = vpop.f32.mrf.mxu0
  %v994 = vadd.f32 0.0, %v993
  %v995 = vpop.f32.mrf.mxu0
  %996 = vdwg.mxu0
  %v997 = vadd.f32 %v924, %v994
  %v998 = vld [vmem:[%s698 + $0x2] sm:$0x3]
  %999 = vrot.lane.b32.xlu0 %v918, 32
  %v1000 = vpop.permute.xlu0 %999
  %v1001 = vsel %vm23, %v1000, 0
  %1003 = vmatprep.subr.mxu0 0.0
  %1004 = vmatpush1.msra.mxu0 0.0
  %1005 = vmatprep.subr.mxu0 0.0
  %1006 = vmatpush1.msra.mxu0 0.0
  %1007 = vmatprep.subr.mxu0 0.0
  %1008 = vmatpush1.msra.mxu0 0.0
  %1009 = vmatprep.subr.mxu0 0.0
  %1010 = vmatpush1.msra.mxu0 0.0
  %1011 = vmatprep.subr.mxu0 0.0
  %1012 = vmatpush1.msra.mxu0 0.0
  %1013 = vmatprep.subr.mxu0 0.0
  %1014 = vmatpush1.msra.mxu0 0.0
  %1015 = vmatprep.subr.mxu0 0.0
  %1016 = vmatpush1.msra.mxu0 0.0
  %1017 = vmatprep.subr.mxu0 0.0
  %1018 = vmatpush1.msra.mxu0 0.0
  %1019 = vmatprep.subr.mxu0 0.0
  %1020 = vmatpush1.msra.mxu0 0.0
  %1021 = vmatprep.subr.mxu0 0.0
  %1022 = vmatpush1.msra.mxu0 0.0
  %1023 = vmatprep.subr.mxu0 0.0
  %1024 = vmatpush1.msra.mxu0 0.0
  %1025 = vmatprep.subr.mxu0 0.0
  %1026 = vmatpush1.msra.mxu0 0.0
  %1027 = vmatprep.subr.mxu0 0.0
  %1028 = vmatpush1.msra.mxu0 %v21
  %1029 = vmatprep.subr.mxu0 0.0
  %1030 = vmatpush1.msra.mxu0 %v20
  %1031 = vmatprep.subr.mxu0 0.0
  %1032 = vmatpush1.msra.mxu0 %v19
  %1033 = vmatprep.subr.mxu0 0.0
  %1034 = vmatpush1.msra.mxu0 %v18
  %1035 = vmatprep.subr.mxu0 0.0
  %1036 = vmatpush2.msra.mxu0 0.0
  %1037 = vmatprep.subr.mxu0 0.0
  %1038 = vmatpush2.msra.mxu0 0.0
  %1039 = vmatprep.subr.mxu0 0.0
  %1040 = vmatpush2.msra.mxu0 0.0
  %1041 = vmatprep.subr.mxu0 0.0
  %1042 = vmatpush2.msra.mxu0 0.0
  %1043 = vmatprep.subr.mxu0 0.0
  %1044 = vmatpush2.msra.mxu0 0.0
  %1045 = vmatprep.subr.mxu0 0.0
  %1046 = vmatpush2.msra.mxu0 0.0
  %1047 = vmatprep.subr.mxu0 0.0
  %1048 = vmatpush2.msra.mxu0 0.0
  %1049 = vmatprep.subr.mxu0 0.0
  %1050 = vmatpush2.msra.mxu0 0.0
  %1051 = vmatprep.subr.mxu0 0.0
  %1052 = vmatpush2.msra.mxu0 0.0
  %1053 = vmatprep.subr.mxu0 0.0
  %1054 = vmatpush2.msra.mxu0 0.0
  %1055 = vmatprep.subr.mxu0 0.0
  %1056 = vmatpush2.msra.mxu0 0.0
  %1057 = vmatprep.subr.mxu0 0.0
  %1058 = vmatpush2.msra.mxu0 0.0
  %1059 = vmatprep.subr.mxu0 0.0
  %1060 = vmatpush2.msra.mxu0 0.0
  %1061 = vmatprep.subr.mxu0 0.0
  %1062 = vmatpush2.msra.mxu0 0.0
  %1063 = vmatprep.subr.mxu0 0.0
  %1064 = vmatpush2.msra.mxu0 0.0
  %1065 = vmatprep.subr.mxu0 0.0
  %1066 = vmatpush2.msra.mxu0 0.0
  %1067 = vmatprep.mubr.f32.mxu0 0.0
  %1068 = vmatmul.mubr.f32.gmra.mxu0 %v1001
  %v1069 = vpop.f32.mrf.mxu0
  %v1070 = vadd.f32 0.0, %v1069
  %v1071 = vpop.f32.mrf.mxu0
  %1072 = vdwg.mxu0
  %v1073 = vadd.f32 %v998, %v1070
  %v1074 = vxor.u32 %v997, 2147483648
  %v1075 = vmul.f32 %v1074, 1.442695
  %v1076 = vpow.pop %v1075
  %v1077 = vadd.f32 %v1076, 1.0
  %v1078 = vrcp.pop %v1077
  %v1079 = vmul.f32 1.0, %v1078
  %v1080 = vtanh.pop %v997
  %v1081 = vmul.f32 %v1079, %v867
  %1083 = vrot.lane.b32.xlu0 %v1080, 64
  %v1084 = vpop.permute.xlu0 %1083
  %v1086 = vmul.f32 %v1079, %v1084
  %1088 = vrot.lane.b32.xlu0 %v1086, 32
  %v1089 = vpop.permute.xlu0 %1088
  %v1091 = vadd.f32 %v1081, %v1089
  %v1092 = vtanh.pop %v1091
  %1094 = vrot.lane.b32.xlu0 %v1092, 64
  %v1095 = vpop.permute.xlu0 %1094
  %v1097 = vmul.f32 %v1079, %v1095
  %v1098 = vxor.u32 %v1073, 2147483648
  %v1099 = vmul.f32 %v1098, 1.442695
  %v1100 = vpow.pop %v1099
  %v1101 = vadd.f32 %v1100, 1.0
  %v1102 = vrcp.pop %v1101
  %v1103 = vmul.f32 1.0, %v1102
  %v1104 = vtanh.pop %v1073
  %v1105 = vmul.f32 %v1103, %v891
  %1107 = vrot.lane.b32.xlu0 %v1104, 64
  %v1108 = vpop.permute.xlu0 %1107
  %v1110 = vmul.f32 %v1103, %v1108
  %1112 = vrot.lane.b32.xlu0 %v1110, 32
  %v1113 = vpop.permute.xlu0 %1112
  %v1115 = vadd.f32 %v1105, %v1113
  %v1116 = vtanh.pop %v1115
  %1118 = vrot.lane.b32.xlu0 %v1116, 64
  %v1119 = vpop.permute.xlu0 %1118
  %v1121 = vmul.f32 %v1103, %v1119
  %v1124 = vunpack.c.l.s4 1983009808
  %v1125 = vunpack.c.0.s8 %v1124
  %v1126 = vlaneseq
  %v1127 = vshrl.u32 %v1126, 7
  %v1128 = vsub.s32 %v1125, %v1127
  %v1129 = vrot.slane %v1097, %v1128
  %1130 = vrot.lane.b32.xlu0 %v1129, 32
  %v1131 = vpop.permute.xlu0 %1130
  %1133 = vst.msk [vmem:[%s922] sm:$0x3] %vm230, %v1131
  %v1136 = vunpack.c.l.s4 1983009808
  %v1137 = vunpack.c.0.s8 %v1136
  %v1138 = vlaneseq
  %v1139 = vshrl.u32 %v1138, 7
  %v1140 = vsub.s32 %v1137, %v1139
  %v1141 = vrot.slane %v1121, %v1140
  %1142 = vrot.lane.b32.xlu0 %v1141, 64
  %v1143 = vpop.permute.xlu0 %1142
  %1145 = vst.msk [vmem:[%s909] sm:$0x3] %vm244, %v1143
  %v1146 = vld [vmem:[%s547] sm:$0x3]
  %v1147 = vsel %vm23, %v1131, 0
  %1149 = vmatprep.subr.mxu0 0.0
  %1150 = vmatpush1.msra.mxu0 0.0
  %1151 = vmatprep.subr.mxu0 0.0
  %1152 = vmatpush1.msra.mxu0 0.0
  %1153 = vmatprep.subr.mxu0 0.0
  %1154 = vmatpush1.msra.mxu0 0.0
  %1155 = vmatprep.subr.mxu0 0.0
  %1156 = vmatpush1.msra.mxu0 0.0
  %1157 = vmatprep.subr.mxu0 0.0
  %1158 = vmatpush1.msra.mxu0 0.0
  %1159 = vmatprep.subr.mxu0 0.0
  %1160 = vmatpush1.msra.mxu0 0.0
  %1161 = vmatprep.subr.mxu0 0.0
  %1162 = vmatpush1.msra.mxu0 0.0
  %1163 = vmatprep.subr.mxu0 0.0
  %1164 = vmatpush1.msra.mxu0 0.0
  %1165 = vmatprep.subr.mxu0 0.0
  %1166 = vmatpush1.msra.mxu0 0.0
  %1167 = vmatprep.subr.mxu0 0.0
  %1168 = vmatpush1.msra.mxu0 0.0
  %1169 = vmatprep.subr.mxu0 0.0
  %1170 = vmatpush1.msra.mxu0 0.0
  %1171 = vmatprep.subr.mxu0 0.0
  %1172 = vmatpush1.msra.mxu0 0.0
  %1173 = vmatprep.subr.mxu0 0.0
  %1174 = vmatpush1.msra.mxu0 %v17
  %1175 = vmatprep.subr.mxu0 0.0
  %1176 = vmatpush1.msra.mxu0 %v16
  %1177 = vmatprep.subr.mxu0 0.0
  %1178 = vmatpush1.msra.mxu0 %v15
  %1179 = vmatprep.subr.mxu0 0.0
  %1180 = vmatpush1.msra.mxu0 %v14
  %1181 = vmatprep.subr.mxu0 0.0
  %1182 = vmatpush2.msra.mxu0 0.0
  %1183 = vmatprep.subr.mxu0 0.0
  %1184 = vmatpush2.msra.mxu0 0.0
  %1185 = vmatprep.subr.mxu0 0.0
  %1186 = vmatpush2.msra.mxu0 0.0
  %1187 = vmatprep.subr.mxu0 0.0
  %1188 = vmatpush2.msra.mxu0 0.0
  %1189 = vmatprep.subr.mxu0 0.0
  %1190 = vmatpush2.msra.mxu0 0.0
  %1191 = vmatprep.subr.mxu0 0.0
  %1192 = vmatpush2.msra.mxu0 0.0
  %1193 = vmatprep.subr.mxu0 0.0
  %1194 = vmatpush2.msra.mxu0 0.0
  %1195 = vmatprep.subr.mxu0 0.0
  %1196 = vmatpush2.msra.mxu0 0.0
  %1197 = vmatprep.subr.mxu0 0.0
  %1198 = vmatpush2.msra.mxu0 0.0
  %1199 = vmatprep.subr.mxu0 0.0
  %1200 = vmatpush2.msra.mxu0 0.0
  %1201 = vmatprep.subr.mxu0 0.0
  %1202 = vmatpush2.msra.mxu0 0.0
  %1203 = vmatprep.subr.mxu0 0.0
  %1204 = vmatpush2.msra.mxu0 0.0
  %1205 = vmatprep.subr.mxu0 0.0
  %1206 = vmatpush2.msra.mxu0 0.0
  %1207 = vmatprep.subr.mxu0 0.0
  %1208 = vmatpush2.msra.mxu0 0.0
  %1209 = vmatprep.subr.mxu0 0.0
  %1210 = vmatpush2.msra.mxu0 0.0
  %1211 = vmatprep.subr.mxu0 0.0
  %1212 = vmatpush2.msra.mxu0 0.0
  %1213 = vmatprep.mubr.f32.mxu0 0.0
  %1214 = vmatmul.mubr.f32.gmra.mxu0 %v1147
  %v1215 = vpop.f32.mrf.mxu0
  %v1216 = vadd.f32 0.0, %v1215
  %v1217 = vpop.f32.mrf.mxu0
  %1218 = vdwg.mxu0
  %v1219 = vadd.f32 %v1146, %v1216
  %v1220 = vld [vmem:[%s472 + $0x2] sm:$0x3]
  %1221 = vrot.lane.b32.xlu0 %v1141, 32
  %v1222 = vpop.permute.xlu0 %1221
  %v1223 = vsel %vm23, %v1222, 0
  %1225 = vmatprep.subr.mxu0 0.0
  %1226 = vmatpush1.msra.mxu0 0.0
  %1227 = vmatprep.subr.mxu0 0.0
  %1228 = vmatpush1.msra.mxu0 0.0
  %1229 = vmatprep.subr.mxu0 0.0
  %1230 = vmatpush1.msra.mxu0 0.0
  %1231 = vmatprep.subr.mxu0 0.0
  %1232 = vmatpush1.msra.mxu0 0.0
  %1233 = vmatprep.subr.mxu0 0.0
  %1234 = vmatpush1.msra.mxu0 0.0
  %1235 = vmatprep.subr.mxu0 0.0
  %1236 = vmatpush1.msra.mxu0 0.0
  %1237 = vmatprep.subr.mxu0 0.0
  %1238 = vmatpush1.msra.mxu0 0.0
  %1239 = vmatprep.subr.mxu0 0.0
  %1240 = vmatpush1.msra.mxu0 0.0
  %1241 = vmatprep.subr.mxu0 0.0
  %1242 = vmatpush1.msra.mxu0 0.0
  %1243 = vmatprep.subr.mxu0 0.0
  %1244 = vmatpush1.msra.mxu0 0.0
  %1245 = vmatprep.subr.mxu0 0.0
  %1246 = vmatpush1.msra.mxu0 0.0
  %1247 = vmatprep.subr.mxu0 0.0
  %1248 = vmatpush1.msra.mxu0 0.0
  %1249 = vmatprep.subr.mxu0 0.0
  %1250 = vmatpush1.msra.mxu0 %v21
  %1251 = vmatprep.subr.mxu0 0.0
  %1252 = vmatpush1.msra.mxu0 %v20
  %1253 = vmatprep.subr.mxu0 0.0
  %1254 = vmatpush1.msra.mxu0 %v19
  %1255 = vmatprep.subr.mxu0 0.0
  %1256 = vmatpush1.msra.mxu0 %v18
  %1257 = vmatprep.subr.mxu0 0.0
  %1258 = vmatpush2.msra.mxu0 0.0
  %1259 = vmatprep.subr.mxu0 0.0
  %1260 = vmatpush2.msra.mxu0 0.0
  %1261 = vmatprep.subr.mxu0 0.0
  %1262 = vmatpush2.msra.mxu0 0.0
  %1263 = vmatprep.subr.mxu0 0.0
  %1264 = vmatpush2.msra.mxu0 0.0
  %1265 = vmatprep.subr.mxu0 0.0
  %1266 = vmatpush2.msra.mxu0 0.0
  %1267 = vmatprep.subr.mxu0 0.0
  %1268 = vmatpush2.msra.mxu0 0.0
  %1269 = vmatprep.subr.mxu0 0.0
  %1270 = vmatpush2.msra.mxu0 0.0
  %1271 = vmatprep.subr.mxu0 0.0
  %1272 = vmatpush2.msra.mxu0 0.0
  %1273 = vmatprep.subr.mxu0 0.0
  %1274 = vmatpush2.msra.mxu0 0.0
  %1275 = vmatprep.subr.mxu0 0.0
  %1276 = vmatpush2.msra.mxu0 0.0
  %1277 = vmatprep.subr.mxu0 0.0
  %1278 = vmatpush2.msra.mxu0 0.0
  %1279 = vmatprep.subr.mxu0 0.0
  %1280 = vmatpush2.msra.mxu0 0.0
  %1281 = vmatprep.subr.mxu0 0.0
  %1282 = vmatpush2.msra.mxu0 0.0
  %1283 = vmatprep.subr.mxu0 0.0
  %1284 = vmatpush2.msra.mxu0 0.0
  %1285 = vmatprep.subr.mxu0 0.0
  %1286 = vmatpush2.msra.mxu0 0.0
  %1287 = vmatprep.subr.mxu0 0.0
  %1288 = vmatpush2.msra.mxu0 0.0
  %1289 = vmatprep.mubr.f32.mxu0 0.0
  %1290 = vmatmul.mubr.f32.gmra.mxu0 %v1223
  %v1291 = vpop.f32.mrf.mxu0
  %v1292 = vadd.f32 0.0, %v1291
  %v1293 = vpop.f32.mrf.mxu0
  %1294 = vdwg.mxu0
  %v1295 = vadd.f32 %v1220, %v1292
  %v1296 = vxor.u32 %v1219, 2147483648
  %v1297 = vmul.f32 %v1296, 1.442695
  %v1298 = vpow.pop %v1297
  %v1299 = vadd.f32 %v1298, 1.0
  %v1300 = vrcp.pop %v1299
  %v1301 = vmul.f32 1.0, %v1300
  %v1302 = vtanh.pop %v1219
  %v1303 = vmul.f32 %v1301, %v1091
  %1305 = vrot.lane.b32.xlu0 %v1302, 64
  %v1306 = vpop.permute.xlu0 %1305
  %v1308 = vmul.f32 %v1301, %v1306
  %1310 = vrot.lane.b32.xlu0 %v1308, 32
  %v1311 = vpop.permute.xlu0 %1310
  %v1313 = vadd.f32 %v1303, %v1311
  %v1314 = vtanh.pop %v1313
  %1316 = vrot.lane.b32.xlu0 %v1314, 64
  %v1317 = vpop.permute.xlu0 %1316
  %v1319 = vmul.f32 %v1301, %v1317
  %v1320 = vxor.u32 %v1295, 2147483648
  %v1321 = vmul.f32 %v1320, 1.442695
  %v1322 = vpow.pop %v1321
  %v1323 = vadd.f32 %v1322, 1.0
  %v1324 = vrcp.pop %v1323
  %v1325 = vmul.f32 1.0, %v1324
  %v1326 = vtanh.pop %v1295
  %v1327 = vmul.f32 %v1325, %v1115
  %1329 = vrot.lane.b32.xlu0 %v1326, 64
  %v1330 = vpop.permute.xlu0 %1329
  %v1332 = vmul.f32 %v1325, %v1330
  %1334 = vrot.lane.b32.xlu0 %v1332, 32
  %v1335 = vpop.permute.xlu0 %1334
  %v1337 = vadd.f32 %v1327, %v1335
  %v1338 = vtanh.pop %v1337
  %1340 = vrot.lane.b32.xlu0 %v1338, 64
  %v1341 = vpop.permute.xlu0 %1340
  %v1343 = vmul.f32 %v1325, %v1341
  %v1346 = vunpack.c.l.s4 1983009808
  %v1347 = vunpack.c.0.s8 %v1346
  %v1348 = vlaneseq
  %v1349 = vshrl.u32 %v1348, 7
  %v1350 = vsub.s32 %v1347, %v1349
  %v1351 = vrot.slane %v1319, %v1350
  %1352 = vrot.lane.b32.xlu0 %v1351, 32
  %v1353 = vpop.permute.xlu0 %1352
  %1355 = vst.msk [vmem:[%s696] sm:$0x3] %vm230, %v1353
  %v1358 = vunpack.c.l.s4 1983009808
  %v1359 = vunpack.c.0.s8 %v1358
  %v1360 = vlaneseq
  %v1361 = vshrl.u32 %v1360, 7
  %v1362 = vsub.s32 %v1359, %v1361
  %v1363 = vrot.slane %v1343, %v1362
  %1364 = vrot.lane.b32.xlu0 %v1363, 64
  %v1365 = vpop.permute.xlu0 %1364
  %1367 = vst.msk [vmem:[%s683] sm:$0x3] %vm244, %v1365
  %v1368 = vld [vmem:[%s321] sm:$0x3]
  %v1369 = vsel %vm23, %v1353, 0
  %1371 = vmatprep.subr.mxu0 0.0
  %1372 = vmatpush1.msra.mxu0 0.0
  %1373 = vmatprep.subr.mxu0 0.0
  %1374 = vmatpush1.msra.mxu0 0.0
  %1375 = vmatprep.subr.mxu0 0.0
  %1376 = vmatpush1.msra.mxu0 0.0
  %1377 = vmatprep.subr.mxu0 0.0
  %1378 = vmatpush1.msra.mxu0 0.0
  %1379 = vmatprep.subr.mxu0 0.0
  %1380 = vmatpush1.msra.mxu0 0.0
  %1381 = vmatprep.subr.mxu0 0.0
  %1382 = vmatpush1.msra.mxu0 0.0
  %1383 = vmatprep.subr.mxu0 0.0
  %1384 = vmatpush1.msra.mxu0 0.0
  %1385 = vmatprep.subr.mxu0 0.0
  %1386 = vmatpush1.msra.mxu0 0.0
  %1387 = vmatprep.subr.mxu0 0.0
  %1388 = vmatpush1.msra.mxu0 0.0
  %1389 = vmatprep.subr.mxu0 0.0
  %1390 = vmatpush1.msra.mxu0 0.0
  %1391 = vmatprep.subr.mxu0 0.0
  %1392 = vmatpush1.msra.mxu0 0.0
  %1393 = vmatprep.subr.mxu0 0.0
  %1394 = vmatpush1.msra.mxu0 0.0
  %1395 = vmatprep.subr.mxu0 0.0
  %1396 = vmatpush1.msra.mxu0 %v17
  %1397 = vmatprep.subr.mxu0 0.0
  %1398 = vmatpush1.msra.mxu0 %v16
  %1399 = vmatprep.subr.mxu0 0.0
  %1400 = vmatpush1.msra.mxu0 %v15
  %1401 = vmatprep.subr.mxu0 0.0
  %1402 = vmatpush1.msra.mxu0 %v14
  %1403 = vmatprep.subr.mxu0 0.0
  %1404 = vmatpush2.msra.mxu0 0.0
  %1405 = vmatprep.subr.mxu0 0.0
  %1406 = vmatpush2.msra.mxu0 0.0
  %1407 = vmatprep.subr.mxu0 0.0
  %1408 = vmatpush2.msra.mxu0 0.0
  %1409 = vmatprep.subr.mxu0 0.0
  %1410 = vmatpush2.msra.mxu0 0.0
  %1411 = vmatprep.subr.mxu0 0.0
  %1412 = vmatpush2.msra.mxu0 0.0
  %1413 = vmatprep.subr.mxu0 0.0
  %1414 = vmatpush2.msra.mxu0 0.0
  %1415 = vmatprep.subr.mxu0 0.0
  %1416 = vmatpush2.msra.mxu0 0.0
  %1417 = vmatprep.subr.mxu0 0.0
  %1418 = vmatpush2.msra.mxu0 0.0
  %1419 = vmatprep.subr.mxu0 0.0
  %1420 = vmatpush2.msra.mxu0 0.0
  %1421 = vmatprep.subr.mxu0 0.0
  %1422 = vmatpush2.msra.mxu0 0.0
  %1423 = vmatprep.subr.mxu0 0.0
  %1424 = vmatpush2.msra.mxu0 0.0
  %1425 = vmatprep.subr.mxu0 0.0
  %1426 = vmatpush2.msra.mxu0 0.0
  %1427 = vmatprep.subr.mxu0 0.0
  %1428 = vmatpush2.msra.mxu0 0.0
  %1429 = vmatprep.subr.mxu0 0.0
  %1430 = vmatpush2.msra.mxu0 0.0
  %1431 = vmatprep.subr.mxu0 0.0
  %1432 = vmatpush2.msra.mxu0 0.0
  %1433 = vmatprep.subr.mxu0 0.0
  %1434 = vmatpush2.msra.mxu0 0.0
  %1435 = vmatprep.mubr.f32.mxu0 0.0
  %1436 = vmatmul.mubr.f32.gmra.mxu0 %v1369
  %v1437 = vpop.f32.mrf.mxu0
  %v1438 = vadd.f32 0.0, %v1437
  %v1439 = vpop.f32.mrf.mxu0
  %1440 = vdwg.mxu0
  %v1441 = vadd.f32 %v1368, %v1438
  %v1442 = vld [vmem:[%s246 + $0x2] sm:$0x3]
  %1443 = vrot.lane.b32.xlu0 %v1363, 32
  %v1444 = vpop.permute.xlu0 %1443
  %v1445 = vsel %vm23, %v1444, 0
  %1447 = vmatprep.subr.mxu0 0.0
  %1448 = vmatpush1.msra.mxu0 0.0
  %1449 = vmatprep.subr.mxu0 0.0
  %1450 = vmatpush1.msra.mxu0 0.0
  %1451 = vmatprep.subr.mxu0 0.0
  %1452 = vmatpush1.msra.mxu0 0.0
  %1453 = vmatprep.subr.mxu0 0.0
  %1454 = vmatpush1.msra.mxu0 0.0
  %1455 = vmatprep.subr.mxu0 0.0
  %1456 = vmatpush1.msra.mxu0 0.0
  %1457 = vmatprep.subr.mxu0 0.0
  %1458 = vmatpush1.msra.mxu0 0.0
  %1459 = vmatprep.subr.mxu0 0.0
  %1460 = vmatpush1.msra.mxu0 0.0
  %1461 = vmatprep.subr.mxu0 0.0
  %1462 = vmatpush1.msra.mxu0 0.0
  %1463 = vmatprep.subr.mxu0 0.0
  %1464 = vmatpush1.msra.mxu0 0.0
  %1465 = vmatprep.subr.mxu0 0.0
  %1466 = vmatpush1.msra.mxu0 0.0
  %1467 = vmatprep.subr.mxu0 0.0
  %1468 = vmatpush1.msra.mxu0 0.0
  %1469 = vmatprep.subr.mxu0 0.0
  %1470 = vmatpush1.msra.mxu0 0.0
  %1471 = vmatprep.subr.mxu0 0.0
  %1472 = vmatpush1.msra.mxu0 %v21
  %1473 = vmatprep.subr.mxu0 0.0
  %1474 = vmatpush1.msra.mxu0 %v20
  %1475 = vmatprep.subr.mxu0 0.0
  %1476 = vmatpush1.msra.mxu0 %v19
  %1477 = vmatprep.subr.mxu0 0.0
  %1478 = vmatpush1.msra.mxu0 %v18
  %1479 = vmatprep.subr.mxu0 0.0
  %1480 = vmatpush2.msra.mxu0 0.0
  %1481 = vmatprep.subr.mxu0 0.0
  %1482 = vmatpush2.msra.mxu0 0.0
  %1483 = vmatprep.subr.mxu0 0.0
  %1484 = vmatpush2.msra.mxu0 0.0
  %1485 = vmatprep.subr.mxu0 0.0
  %1486 = vmatpush2.msra.mxu0 0.0
  %1487 = vmatprep.subr.mxu0 0.0
  %1488 = vmatpush2.msra.mxu0 0.0
  %1489 = vmatprep.subr.mxu0 0.0
  %1490 = vmatpush2.msra.mxu0 0.0
  %1491 = vmatprep.subr.mxu0 0.0
  %1492 = vmatpush2.msra.mxu0 0.0
  %1493 = vmatprep.subr.mxu0 0.0
  %1494 = vmatpush2.msra.mxu0 0.0
  %1495 = vmatprep.subr.mxu0 0.0
  %1496 = vmatpush2.msra.mxu0 0.0
  %1497 = vmatprep.subr.mxu0 0.0
  %1498 = vmatpush2.msra.mxu0 0.0
  %1499 = vmatprep.subr.mxu0 0.0
  %1500 = vmatpush2.msra.mxu0 0.0
  %1501 = vmatprep.subr.mxu0 0.0
  %1502 = vmatpush2.msra.mxu0 0.0
  %1503 = vmatprep.subr.mxu0 0.0
  %1504 = vmatpush2.msra.mxu0 0.0
  %1505 = vmatprep.subr.mxu0 0.0
  %1506 = vmatpush2.msra.mxu0 0.0
  %1507 = vmatprep.subr.mxu0 0.0
  %1508 = vmatpush2.msra.mxu0 0.0
  %1509 = vmatprep.subr.mxu0 0.0
  %1510 = vmatpush2.msra.mxu0 0.0
  %1511 = vmatprep.mubr.f32.mxu0 0.0
  %1512 = vmatmul.mubr.f32.gmra.mxu0 %v1445
  %v1513 = vpop.f32.mrf.mxu0
  %v1514 = vadd.f32 0.0, %v1513
  %v1515 = vpop.f32.mrf.mxu0
  %1516 = vdwg.mxu0
  %v1517 = vadd.f32 %v1442, %v1514
  %v1518 = vxor.u32 %v1441, 2147483648
  %v1519 = vmul.f32 %v1518, 1.442695
  %v1520 = vpow.pop %v1519
  %v1521 = vadd.f32 %v1520, 1.0
  %v1522 = vrcp.pop %v1521
  %v1523 = vmul.f32 1.0, %v1522
  %v1524 = vtanh.pop %v1441
  %v1525 = vmul.f32 %v1523, %v1313
  %1527 = vrot.lane.b32.xlu0 %v1524, 64
  %v1528 = vpop.permute.xlu0 %1527
  %v1530 = vmul.f32 %v1523, %v1528
  %1532 = vrot.lane.b32.xlu0 %v1530, 32
  %v1533 = vpop.permute.xlu0 %1532
  %v1535 = vadd.f32 %v1525, %v1533
  %v1536 = vtanh.pop %v1535
  %1538 = vrot.lane.b32.xlu0 %v1536, 64
  %v1539 = vpop.permute.xlu0 %1538
  %v1541 = vmul.f32 %v1523, %v1539
  %v1542 = vxor.u32 %v1517, 2147483648
  %v1543 = vmul.f32 %v1542, 1.442695
  %v1544 = vpow.pop %v1543
  %v1545 = vadd.f32 %v1544, 1.0
  %v1546 = vrcp.pop %v1545
  %v1547 = vmul.f32 1.0, %v1546
  %v1548 = vtanh.pop %v1517
  %v1549 = vmul.f32 %v1547, %v1337
  %1551 = vrot.lane.b32.xlu0 %v1548, 64
  %v1552 = vpop.permute.xlu0 %1551
  %v1554 = vmul.f32 %v1547, %v1552
  %1556 = vrot.lane.b32.xlu0 %v1554, 32
  %v1557 = vpop.permute.xlu0 %1556
  %v1559 = vadd.f32 %v1549, %v1557
  %v1560 = vtanh.pop %v1559
  %1562 = vrot.lane.b32.xlu0 %v1560, 64
  %v1563 = vpop.permute.xlu0 %1562
  %v1565 = vmul.f32 %v1547, %v1563
  %v1568 = vunpack.c.l.s4 1983009808
  %v1569 = vunpack.c.0.s8 %v1568
  %v1570 = vlaneseq
  %v1571 = vshrl.u32 %v1570, 7
  %v1572 = vsub.s32 %v1569, %v1571
  %v1573 = vrot.slane %v1541, %v1572
  %1574 = vrot.lane.b32.xlu0 %v1573, 32
  %v1575 = vpop.permute.xlu0 %1574
  %1577 = vst.msk [vmem:[%s470] sm:$0x3] %vm230, %v1575
  %v1580 = vunpack.c.l.s4 1983009808
  %v1581 = vunpack.c.0.s8 %v1580
  %v1582 = vlaneseq
  %v1583 = vshrl.u32 %v1582, 7
  %v1584 = vsub.s32 %v1581, %v1583
  %v1585 = vrot.slane %v1565, %v1584
  %1586 = vrot.lane.b32.xlu0 %v1585, 64
  %v1587 = vpop.permute.xlu0 %1586
  %1589 = vst.msk [vmem:[%s457] sm:$0x3] %vm244, %v1587
  %v1590 = vld [vmem:[%s98] sm:$0x3]
  %v1591 = vsel %vm23, %v1575, 0
  %1593 = vmatprep.subr.mxu0 0.0
  %1594 = vmatpush1.msra.mxu0 0.0
  %1595 = vmatprep.subr.mxu0 0.0
  %1596 = vmatpush1.msra.mxu0 0.0
  %1597 = vmatprep.subr.mxu0 0.0
  %1598 = vmatpush1.msra.mxu0 0.0
  %1599 = vmatprep.subr.mxu0 0.0
  %1600 = vmatpush1.msra.mxu0 0.0
  %1601 = vmatprep.subr.mxu0 0.0
  %1602 = vmatpush1.msra.mxu0 0.0
  %1603 = vmatprep.subr.mxu0 0.0
  %1604 = vmatpush1.msra.mxu0 0.0
  %1605 = vmatprep.subr.mxu0 0.0
  %1606 = vmatpush1.msra.mxu0 0.0
  %1607 = vmatprep.subr.mxu0 0.0
  %1608 = vmatpush1.msra.mxu0 0.0
  %1609 = vmatprep.subr.mxu0 0.0
  %1610 = vmatpush1.msra.mxu0 0.0
  %1611 = vmatprep.subr.mxu0 0.0
  %1612 = vmatpush1.msra.mxu0 0.0
  %1613 = vmatprep.subr.mxu0 0.0
  %1614 = vmatpush1.msra.mxu0 0.0
  %1615 = vmatprep.subr.mxu0 0.0
  %1616 = vmatpush1.msra.mxu0 0.0
  %1617 = vmatprep.subr.mxu0 0.0
  %1618 = vmatpush1.msra.mxu0 %v17
  %1619 = vmatprep.subr.mxu0 0.0
  %1620 = vmatpush1.msra.mxu0 %v16
  %1621 = vmatprep.subr.mxu0 0.0
  %1622 = vmatpush1.msra.mxu0 %v15
  %1623 = vmatprep.subr.mxu0 0.0
  %1624 = vmatpush1.msra.mxu0 %v14
  %1625 = vmatprep.subr.mxu0 0.0
  %1626 = vmatpush2.msra.mxu0 0.0
  %1627 = vmatprep.subr.mxu0 0.0
  %1628 = vmatpush2.msra.mxu0 0.0
  %1629 = vmatprep.subr.mxu0 0.0
  %1630 = vmatpush2.msra.mxu0 0.0
  %1631 = vmatprep.subr.mxu0 0.0
  %1632 = vmatpush2.msra.mxu0 0.0
  %1633 = vmatprep.subr.mxu0 0.0
  %1634 = vmatpush2.msra.mxu0 0.0
  %1635 = vmatprep.subr.mxu0 0.0
  %1636 = vmatpush2.msra.mxu0 0.0
  %1637 = vmatprep.subr.mxu0 0.0
  %1638 = vmatpush2.msra.mxu0 0.0
  %1639 = vmatprep.subr.mxu0 0.0
  %1640 = vmatpush2.msra.mxu0 0.0
  %1641 = vmatprep.subr.mxu0 0.0
  %1642 = vmatpush2.msra.mxu0 0.0
  %1643 = vmatprep.subr.mxu0 0.0
  %1644 = vmatpush2.msra.mxu0 0.0
  %1645 = vmatprep.subr.mxu0 0.0
  %1646 = vmatpush2.msra.mxu0 0.0
  %1647 = vmatprep.subr.mxu0 0.0
  %1648 = vmatpush2.msra.mxu0 0.0
  %1649 = vmatprep.subr.mxu0 0.0
  %1650 = vmatpush2.msra.mxu0 0.0
  %1651 = vmatprep.subr.mxu0 0.0
  %1652 = vmatpush2.msra.mxu0 0.0
  %1653 = vmatprep.subr.mxu0 0.0
  %1654 = vmatpush2.msra.mxu0 0.0
  %1655 = vmatprep.subr.mxu0 0.0
  %1656 = vmatpush2.msra.mxu0 0.0
  %1657 = vmatprep.mubr.f32.mxu0 0.0
  %1658 = vmatmul.mubr.f32.gmra.mxu0 %v1591
  %v1659 = vpop.f32.mrf.mxu0
  %v1660 = vadd.f32 0.0, %v1659
  %v1661 = vpop.f32.mrf.mxu0
  %1662 = vdwg.mxu0
  %v1663 = vadd.f32 %v1590, %v1660
  %v1664 = vld [vmem:[%s0 + $0x2] sm:$0x3]
  %1665 = vrot.lane.b32.xlu0 %v1585, 32
  %v1666 = vpop.permute.xlu0 %1665
  %v1667 = vsel %vm23, %v1666, 0
  %1669 = vmatprep.subr.mxu0 0.0
  %1670 = vmatpush1.msra.mxu0 0.0
  %1671 = vmatprep.subr.mxu0 0.0
  %1672 = vmatpush1.msra.mxu0 0.0
  %1673 = vmatprep.subr.mxu0 0.0
  %1674 = vmatpush1.msra.mxu0 0.0
  %1675 = vmatprep.subr.mxu0 0.0
  %1676 = vmatpush1.msra.mxu0 0.0
  %1677 = vmatprep.subr.mxu0 0.0
  %1678 = vmatpush1.msra.mxu0 0.0
  %1679 = vmatprep.subr.mxu0 0.0
  %1680 = vmatpush1.msra.mxu0 0.0
  %1681 = vmatprep.subr.mxu0 0.0
  %1682 = vmatpush1.msra.mxu0 0.0
  %1683 = vmatprep.subr.mxu0 0.0
  %1684 = vmatpush1.msra.mxu0 0.0
  %1685 = vmatprep.subr.mxu0 0.0
  %1686 = vmatpush1.msra.mxu0 0.0
  %1687 = vmatprep.subr.mxu0 0.0
  %1688 = vmatpush1.msra.mxu0 0.0
  %1689 = vmatprep.subr.mxu0 0.0
  %1690 = vmatpush1.msra.mxu0 0.0
  %1691 = vmatprep.subr.mxu0 0.0
  %1692 = vmatpush1.msra.mxu0 0.0
  %1693 = vmatprep.subr.mxu0 0.0
  %1694 = vmatpush1.msra.mxu0 %v21
  %1695 = vmatprep.subr.mxu0 0.0
  %1696 = vmatpush1.msra.mxu0 %v20
  %1697 = vmatprep.subr.mxu0 0.0
  %1698 = vmatpush1.msra.mxu0 %v19
  %1699 = vmatprep.subr.mxu0 0.0
  %1700 = vmatpush1.msra.mxu0 %v18
  %1701 = vmatprep.subr.mxu0 0.0
  %1702 = vmatpush2.msra.mxu0 0.0
  %1703 = vmatprep.subr.mxu0 0.0
  %1704 = vmatpush2.msra.mxu0 0.0
  %1705 = vmatprep.subr.mxu0 0.0
  %1706 = vmatpush2.msra.mxu0 0.0
  %1707 = vmatprep.subr.mxu0 0.0
  %1708 = vmatpush2.msra.mxu0 0.0
  %1709 = vmatprep.subr.mxu0 0.0
  %1710 = vmatpush2.msra.mxu0 0.0
  %1711 = vmatprep.subr.mxu0 0.0
  %1712 = vmatpush2.msra.mxu0 0.0
  %1713 = vmatprep.subr.mxu0 0.0
  %1714 = vmatpush2.msra.mxu0 0.0
  %1715 = vmatprep.subr.mxu0 0.0
  %1716 = vmatpush2.msra.mxu0 0.0
  %1717 = vmatprep.subr.mxu0 0.0
  %1718 = vmatpush2.msra.mxu0 0.0
  %1719 = vmatprep.subr.mxu0 0.0
  %1720 = vmatpush2.msra.mxu0 0.0
  %1721 = vmatprep.subr.mxu0 0.0
  %1722 = vmatpush2.msra.mxu0 0.0
  %1723 = vmatprep.subr.mxu0 0.0
  %1724 = vmatpush2.msra.mxu0 0.0
  %1725 = vmatprep.subr.mxu0 0.0
  %1726 = vmatpush2.msra.mxu0 0.0
  %1727 = vmatprep.subr.mxu0 0.0
  %1728 = vmatpush2.msra.mxu0 0.0
  %1729 = vmatprep.subr.mxu0 0.0
  %1730 = vmatpush2.msra.mxu0 0.0
  %1731 = vmatprep.subr.mxu0 0.0
  %1732 = vmatpush2.msra.mxu0 0.0
  %1733 = vmatprep.mubr.f32.mxu0 0.0
  %1734 = vmatmul.mubr.f32.gmra.mxu0 %v1667
  %v1735 = vpop.f32.mrf.mxu0
  %v1736 = vadd.f32 0.0, %v1735
  %v1737 = vpop.f32.mrf.mxu0
  %1738 = vdwg.mxu0
  %v1739 = vadd.f32 %v1664, %v1736
  %v1740 = vxor.u32 %v1663, 2147483648
  %v1741 = vmul.f32 %v1740, 1.442695
  %v1742 = vpow.pop %v1741
  %v1743 = vadd.f32 %v1742, 1.0
  %v1744 = vrcp.pop %v1743
  %v1745 = vmul.f32 1.0, %v1744
  %v1746 = vtanh.pop %v1663
  %v1747 = vmul.f32 %v1745, %v1535
  %1749 = vrot.lane.b32.xlu0 %v1746, 64
  %v1750 = vpop.permute.xlu0 %1749
  %v1752 = vmul.f32 %v1745, %v1750
  %1754 = vrot.lane.b32.xlu0 %v1752, 32
  %v1755 = vpop.permute.xlu0 %1754
  %v1757 = vadd.f32 %v1747, %v1755
  %v1758 = vtanh.pop %v1757
  %1760 = vrot.lane.b32.xlu0 %v1758, 64
  %v1761 = vpop.permute.xlu0 %1760
  %v1763 = vmul.f32 %v1745, %v1761
  %v1764 = vxor.u32 %v1739, 2147483648
  %v1765 = vmul.f32 %v1764, 1.442695
  %v1766 = vpow.pop %v1765
  %v1767 = vadd.f32 %v1766, 1.0
  %v1768 = vrcp.pop %v1767
  %v1769 = vmul.f32 1.0, %v1768
  %v1770 = vtanh.pop %v1739
  %v1771 = vmul.f32 %v1769, %v1559
  %1773 = vrot.lane.b32.xlu0 %v1770, 64
  %v1774 = vpop.permute.xlu0 %1773
  %v1776 = vmul.f32 %v1769, %v1774
  %1778 = vrot.lane.b32.xlu0 %v1776, 32
  %v1779 = vpop.permute.xlu0 %1778
  %v1781 = vadd.f32 %v1771, %v1779
  %v1782 = vtanh.pop %v1781
  %1784 = vrot.lane.b32.xlu0 %v1782, 64
  %v1785 = vpop.permute.xlu0 %1784
  %v1787 = vmul.f32 %v1769, %v1785
  %v1790 = vunpack.c.l.s4 1983009808
  %v1791 = vunpack.c.0.s8 %v1790
  %v1792 = vlaneseq
  %v1793 = vshrl.u32 %v1792, 7
  %v1794 = vsub.s32 %v1791, %v1793
  %v1795 = vrot.slane %v1763, %v1794
  %1796 = vrot.lane.b32.xlu0 %v1795, 32
  %v1797 = vpop.permute.xlu0 %1796
  %1799 = vst.msk [vmem:[%s243] sm:$0x3] %vm230, %v1797
  %v1802 = vunpack.c.l.s4 1983009808
  %v1803 = vunpack.c.0.s8 %v1802
  %v1804 = vlaneseq
  %v1805 = vshrl.u32 %v1804, 7
  %v1806 = vsub.s32 %v1803, %v1805
  %v1807 = vrot.slane %v1787, %v1806
  %1808 = vrot.lane.b32.xlu0 %v1807, 64
  %v1809 = vpop.permute.xlu0 %1808
  %1811 = vst.msk [vmem:[%s3] sm:$0x3] %vm244, %v1809
  // Predicated region
  $region14: #{rna3d_forward.8} parent=0 // pred_check
    _
  $region15: #{rna3d_forward.8} parent=0 // pred_check_branch
    %1813 = sbr.rel (0) target = $region17
  $region16: #{rna3d_forward.8} parent=0 // pred_region
    _
  $region17: #{rna3d_forward.8} parent=0 // pred_fallthru
    _
  // Predicated region
  $region18: #{rna3d_forward.8} parent=0 // pred_check
    _
  $region19: #{rna3d_forward.8} parent=0 // pred_check_branch
    %1815 = sbr.rel (0) target = $region21
  $region20: #{rna3d_forward.8} parent=0 // pred_region
    _
  $region21: #{rna3d_forward.8} parent=0 // pred_fallthru
    _

// kernel: rna3d_forward.12
$region0: #{rna3d_forward.12}
  #allocation0 [shape = 'u32[]', space=smem, size = 0x4, offset = 0x4, fixed_abs, tag = 'smem constant byte address 0x4 - core index']
  #allocation1 [shape = 'u32[144,128]{1,0:T(1,128)}', space=vmem, size = 0x12000, scoped, tag = 'internal scratch']
  %s0 = inlined_call_operand.vmem [shape: f32[8,2,256], index: 0, kind: input, shape index: {}]
  %s1 = inlined_call_operand.vmem [shape: f32[32,128], index: 1, kind: input, shape index: {}]
  %s2 = inlined_call_operand.vmem [shape: f32[32,128], index: 2, kind: input, shape index: {}]
  %s3 = inlined_call_operand.vmem [shape: f32[2,8,64], index: 3, kind: output, shape index: {}]
  %s4 = sld [smem:[#allocation0]]
  $region22: #{rna3d_forward.12} parent=0
    _
  %s6 = ssub.s32 1, %s4
  %s7 = scalar_select 0, %s6, %s4
  // Predicated region
  $region2: #{rna3d_forward.12} parent=0 // pred_check
    _
  $region3: #{rna3d_forward.12} parent=0 // pred_check_branch
    %9 = sbr.rel (0) target = $region5
  $region4: #{rna3d_forward.12} parent=0 // pred_region
    _
  $region5: #{rna3d_forward.12} parent=0 // pred_fallthru
    _
  // Predicated region
  $region6: #{rna3d_forward.12} parent=0 // pred_check
    _
  $region7: #{rna3d_forward.12} parent=0 // pred_check_branch
    %11 = sbr.rel (0) target = $region9
  $region8: #{rna3d_forward.12} parent=0 // pred_region
    _
  $region9: #{rna3d_forward.12} parent=0 // pred_fallthru
    _
  // Predicated region
  $region10: #{rna3d_forward.12} parent=0 // pred_check
    _
  $region11: #{rna3d_forward.12} parent=0 // pred_check_branch
    %13 = sbr.rel (0) target = $region13
  $region12: #{rna3d_forward.12} parent=0 // pred_region
    _
  $region13: #{rna3d_forward.12} parent=0 // pred_fallthru
    _
  %v14 = vld [vmem:[%s1] sm:$0xff]
  %v15 = vld [vmem:[%s1 + $0x8] sm:$0xff]
  %v16 = vld [vmem:[%s1 + $0x10] sm:$0xff]
  %v17 = vld [vmem:[%s1 + $0x18] sm:$0xff]
  %v18 = vld [vmem:[%s2] sm:$0xff]
  %v19 = vld [vmem:[%s2 + $0x8] sm:$0xff]
  %v20 = vld [vmem:[%s2 + $0x10] sm:$0xff]
  %v21 = vld [vmem:[%s2 + $0x18] sm:$0xff]
  %v22 = vld [vmem:[%s0] sm:$0x3]
  %vm23 = vcmask 261120
  %v25 = vsel %vm23, 0.0, 0
  %27 = vmatprep.subr.mxu0 0.0
  %28 = vmatpush1.msra.mxu0 0.0
  %29 = vmatprep.subr.mxu0 0.0
  %30 = vmatpush1.msra.mxu0 0.0
  %31 = vmatprep.subr.mxu0 0.0
  %32 = vmatpush1.msra.mxu0 0.0
  %33 = vmatprep.subr.mxu0 0.0
  %34 = vmatpush1.msra.mxu0 0.0
  %35 = vmatprep.subr.mxu0 0.0
  %36 = vmatpush1.msra.mxu0 0.0
  %37 = vmatprep.subr.mxu0 0.0
  %38 = vmatpush1.msra.mxu0 0.0
  %39 = vmatprep.subr.mxu0 0.0
  %40 = vmatpush1.msra.mxu0 0.0
  %41 = vmatprep.subr.mxu0 0.0
  %42 = vmatpush1.msra.mxu0 0.0
  %43 = vmatprep.subr.mxu0 0.0
  %44 = vmatpush1.msra.mxu0 0.0
  %45 = vmatprep.subr.mxu0 0.0
  %46 = vmatpush1.msra.mxu0 0.0
  %47 = vmatprep.subr.mxu0 0.0
  %48 = vmatpush1.msra.mxu0 0.0
  %49 = vmatprep.subr.mxu0 0.0
  %50 = vmatpush1.msra.mxu0 0.0
  %51 = vmatprep.subr.mxu0 0.0
  %52 = vmatpush1.msra.mxu0 %v17
  %53 = vmatprep.subr.mxu0 0.0
  %54 = vmatpush1.msra.mxu0 %v16
  %55 = vmatprep.subr.mxu0 0.0
  %56 = vmatpush1.msra.mxu0 %v15
  %57 = vmatprep.subr.mxu0 0.0
  %58 = vmatpush1.msra.mxu0 %v14
  %59 = vmatprep.subr.mxu0 0.0
  %60 = vmatpush2.msra.mxu0 0.0
  %61 = vmatprep.subr.mxu0 0.0
  %62 = vmatpush2.msra.mxu0 0.0
  %63 = vmatprep.subr.mxu0 0.0
  %64 = vmatpush2.msra.mxu0 0.0
  %65 = vmatprep.subr.mxu0 0.0
  %66 = vmatpush2.msra.mxu0 0.0
  %67 = vmatprep.subr.mxu0 0.0
  %68 = vmatpush2.msra.mxu0 0.0
  %69 = vmatprep.subr.mxu0 0.0
  %70 = vmatpush2.msra.mxu0 0.0
  %71 = vmatprep.subr.mxu0 0.0
  %72 = vmatpush2.msra.mxu0 0.0
  %73 = vmatprep.subr.mxu0 0.0
  %74 = vmatpush2.msra.mxu0 0.0
  %75 = vmatprep.subr.mxu0 0.0
  %76 = vmatpush2.msra.mxu0 0.0
  %77 = vmatprep.subr.mxu0 0.0
  %78 = vmatpush2.msra.mxu0 0.0
  %79 = vmatprep.subr.mxu0 0.0
  %80 = vmatpush2.msra.mxu0 0.0
  %81 = vmatprep.subr.mxu0 0.0
  %82 = vmatpush2.msra.mxu0 0.0
  %83 = vmatprep.subr.mxu0 0.0
  %84 = vmatpush2.msra.mxu0 0.0
  %85 = vmatprep.subr.mxu0 0.0
  %86 = vmatpush2.msra.mxu0 0.0
  %87 = vmatprep.subr.mxu0 0.0
  %88 = vmatpush2.msra.mxu0 0.0
  %89 = vmatprep.subr.mxu0 0.0
  %90 = vmatpush2.msra.mxu0 0.0
  %91 = vmatprep.mubr.f32.mxu0 0.0
  %92 = vmatmul.mubr.f32.gmra.mxu0 %v25
  %v93 = vpop.f32.mrf.mxu0
  %v94 = vadd.f32 0.0, %v93
  %v95 = vpop.f32.mrf.mxu0
  %96 = vdwg.mxu0
  %v97 = vadd.f32 %v22, %v94
  %s98 = scalar_lea.vmem %s0, 28
  %v99 = vld [vmem:[%s98 + $0x2] sm:$0x3]
  %100 = vmatprep.subr.mxu0 0.0
  %101 = vmatpush1.msra.mxu0 0.0
  %102 = vmatprep.subr.mxu0 0.0
  %103 = vmatpush1.msra.mxu0 0.0
  %104 = vmatprep.subr.mxu0 0.0
  %105 = vmatpush1.msra.mxu0 0.0
  %106 = vmatprep.subr.mxu0 0.0
  %107 = vmatpush1.msra.mxu0 0.0
  %108 = vmatprep.subr.mxu0 0.0
  %109 = vmatpush1.msra.mxu0 0.0
  %110 = vmatprep.subr.mxu0 0.0
  %111 = vmatpush1.msra.mxu0 0.0
  %112 = vmatprep.subr.mxu0 0.0
  %113 = vmatpush1.msra.mxu0 0.0
  %114 = vmatprep.subr.mxu0 0.0
  %115 = vmatpush1.msra.mxu0 0.0
  %116 = vmatprep.subr.mxu0 0.0
  %117 = vmatpush1.msra.mxu0 0.0
  %118 = vmatprep.subr.mxu0 0.0
  %119 = vmatpush1.msra.mxu0 0.0
  %120 = vmatprep.subr.mxu0 0.0
  %121 = vmatpush1.msra.mxu0 0.0
  %122 = vmatprep.subr.mxu0 0.0
  %123 = vmatpush1.msra.mxu0 0.0
  %124 = vmatprep.subr.mxu0 0.0
  %125 = vmatpush1.msra.mxu0 %v21
  %126 = vmatprep.subr.mxu0 0.0
  %127 = vmatpush1.msra.mxu0 %v20
  %128 = vmatprep.subr.mxu0 0.0
  %129 = vmatpush1.msra.mxu0 %v19
  %130 = vmatprep.subr.mxu0 0.0
  %131 = vmatpush1.msra.mxu0 %v18
  %132 = vmatprep.subr.mxu0 0.0
  %133 = vmatpush2.msra.mxu0 0.0
  %134 = vmatprep.subr.mxu0 0.0
  %135 = vmatpush2.msra.mxu0 0.0
  %136 = vmatprep.subr.mxu0 0.0
  %137 = vmatpush2.msra.mxu0 0.0
  %138 = vmatprep.subr.mxu0 0.0
  %139 = vmatpush2.msra.mxu0 0.0
  %140 = vmatprep.subr.mxu0 0.0
  %141 = vmatpush2.msra.mxu0 0.0
  %142 = vmatprep.subr.mxu0 0.0
  %143 = vmatpush2.msra.mxu0 0.0
  %144 = vmatprep.subr.mxu0 0.0
  %145 = vmatpush2.msra.mxu0 0.0
  %146 = vmatprep.subr.mxu0 0.0
  %147 = vmatpush2.msra.mxu0 0.0
  %148 = vmatprep.subr.mxu0 0.0
  %149 = vmatpush2.msra.mxu0 0.0
  %150 = vmatprep.subr.mxu0 0.0
  %151 = vmatpush2.msra.mxu0 0.0
  %152 = vmatprep.subr.mxu0 0.0
  %153 = vmatpush2.msra.mxu0 0.0
  %154 = vmatprep.subr.mxu0 0.0
  %155 = vmatpush2.msra.mxu0 0.0
  %156 = vmatprep.subr.mxu0 0.0
  %157 = vmatpush2.msra.mxu0 0.0
  %158 = vmatprep.subr.mxu0 0.0
  %159 = vmatpush2.msra.mxu0 0.0
  %160 = vmatprep.subr.mxu0 0.0
  %161 = vmatpush2.msra.mxu0 0.0
  %162 = vmatprep.subr.mxu0 0.0
  %163 = vmatpush2.msra.mxu0 0.0
  %164 = vmatprep.mubr.f32.mxu0 0.0
  %165 = vmatmul.mubr.f32.gmra.mxu0 %v25
  %v166 = vpop.f32.mrf.mxu0
  %v167 = vadd.f32 0.0, %v166
  %v168 = vpop.f32.mrf.mxu0
  %169 = vdwg.mxu0
  %v170 = vadd.f32 %v99, %v167
  %v171 = vxor.u32 %v97, 2147483648
  %v172 = vmul.f32 %v171, 1.442695
  %v173 = vpow.pop %v172
  %v174 = vadd.f32 %v173, 1.0
  %v175 = vrcp.pop %v174
  %v176 = vmul.f32 1.0, %v175
  %v177 = vtanh.pop %v97
  %v178 = vmul.f32 %v176, 0.0
  %180 = vrot.lane.b32.xlu0 %v177, 64
  %v181 = vpop.permute.xlu0 %180
  %v183 = vmul.f32 %v176, %v181
  %185 = vrot.lane.b32.xlu0 %v183, 32
  %v186 = vpop.permute.xlu0 %185
  %v188 = vadd.f32 %v178, %v186
  %v189 = vtanh.pop %v188
  %191 = vrot.lane.b32.xlu0 %v189, 64
  %v192 = vpop.permute.xlu0 %191
  %v194 = vmul.f32 %v176, %v192
  %v195 = vxor.u32 %v170, 2147483648
  %v196 = vmul.f32 %v195, 1.442695
  %v197 = vpow.pop %v196
  %v198 = vadd.f32 %v197, 1.0
  %v199 = vrcp.pop %v198
  %v200 = vmul.f32 1.0, %v199
  %v201 = vtanh.pop %v170
  %v202 = vmul.f32 %v200, 0.0
  %204 = vrot.lane.b32.xlu0 %v201, 64
  %v205 = vpop.permute.xlu0 %204
  %v207 = vmul.f32 %v200, %v205
  %209 = vrot.lane.b32.xlu0 %v207, 32
  %v210 = vpop.permute.xlu0 %209
  %v212 = vadd.f32 %v202, %v210
  %v213 = vtanh.pop %v212
  %215 = vrot.lane.b32.xlu0 %v213, 64
  %v216 = vpop.permute.xlu0 %215
  %v218 = vmul.f32 %v200, %v216
  %v221 = vunpack.c.l.s4 1966171168
  %v222 = vunpack.c.0.s8 %v221
  %v223 = vlaneseq
  %v224 = vshrl.u32 %v223, 7
  %v225 = vsub.s32 %v222, %v224
  %v226 = vrot.slane %v194, %v225
  %v227 = vcombine.high %v226, %v226
  %v228 = vlaneseq
  %v229 = vshrl.u32 %v228, 7
  %v230 = vsub.s32 0, %v229
  %v231 = vrot.slane %v226, %v230
  %v232 = vlaneseq
  %v233 = vshrl.u32 %v232, 7
  %v234 = vsub.s32 0, %v233
  %v235 = vrot.slane %v227, %v234
  %236 = vrot.lane.b32.xlu0 %v231, 32
  %v237 = vpop.permute.xlu0 %236
  %238 = vrot.lane.b32.xlu0 %v235, 32
  %v239 = vpop.permute.xlu0 %238
  %vm242 = vcmask 253952
  %243 = vst.msk [vmem:[%s3] sm:$0x1] %vm242, %v237
  %244 = vst.msk [vmem:[%s3 + $0x8] sm:$0x1] %vm242, %v239
  %v247 = vunpack.c.l.s4 1966171168
  %v248 = vunpack.c.0.s8 %v247
  %v249 = vlaneseq
  %v250 = vshrl.u32 %v249, 7
  %v251 = vsub.s32 %v248, %v250
  %v252 = vrot.slane %v218, %v251
  %v253 = vcombine.high %v252, %v252
  %v254 = vlaneseq
  %v255 = vshrl.u32 %v254, 7
  %v256 = vsub.s32 0, %v255
  %v257 = vrot.slane %v252, %v256
  %v258 = vlaneseq
  %v259 = vshrl.u32 %v258, 7
  %v260 = vsub.s32 0, %v259
  %v261 = vrot.slane %v253, %v260
  %262 = vrot.lane.b32.xlu0 %v257, 64
  %v263 = vpop.permute.xlu0 %262
  %264 = vrot.lane.b32.xlu0 %v261, 64
  %v265 = vpop.permute.xlu0 %264
  %vm268 = vcmask 516352
  %269 = vst.msk [vmem:[%s3 + $0x7] sm:$0x1] %vm268, %v263
  %270 = vst.msk [vmem:[%s3 + $0xf] sm:$0x1] %vm268, %v265
  %s271 = scalar_lea.vmem %s0, 4
  %v272 = vld [vmem:[%s271] sm:$0x3]
  %v274 = vunpack.c.l.s4 1983009808
  %v275 = vunpack.c.0.s8 %v274
  %v276 = vlaneseq
  %v277 = vshrl.u32 %v276, 7
  %v278 = vsub.s32 %v275, %v277
  %v279 = vrot.slane %v194, %v278
  %280 = vrot.lane.b32.xlu0 %v279, 32
  %v281 = vpop.permute.xlu0 %280
  %v282 = vsel %vm23, %v281, 0
  %284 = vmatprep.subr.mxu0 0.0
  %285 = vmatpush1.msra.mxu0 0.0
  %286 = vmatprep.subr.mxu0 0.0
  %287 = vmatpush1.msra.mxu0 0.0
  %288 = vmatprep.subr.mxu0 0.0
  %289 = vmatpush1.msra.mxu0 0.0
  %290 = vmatprep.subr.mxu0 0.0
  %291 = vmatpush1.msra.mxu0 0.0
  %292 = vmatprep.subr.mxu0 0.0
  %293 = vmatpush1.msra.mxu0 0.0
  %294 = vmatprep.subr.mxu0 0.0
  %295 = vmatpush1.msra.mxu0 0.0
  %296 = vmatprep.subr.mxu0 0.0
  %297 = vmatpush1.msra.mxu0 0.0
  %298 = vmatprep.subr.mxu0 0.0
  %299 = vmatpush1.msra.mxu0 0.0
  %300 = vmatprep.subr.mxu0 0.0
  %301 = vmatpush1.msra.mxu0 0.0
  %302 = vmatprep.subr.mxu0 0.0
  %303 = vmatpush1.msra.mxu0 0.0
  %304 = vmatprep.subr.mxu0 0.0
  %305 = vmatpush1.msra.mxu0 0.0
  %306 = vmatprep.subr.mxu0 0.0
  %307 = vmatpush1.msra.mxu0 0.0
  %308 = vmatprep.subr.mxu0 0.0
  %309 = vmatpush1.msra.mxu0 %v17
  %310 = vmatprep.subr.mxu0 0.0
  %311 = vmatpush1.msra.mxu0 %v16
  %312 = vmatprep.subr.mxu0 0.0
  %313 = vmatpush1.msra.mxu0 %v15
  %314 = vmatprep.subr.mxu0 0.0
  %315 = vmatpush1.msra.mxu0 %v14
  %316 = vmatprep.subr.mxu0 0.0
  %317 = vmatpush2.msra.mxu0 0.0
  %318 = vmatprep.subr.mxu0 0.0
  %319 = vmatpush2.msra.mxu0 0.0
  %320 = vmatprep.subr.mxu0 0.0
  %321 = vmatpush2.msra.mxu0 0.0
  %322 = vmatprep.subr.mxu0 0.0
  %323 = vmatpush2.msra.mxu0 0.0
  %324 = vmatprep.subr.mxu0 0.0
  %325 = vmatpush2.msra.mxu0 0.0
  %326 = vmatprep.subr.mxu0 0.0
  %327 = vmatpush2.msra.mxu0 0.0
  %328 = vmatprep.subr.mxu0 0.0
  %329 = vmatpush2.msra.mxu0 0.0
  %330 = vmatprep.subr.mxu0 0.0
  %331 = vmatpush2.msra.mxu0 0.0
  %332 = vmatprep.subr.mxu0 0.0
  %333 = vmatpush2.msra.mxu0 0.0
  %334 = vmatprep.subr.mxu0 0.0
  %335 = vmatpush2.msra.mxu0 0.0
  %336 = vmatprep.subr.mxu0 0.0
  %337 = vmatpush2.msra.mxu0 0.0
  %338 = vmatprep.subr.mxu0 0.0
  %339 = vmatpush2.msra.mxu0 0.0
  %340 = vmatprep.subr.mxu0 0.0
  %341 = vmatpush2.msra.mxu0 0.0
  %342 = vmatprep.subr.mxu0 0.0
  %343 = vmatpush2.msra.mxu0 0.0
  %344 = vmatprep.subr.mxu0 0.0
  %345 = vmatpush2.msra.mxu0 0.0
  %346 = vmatprep.subr.mxu0 0.0
  %347 = vmatpush2.msra.mxu0 0.0
  %348 = vmatprep.mubr.f32.mxu0 0.0
  %349 = vmatmul.mubr.f32.gmra.mxu0 %v282
  %v350 = vpop.f32.mrf.mxu0
  %v351 = vadd.f32 0.0, %v350
  %v352 = vpop.f32.mrf.mxu0
  %353 = vdwg.mxu0
  %v354 = vadd.f32 %v272, %v351
  %s355 = scalar_lea.vmem %s0, 24
  %v356 = vld [vmem:[%s355 + $0x2] sm:$0x3]
  %v358 = vunpack.c.l.s4 1983009808
  %v359 = vunpack.c.0.s8 %v358
  %v360 = vlaneseq
  %v361 = vshrl.u32 %v360, 7
  %v362 = vsub.s32 %v359, %v361
  %v363 = vrot.slane %v218, %v362
  %364 = vrot.lane.b32.xlu0 %v363, 32
  %v365 = vpop.permute.xlu0 %364
  %v366 = vsel %vm23, %v365, 0
  %368 = vmatprep.subr.mxu0 0.0
  %369 = vmatpush1.msra.mxu0 0.0
  %370 = vmatprep.subr.mxu0 0.0
  %371 = vmatpush1.msra.mxu0 0.0
  %372 = vmatprep.subr.mxu0 0.0
  %373 = vmatpush1.msra.mxu0 0.0
  %374 = vmatprep.subr.mxu0 0.0
  %375 = vmatpush1.msra.mxu0 0.0
  %376 = vmatprep.subr.mxu0 0.0
  %377 = vmatpush1.msra.mxu0 0.0
  %378 = vmatprep.subr.mxu0 0.0
  %379 = vmatpush1.msra.mxu0 0.0
  %380 = vmatprep.subr.mxu0 0.0
  %381 = vmatpush1.msra.mxu0 0.0
  %382 = vmatprep.subr.mxu0 0.0
  %383 = vmatpush1.msra.mxu0 0.0
  %384 = vmatprep.subr.mxu0 0.0
  %385 = vmatpush1.msra.mxu0 0.0
  %386 = vmatprep.subr.mxu0 0.0
  %387 = vmatpush1.msra.mxu0 0.0
  %388 = vmatprep.subr.mxu0 0.0
  %389 = vmatpush1.msra.mxu0 0.0
  %390 = vmatprep.subr.mxu0 0.0
  %391 = vmatpush1.msra.mxu0 0.0
  %392 = vmatprep.subr.mxu0 0.0
  %393 = vmatpush1.msra.mxu0 %v21
  %394 = vmatprep.subr.mxu0 0.0
  %395 = vmatpush1.msra.mxu0 %v20
  %396 = vmatprep.subr.mxu0 0.0
  %397 = vmatpush1.msra.mxu0 %v19
  %398 = vmatprep.subr.mxu0 0.0
  %399 = vmatpush1.msra.mxu0 %v18
  %400 = vmatprep.subr.mxu0 0.0
  %401 = vmatpush2.msra.mxu0 0.0
  %402 = vmatprep.subr.mxu0 0.0
  %403 = vmatpush2.msra.mxu0 0.0
  %404 = vmatprep.subr.mxu0 0.0
  %405 = vmatpush2.msra.mxu0 0.0
  %406 = vmatprep.subr.mxu0 0.0
  %407 = vmatpush2.msra.mxu0 0.0
  %408 = vmatprep.subr.mxu0 0.0
  %409 = vmatpush2.msra.mxu0 0.0
  %410 = vmatprep.subr.mxu0 0.0
  %411 = vmatpush2.msra.mxu0 0.0
  %412 = vmatprep.subr.mxu0 0.0
  %413 = vmatpush2.msra.mxu0 0.0
  %414 = vmatprep.subr.mxu0 0.0
  %415 = vmatpush2.msra.mxu0 0.0
  %416 = vmatprep.subr.mxu0 0.0
  %417 = vmatpush2.msra.mxu0 0.0
  %418 = vmatprep.subr.mxu0 0.0
  %419 = vmatpush2.msra.mxu0 0.0
  %420 = vmatprep.subr.mxu0 0.0
  %421 = vmatpush2.msra.mxu0 0.0
  %422 = vmatprep.subr.mxu0 0.0
  %423 = vmatpush2.msra.mxu0 0.0
  %424 = vmatprep.subr.mxu0 0.0
  %425 = vmatpush2.msra.mxu0 0.0
  %426 = vmatprep.subr.mxu0 0.0
  %427 = vmatpush2.msra.mxu0 0.0
  %428 = vmatprep.subr.mxu0 0.0
  %429 = vmatpush2.msra.mxu0 0.0
  %430 = vmatprep.subr.mxu0 0.0
  %431 = vmatpush2.msra.mxu0 0.0
  %432 = vmatprep.mubr.f32.mxu0 0.0
  %433 = vmatmul.mubr.f32.gmra.mxu0 %v366
  %v434 = vpop.f32.mrf.mxu0
  %v435 = vadd.f32 0.0, %v434
  %v436 = vpop.f32.mrf.mxu0
  %437 = vdwg.mxu0
  %v438 = vadd.f32 %v356, %v435
  %v439 = vxor.u32 %v354, 2147483648
  %v440 = vmul.f32 %v439, 1.442695
  %v441 = vpow.pop %v440
  %v442 = vadd.f32 %v441, 1.0
  %v443 = vrcp.pop %v442
  %v444 = vmul.f32 1.0, %v443
  %v445 = vtanh.pop %v354
  %v446 = vmul.f32 %v444, %v188
  %448 = vrot.lane.b32.xlu0 %v445, 64
  %v449 = vpop.permute.xlu0 %448
  %v451 = vmul.f32 %v444, %v449
  %453 = vrot.lane.b32.xlu0 %v451, 32
  %v454 = vpop.permute.xlu0 %453
  %v456 = vadd.f32 %v446, %v454
  %v457 = vtanh.pop %v456
  %459 = vrot.lane.b32.xlu0 %v457, 64
  %v460 = vpop.permute.xlu0 %459
  %v462 = vmul.f32 %v444, %v460
  %v463 = vxor.u32 %v438, 2147483648
  %v464 = vmul.f32 %v463, 1.442695
  %v465 = vpow.pop %v464
  %v466 = vadd.f32 %v465, 1.0
  %v467 = vrcp.pop %v466
  %v468 = vmul.f32 1.0, %v467
  %v469 = vtanh.pop %v438
  %v470 = vmul.f32 %v468, %v212
  %472 = vrot.lane.b32.xlu0 %v469, 64
  %v473 = vpop.permute.xlu0 %472
  %v475 = vmul.f32 %v468, %v473
  %477 = vrot.lane.b32.xlu0 %v475, 32
  %v478 = vpop.permute.xlu0 %477
  %v480 = vadd.f32 %v470, %v478
  %v481 = vtanh.pop %v480
  %483 = vrot.lane.b32.xlu0 %v481, 64
  %v484 = vpop.permute.xlu0 %483
  %v486 = vmul.f32 %v468, %v484
  %v489 = vunpack.c.l.s4 1966171168
  %v490 = vunpack.c.0.s8 %v489
  %v491 = vlaneseq
  %v492 = vshrl.u32 %v491, 7
  %v493 = vsub.s32 %v490, %v492
  %v494 = vrot.slane %v462, %v493
  %v495 = vcombine.high %v494, %v494
  %v496 = vlaneseq
  %v497 = vshrl.u32 %v496, 7
  %v498 = vsub.s32 0, %v497
  %v499 = vrot.slane %v494, %v498
  %v500 = vlaneseq
  %v501 = vshrl.u32 %v500, 7
  %v502 = vsub.s32 0, %v501
  %v503 = vrot.slane %v495, %v502
  %504 = vrot.lane.b32.xlu0 %v499, 32
  %v505 = vpop.permute.xlu0 %504
  %506 = vrot.lane.b32.xlu0 %v503, 32
  %v507 = vpop.permute.xlu0 %506
  %510 = vst.msk [vmem:[%s3 + $0x1] sm:$0x1] %vm242, %v505
  %511 = vst.msk [vmem:[%s3 + $0x9] sm:$0x1] %vm242, %v507
  %v514 = vunpack.c.l.s4 1966171168
  %v515 = vunpack.c.0.s8 %v514
  %v516 = vlaneseq
  %v517 = vshrl.u32 %v516, 7
  %v518 = vsub.s32 %v515, %v517
  %v519 = vrot.slane %v486, %v518
  %v520 = vcombine.high %v519, %v519
  %v521 = vlaneseq
  %v522 = vshrl.u32 %v521, 7
  %v523 = vsub.s32 0, %v522
  %v524 = vrot.slane %v519, %v523
  %v525 = vlaneseq
  %v526 = vshrl.u32 %v525, 7
  %v527 = vsub.s32 0, %v526
  %v528 = vrot.slane %v520, %v527
  %529 = vrot.lane.b32.xlu0 %v524, 64
  %v530 = vpop.permute.xlu0 %529
  %531 = vrot.lane.b32.xlu0 %v528, 64
  %v532 = vpop.permute.xlu0 %531
  %535 = vst.msk [vmem:[%s3 + $0x6] sm:$0x1] %vm268, %v530
  %536 = vst.msk [vmem:[%s3 + $0xe] sm:$0x1] %vm268, %v532
  %s537 = scalar_lea.vmem %s0, 8
  %v538 = vld [vmem:[%s537] sm:$0x3]
  %v540 = vunpack.c.l.s4 1983009808
  %v541 = vunpack.c.0.s8 %v540
  %v542 = vlaneseq
  %v543 = vshrl.u32 %v542, 7
  %v544 = vsub.s32 %v541, %v543
  %v545 = vrot.slane %v462, %v544
  %546 = vrot.lane.b32.xlu0 %v545, 32
  %v547 = vpop.permute.xlu0 %546
  %v548 = vsel %vm23, %v547, 0
  %550 = vmatprep.subr.mxu0 0.0
  %551 = vmatpush1.msra.mxu0 0.0
  %552 = vmatprep.subr.mxu0 0.0
  %553 = vmatpush1.msra.mxu0 0.0
  %554 = vmatprep.subr.mxu0 0.0
  %555 = vmatpush1.msra.mxu0 0.0
  %556 = vmatprep.subr.mxu0 0.0
  %557 = vmatpush1.msra.mxu0 0.0
  %558 = vmatprep.subr.mxu0 0.0
  %559 = vmatpush1.msra.mxu0 0.0
  %560 = vmatprep.subr.mxu0 0.0
  %561 = vmatpush1.msra.mxu0 0.0
  %562 = vmatprep.subr.mxu0 0.0
  %563 = vmatpush1.msra.mxu0 0.0
  %564 = vmatprep.subr.mxu0 0.0
  %565 = vmatpush1.msra.mxu0 0.0
  %566 = vmatprep.subr.mxu0 0.0
  %567 = vmatpush1.msra.mxu0 0.0
  %568 = vmatprep.subr.mxu0 0.0
  %569 = vmatpush1.msra.mxu0 0.0
  %570 = vmatprep.subr.mxu0 0.0
  %571 = vmatpush1.msra.mxu0 0.0
  %572 = vmatprep.subr.mxu0 0.0
  %573 = vmatpush1.msra.mxu0 0.0
  %574 = vmatprep.subr.mxu0 0.0
  %575 = vmatpush1.msra.mxu0 %v17
  %576 = vmatprep.subr.mxu0 0.0
  %577 = vmatpush1.msra.mxu0 %v16
  %578 = vmatprep.subr.mxu0 0.0
  %579 = vmatpush1.msra.mxu0 %v15
  %580 = vmatprep.subr.mxu0 0.0
  %581 = vmatpush1.msra.mxu0 %v14
  %582 = vmatprep.subr.mxu0 0.0
  %583 = vmatpush2.msra.mxu0 0.0
  %584 = vmatprep.subr.mxu0 0.0
  %585 = vmatpush2.msra.mxu0 0.0
  %586 = vmatprep.subr.mxu0 0.0
  %587 = vmatpush2.msra.mxu0 0.0
  %588 = vmatprep.subr.mxu0 0.0
  %589 = vmatpush2.msra.mxu0 0.0
  %590 = vmatprep.subr.mxu0 0.0
  %591 = vmatpush2.msra.mxu0 0.0
  %592 = vmatprep.subr.mxu0 0.0
  %593 = vmatpush2.msra.mxu0 0.0
  %594 = vmatprep.subr.mxu0 0.0
  %595 = vmatpush2.msra.mxu0 0.0
  %596 = vmatprep.subr.mxu0 0.0
  %597 = vmatpush2.msra.mxu0 0.0
  %598 = vmatprep.subr.mxu0 0.0
  %599 = vmatpush2.msra.mxu0 0.0
  %600 = vmatprep.subr.mxu0 0.0
  %601 = vmatpush2.msra.mxu0 0.0
  %602 = vmatprep.subr.mxu0 0.0
  %603 = vmatpush2.msra.mxu0 0.0
  %604 = vmatprep.subr.mxu0 0.0
  %605 = vmatpush2.msra.mxu0 0.0
  %606 = vmatprep.subr.mxu0 0.0
  %607 = vmatpush2.msra.mxu0 0.0
  %608 = vmatprep.subr.mxu0 0.0
  %609 = vmatpush2.msra.mxu0 0.0
  %610 = vmatprep.subr.mxu0 0.0
  %611 = vmatpush2.msra.mxu0 0.0
  %612 = vmatprep.subr.mxu0 0.0
  %613 = vmatpush2.msra.mxu0 0.0
  %614 = vmatprep.mubr.f32.mxu0 0.0
  %615 = vmatmul.mubr.f32.gmra.mxu0 %v548
  %v616 = vpop.f32.mrf.mxu0
  %v617 = vadd.f32 0.0, %v616
  %v618 = vpop.f32.mrf.mxu0
  %619 = vdwg.mxu0
  %v620 = vadd.f32 %v538, %v617
  %s621 = scalar_lea.vmem %s0, 20
  %v622 = vld [vmem:[%s621 + $0x2] sm:$0x3]
  %v624 = vunpack.c.l.s4 1983009808
  %v625 = vunpack.c.0.s8 %v624
  %v626 = vlaneseq
  %v627 = vshrl.u32 %v626, 7
  %v628 = vsub.s32 %v625, %v627
  %v629 = vrot.slane %v486, %v628
  %630 = vrot.lane.b32.xlu0 %v629, 32
  %v631 = vpop.permute.xlu0 %630
  %v632 = vsel %vm23, %v631, 0
  %634 = vmatprep.subr.mxu0 0.0
  %635 = vmatpush1.msra.mxu0 0.0
  %636 = vmatprep.subr.mxu0 0.0
  %637 = vmatpush1.msra.mxu0 0.0
  %638 = vmatprep.subr.mxu0 0.0
  %639 = vmatpush1.msra.mxu0 0.0
  %640 = vmatprep.subr.mxu0 0.0
  %641 = vmatpush1.msra.mxu0 0.0
  %642 = vmatprep.subr.mxu0 0.0
  %643 = vmatpush1.msra.mxu0 0.0
  %644 = vmatprep.subr.mxu0 0.0
  %645 = vmatpush1.msra.mxu0 0.0
  %646 = vmatprep.subr.mxu0 0.0
  %647 = vmatpush1.msra.mxu0 0.0
  %648 = vmatprep.subr.mxu0 0.0
  %649 = vmatpush1.msra.mxu0 0.0
  %650 = vmatprep.subr.mxu0 0.0
  %651 = vmatpush1.msra.mxu0 0.0
  %652 = vmatprep.subr.mxu0 0.0
  %653 = vmatpush1.msra.mxu0 0.0
  %654 = vmatprep.subr.mxu0 0.0
  %655 = vmatpush1.msra.mxu0 0.0
  %656 = vmatprep.subr.mxu0 0.0
  %657 = vmatpush1.msra.mxu0 0.0
  %658 = vmatprep.subr.mxu0 0.0
  %659 = vmatpush1.msra.mxu0 %v21
  %660 = vmatprep.subr.mxu0 0.0
  %661 = vmatpush1.msra.mxu0 %v20
  %662 = vmatprep.subr.mxu0 0.0
  %663 = vmatpush1.msra.mxu0 %v19
  %664 = vmatprep.subr.mxu0 0.0
  %665 = vmatpush1.msra.mxu0 %v18
  %666 = vmatprep.subr.mxu0 0.0
  %667 = vmatpush2.msra.mxu0 0.0
  %668 = vmatprep.subr.mxu0 0.0
  %669 = vmatpush2.msra.mxu0 0.0
  %670 = vmatprep.subr.mxu0 0.0
  %671 = vmatpush2.msra.mxu0 0.0
  %672 = vmatprep.subr.mxu0 0.0
  %673 = vmatpush2.msra.mxu0 0.0
  %674 = vmatprep.subr.mxu0 0.0
  %675 = vmatpush2.msra.mxu0 0.0
  %676 = vmatprep.subr.mxu0 0.0
  %677 = vmatpush2.msra.mxu0 0.0
  %678 = vmatprep.subr.mxu0 0.0
  %679 = vmatpush2.msra.mxu0 0.0
  %680 = vmatprep.subr.mxu0 0.0
  %681 = vmatpush2.msra.mxu0 0.0
  %682 = vmatprep.subr.mxu0 0.0
  %683 = vmatpush2.msra.mxu0 0.0
  %684 = vmatprep.subr.mxu0 0.0
  %685 = vmatpush2.msra.mxu0 0.0
  %686 = vmatprep.subr.mxu0 0.0
  %687 = vmatpush2.msra.mxu0 0.0
  %688 = vmatprep.subr.mxu0 0.0
  %689 = vmatpush2.msra.mxu0 0.0
  %690 = vmatprep.subr.mxu0 0.0
  %691 = vmatpush2.msra.mxu0 0.0
  %692 = vmatprep.subr.mxu0 0.0
  %693 = vmatpush2.msra.mxu0 0.0
  %694 = vmatprep.subr.mxu0 0.0
  %695 = vmatpush2.msra.mxu0 0.0
  %696 = vmatprep.subr.mxu0 0.0
  %697 = vmatpush2.msra.mxu0 0.0
  %698 = vmatprep.mubr.f32.mxu0 0.0
  %699 = vmatmul.mubr.f32.gmra.mxu0 %v632
  %v700 = vpop.f32.mrf.mxu0
  %v701 = vadd.f32 0.0, %v700
  %v702 = vpop.f32.mrf.mxu0
  %703 = vdwg.mxu0
  %v704 = vadd.f32 %v622, %v701
  %v705 = vxor.u32 %v620, 2147483648
  %v706 = vmul.f32 %v705, 1.442695
  %v707 = vpow.pop %v706
  %v708 = vadd.f32 %v707, 1.0
  %v709 = vrcp.pop %v708
  %v710 = vmul.f32 1.0, %v709
  %v711 = vtanh.pop %v620
  %v712 = vmul.f32 %v710, %v456
  %714 = vrot.lane.b32.xlu0 %v711, 64
  %v715 = vpop.permute.xlu0 %714
  %v717 = vmul.f32 %v710, %v715
  %719 = vrot.lane.b32.xlu0 %v717, 32
  %v720 = vpop.permute.xlu0 %719
  %v722 = vadd.f32 %v712, %v720
  %v723 = vtanh.pop %v722
  %725 = vrot.lane.b32.xlu0 %v723, 64
  %v726 = vpop.permute.xlu0 %725
  %v728 = vmul.f32 %v710, %v726
  %v729 = vxor.u32 %v704, 2147483648
  %v730 = vmul.f32 %v729, 1.442695
  %v731 = vpow.pop %v730
  %v732 = vadd.f32 %v731, 1.0
  %v733 = vrcp.pop %v732
  %v734 = vmul.f32 1.0, %v733
  %v735 = vtanh.pop %v704
  %v736 = vmul.f32 %v734, %v480
  %738 = vrot.lane.b32.xlu0 %v735, 64
  %v739 = vpop.permute.xlu0 %738
  %v741 = vmul.f32 %v734, %v739
  %743 = vrot.lane.b32.xlu0 %v741, 32
  %v744 = vpop.permute.xlu0 %743
  %v746 = vadd.f32 %v736, %v744
  %v747 = vtanh.pop %v746
  %749 = vrot.lane.b32.xlu0 %v747, 64
  %v750 = vpop.permute.xlu0 %749
  %v752 = vmul.f32 %v734, %v750
  %v755 = vunpack.c.l.s4 1966171168
  %v756 = vunpack.c.0.s8 %v755
  %v757 = vlaneseq
  %v758 = vshrl.u32 %v757, 7
  %v759 = vsub.s32 %v756, %v758
  %v760 = vrot.slane %v728, %v759
  %v761 = vcombine.high %v760, %v760
  %v762 = vlaneseq
  %v763 = vshrl.u32 %v762, 7
  %v764 = vsub.s32 0, %v763
  %v765 = vrot.slane %v760, %v764
  %v766 = vlaneseq
  %v767 = vshrl.u32 %v766, 7
  %v768 = vsub.s32 0, %v767
  %v769 = vrot.slane %v761, %v768
  %770 = vrot.lane.b32.xlu0 %v765, 32
  %v771 = vpop.permute.xlu0 %770
  %772 = vrot.lane.b32.xlu0 %v769, 32
  %v773 = vpop.permute.xlu0 %772
  %776 = vst.msk [vmem:[%s3 + $0x2] sm:$0x1] %vm242, %v771
  %777 = vst.msk [vmem:[%s3 + $0xa] sm:$0x1] %vm242, %v773
  %v780 = vunpack.c.l.s4 1966171168
  %v781 = vunpack.c.0.s8 %v780
  %v782 = vlaneseq
  %v783 = vshrl.u32 %v782, 7
  %v784 = vsub.s32 %v781, %v783
  %v785 = vrot.slane %v752, %v784
  %v786 = vcombine.high %v785, %v785
  %v787 = vlaneseq
  %v788 = vshrl.u32 %v787, 7
  %v789 = vsub.s32 0, %v788
  %v790 = vrot.slane %v785, %v789
  %v791 = vlaneseq
  %v792 = vshrl.u32 %v791, 7
  %v793 = vsub.s32 0, %v792
  %v794 = vrot.slane %v786, %v793
  %795 = vrot.lane.b32.xlu0 %v790, 64
  %v796 = vpop.permute.xlu0 %795
  %797 = vrot.lane.b32.xlu0 %v794, 64
  %v798 = vpop.permute.xlu0 %797
  %801 = vst.msk [vmem:[%s3 + $0x5] sm:$0x1] %vm268, %v796
  %802 = vst.msk [vmem:[%s3 + $0xd] sm:$0x1] %vm268, %v798
  %s803 = scalar_lea.vmem %s0, 12
  %v804 = vld [vmem:[%s803] sm:$0x3]
  %v806 = vunpack.c.l.s4 1983009808
  %v807 = vunpack.c.0.s8 %v806
  %v808 = vlaneseq
  %v809 = vshrl.u32 %v808, 7
  %v810 = vsub.s32 %v807, %v809
  %v811 = vrot.slane %v728, %v810
  %812 = vrot.lane.b32.xlu0 %v811, 32
  %v813 = vpop.permute.xlu0 %812
  %v814 = vsel %vm23, %v813, 0
  %816 = vmatprep.subr.mxu0 0.0
  %817 = vmatpush1.msra.mxu0 0.0
  %818 = vmatprep.subr.mxu0 0.0
  %819 = vmatpush1.msra.mxu0 0.0
  %820 = vmatprep.subr.mxu0 0.0
  %821 = vmatpush1.msra.mxu0 0.0
  %822 = vmatprep.subr.mxu0 0.0
  %823 = vmatpush1.msra.mxu0 0.0
  %824 = vmatprep.subr.mxu0 0.0
  %825 = vmatpush1.msra.mxu0 0.0
  %826 = vmatprep.subr.mxu0 0.0
  %827 = vmatpush1.msra.mxu0 0.0
  %828 = vmatprep.subr.mxu0 0.0
  %829 = vmatpush1.msra.mxu0 0.0
  %830 = vmatprep.subr.mxu0 0.0
  %831 = vmatpush1.msra.mxu0 0.0
  %832 = vmatprep.subr.mxu0 0.0
  %833 = vmatpush1.msra.mxu0 0.0
  %834 = vmatprep.subr.mxu0 0.0
  %835 = vmatpush1.msra.mxu0 0.0
  %836 = vmatprep.subr.mxu0 0.0
  %837 = vmatpush1.msra.mxu0 0.0
  %838 = vmatprep.subr.mxu0 0.0
  %839 = vmatpush1.msra.mxu0 0.0
  %840 = vmatprep.subr.mxu0 0.0
  %841 = vmatpush1.msra.mxu0 %v17
  %842 = vmatprep.subr.mxu0 0.0
  %843 = vmatpush1.msra.mxu0 %v16
  %844 = vmatprep.subr.mxu0 0.0
  %845 = vmatpush1.msra.mxu0 %v15
  %846 = vmatprep.subr.mxu0 0.0
  %847 = vmatpush1.msra.mxu0 %v14
  %848 = vmatprep.subr.mxu0 0.0
  %849 = vmatpush2.msra.mxu0 0.0
  %850 = vmatprep.subr.mxu0 0.0
  %851 = vmatpush2.msra.mxu0 0.0
  %852 = vmatprep.subr.mxu0 0.0
  %853 = vmatpush2.msra.mxu0 0.0
  %854 = vmatprep.subr.mxu0 0.0
  %855 = vmatpush2.msra.mxu0 0.0
  %856 = vmatprep.subr.mxu0 0.0
  %857 = vmatpush2.msra.mxu0 0.0
  %858 = vmatprep.subr.mxu0 0.0
  %859 = vmatpush2.msra.mxu0 0.0
  %860 = vmatprep.subr.mxu0 0.0
  %861 = vmatpush2.msra.mxu0 0.0
  %862 = vmatprep.subr.mxu0 0.0
  %863 = vmatpush2.msra.mxu0 0.0
  %864 = vmatprep.subr.mxu0 0.0
  %865 = vmatpush2.msra.mxu0 0.0
  %866 = vmatprep.subr.mxu0 0.0
  %867 = vmatpush2.msra.mxu0 0.0
  %868 = vmatprep.subr.mxu0 0.0
  %869 = vmatpush2.msra.mxu0 0.0
  %870 = vmatprep.subr.mxu0 0.0
  %871 = vmatpush2.msra.mxu0 0.0
  %872 = vmatprep.subr.mxu0 0.0
  %873 = vmatpush2.msra.mxu0 0.0
  %874 = vmatprep.subr.mxu0 0.0
  %875 = vmatpush2.msra.mxu0 0.0
  %876 = vmatprep.subr.mxu0 0.0
  %877 = vmatpush2.msra.mxu0 0.0
  %878 = vmatprep.subr.mxu0 0.0
  %879 = vmatpush2.msra.mxu0 0.0
  %880 = vmatprep.mubr.f32.mxu0 0.0
  %881 = vmatmul.mubr.f32.gmra.mxu0 %v814
  %v882 = vpop.f32.mrf.mxu0
  %v883 = vadd.f32 0.0, %v882
  %v884 = vpop.f32.mrf.mxu0
  %885 = vdwg.mxu0
  %v886 = vadd.f32 %v804, %v883
  %s887 = scalar_lea.vmem %s0, 16
  %v888 = vld [vmem:[%s887 + $0x2] sm:$0x3]
  %v890 = vunpack.c.l.s4 1983009808
  %v891 = vunpack.c.0.s8 %v890
  %v892 = vlaneseq
  %v893 = vshrl.u32 %v892, 7
  %v894 = vsub.s32 %v891, %v893
  %v895 = vrot.slane %v752, %v894
  %896 = vrot.lane.b32.xlu0 %v895, 32
  %v897 = vpop.permute.xlu0 %896
  %v898 = vsel %vm23, %v897, 0
  %900 = vmatprep.subr.mxu0 0.0
  %901 = vmatpush1.msra.mxu0 0.0
  %902 = vmatprep.subr.mxu0 0.0
  %903 = vmatpush1.msra.mxu0 0.0
  %904 = vmatprep.subr.mxu0 0.0
  %905 = vmatpush1.msra.mxu0 0.0
  %906 = vmatprep.subr.mxu0 0.0
  %907 = vmatpush1.msra.mxu0 0.0
  %908 = vmatprep.subr.mxu0 0.0
  %909 = vmatpush1.msra.mxu0 0.0
  %910 = vmatprep.subr.mxu0 0.0
  %911 = vmatpush1.msra.mxu0 0.0
  %912 = vmatprep.subr.mxu0 0.0
  %913 = vmatpush1.msra.mxu0 0.0
  %914 = vmatprep.subr.mxu0 0.0
  %915 = vmatpush1.msra.mxu0 0.0
  %916 = vmatprep.subr.mxu0 0.0
  %917 = vmatpush1.msra.mxu0 0.0
  %918 = vmatprep.subr.mxu0 0.0
  %919 = vmatpush1.msra.mxu0 0.0
  %920 = vmatprep.subr.mxu0 0.0
  %921 = vmatpush1.msra.mxu0 0.0
  %922 = vmatprep.subr.mxu0 0.0
  %923 = vmatpush1.msra.mxu0 0.0
  %924 = vmatprep.subr.mxu0 0.0
  %925 = vmatpush1.msra.mxu0 %v21
  %926 = vmatprep.subr.mxu0 0.0
  %927 = vmatpush1.msra.mxu0 %v20
  %928 = vmatprep.subr.mxu0 0.0
  %929 = vmatpush1.msra.mxu0 %v19
  %930 = vmatprep.subr.mxu0 0.0
  %931 = vmatpush1.msra.mxu0 %v18
  %932 = vmatprep.subr.mxu0 0.0
  %933 = vmatpush2.msra.mxu0 0.0
  %934 = vmatprep.subr.mxu0 0.0
  %935 = vmatpush2.msra.mxu0 0.0
  %936 = vmatprep.subr.mxu0 0.0
  %937 = vmatpush2.msra.mxu0 0.0
  %938 = vmatprep.subr.mxu0 0.0
  %939 = vmatpush2.msra.mxu0 0.0
  %940 = vmatprep.subr.mxu0 0.0
  %941 = vmatpush2.msra.mxu0 0.0
  %942 = vmatprep.subr.mxu0 0.0
  %943 = vmatpush2.msra.mxu0 0.0
  %944 = vmatprep.subr.mxu0 0.0
  %945 = vmatpush2.msra.mxu0 0.0
  %946 = vmatprep.subr.mxu0 0.0
  %947 = vmatpush2.msra.mxu0 0.0
  %948 = vmatprep.subr.mxu0 0.0
  %949 = vmatpush2.msra.mxu0 0.0
  %950 = vmatprep.subr.mxu0 0.0
  %951 = vmatpush2.msra.mxu0 0.0
  %952 = vmatprep.subr.mxu0 0.0
  %953 = vmatpush2.msra.mxu0 0.0
  %954 = vmatprep.subr.mxu0 0.0
  %955 = vmatpush2.msra.mxu0 0.0
  %956 = vmatprep.subr.mxu0 0.0
  %957 = vmatpush2.msra.mxu0 0.0
  %958 = vmatprep.subr.mxu0 0.0
  %959 = vmatpush2.msra.mxu0 0.0
  %960 = vmatprep.subr.mxu0 0.0
  %961 = vmatpush2.msra.mxu0 0.0
  %962 = vmatprep.subr.mxu0 0.0
  %963 = vmatpush2.msra.mxu0 0.0
  %964 = vmatprep.mubr.f32.mxu0 0.0
  %965 = vmatmul.mubr.f32.gmra.mxu0 %v898
  %v966 = vpop.f32.mrf.mxu0
  %v967 = vadd.f32 0.0, %v966
  %v968 = vpop.f32.mrf.mxu0
  %969 = vdwg.mxu0
  %v970 = vadd.f32 %v888, %v967
  %v971 = vxor.u32 %v886, 2147483648
  %v972 = vmul.f32 %v971, 1.442695
  %v973 = vpow.pop %v972
  %v974 = vadd.f32 %v973, 1.0
  %v975 = vrcp.pop %v974
  %v976 = vmul.f32 1.0, %v975
  %v977 = vtanh.pop %v886
  %v978 = vmul.f32 %v976, %v722
  %980 = vrot.lane.b32.xlu0 %v977, 64
  %v981 = vpop.permute.xlu0 %980
  %v983 = vmul.f32 %v976, %v981
  %985 = vrot.lane.b32.xlu0 %v983, 32
  %v986 = vpop.permute.xlu0 %985
  %v988 = vadd.f32 %v978, %v986
  %v989 = vtanh.pop %v988
  %991 = vrot.lane.b32.xlu0 %v989, 64
  %v992 = vpop.permute.xlu0 %991
  %v994 = vmul.f32 %v976, %v992
  %v995 = vxor.u32 %v970, 2147483648
  %v996 = vmul.f32 %v995, 1.442695
  %v997 = vpow.pop %v996
  %v998 = vadd.f32 %v997, 1.0
  %v999 = vrcp.pop %v998
  %v1000 = vmul.f32 1.0, %v999
  %v1001 = vtanh.pop %v970
  %v1002 = vmul.f32 %v1000, %v746
  %1004 = vrot.lane.b32.xlu0 %v1001, 64
  %v1005 = vpop.permute.xlu0 %1004
  %v1007 = vmul.f32 %v1000, %v1005
  %1009 = vrot.lane.b32.xlu0 %v1007, 32
  %v1010 = vpop.permute.xlu0 %1009
  %v1012 = vadd.f32 %v1002, %v1010
  %v1013 = vtanh.pop %v1012
  %1015 = vrot.lane.b32.xlu0 %v1013, 64
  %v1016 = vpop.permute.xlu0 %1015
  %v1018 = vmul.f32 %v1000, %v1016
  %v1021 = vunpack.c.l.s4 1966171168
  %v1022 = vunpack.c.0.s8 %v1021
  %v1023 = vlaneseq
  %v1024 = vshrl.u32 %v1023, 7
  %v1025 = vsub.s32 %v1022, %v1024
  %v1026 = vrot.slane %v994, %v1025
  %v1027 = vcombine.high %v1026, %v1026
  %v1028 = vlaneseq
  %v1029 = vshrl.u32 %v1028, 7
  %v1030 = vsub.s32 0, %v1029
  %v1031 = vrot.slane %v1026, %v1030
  %v1032 = vlaneseq
  %v1033 = vshrl.u32 %v1032, 7
  %v1034 = vsub.s32 0, %v1033
  %v1035 = vrot.slane %v1027, %v1034
  %1036 = vrot.lane.b32.xlu0 %v1031, 32
  %v1037 = vpop.permute.xlu0 %1036
  %1038 = vrot.lane.b32.xlu0 %v1035, 32
  %v1039 = vpop.permute.xlu0 %1038
  %1042 = vst.msk [vmem:[%s3 + $0x3] sm:$0x1] %vm242, %v1037
  %1043 = vst.msk [vmem:[%s3 + $0xb] sm:$0x1] %vm242, %v1039
  %v1046 = vunpack.c.l.s4 1966171168
  %v1047 = vunpack.c.0.s8 %v1046
  %v1048 = vlaneseq
  %v1049 = vshrl.u32 %v1048, 7
  %v1050 = vsub.s32 %v1047, %v1049
  %v1051 = vrot.slane %v1018, %v1050
  %v1052 = vcombine.high %v1051, %v1051
  %v1053 = vlaneseq
  %v1054 = vshrl.u32 %v1053, 7
  %v1055 = vsub.s32 0, %v1054
  %v1056 = vrot.slane %v1051, %v1055
  %v1057 = vlaneseq
  %v1058 = vshrl.u32 %v1057, 7
  %v1059 = vsub.s32 0, %v1058
  %v1060 = vrot.slane %v1052, %v1059
  %1061 = vrot.lane.b32.xlu0 %v1056, 64
  %v1062 = vpop.permute.xlu0 %1061
  %1063 = vrot.lane.b32.xlu0 %v1060, 64
  %v1064 = vpop.permute.xlu0 %1063
  %1067 = vst.msk [vmem:[%s3 + $0x4] sm:$0x1] %vm268, %v1062
  %1068 = vst.msk [vmem:[%s3 + $0xc] sm:$0x1] %vm268, %v1064
  %v1069 = vld [vmem:[%s887] sm:$0x3]
  %v1071 = vunpack.c.l.s4 1983009808
  %v1072 = vunpack.c.0.s8 %v1071
  %v1073 = vlaneseq
  %v1074 = vshrl.u32 %v1073, 7
  %v1075 = vsub.s32 %v1072, %v1074
  %v1076 = vrot.slane %v994, %v1075
  %1077 = vrot.lane.b32.xlu0 %v1076, 32
  %v1078 = vpop.permute.xlu0 %1077
  %v1079 = vsel %vm23, %v1078, 0
  %1081 = vmatprep.subr.mxu0 0.0
  %1082 = vmatpush1.msra.mxu0 0.0
  %1083 = vmatprep.subr.mxu0 0.0
  %1084 = vmatpush1.msra.mxu0 0.0
  %1085 = vmatprep.subr.mxu0 0.0
  %1086 = vmatpush1.msra.mxu0 0.0
  %1087 = vmatprep.subr.mxu0 0.0
  %1088 = vmatpush1.msra.mxu0 0.0
  %1089 = vmatprep.subr.mxu0 0.0
  %1090 = vmatpush1.msra.mxu0 0.0
  %1091 = vmatprep.subr.mxu0 0.0
  %1092 = vmatpush1.msra.mxu0 0.0
  %1093 = vmatprep.subr.mxu0 0.0
  %1094 = vmatpush1.msra.mxu0 0.0
  %1095 = vmatprep.subr.mxu0 0.0
  %1096 = vmatpush1.msra.mxu0 0.0
  %1097 = vmatprep.subr.mxu0 0.0
  %1098 = vmatpush1.msra.mxu0 0.0
  %1099 = vmatprep.subr.mxu0 0.0
  %1100 = vmatpush1.msra.mxu0 0.0
  %1101 = vmatprep.subr.mxu0 0.0
  %1102 = vmatpush1.msra.mxu0 0.0
  %1103 = vmatprep.subr.mxu0 0.0
  %1104 = vmatpush1.msra.mxu0 0.0
  %1105 = vmatprep.subr.mxu0 0.0
  %1106 = vmatpush1.msra.mxu0 %v17
  %1107 = vmatprep.subr.mxu0 0.0
  %1108 = vmatpush1.msra.mxu0 %v16
  %1109 = vmatprep.subr.mxu0 0.0
  %1110 = vmatpush1.msra.mxu0 %v15
  %1111 = vmatprep.subr.mxu0 0.0
  %1112 = vmatpush1.msra.mxu0 %v14
  %1113 = vmatprep.subr.mxu0 0.0
  %1114 = vmatpush2.msra.mxu0 0.0
  %1115 = vmatprep.subr.mxu0 0.0
  %1116 = vmatpush2.msra.mxu0 0.0
  %1117 = vmatprep.subr.mxu0 0.0
  %1118 = vmatpush2.msra.mxu0 0.0
  %1119 = vmatprep.subr.mxu0 0.0
  %1120 = vmatpush2.msra.mxu0 0.0
  %1121 = vmatprep.subr.mxu0 0.0
  %1122 = vmatpush2.msra.mxu0 0.0
  %1123 = vmatprep.subr.mxu0 0.0
  %1124 = vmatpush2.msra.mxu0 0.0
  %1125 = vmatprep.subr.mxu0 0.0
  %1126 = vmatpush2.msra.mxu0 0.0
  %1127 = vmatprep.subr.mxu0 0.0
  %1128 = vmatpush2.msra.mxu0 0.0
  %1129 = vmatprep.subr.mxu0 0.0
  %1130 = vmatpush2.msra.mxu0 0.0
  %1131 = vmatprep.subr.mxu0 0.0
  %1132 = vmatpush2.msra.mxu0 0.0
  %1133 = vmatprep.subr.mxu0 0.0
  %1134 = vmatpush2.msra.mxu0 0.0
  %1135 = vmatprep.subr.mxu0 0.0
  %1136 = vmatpush2.msra.mxu0 0.0
  %1137 = vmatprep.subr.mxu0 0.0
  %1138 = vmatpush2.msra.mxu0 0.0
  %1139 = vmatprep.subr.mxu0 0.0
  %1140 = vmatpush2.msra.mxu0 0.0
  %1141 = vmatprep.subr.mxu0 0.0
  %1142 = vmatpush2.msra.mxu0 0.0
  %1143 = vmatprep.subr.mxu0 0.0
  %1144 = vmatpush2.msra.mxu0 0.0
  %1145 = vmatprep.mubr.f32.mxu0 0.0
  %1146 = vmatmul.mubr.f32.gmra.mxu0 %v1079
  %v1147 = vpop.f32.mrf.mxu0
  %v1148 = vadd.f32 0.0, %v1147
  %v1149 = vpop.f32.mrf.mxu0
  %1150 = vdwg.mxu0
  %v1151 = vadd.f32 %v1069, %v1148
  %v1152 = vld [vmem:[%s803 + $0x2] sm:$0x3]
  %v1154 = vunpack.c.l.s4 1983009808
  %v1155 = vunpack.c.0.s8 %v1154
  %v1156 = vlaneseq
  %v1157 = vshrl.u32 %v1156, 7
  %v1158 = vsub.s32 %v1155, %v1157
  %v1159 = vrot.slane %v1018, %v1158
  %1160 = vrot.lane.b32.xlu0 %v1159, 32
  %v1161 = vpop.permute.xlu0 %1160
  %v1162 = vsel %vm23, %v1161, 0
  %1164 = vmatprep.subr.mxu0 0.0
  %1165 = vmatpush1.msra.mxu0 0.0
  %1166 = vmatprep.subr.mxu0 0.0
  %1167 = vmatpush1.msra.mxu0 0.0
  %1168 = vmatprep.subr.mxu0 0.0
  %1169 = vmatpush1.msra.mxu0 0.0
  %1170 = vmatprep.subr.mxu0 0.0
  %1171 = vmatpush1.msra.mxu0 0.0
  %1172 = vmatprep.subr.mxu0 0.0
  %1173 = vmatpush1.msra.mxu0 0.0
  %1174 = vmatprep.subr.mxu0 0.0
  %1175 = vmatpush1.msra.mxu0 0.0
  %1176 = vmatprep.subr.mxu0 0.0
  %1177 = vmatpush1.msra.mxu0 0.0
  %1178 = vmatprep.subr.mxu0 0.0
  %1179 = vmatpush1.msra.mxu0 0.0
  %1180 = vmatprep.subr.mxu0 0.0
  %1181 = vmatpush1.msra.mxu0 0.0
  %1182 = vmatprep.subr.mxu0 0.0
  %1183 = vmatpush1.msra.mxu0 0.0
  %1184 = vmatprep.subr.mxu0 0.0
  %1185 = vmatpush1.msra.mxu0 0.0
  %1186 = vmatprep.subr.mxu0 0.0
  %1187 = vmatpush1.msra.mxu0 0.0
  %1188 = vmatprep.subr.mxu0 0.0
  %1189 = vmatpush1.msra.mxu0 %v21
  %1190 = vmatprep.subr.mxu0 0.0
  %1191 = vmatpush1.msra.mxu0 %v20
  %1192 = vmatprep.subr.mxu0 0.0
  %1193 = vmatpush1.msra.mxu0 %v19
  %1194 = vmatprep.subr.mxu0 0.0
  %1195 = vmatpush1.msra.mxu0 %v18
  %1196 = vmatprep.subr.mxu0 0.0
  %1197 = vmatpush2.msra.mxu0 0.0
  %1198 = vmatprep.subr.mxu0 0.0
  %1199 = vmatpush2.msra.mxu0 0.0
  %1200 = vmatprep.subr.mxu0 0.0
  %1201 = vmatpush2.msra.mxu0 0.0
  %1202 = vmatprep.subr.mxu0 0.0
  %1203 = vmatpush2.msra.mxu0 0.0
  %1204 = vmatprep.subr.mxu0 0.0
  %1205 = vmatpush2.msra.mxu0 0.0
  %1206 = vmatprep.subr.mxu0 0.0
  %1207 = vmatpush2.msra.mxu0 0.0
  %1208 = vmatprep.subr.mxu0 0.0
  %1209 = vmatpush2.msra.mxu0 0.0
  %1210 = vmatprep.subr.mxu0 0.0
  %1211 = vmatpush2.msra.mxu0 0.0
  %1212 = vmatprep.subr.mxu0 0.0
  %1213 = vmatpush2.msra.mxu0 0.0
  %1214 = vmatprep.subr.mxu0 0.0
  %1215 = vmatpush2.msra.mxu0 0.0
  %1216 = vmatprep.subr.mxu0 0.0
  %1217 = vmatpush2.msra.mxu0 0.0
  %1218 = vmatprep.subr.mxu0 0.0
  %1219 = vmatpush2.msra.mxu0 0.0
  %1220 = vmatprep.subr.mxu0 0.0
  %1221 = vmatpush2.msra.mxu0 0.0
  %1222 = vmatprep.subr.mxu0 0.0
  %1223 = vmatpush2.msra.mxu0 0.0
  %1224 = vmatprep.subr.mxu0 0.0
  %1225 = vmatpush2.msra.mxu0 0.0
  %1226 = vmatprep.subr.mxu0 0.0
  %1227 = vmatpush2.msra.mxu0 0.0
  %1228 = vmatprep.mubr.f32.mxu0 0.0
  %1229 = vmatmul.mubr.f32.gmra.mxu0 %v1162
  %v1230 = vpop.f32.mrf.mxu0
  %v1231 = vadd.f32 0.0, %v1230
  %v1232 = vpop.f32.mrf.mxu0
  %1233 = vdwg.mxu0
  %v1234 = vadd.f32 %v1152, %v1231
  %v1235 = vxor.u32 %v1151, 2147483648
  %v1236 = vmul.f32 %v1235, 1.442695
  %v1237 = vpow.pop %v1236
  %v1238 = vadd.f32 %v1237, 1.0
  %v1239 = vrcp.pop %v1238
  %v1240 = vmul.f32 1.0, %v1239
  %v1241 = vtanh.pop %v1151
  %v1242 = vmul.f32 %v1240, %v988
  %1244 = vrot.lane.b32.xlu0 %v1241, 64
  %v1245 = vpop.permute.xlu0 %1244
  %v1247 = vmul.f32 %v1240, %v1245
  %1249 = vrot.lane.b32.xlu0 %v1247, 32
  %v1250 = vpop.permute.xlu0 %1249
  %v1252 = vadd.f32 %v1242, %v1250
  %v1253 = vtanh.pop %v1252
  %1255 = vrot.lane.b32.xlu0 %v1253, 64
  %v1256 = vpop.permute.xlu0 %1255
  %v1258 = vmul.f32 %v1240, %v1256
  %v1259 = vxor.u32 %v1234, 2147483648
  %v1260 = vmul.f32 %v1259, 1.442695
  %v1261 = vpow.pop %v1260
  %v1262 = vadd.f32 %v1261, 1.0
  %v1263 = vrcp.pop %v1262
  %v1264 = vmul.f32 1.0, %v1263
  %v1265 = vtanh.pop %v1234
  %v1266 = vmul.f32 %v1264, %v1012
  %1268 = vrot.lane.b32.xlu0 %v1265, 64
  %v1269 = vpop.permute.xlu0 %1268
  %v1271 = vmul.f32 %v1264, %v1269
  %1273 = vrot.lane.b32.xlu0 %v1271, 32
  %v1274 = vpop.permute.xlu0 %1273
  %v1276 = vadd.f32 %v1266, %v1274
  %v1277 = vtanh.pop %v1276
  %1279 = vrot.lane.b32.xlu0 %v1277, 64
  %v1280 = vpop.permute.xlu0 %1279
  %v1282 = vmul.f32 %v1264, %v1280
  %v1285 = vunpack.c.l.s4 1966171168
  %v1286 = vunpack.c.0.s8 %v1285
  %v1287 = vlaneseq
  %v1288 = vshrl.u32 %v1287, 7
  %v1289 = vsub.s32 %v1286, %v1288
  %v1290 = vrot.slane %v1258, %v1289
  %v1291 = vcombine.high %v1290, %v1290
  %v1292 = vlaneseq
  %v1293 = vshrl.u32 %v1292, 7
  %v1294 = vsub.s32 0, %v1293
  %v1295 = vrot.slane %v1290, %v1294
  %v1296 = vlaneseq
  %v1297 = vshrl.u32 %v1296, 7
  %v1298 = vsub.s32 0, %v1297
  %v1299 = vrot.slane %v1291, %v1298
  %1300 = vrot.lane.b32.xlu0 %v1295, 32
  %v1301 = vpop.permute.xlu0 %1300
  %1302 = vrot.lane.b32.xlu0 %v1299, 32
  %v1303 = vpop.permute.xlu0 %1302
  %1306 = vst.msk [vmem:[%s3 + $0x4] sm:$0x1] %vm242, %v1301
  %1307 = vst.msk [vmem:[%s3 + $0xc] sm:$0x1] %vm242, %v1303
  %v1310 = vunpack.c.l.s4 1966171168
  %v1311 = vunpack.c.0.s8 %v1310
  %v1312 = vlaneseq
  %v1313 = vshrl.u32 %v1312, 7
  %v1314 = vsub.s32 %v1311, %v1313
  %v1315 = vrot.slane %v1282, %v1314
  %v1316 = vcombine.high %v1315, %v1315
  %v1317 = vlaneseq
  %v1318 = vshrl.u32 %v1317, 7
  %v1319 = vsub.s32 0, %v1318
  %v1320 = vrot.slane %v1315, %v1319
  %v1321 = vlaneseq
  %v1322 = vshrl.u32 %v1321, 7
  %v1323 = vsub.s32 0, %v1322
  %v1324 = vrot.slane %v1316, %v1323
  %1325 = vrot.lane.b32.xlu0 %v1320, 64
  %v1326 = vpop.permute.xlu0 %1325
  %1327 = vrot.lane.b32.xlu0 %v1324, 64
  %v1328 = vpop.permute.xlu0 %1327
  %1331 = vst.msk [vmem:[%s3 + $0x3] sm:$0x1] %vm268, %v1326
  %1332 = vst.msk [vmem:[%s3 + $0xb] sm:$0x1] %vm268, %v1328
  %v1333 = vld [vmem:[%s621] sm:$0x3]
  %v1335 = vunpack.c.l.s4 1983009808
  %v1336 = vunpack.c.0.s8 %v1335
  %v1337 = vlaneseq
  %v1338 = vshrl.u32 %v1337, 7
  %v1339 = vsub.s32 %v1336, %v1338
  %v1340 = vrot.slane %v1258, %v1339
  %1341 = vrot.lane.b32.xlu0 %v1340, 32
  %v1342 = vpop.permute.xlu0 %1341
  %v1343 = vsel %vm23, %v1342, 0
  %1345 = vmatprep.subr.mxu0 0.0
  %1346 = vmatpush1.msra.mxu0 0.0
  %1347 = vmatprep.subr.mxu0 0.0
  %1348 = vmatpush1.msra.mxu0 0.0
  %1349 = vmatprep.subr.mxu0 0.0
  %1350 = vmatpush1.msra.mxu0 0.0
  %1351 = vmatprep.subr.mxu0 0.0
  %1352 = vmatpush1.msra.mxu0 0.0
  %1353 = vmatprep.subr.mxu0 0.0
  %1354 = vmatpush1.msra.mxu0 0.0
  %1355 = vmatprep.subr.mxu0 0.0
  %1356 = vmatpush1.msra.mxu0 0.0
  %1357 = vmatprep.subr.mxu0 0.0
  %1358 = vmatpush1.msra.mxu0 0.0
  %1359 = vmatprep.subr.mxu0 0.0
  %1360 = vmatpush1.msra.mxu0 0.0
  %1361 = vmatprep.subr.mxu0 0.0
  %1362 = vmatpush1.msra.mxu0 0.0
  %1363 = vmatprep.subr.mxu0 0.0
  %1364 = vmatpush1.msra.mxu0 0.0
  %1365 = vmatprep.subr.mxu0 0.0
  %1366 = vmatpush1.msra.mxu0 0.0
  %1367 = vmatprep.subr.mxu0 0.0
  %1368 = vmatpush1.msra.mxu0 0.0
  %1369 = vmatprep.subr.mxu0 0.0
  %1370 = vmatpush1.msra.mxu0 %v17
  %1371 = vmatprep.subr.mxu0 0.0
  %1372 = vmatpush1.msra.mxu0 %v16
  %1373 = vmatprep.subr.mxu0 0.0
  %1374 = vmatpush1.msra.mxu0 %v15
  %1375 = vmatprep.subr.mxu0 0.0
  %1376 = vmatpush1.msra.mxu0 %v14
  %1377 = vmatprep.subr.mxu0 0.0
  %1378 = vmatpush2.msra.mxu0 0.0
  %1379 = vmatprep.subr.mxu0 0.0
  %1380 = vmatpush2.msra.mxu0 0.0
  %1381 = vmatprep.subr.mxu0 0.0
  %1382 = vmatpush2.msra.mxu0 0.0
  %1383 = vmatprep.subr.mxu0 0.0
  %1384 = vmatpush2.msra.mxu0 0.0
  %1385 = vmatprep.subr.mxu0 0.0
  %1386 = vmatpush2.msra.mxu0 0.0
  %1387 = vmatprep.subr.mxu0 0.0
  %1388 = vmatpush2.msra.mxu0 0.0
  %1389 = vmatprep.subr.mxu0 0.0
  %1390 = vmatpush2.msra.mxu0 0.0
  %1391 = vmatprep.subr.mxu0 0.0
  %1392 = vmatpush2.msra.mxu0 0.0
  %1393 = vmatprep.subr.mxu0 0.0
  %1394 = vmatpush2.msra.mxu0 0.0
  %1395 = vmatprep.subr.mxu0 0.0
  %1396 = vmatpush2.msra.mxu0 0.0
  %1397 = vmatprep.subr.mxu0 0.0
  %1398 = vmatpush2.msra.mxu0 0.0
  %1399 = vmatprep.subr.mxu0 0.0
  %1400 = vmatpush2.msra.mxu0 0.0
  %1401 = vmatprep.subr.mxu0 0.0
  %1402 = vmatpush2.msra.mxu0 0.0
  %1403 = vmatprep.subr.mxu0 0.0
  %1404 = vmatpush2.msra.mxu0 0.0
  %1405 = vmatprep.subr.mxu0 0.0
  %1406 = vmatpush2.msra.mxu0 0.0
  %1407 = vmatprep.subr.mxu0 0.0
  %1408 = vmatpush2.msra.mxu0 0.0
  %1409 = vmatprep.mubr.f32.mxu0 0.0
  %1410 = vmatmul.mubr.f32.gmra.mxu0 %v1343
  %v1411 = vpop.f32.mrf.mxu0
  %v1412 = vadd.f32 0.0, %v1411
  %v1413 = vpop.f32.mrf.mxu0
  %1414 = vdwg.mxu0
  %v1415 = vadd.f32 %v1333, %v1412
  %v1416 = vld [vmem:[%s537 + $0x2] sm:$0x3]
  %v1418 = vunpack.c.l.s4 1983009808
  %v1419 = vunpack.c.0.s8 %v1418
  %v1420 = vlaneseq
  %v1421 = vshrl.u32 %v1420, 7
  %v1422 = vsub.s32 %v1419, %v1421
  %v1423 = vrot.slane %v1282, %v1422
  %1424 = vrot.lane.b32.xlu0 %v1423, 32
  %v1425 = vpop.permute.xlu0 %1424
  %v1426 = vsel %vm23, %v1425, 0
  %1428 = vmatprep.subr.mxu0 0.0
  %1429 = vmatpush1.msra.mxu0 0.0
  %1430 = vmatprep.subr.mxu0 0.0
  %1431 = vmatpush1.msra.mxu0 0.0
  %1432 = vmatprep.subr.mxu0 0.0
  %1433 = vmatpush1.msra.mxu0 0.0
  %1434 = vmatprep.subr.mxu0 0.0
  %1435 = vmatpush1.msra.mxu0 0.0
  %1436 = vmatprep.subr.mxu0 0.0
  %1437 = vmatpush1.msra.mxu0 0.0
  %1438 = vmatprep.subr.mxu0 0.0
  %1439 = vmatpush1.msra.mxu0 0.0
  %1440 = vmatprep.subr.mxu0 0.0
  %1441 = vmatpush1.msra.mxu0 0.0
  %1442 = vmatprep.subr.mxu0 0.0
  %1443 = vmatpush1.msra.mxu0 0.0
  %1444 = vmatprep.subr.mxu0 0.0
  %1445 = vmatpush1.msra.mxu0 0.0
  %1446 = vmatprep.subr.mxu0 0.0
  %1447 = vmatpush1.msra.mxu0 0.0
  %1448 = vmatprep.subr.mxu0 0.0
  %1449 = vmatpush1.msra.mxu0 0.0
  %1450 = vmatprep.subr.mxu0 0.0
  %1451 = vmatpush1.msra.mxu0 0.0
  %1452 = vmatprep.subr.mxu0 0.0
  %1453 = vmatpush1.msra.mxu0 %v21
  %1454 = vmatprep.subr.mxu0 0.0
  %1455 = vmatpush1.msra.mxu0 %v20
  %1456 = vmatprep.subr.mxu0 0.0
  %1457 = vmatpush1.msra.mxu0 %v19
  %1458 = vmatprep.subr.mxu0 0.0
  %1459 = vmatpush1.msra.mxu0 %v18
  %1460 = vmatprep.subr.mxu0 0.0
  %1461 = vmatpush2.msra.mxu0 0.0
  %1462 = vmatprep.subr.mxu0 0.0
  %1463 = vmatpush2.msra.mxu0 0.0
  %1464 = vmatprep.subr.mxu0 0.0
  %1465 = vmatpush2.msra.mxu0 0.0
  %1466 = vmatprep.subr.mxu0 0.0
  %1467 = vmatpush2.msra.mxu0 0.0
  %1468 = vmatprep.subr.mxu0 0.0
  %1469 = vmatpush2.msra.mxu0 0.0
  %1470 = vmatprep.subr.mxu0 0.0
  %1471 = vmatpush2.msra.mxu0 0.0
  %1472 = vmatprep.subr.mxu0 0.0
  %1473 = vmatpush2.msra.mxu0 0.0
  %1474 = vmatprep.subr.mxu0 0.0
  %1475 = vmatpush2.msra.mxu0 0.0
  %1476 = vmatprep.subr.mxu0 0.0
  %1477 = vmatpush2.msra.mxu0 0.0
  %1478 = vmatprep.subr.mxu0 0.0
  %1479 = vmatpush2.msra.mxu0 0.0
  %1480 = vmatprep.subr.mxu0 0.0
  %1481 = vmatpush2.msra.mxu0 0.0
  %1482 = vmatprep.subr.mxu0 0.0
  %1483 = vmatpush2.msra.mxu0 0.0
  %1484 = vmatprep.subr.mxu0 0.0
  %1485 = vmatpush2.msra.mxu0 0.0
  %1486 = vmatprep.subr.mxu0 0.0
  %1487 = vmatpush2.msra.mxu0 0.0
  %1488 = vmatprep.subr.mxu0 0.0
  %1489 = vmatpush2.msra.mxu0 0.0
  %1490 = vmatprep.subr.mxu0 0.0
  %1491 = vmatpush2.msra.mxu0 0.0
  %1492 = vmatprep.mubr.f32.mxu0 0.0
  %1493 = vmatmul.mubr.f32.gmra.mxu0 %v1426
  %v1494 = vpop.f32.mrf.mxu0
  %v1495 = vadd.f32 0.0, %v1494
  %v1496 = vpop.f32.mrf.mxu0
  %1497 = vdwg.mxu0
  %v1498 = vadd.f32 %v1416, %v1495
  %v1499 = vxor.u32 %v1415, 2147483648
  %v1500 = vmul.f32 %v1499, 1.442695
  %v1501 = vpow.pop %v1500
  %v1502 = vadd.f32 %v1501, 1.0
  %v1503 = vrcp.pop %v1502
  %v1504 = vmul.f32 1.0, %v1503
  %v1505 = vtanh.pop %v1415
  %v1506 = vmul.f32 %v1504, %v1252
  %1508 = vrot.lane.b32.xlu0 %v1505, 64
  %v1509 = vpop.permute.xlu0 %1508
  %v1511 = vmul.f32 %v1504, %v1509
  %1513 = vrot.lane.b32.xlu0 %v1511, 32
  %v1514 = vpop.permute.xlu0 %1513
  %v1516 = vadd.f32 %v1506, %v1514
  %v1517 = vtanh.pop %v1516
  %1519 = vrot.lane.b32.xlu0 %v1517, 64
  %v1520 = vpop.permute.xlu0 %1519
  %v1522 = vmul.f32 %v1504, %v1520
  %v1523 = vxor.u32 %v1498, 2147483648
  %v1524 = vmul.f32 %v1523, 1.442695
  %v1525 = vpow.pop %v1524
  %v1526 = vadd.f32 %v1525, 1.0
  %v1527 = vrcp.pop %v1526
  %v1528 = vmul.f32 1.0, %v1527
  %v1529 = vtanh.pop %v1498
  %v1530 = vmul.f32 %v1528, %v1276
  %1532 = vrot.lane.b32.xlu0 %v1529, 64
  %v1533 = vpop.permute.xlu0 %1532
  %v1535 = vmul.f32 %v1528, %v1533
  %1537 = vrot.lane.b32.xlu0 %v1535, 32
  %v1538 = vpop.permute.xlu0 %1537
  %v1540 = vadd.f32 %v1530, %v1538
  %v1541 = vtanh.pop %v1540
  %1543 = vrot.lane.b32.xlu0 %v1541, 64
  %v1544 = vpop.permute.xlu0 %1543
  %v1546 = vmul.f32 %v1528, %v1544
  %v1549 = vunpack.c.l.s4 1966171168
  %v1550 = vunpack.c.0.s8 %v1549
  %v1551 = vlaneseq
  %v1552 = vshrl.u32 %v1551, 7
  %v1553 = vsub.s32 %v1550, %v1552
  %v1554 = vrot.slane %v1522, %v1553
  %v1555 = vcombine.high %v1554, %v1554
  %v1556 = vlaneseq
  %v1557 = vshrl.u32 %v1556, 7
  %v1558 = vsub.s32 0, %v1557
  %v1559 = vrot.slane %v1554, %v1558
  %v1560 = vlaneseq
  %v1561 = vshrl.u32 %v1560, 7
  %v1562 = vsub.s32 0, %v1561
  %v1563 = vrot.slane %v1555, %v1562
  %1564 = vrot.lane.b32.xlu0 %v1559, 32
  %v1565 = vpop.permute.xlu0 %1564
  %1566 = vrot.lane.b32.xlu0 %v1563, 32
  %v1567 = vpop.permute.xlu0 %1566
  %1570 = vst.msk [vmem:[%s3 + $0x5] sm:$0x1] %vm242, %v1565
  %1571 = vst.msk [vmem:[%s3 + $0xd] sm:$0x1] %vm242, %v1567
  %v1574 = vunpack.c.l.s4 1966171168
  %v1575 = vunpack.c.0.s8 %v1574
  %v1576 = vlaneseq
  %v1577 = vshrl.u32 %v1576, 7
  %v1578 = vsub.s32 %v1575, %v1577
  %v1579 = vrot.slane %v1546, %v1578
  %v1580 = vcombine.high %v1579, %v1579
  %v1581 = vlaneseq
  %v1582 = vshrl.u32 %v1581, 7
  %v1583 = vsub.s32 0, %v1582
  %v1584 = vrot.slane %v1579, %v1583
  %v1585 = vlaneseq
  %v1586 = vshrl.u32 %v1585, 7
  %v1587 = vsub.s32 0, %v1586
  %v1588 = vrot.slane %v1580, %v1587
  %1589 = vrot.lane.b32.xlu0 %v1584, 64
  %v1590 = vpop.permute.xlu0 %1589
  %1591 = vrot.lane.b32.xlu0 %v1588, 64
  %v1592 = vpop.permute.xlu0 %1591
  %1595 = vst.msk [vmem:[%s3 + $0x2] sm:$0x1] %vm268, %v1590
  %1596 = vst.msk [vmem:[%s3 + $0xa] sm:$0x1] %vm268, %v1592
  %v1597 = vld [vmem:[%s355] sm:$0x3]
  %v1599 = vunpack.c.l.s4 1983009808
  %v1600 = vunpack.c.0.s8 %v1599
  %v1601 = vlaneseq
  %v1602 = vshrl.u32 %v1601, 7
  %v1603 = vsub.s32 %v1600, %v1602
  %v1604 = vrot.slane %v1522, %v1603
  %1605 = vrot.lane.b32.xlu0 %v1604, 32
  %v1606 = vpop.permute.xlu0 %1605
  %v1607 = vsel %vm23, %v1606, 0
  %1609 = vmatprep.subr.mxu0 0.0
  %1610 = vmatpush1.msra.mxu0 0.0
  %1611 = vmatprep.subr.mxu0 0.0
  %1612 = vmatpush1.msra.mxu0 0.0
  %1613 = vmatprep.subr.mxu0 0.0
  %1614 = vmatpush1.msra.mxu0 0.0
  %1615 = vmatprep.subr.mxu0 0.0
  %1616 = vmatpush1.msra.mxu0 0.0
  %1617 = vmatprep.subr.mxu0 0.0
  %1618 = vmatpush1.msra.mxu0 0.0
  %1619 = vmatprep.subr.mxu0 0.0
  %1620 = vmatpush1.msra.mxu0 0.0
  %1621 = vmatprep.subr.mxu0 0.0
  %1622 = vmatpush1.msra.mxu0 0.0
  %1623 = vmatprep.subr.mxu0 0.0
  %1624 = vmatpush1.msra.mxu0 0.0
  %1625 = vmatprep.subr.mxu0 0.0
  %1626 = vmatpush1.msra.mxu0 0.0
  %1627 = vmatprep.subr.mxu0 0.0
  %1628 = vmatpush1.msra.mxu0 0.0
  %1629 = vmatprep.subr.mxu0 0.0
  %1630 = vmatpush1.msra.mxu0 0.0
  %1631 = vmatprep.subr.mxu0 0.0
  %1632 = vmatpush1.msra.mxu0 0.0
  %1633 = vmatprep.subr.mxu0 0.0
  %1634 = vmatpush1.msra.mxu0 %v17
  %1635 = vmatprep.subr.mxu0 0.0
  %1636 = vmatpush1.msra.mxu0 %v16
  %1637 = vmatprep.subr.mxu0 0.0
  %1638 = vmatpush1.msra.mxu0 %v15
  %1639 = vmatprep.subr.mxu0 0.0
  %1640 = vmatpush1.msra.mxu0 %v14
  %1641 = vmatprep.subr.mxu0 0.0
  %1642 = vmatpush2.msra.mxu0 0.0
  %1643 = vmatprep.subr.mxu0 0.0
  %1644 = vmatpush2.msra.mxu0 0.0
  %1645 = vmatprep.subr.mxu0 0.0
  %1646 = vmatpush2.msra.mxu0 0.0
  %1647 = vmatprep.subr.mxu0 0.0
  %1648 = vmatpush2.msra.mxu0 0.0
  %1649 = vmatprep.subr.mxu0 0.0
  %1650 = vmatpush2.msra.mxu0 0.0
  %1651 = vmatprep.subr.mxu0 0.0
  %1652 = vmatpush2.msra.mxu0 0.0
  %1653 = vmatprep.subr.mxu0 0.0
  %1654 = vmatpush2.msra.mxu0 0.0
  %1655 = vmatprep.subr.mxu0 0.0
  %1656 = vmatpush2.msra.mxu0 0.0
  %1657 = vmatprep.subr.mxu0 0.0
  %1658 = vmatpush2.msra.mxu0 0.0
  %1659 = vmatprep.subr.mxu0 0.0
  %1660 = vmatpush2.msra.mxu0 0.0
  %1661 = vmatprep.subr.mxu0 0.0
  %1662 = vmatpush2.msra.mxu0 0.0
  %1663 = vmatprep.subr.mxu0 0.0
  %1664 = vmatpush2.msra.mxu0 0.0
  %1665 = vmatprep.subr.mxu0 0.0
  %1666 = vmatpush2.msra.mxu0 0.0
  %1667 = vmatprep.subr.mxu0 0.0
  %1668 = vmatpush2.msra.mxu0 0.0
  %1669 = vmatprep.subr.mxu0 0.0
  %1670 = vmatpush2.msra.mxu0 0.0
  %1671 = vmatprep.subr.mxu0 0.0
  %1672 = vmatpush2.msra.mxu0 0.0
  %1673 = vmatprep.mubr.f32.mxu0 0.0
  %1674 = vmatmul.mubr.f32.gmra.mxu0 %v1607
  %v1675 = vpop.f32.mrf.mxu0
  %v1676 = vadd.f32 0.0, %v1675
  %v1677 = vpop.f32.mrf.mxu0
  %1678 = vdwg.mxu0
  %v1679 = vadd.f32 %v1597, %v1676
  %v1680 = vld [vmem:[%s271 + $0x2] sm:$0x3]
  %v1682 = vunpack.c.l.s4 1983009808
  %v1683 = vunpack.c.0.s8 %v1682
  %v1684 = vlaneseq
  %v1685 = vshrl.u32 %v1684, 7
  %v1686 = vsub.s32 %v1683, %v1685
  %v1687 = vrot.slane %v1546, %v1686
  %1688 = vrot.lane.b32.xlu0 %v1687, 32
  %v1689 = vpop.permute.xlu0 %1688
  %v1690 = vsel %vm23, %v1689, 0
  %1692 = vmatprep.subr.mxu0 0.0
  %1693 = vmatpush1.msra.mxu0 0.0
  %1694 = vmatprep.subr.mxu0 0.0
  %1695 = vmatpush1.msra.mxu0 0.0
  %1696 = vmatprep.subr.mxu0 0.0
  %1697 = vmatpush1.msra.mxu0 0.0
  %1698 = vmatprep.subr.mxu0 0.0
  %1699 = vmatpush1.msra.mxu0 0.0
  %1700 = vmatprep.subr.mxu0 0.0
  %1701 = vmatpush1.msra.mxu0 0.0
  %1702 = vmatprep.subr.mxu0 0.0
  %1703 = vmatpush1.msra.mxu0 0.0
  %1704 = vmatprep.subr.mxu0 0.0
  %1705 = vmatpush1.msra.mxu0 0.0
  %1706 = vmatprep.subr.mxu0 0.0
  %1707 = vmatpush1.msra.mxu0 0.0
  %1708 = vmatprep.subr.mxu0 0.0
  %1709 = vmatpush1.msra.mxu0 0.0
  %1710 = vmatprep.subr.mxu0 0.0
  %1711 = vmatpush1.msra.mxu0 0.0
  %1712 = vmatprep.subr.mxu0 0.0
  %1713 = vmatpush1.msra.mxu0 0.0
  %1714 = vmatprep.subr.mxu0 0.0
  %1715 = vmatpush1.msra.mxu0 0.0
  %1716 = vmatprep.subr.mxu0 0.0
  %1717 = vmatpush1.msra.mxu0 %v21
  %1718 = vmatprep.subr.mxu0 0.0
  %1719 = vmatpush1.msra.mxu0 %v20
  %1720 = vmatprep.subr.mxu0 0.0
  %1721 = vmatpush1.msra.mxu0 %v19
  %1722 = vmatprep.subr.mxu0 0.0
  %1723 = vmatpush1.msra.mxu0 %v18
  %1724 = vmatprep.subr.mxu0 0.0
  %1725 = vmatpush2.msra.mxu0 0.0
  %1726 = vmatprep.subr.mxu0 0.0
  %1727 = vmatpush2.msra.mxu0 0.0
  %1728 = vmatprep.subr.mxu0 0.0
  %1729 = vmatpush2.msra.mxu0 0.0
  %1730 = vmatprep.subr.mxu0 0.0
  %1731 = vmatpush2.msra.mxu0 0.0
  %1732 = vmatprep.subr.mxu0 0.0
  %1733 = vmatpush2.msra.mxu0 0.0
  %1734 = vmatprep.subr.mxu0 0.0
  %1735 = vmatpush2.msra.mxu0 0.0
  %1736 = vmatprep.subr.mxu0 0.0
  %1737 = vmatpush2.msra.mxu0 0.0
  %1738 = vmatprep.subr.mxu0 0.0
  %1739 = vmatpush2.msra.mxu0 0.0
  %1740 = vmatprep.subr.mxu0 0.0
  %1741 = vmatpush2.msra.mxu0 0.0
  %1742 = vmatprep.subr.mxu0 0.0
  %1743 = vmatpush2.msra.mxu0 0.0
  %1744 = vmatprep.subr.mxu0 0.0
  %1745 = vmatpush2.msra.mxu0 0.0
  %1746 = vmatprep.subr.mxu0 0.0
  %1747 = vmatpush2.msra.mxu0 0.0
  %1748 = vmatprep.subr.mxu0 0.0
  %1749 = vmatpush2.msra.mxu0 0.0
  %1750 = vmatprep.subr.mxu0 0.0
  %1751 = vmatpush2.msra.mxu0 0.0
  %1752 = vmatprep.subr.mxu0 0.0
  %1753 = vmatpush2.msra.mxu0 0.0
  %1754 = vmatprep.subr.mxu0 0.0
  %1755 = vmatpush2.msra.mxu0 0.0
  %1756 = vmatprep.mubr.f32.mxu0 0.0
  %1757 = vmatmul.mubr.f32.gmra.mxu0 %v1690
  %v1758 = vpop.f32.mrf.mxu0
  %v1759 = vadd.f32 0.0, %v1758
  %v1760 = vpop.f32.mrf.mxu0
  %1761 = vdwg.mxu0
  %v1762 = vadd.f32 %v1680, %v1759
  %v1763 = vxor.u32 %v1679, 2147483648
  %v1764 = vmul.f32 %v1763, 1.442695
  %v1765 = vpow.pop %v1764
  %v1766 = vadd.f32 %v1765, 1.0
  %v1767 = vrcp.pop %v1766
  %v1768 = vmul.f32 1.0, %v1767
  %v1769 = vtanh.pop %v1679
  %v1770 = vmul.f32 %v1768, %v1516
  %1772 = vrot.lane.b32.xlu0 %v1769, 64
  %v1773 = vpop.permute.xlu0 %1772
  %v1775 = vmul.f32 %v1768, %v1773
  %1777 = vrot.lane.b32.xlu0 %v1775, 32
  %v1778 = vpop.permute.xlu0 %1777
  %v1780 = vadd.f32 %v1770, %v1778
  %v1781 = vtanh.pop %v1780
  %1783 = vrot.lane.b32.xlu0 %v1781, 64
  %v1784 = vpop.permute.xlu0 %1783
  %v1786 = vmul.f32 %v1768, %v1784
  %v1787 = vxor.u32 %v1762, 2147483648
  %v1788 = vmul.f32 %v1787, 1.442695
  %v1789 = vpow.pop %v1788
  %v1790 = vadd.f32 %v1789, 1.0
  %v1791 = vrcp.pop %v1790
  %v1792 = vmul.f32 1.0, %v1791
  %v1793 = vtanh.pop %v1762
  %v1794 = vmul.f32 %v1792, %v1540
  %1796 = vrot.lane.b32.xlu0 %v1793, 64
  %v1797 = vpop.permute.xlu0 %1796
  %v1799 = vmul.f32 %v1792, %v1797
  %1801 = vrot.lane.b32.xlu0 %v1799, 32
  %v1802 = vpop.permute.xlu0 %1801
  %v1804 = vadd.f32 %v1794, %v1802
  %v1805 = vtanh.pop %v1804
  %1807 = vrot.lane.b32.xlu0 %v1805, 64
  %v1808 = vpop.permute.xlu0 %1807
  %v1810 = vmul.f32 %v1792, %v1808
  %v1813 = vunpack.c.l.s4 1966171168
  %v1814 = vunpack.c.0.s8 %v1813
  %v1815 = vlaneseq
  %v1816 = vshrl.u32 %v1815, 7
  %v1817 = vsub.s32 %v1814, %v1816
  %v1818 = vrot.slane %v1786, %v1817
  %v1819 = vcombine.high %v1818, %v1818
  %v1820 = vlaneseq
  %v1821 = vshrl.u32 %v1820, 7
  %v1822 = vsub.s32 0, %v1821
  %v1823 = vrot.slane %v1818, %v1822
  %v1824 = vlaneseq
  %v1825 = vshrl.u32 %v1824, 7
  %v1826 = vsub.s32 0, %v1825
  %v1827 = vrot.slane %v1819, %v1826
  %1828 = vrot.lane.b32.xlu0 %v1823, 32
  %v1829 = vpop.permute.xlu0 %1828
  %1830 = vrot.lane.b32.xlu0 %v1827, 32
  %v1831 = vpop.permute.xlu0 %1830
  %1834 = vst.msk [vmem:[%s3 + $0x6] sm:$0x1] %vm242, %v1829
  %1835 = vst.msk [vmem:[%s3 + $0xe] sm:$0x1] %vm242, %v1831
  %v1838 = vunpack.c.l.s4 1966171168
  %v1839 = vunpack.c.0.s8 %v1838
  %v1840 = vlaneseq
  %v1841 = vshrl.u32 %v1840, 7
  %v1842 = vsub.s32 %v1839, %v1841
  %v1843 = vrot.slane %v1810, %v1842
  %v1844 = vcombine.high %v1843, %v1843
  %v1845 = vlaneseq
  %v1846 = vshrl.u32 %v1845, 7
  %v1847 = vsub.s32 0, %v1846
  %v1848 = vrot.slane %v1843, %v1847
  %v1849 = vlaneseq
  %v1850 = vshrl.u32 %v1849, 7
  %v1851 = vsub.s32 0, %v1850
  %v1852 = vrot.slane %v1844, %v1851
  %1853 = vrot.lane.b32.xlu0 %v1848, 64
  %v1854 = vpop.permute.xlu0 %1853
  %1855 = vrot.lane.b32.xlu0 %v1852, 64
  %v1856 = vpop.permute.xlu0 %1855
  %1859 = vst.msk [vmem:[%s3 + $0x1] sm:$0x1] %vm268, %v1854
  %1860 = vst.msk [vmem:[%s3 + $0x9] sm:$0x1] %vm268, %v1856
  %v1861 = vld [vmem:[%s98] sm:$0x3]
  %v1863 = vunpack.c.l.s4 1983009808
  %v1864 = vunpack.c.0.s8 %v1863
  %v1865 = vlaneseq
  %v1866 = vshrl.u32 %v1865, 7
  %v1867 = vsub.s32 %v1864, %v1866
  %v1868 = vrot.slane %v1786, %v1867
  %1869 = vrot.lane.b32.xlu0 %v1868, 32
  %v1870 = vpop.permute.xlu0 %1869
  %v1871 = vsel %vm23, %v1870, 0
  %1873 = vmatprep.subr.mxu0 0.0
  %1874 = vmatpush1.msra.mxu0 0.0
  %1875 = vmatprep.subr.mxu0 0.0
  %1876 = vmatpush1.msra.mxu0 0.0
  %1877 = vmatprep.subr.mxu0 0.0
  %1878 = vmatpush1.msra.mxu0 0.0
  %1879 = vmatprep.subr.mxu0 0.0
  %1880 = vmatpush1.msra.mxu0 0.0
  %1881 = vmatprep.subr.mxu0 0.0
  %1882 = vmatpush1.msra.mxu0 0.0
  %1883 = vmatprep.subr.mxu0 0.0
  %1884 = vmatpush1.msra.mxu0 0.0
  %1885 = vmatprep.subr.mxu0 0.0
  %1886 = vmatpush1.msra.mxu0 0.0
  %1887 = vmatprep.subr.mxu0 0.0
  %1888 = vmatpush1.msra.mxu0 0.0
  %1889 = vmatprep.subr.mxu0 0.0
  %1890 = vmatpush1.msra.mxu0 0.0
  %1891 = vmatprep.subr.mxu0 0.0
  %1892 = vmatpush1.msra.mxu0 0.0
  %1893 = vmatprep.subr.mxu0 0.0
  %1894 = vmatpush1.msra.mxu0 0.0
  %1895 = vmatprep.subr.mxu0 0.0
  %1896 = vmatpush1.msra.mxu0 0.0
  %1897 = vmatprep.subr.mxu0 0.0
  %1898 = vmatpush1.msra.mxu0 %v17
  %1899 = vmatprep.subr.mxu0 0.0
  %1900 = vmatpush1.msra.mxu0 %v16
  %1901 = vmatprep.subr.mxu0 0.0
  %1902 = vmatpush1.msra.mxu0 %v15
  %1903 = vmatprep.subr.mxu0 0.0
  %1904 = vmatpush1.msra.mxu0 %v14
  %1905 = vmatprep.subr.mxu0 0.0
  %1906 = vmatpush2.msra.mxu0 0.0
  %1907 = vmatprep.subr.mxu0 0.0
  %1908 = vmatpush2.msra.mxu0 0.0
  %1909 = vmatprep.subr.mxu0 0.0
  %1910 = vmatpush2.msra.mxu0 0.0
  %1911 = vmatprep.subr.mxu0 0.0
  %1912 = vmatpush2.msra.mxu0 0.0
  %1913 = vmatprep.subr.mxu0 0.0
  %1914 = vmatpush2.msra.mxu0 0.0
  %1915 = vmatprep.subr.mxu0 0.0
  %1916 = vmatpush2.msra.mxu0 0.0
  %1917 = vmatprep.subr.mxu0 0.0
  %1918 = vmatpush2.msra.mxu0 0.0
  %1919 = vmatprep.subr.mxu0 0.0
  %1920 = vmatpush2.msra.mxu0 0.0
  %1921 = vmatprep.subr.mxu0 0.0
  %1922 = vmatpush2.msra.mxu0 0.0
  %1923 = vmatprep.subr.mxu0 0.0
  %1924 = vmatpush2.msra.mxu0 0.0
  %1925 = vmatprep.subr.mxu0 0.0
  %1926 = vmatpush2.msra.mxu0 0.0
  %1927 = vmatprep.subr.mxu0 0.0
  %1928 = vmatpush2.msra.mxu0 0.0
  %1929 = vmatprep.subr.mxu0 0.0
  %1930 = vmatpush2.msra.mxu0 0.0
  %1931 = vmatprep.subr.mxu0 0.0
  %1932 = vmatpush2.msra.mxu0 0.0
  %1933 = vmatprep.subr.mxu0 0.0
  %1934 = vmatpush2.msra.mxu0 0.0
  %1935 = vmatprep.subr.mxu0 0.0
  %1936 = vmatpush2.msra.mxu0 0.0
  %1937 = vmatprep.mubr.f32.mxu0 0.0
  %1938 = vmatmul.mubr.f32.gmra.mxu0 %v1871
  %v1939 = vpop.f32.mrf.mxu0
  %v1940 = vadd.f32 0.0, %v1939
  %v1941 = vpop.f32.mrf.mxu0
  %1942 = vdwg.mxu0
  %v1943 = vadd.f32 %v1861, %v1940
  %v1944 = vld [vmem:[%s0 + $0x2] sm:$0x3]
  %v1946 = vunpack.c.l.s4 1983009808
  %v1947 = vunpack.c.0.s8 %v1946
  %v1948 = vlaneseq
  %v1949 = vshrl.u32 %v1948, 7
  %v1950 = vsub.s32 %v1947, %v1949
  %v1951 = vrot.slane %v1810, %v1950
  %1952 = vrot.lane.b32.xlu0 %v1951, 32
  %v1953 = vpop.permute.xlu0 %1952
  %v1954 = vsel %vm23, %v1953, 0
  %1956 = vmatprep.subr.mxu0 0.0
  %1957 = vmatpush1.msra.mxu0 0.0
  %1958 = vmatprep.subr.mxu0 0.0
  %1959 = vmatpush1.msra.mxu0 0.0
  %1960 = vmatprep.subr.mxu0 0.0
  %1961 = vmatpush1.msra.mxu0 0.0
  %1962 = vmatprep.subr.mxu0 0.0
  %1963 = vmatpush1.msra.mxu0 0.0
  %1964 = vmatprep.subr.mxu0 0.0
  %1965 = vmatpush1.msra.mxu0 0.0
  %1966 = vmatprep.subr.mxu0 0.0
  %1967 = vmatpush1.msra.mxu0 0.0
  %1968 = vmatprep.subr.mxu0 0.0
  %1969 = vmatpush1.msra.mxu0 0.0
  %1970 = vmatprep.subr.mxu0 0.0
  %1971 = vmatpush1.msra.mxu0 0.0
  %1972 = vmatprep.subr.mxu0 0.0
  %1973 = vmatpush1.msra.mxu0 0.0
  %1974 = vmatprep.subr.mxu0 0.0
  %1975 = vmatpush1.msra.mxu0 0.0
  %1976 = vmatprep.subr.mxu0 0.0
  %1977 = vmatpush1.msra.mxu0 0.0
  %1978 = vmatprep.subr.mxu0 0.0
  %1979 = vmatpush1.msra.mxu0 0.0
  %1980 = vmatprep.subr.mxu0 0.0
  %1981 = vmatpush1.msra.mxu0 %v21
  %1982 = vmatprep.subr.mxu0 0.0
  %1983 = vmatpush1.msra.mxu0 %v20
  %1984 = vmatprep.subr.mxu0 0.0
  %1985 = vmatpush1.msra.mxu0 %v19
  %1986 = vmatprep.subr.mxu0 0.0
  %1987 = vmatpush1.msra.mxu0 %v18
  %1988 = vmatprep.subr.mxu0 0.0
  %1989 = vmatpush2.msra.mxu0 0.0
  %1990 = vmatprep.subr.mxu0 0.0
  %1991 = vmatpush2.msra.mxu0 0.0
  %1992 = vmatprep.subr.mxu0 0.0
  %1993 = vmatpush2.msra.mxu0 0.0
  %1994 = vmatprep.subr.mxu0 0.0
  %1995 = vmatpush2.msra.mxu0 0.0
  %1996 = vmatprep.subr.mxu0 0.0
  %1997 = vmatpush2.msra.mxu0 0.0
  %1998 = vmatprep.subr.mxu0 0.0
  %1999 = vmatpush2.msra.mxu0 0.0
  %2000 = vmatprep.subr.mxu0 0.0
  %2001 = vmatpush2.msra.mxu0 0.0
  %2002 = vmatprep.subr.mxu0 0.0
  %2003 = vmatpush2.msra.mxu0 0.0
  %2004 = vmatprep.subr.mxu0 0.0
  %2005 = vmatpush2.msra.mxu0 0.0
  %2006 = vmatprep.subr.mxu0 0.0
  %2007 = vmatpush2.msra.mxu0 0.0
  %2008 = vmatprep.subr.mxu0 0.0
  %2009 = vmatpush2.msra.mxu0 0.0
  %2010 = vmatprep.subr.mxu0 0.0
  %2011 = vmatpush2.msra.mxu0 0.0
  %2012 = vmatprep.subr.mxu0 0.0
  %2013 = vmatpush2.msra.mxu0 0.0
  %2014 = vmatprep.subr.mxu0 0.0
  %2015 = vmatpush2.msra.mxu0 0.0
  %2016 = vmatprep.subr.mxu0 0.0
  %2017 = vmatpush2.msra.mxu0 0.0
  %2018 = vmatprep.subr.mxu0 0.0
  %2019 = vmatpush2.msra.mxu0 0.0
  %2020 = vmatprep.mubr.f32.mxu0 0.0
  %2021 = vmatmul.mubr.f32.gmra.mxu0 %v1954
  %v2022 = vpop.f32.mrf.mxu0
  %v2023 = vadd.f32 0.0, %v2022
  %v2024 = vpop.f32.mrf.mxu0
  %2025 = vdwg.mxu0
  %v2026 = vadd.f32 %v1944, %v2023
  %v2027 = vxor.u32 %v1943, 2147483648
  %v2028 = vmul.f32 %v2027, 1.442695
  %v2029 = vpow.pop %v2028
  %v2030 = vadd.f32 %v2029, 1.0
  %v2031 = vrcp.pop %v2030
  %v2032 = vmul.f32 1.0, %v2031
  %v2033 = vtanh.pop %v1943
  %v2034 = vmul.f32 %v2032, %v1780
  %2036 = vrot.lane.b32.xlu0 %v2033, 64
  %v2037 = vpop.permute.xlu0 %2036
  %v2039 = vmul.f32 %v2032, %v2037
  %2041 = vrot.lane.b32.xlu0 %v2039, 32
  %v2042 = vpop.permute.xlu0 %2041
  %v2044 = vadd.f32 %v2034, %v2042
  %v2045 = vtanh.pop %v2044
  %2047 = vrot.lane.b32.xlu0 %v2045, 64
  %v2048 = vpop.permute.xlu0 %2047
  %v2050 = vmul.f32 %v2032, %v2048
  %v2051 = vxor.u32 %v2026, 2147483648
  %v2052 = vmul.f32 %v2051, 1.442695
  %v2053 = vpow.pop %v2052
  %v2054 = vadd.f32 %v2053, 1.0
  %v2055 = vrcp.pop %v2054
  %v2056 = vmul.f32 1.0, %v2055
  %v2057 = vtanh.pop %v2026
  %v2058 = vmul.f32 %v2056, %v1804
  %2060 = vrot.lane.b32.xlu0 %v2057, 64
  %v2061 = vpop.permute.xlu0 %2060
  %v2063 = vmul.f32 %v2056, %v2061
  %2065 = vrot.lane.b32.xlu0 %v2063, 32
  %v2066 = vpop.permute.xlu0 %2065
  %v2068 = vadd.f32 %v2058, %v2066
  %v2069 = vtanh.pop %v2068
  %2071 = vrot.lane.b32.xlu0 %v2069, 64
  %v2072 = vpop.permute.xlu0 %2071
  %v2074 = vmul.f32 %v2056, %v2072
  %v2077 = vunpack.c.l.s4 1966171168
  %v2078 = vunpack.c.0.s8 %v2077
  %v2079 = vlaneseq
  %v2080 = vshrl.u32 %v2079, 7
  %v2081 = vsub.s32 %v2078, %v2080
  %v2082 = vrot.slane %v2050, %v2081
  %v2083 = vcombine.high %v2082, %v2082
  %v2084 = vlaneseq
  %v2085 = vshrl.u32 %v2084, 7
  %v2086 = vsub.s32 0, %v2085
  %v2087 = vrot.slane %v2082, %v2086
  %v2088 = vlaneseq
  %v2089 = vshrl.u32 %v2088, 7
  %v2090 = vsub.s32 0, %v2089
  %v2091 = vrot.slane %v2083, %v2090
  %2092 = vrot.lane.b32.xlu0 %v2087, 32
  %v2093 = vpop.permute.xlu0 %2092
  %2094 = vrot.lane.b32.xlu0 %v2091, 32
  %v2095 = vpop.permute.xlu0 %2094
  %2098 = vst.msk [vmem:[%s3 + $0x7] sm:$0x1] %vm242, %v2093
  %2099 = vst.msk [vmem:[%s3 + $0xf] sm:$0x1] %vm242, %v2095
  %v2102 = vunpack.c.l.s4 1966171168
  %v2103 = vunpack.c.0.s8 %v2102
  %v2104 = vlaneseq
  %v2105 = vshrl.u32 %v2104, 7
  %v2106 = vsub.s32 %v2103, %v2105
  %v2107 = vrot.slane %v2074, %v2106
  %v2108 = vcombine.high %v2107, %v2107
  %v2109 = vlaneseq
  %v2110 = vshrl.u32 %v2109, 7
  %v2111 = vsub.s32 0, %v2110
  %v2112 = vrot.slane %v2107, %v2111
  %v2113 = vlaneseq
  %v2114 = vshrl.u32 %v2113, 7
  %v2115 = vsub.s32 0, %v2114
  %v2116 = vrot.slane %v2108, %v2115
  %2117 = vrot.lane.b32.xlu0 %v2112, 64
  %v2118 = vpop.permute.xlu0 %2117
  %2119 = vrot.lane.b32.xlu0 %v2116, 64
  %v2120 = vpop.permute.xlu0 %2119
  %2123 = vst.msk [vmem:[%s3] sm:$0x1] %vm268, %v2118
  %2124 = vst.msk [vmem:[%s3 + $0x8] sm:$0x1] %vm268, %v2120
  // Predicated region
  $region14: #{rna3d_forward.12} parent=0 // pred_check
    _
  $region15: #{rna3d_forward.12} parent=0 // pred_check_branch
    %2126 = sbr.rel (0) target = $region17
  $region16: #{rna3d_forward.12} parent=0 // pred_region
    _
  $region17: #{rna3d_forward.12} parent=0 // pred_fallthru
    _
  // Predicated region
  $region18: #{rna3d_forward.12} parent=0 // pred_check
    _
  $region19: #{rna3d_forward.12} parent=0 // pred_check_branch
    %2128 = sbr.rel (0) target = $region21
  $region20: #{rna3d_forward.12} parent=0 // pred_region
    _
  $region21: #{rna3d_forward.12} parent=0 // pred_fallthru
    _

// kernel: rna3d_forward.13
$region0: #{rna3d_forward.13}
  #allocation0 [shape = 'u32[]', space=smem, size = 0x4, offset = 0x4, fixed_abs, tag = 'smem constant byte address 0x4 - core index']
  #allocation1 [shape = 'u32[144,128]{1,0:T(1,128)}', space=vmem, size = 0x12000, scoped, tag = 'internal scratch']
  %s0 = inlined_call_operand.vmem [shape: f32[2,8,64], index: 0, kind: input, shape index: {}]
  %s1 = inlined_call_operand.vmem [shape: f32[64,64], index: 1, kind: input, shape index: {}]
  %s2 = inlined_call_operand.vmem [shape: f32[64,64], index: 2, kind: input, shape index: {}]
  %s3 = inlined_call_operand.vmem [shape: f32[64,64], index: 3, kind: input, shape index: {}]
  %s4 = inlined_call_operand.vmem [shape: f32[1,64], index: 4, kind: input, shape index: {}]
  %s5 = inlined_call_operand.vmem [shape: f32[1,64], index: 5, kind: input, shape index: {}]
  %s6 = inlined_call_operand.vmem [shape: f32[1,64], index: 6, kind: input, shape index: {}]
  %s7 = inlined_call_operand.vmem [shape: f32[64,64], index: 7, kind: input, shape index: {}]
  %s8 = inlined_call_operand.vmem [shape: f32[1,64], index: 8, kind: input, shape index: {}]
  %s9 = inlined_call_operand.vmem [shape: f32[1,64], index: 9, kind: input, shape index: {}]
  %s10 = inlined_call_operand.vmem [shape: f32[1,64], index: 10, kind: input, shape index: {}]
  %s11 = inlined_call_operand.vmem [shape: f32[64,256], index: 11, kind: input, shape index: {}]
  %s12 = inlined_call_operand.vmem [shape: f32[1,256], index: 12, kind: input, shape index: {}]
  %s13 = inlined_call_operand.vmem [shape: f32[256,64], index: 13, kind: input, shape index: {}]
  %s14 = inlined_call_operand.vmem [shape: f32[1,64], index: 14, kind: input, shape index: {}]
  %s15 = inlined_call_operand.vmem [shape: f32[1,64], index: 15, kind: input, shape index: {}]
  %s16 = inlined_call_operand.vmem [shape: f32[1,64], index: 16, kind: input, shape index: {}]
  %s17 = inlined_call_operand.vmem [shape: f32[64,64], index: 17, kind: input, shape index: {}]
  %s18 = inlined_call_operand.vmem [shape: f32[1,64], index: 18, kind: input, shape index: {}]
  %s19 = inlined_call_operand.vmem [shape: f32[64,64], index: 19, kind: input, shape index: {}]
  %s20 = inlined_call_operand.vmem [shape: f32[1,64], index: 20, kind: input, shape index: {}]
  %s21 = inlined_call_operand.vmem [shape: f32[64,64], index: 21, kind: input, shape index: {}]
  %s22 = inlined_call_operand.vmem [shape: f32[1,64], index: 22, kind: input, shape index: {}]
  %s23 = inlined_call_operand.vmem [shape: f32[64,128], index: 23, kind: input, shape index: {}]
  %s24 = inlined_call_operand.vmem [shape: f32[1,128], index: 24, kind: input, shape index: {}]
  %s25 = inlined_call_operand.hbm [shape: f32[2,8,64], index: 25, kind: output, shape index: {0}]
  %s26 = inlined_call_operand.vmem [shape: f32[2,8,128], index: 26, kind: output, shape index: {1}]
  %27 = xla_tuple %s25, %s26
  %s28 = sld [smem:[#allocation0]]
  $region141: #{rna3d_forward.13} parent=0
    _
  %s30 = ssub.s32 1, %s28
  %s31 = scalar_select 0, %s30, %s28
  $region1: #{rna3d_forward.13} parent=0
    #allocation2 [shape = 'u8[8192]{0}', space=vmem, size = 0x2000, scoped, tag = 'output window, operand 0']
    #allocation3 [shape = 's32[2]{0}', space=sflag, size = 0x8, scoped, tag = 'scoped memory for rna3d_forward.13']
    %32 = vsyncpa [#allocation3], 0
    %s33 = scalar_lea.sflag [#allocation3], 1
    %34 = vsyncpa %s33, 0
    loop: start=0, step=1, limit=4
    $region2: #{rna3d_forward.13} parent=1 // loop_pre_header
      _
    $region3: #{rna3d_forward.13} parent=1 // loop_header
      %s36 = sphi 0, %s40
      %p37 = scmp.ge.s32.totalorder %s36, 4
      %s46 = sphi 0, %s48
      %s49 = sphi 0, %s46
      %s50 = sphi 0, %s49
      %s66 = sphi 0, %s50
      %s70 = sphi 0, %s70
      %s72 = sphi 0, %s70
      %s73 = sphi 0, %s72
      %s87 = sphi 0, %s73
      %s91 = sphi 0, %s91
      %s93 = sphi 0, %s91
      %s94 = sphi 0, %s93
      %s108 = sphi 0, %s94
      %s112 = sphi 0, %s112
      %s114 = sphi 0, %s112
      %s115 = sphi 0, %s114
      %s129 = sphi 0, %s115
      %s133 = sphi 0, %s133
      %s135 = sphi 0, %s133
      %s136 = sphi 0, %s135
      %s150 = sphi 0, %s136
      %s154 = sphi 0, %s154
      %s156 = sphi 0, %s154
      %s157 = sphi 0, %s156
      %s171 = sphi 0, %s157
      %s175 = sphi 0, %s175
      %s177 = sphi 0, %s175
      %s178 = sphi 0, %s177
      %s192 = sphi 0, %s178
      %s196 = sphi 0, %s196
      %s198 = sphi 0, %s196
      %s199 = sphi 0, %s198
      %s213 = sphi 0, %s199
      %s217 = sphi 0, %s217
      %s219 = sphi 0, %s217
      %s220 = sphi 0, %s219
      %s234 = sphi 0, %s220
      %s238 = sphi 0, %s238
      %s240 = sphi 0, %s238
      %s241 = sphi 0, %s240
      %s255 = sphi 0, %s241
      %s259 = sphi 0, %s259
      %s261 = sphi 0, %s259
      %s262 = sphi 0, %s261
      %s276 = sphi 0, %s262
      %s280 = sphi 0, %s280
      %s282 = sphi 0, %s280
      %s283 = sphi 0, %s282
      %s297 = sphi 0, %s283
      %s301 = sphi 0, %s301
      %s303 = sphi 0, %s301
      %s304 = sphi 0, %s303
      %s318 = sphi 0, %s304
      %s322 = sphi 0, %s322
      %s324 = sphi 0, %s322
      %s325 = sphi 0, %s324
      %s339 = sphi 0, %s325
      %s343 = sphi 0, %s343
      %s345 = sphi 0, %s343
      %s346 = sphi 0, %s345
      %s360 = sphi 0, %s346
      %s364 = sphi 0, %s364
      %s366 = sphi 0, %s364
      %s367 = sphi 0, %s366
      %s381 = sphi 0, %s367
      %s385 = sphi 0, %s385
      %s387 = sphi 0, %s385
      %s388 = sphi 0, %s387
      %s402 = sphi 0, %s388
      %s406 = sphi 0, %s406
      %s408 = sphi 0, %s406
      %s409 = sphi 0, %s408
      %s423 = sphi 0, %s409
      %s427 = sphi 0, %s427
      %s429 = sphi 0, %s427
      %s430 = sphi 0, %s429
      %s444 = sphi 0, %s430
      %s448 = sphi 0, %s448
      %s450 = sphi 0, %s448
      %s451 = sphi 0, %s450
      %s465 = sphi 0, %s451
      %s469 = sphi 0, %s469
      %s471 = sphi 0, %s469
      %s472 = sphi 0, %s471
      %s486 = sphi 0, %s472
      %s490 = sphi 0, %s490
      %s492 = sphi 0, %s490
      %s493 = sphi 0, %s492
      %s507 = sphi 0, %s493
      %s511 = sphi 0, %s511
      %s513 = sphi 0, %s511
      %s514 = sphi 0, %s513
      %s528 = sphi 0, %s514
      %s532 = sphi 0, %s532
      %s534 = sphi 0, %s532
      %s535 = sphi 0, %s534
      %s549 = sphi 0, %s535
      %s553 = sphi 0, %s553
      %s555 = sphi 0, %s553
      %s556 = sphi 0, %s555
      %s570 = sphi 0, %s556
      %s576 = sphi 0, %s578
      %s579 = sphi 0, %s576
      %s580 = sphi 0, %s579
      %s596 = sphi 0, %s580
      %s602 = sphi 0, %s604
      %s605 = sphi 0, %s602
      %s606 = sphi 0, %s605
      %s622 = sphi 0, %s606
    $region4: #{rna3d_forward.13} parent=1 // loop_header_branch
      %39 = sbr.rel (%p37) target = $region8
    $region5: #{rna3d_forward.13} parent=1 // loop_body
      %s41 = ssub.s32 %s36, 1
      %s42 = ssub.s32 %s36, 2
      %s43 = sadd.s32 %s36, 1
      %s44 = ssub.s32 %s36, %s43
      %p45 = scmp.eq.s32.totalorder %s44, 0
      %s47 = sadd.s32 %s46, 1
      %s48 = scalar_select %p45, %s46, %s47
      %p51 = pneg %p45
      %p52 = scmp.eq.s32.totalorder %s36, 1
      %p53 = por %p51, %p52
      %p54 = scmp.ne.s32.totalorder %s46, %s49
      %p55 = scmp.eq.s32.totalorder %s36, 0
      %p56 = por %p54, %p55
      %p57 = scmp.ne.s32.totalorder %s46, %s49
      %p58 = scmp.eq.s32.totalorder %s41, 1
      %p59 = por %p57, %p58
      %p60 = scmp.ne.s32.totalorder %s49, %s50
      %p61 = scmp.eq.s32.totalorder %s41, 0
      %p62 = por %p60, %p61
      %p63 = scmp.ne.s32.totalorder %s49, %s50
      %p64 = scmp.eq.s32.totalorder %s42, 1
      %p65 = por %p63, %p64
      %p67 = scmp.ne.s32.totalorder %s50, %s66
      %p68 = scmp.eq.s32.totalorder %s42, 0
      %p69 = por %p67, %p68
      %s71 = sadd.s32 %s70, 1
      %p74 = scmp.eq.s32.totalorder %s36, 1
      %p75 = scmp.ne.s32.totalorder %s70, %s72
      %p76 = scmp.eq.s32.totalorder %s36, 0
      %p77 = por %p75, %p76
      %p78 = scmp.ne.s32.totalorder %s70, %s72
      %p79 = scmp.eq.s32.totalorder %s41, 1
      %p80 = por %p78, %p79
      %p81 = scmp.ne.s32.totalorder %s72, %s73
      %p82 = scmp.eq.s32.totalorder %s41, 0
      %p83 = por %p81, %p82
      %p84 = scmp.ne.s32.totalorder %s72, %s73
      %p85 = scmp.eq.s32.totalorder %s42, 1
      %p86 = por %p84, %p85
      %p88 = scmp.ne.s32.totalorder %s73, %s87
      %p89 = scmp.eq.s32.totalorder %s42, 0
      %p90 = por %p88, %p89
      %s92 = sadd.s32 %s91, 1
      %p95 = scmp.eq.s32.totalorder %s36, 1
      %p96 = scmp.ne.s32.totalorder %s91, %s93
      %p97 = scmp.eq.s32.totalorder %s36, 0
      %p98 = por %p96, %p97
      %p99 = scmp.ne.s32.totalorder %s91, %s93
      %p100 = scmp.eq.s32.totalorder %s41, 1
      %p101 = por %p99, %p100
      %p102 = scmp.ne.s32.totalorder %s93, %s94
      %p103 = scmp.eq.s32.totalorder %s41, 0
      %p104 = por %p102, %p103
      %p105 = scmp.ne.s32.totalorder %s93, %s94
      %p106 = scmp.eq.s32.totalorder %s42, 1
      %p107 = por %p105, %p106
      %p109 = scmp.ne.s32.totalorder %s94, %s108
      %p110 = scmp.eq.s32.totalorder %s42, 0
      %p111 = por %p109, %p110
      %s113 = sadd.s32 %s112, 1
      %p116 = scmp.eq.s32.totalorder %s36, 1
      %p117 = scmp.ne.s32.totalorder %s112, %s114
      %p118 = scmp.eq.s32.totalorder %s36, 0
      %p119 = por %p117, %p118
      %p120 = scmp.ne.s32.totalorder %s112, %s114
      %p121 = scmp.eq.s32.totalorder %s41, 1
      %p122 = por %p120, %p121
      %p123 = scmp.ne.s32.totalorder %s114, %s115
      %p124 = scmp.eq.s32.totalorder %s41, 0
      %p125 = por %p123, %p124
      %p126 = scmp.ne.s32.totalorder %s114, %s115
      %p127 = scmp.eq.s32.totalorder %s42, 1
      %p128 = por %p126, %p127
      %p130 = scmp.ne.s32.totalorder %s115, %s129
      %p131 = scmp.eq.s32.totalorder %s42, 0
      %p132 = por %p130, %p131
      %s134 = sadd.s32 %s133, 1
      %p137 = scmp.eq.s32.totalorder %s36, 1
      %p138 = scmp.ne.s32.totalorder %s133, %s135
      %p139 = scmp.eq.s32.totalorder %s36, 0
      %p140 = por %p138, %p139
      %p141 = scmp.ne.s32.totalorder %s133, %s135
      %p142 = scmp.eq.s32.totalorder %s41, 1
      %p143 = por %p141, %p142
      %p144 = scmp.ne.s32.totalorder %s135, %s136
      %p145 = scmp.eq.s32.totalorder %s41, 0
      %p146 = por %p144, %p145
      %p147 = scmp.ne.s32.totalorder %s135, %s136
      %p148 = scmp.eq.s32.totalorder %s42, 1
      %p149 = por %p147, %p148
      %p151 = scmp.ne.s32.totalorder %s136, %s150
      %p152 = scmp.eq.s32.totalorder %s42, 0
      %p153 = por %p151, %p152
      %s155 = sadd.s32 %s154, 1
      %p158 = scmp.eq.s32.totalorder %s36, 1
      %p159 = scmp.ne.s32.totalorder %s154, %s156
      %p160 = scmp.eq.s32.totalorder %s36, 0
      %p161 = por %p159, %p160
      %p162 = scmp.ne.s32.totalorder %s154, %s156
      %p163 = scmp.eq.s32.totalorder %s41, 1
      %p164 = por %p162, %p163
      %p165 = scmp.ne.s32.totalorder %s156, %s157
      %p166 = scmp.eq.s32.totalorder %s41, 0
      %p167 = por %p165, %p166
      %p168 = scmp.ne.s32.totalorder %s156, %s157
      %p169 = scmp.eq.s32.totalorder %s42, 1
      %p170 = por %p168, %p169
      %p172 = scmp.ne.s32.totalorder %s157, %s171
      %p173 = scmp.eq.s32.totalorder %s42, 0
      %p174 = por %p172, %p173
      %s176 = sadd.s32 %s175, 1
      %p179 = scmp.eq.s32.totalorder %s36, 1
      %p180 = scmp.ne.s32.totalorder %s175, %s177
      %p181 = scmp.eq.s32.totalorder %s36, 0
      %p182 = por %p180, %p181
      %p183 = scmp.ne.s32.totalorder %s175, %s177
      %p184 = scmp.eq.s32.totalorder %s41, 1
      %p185 = por %p183, %p184
      %p186 = scmp.ne.s32.totalorder %s177, %s178
      %p187 = scmp.eq.s32.totalorder %s41, 0
      %p188 = por %p186, %p187
      %p189 = scmp.ne.s32.totalorder %s177, %s178
      %p190 = scmp.eq.s32.totalorder %s42, 1
      %p191 = por %p189, %p190
      %p193 = scmp.ne.s32.totalorder %s178, %s192
      %p194 = scmp.eq.s32.totalorder %s42, 0
      %p195 = por %p193, %p194
      %s197 = sadd.s32 %s196, 1
      %p200 = scmp.eq.s32.totalorder %s36, 1
      %p201 = scmp.ne.s32.totalorder %s196, %s198
      %p202 = scmp.eq.s32.totalorder %s36, 0
      %p203 = por %p201, %p202
      %p204 = scmp.ne.s32.totalorder %s196, %s198
      %p205 = scmp.eq.s32.totalorder %s41, 1
      %p206 = por %p204, %p205
      %p207 = scmp.ne.s32.totalorder %s198, %s199
      %p208 = scmp.eq.s32.totalorder %s41, 0
      %p209 = por %p207, %p208
      %p210 = scmp.ne.s32.totalorder %s198, %s199
      %p211 = scmp.eq.s32.totalorder %s42, 1
      %p212 = por %p210, %p211
      %p214 = scmp.ne.s32.totalorder %s199, %s213
      %p215 = scmp.eq.s32.totalorder %s42, 0
      %p216 = por %p214, %p215
      %s218 = sadd.s32 %s217, 1
      %p221 = scmp.eq.s32.totalorder %s36, 1
      %p222 = scmp.ne.s32.totalorder %s217, %s219
      %p223 = scmp.eq.s32.totalorder %s36, 0
      %p224 = por %p222, %p223
      %p225 = scmp.ne.s32.totalorder %s217, %s219
      %p226 = scmp.eq.s32.totalorder %s41, 1
      %p227 = por %p225, %p226
      %p228 = scmp.ne.s32.totalorder %s219, %s220
      %p229 = scmp.eq.s32.totalorder %s41, 0
      %p230 = por %p228, %p229
      %p231 = scmp.ne.s32.totalorder %s219, %s220
      %p232 = scmp.eq.s32.totalorder %s42, 1
      %p233 = por %p231, %p232
      %p235 = scmp.ne.s32.totalorder %s220, %s234
      %p236 = scmp.eq.s32.totalorder %s42, 0
      %p237 = por %p235, %p236
      %s239 = sadd.s32 %s238, 1
      %p242 = scmp.eq.s32.totalorder %s36, 1
      %p243 = scmp.ne.s32.totalorder %s238, %s240
      %p244 = scmp.eq.s32.totalorder %s36, 0
      %p245 = por %p243, %p244
      %p246 = scmp.ne.s32.totalorder %s238, %s240
      %p247 = scmp.eq.s32.totalorder %s41, 1
      %p248 = por %p246, %p247
      %p249 = scmp.ne.s32.totalorder %s240, %s241
      %p250 = scmp.eq.s32.totalorder %s41, 0
      %p251 = por %p249, %p250
      %p252 = scmp.ne.s32.totalorder %s240, %s241
      %p253 = scmp.eq.s32.totalorder %s42, 1
      %p254 = por %p252, %p253
      %p256 = scmp.ne.s32.totalorder %s241, %s255
      %p257 = scmp.eq.s32.totalorder %s42, 0
      %p258 = por %p256, %p257
      %s260 = sadd.s32 %s259, 1
      %p263 = scmp.eq.s32.totalorder %s36, 1
      %p264 = scmp.ne.s32.totalorder %s259, %s261
      %p265 = scmp.eq.s32.totalorder %s36, 0
      %p266 = por %p264, %p265
      %p267 = scmp.ne.s32.totalorder %s259, %s261
      %p268 = scmp.eq.s32.totalorder %s41, 1
      %p269 = por %p267, %p268
      %p270 = scmp.ne.s32.totalorder %s261, %s262
      %p271 = scmp.eq.s32.totalorder %s41, 0
      %p272 = por %p270, %p271
      %p273 = scmp.ne.s32.totalorder %s261, %s262
      %p274 = scmp.eq.s32.totalorder %s42, 1
      %p275 = por %p273, %p274
      %p277 = scmp.ne.s32.totalorder %s262, %s276
      %p278 = scmp.eq.s32.totalorder %s42, 0
      %p279 = por %p277, %p278
      %s281 = sadd.s32 %s280, 1
      %p284 = scmp.eq.s32.totalorder %s36, 1
      %p285 = scmp.ne.s32.totalorder %s280, %s282
      %p286 = scmp.eq.s32.totalorder %s36, 0
      %p287 = por %p285, %p286
      %p288 = scmp.ne.s32.totalorder %s280, %s282
      %p289 = scmp.eq.s32.totalorder %s41, 1
      %p290 = por %p288, %p289
      %p291 = scmp.ne.s32.totalorder %s282, %s283
      %p292 = scmp.eq.s32.totalorder %s41, 0
      %p293 = por %p291, %p292
      %p294 = scmp.ne.s32.totalorder %s282, %s283
      %p295 = scmp.eq.s32.totalorder %s42, 1
      %p296 = por %p294, %p295
      %p298 = scmp.ne.s32.totalorder %s283, %s297
      %p299 = scmp.eq.s32.totalorder %s42, 0
      %p300 = por %p298, %p299
      %s302 = sadd.s32 %s301, 1
      %p305 = scmp.eq.s32.totalorder %s36, 1
      %p306 = scmp.ne.s32.totalorder %s301, %s303
      %p307 = scmp.eq.s32.totalorder %s36, 0
      %p308 = por %p306, %p307
      %p309 = scmp.ne.s32.totalorder %s301, %s303
      %p310 = scmp.eq.s32.totalorder %s41, 1
      %p311 = por %p309, %p310
      %p312 = scmp.ne.s32.totalorder %s303, %s304
      %p313 = scmp.eq.s32.totalorder %s41, 0
      %p314 = por %p312, %p313
      %p315 = scmp.ne.s32.totalorder %s303, %s304
      %p316 = scmp.eq.s32.totalorder %s42, 1
      %p317 = por %p315, %p316
      %p319 = scmp.ne.s32.totalorder %s304, %s318
      %p320 = scmp.eq.s32.totalorder %s42, 0
      %p321 = por %p319, %p320
      %s323 = sadd.s32 %s322, 1
      %p326 = scmp.eq.s32.totalorder %s36, 1
      %p327 = scmp.ne.s32.totalorder %s322, %s324
      %p328 = scmp.eq.s32.totalorder %s36, 0
      %p329 = por %p327, %p328
      %p330 = scmp.ne.s32.totalorder %s322, %s324
      %p331 = scmp.eq.s32.totalorder %s41, 1
      %p332 = por %p330, %p331
      %p333 = scmp.ne.s32.totalorder %s324, %s325
      %p334 = scmp.eq.s32.totalorder %s41, 0
      %p335 = por %p333, %p334
      %p336 = scmp.ne.s32.totalorder %s324, %s325
      %p337 = scmp.eq.s32.totalorder %s42, 1
      %p338 = por %p336, %p337
      %p340 = scmp.ne.s32.totalorder %s325, %s339
      %p341 = scmp.eq.s32.totalorder %s42, 0
      %p342 = por %p340, %p341
      %s344 = sadd.s32 %s343, 1
      %p347 = scmp.eq.s32.totalorder %s36, 1
      %p348 = scmp.ne.s32.totalorder %s343, %s345
      %p349 = scmp.eq.s32.totalorder %s36, 0
      %p350 = por %p348, %p349
      %p351 = scmp.ne.s32.totalorder %s343, %s345
      %p352 = scmp.eq.s32.totalorder %s41, 1
      %p353 = por %p351, %p352
      %p354 = scmp.ne.s32.totalorder %s345, %s346
      %p355 = scmp.eq.s32.totalorder %s41, 0
      %p356 = por %p354, %p355
      %p357 = scmp.ne.s32.totalorder %s345, %s346
      %p358 = scmp.eq.s32.totalorder %s42, 1
      %p359 = por %p357, %p358
      %p361 = scmp.ne.s32.totalorder %s346, %s360
      %p362 = scmp.eq.s32.totalorder %s42, 0
      %p363 = por %p361, %p362
      %s365 = sadd.s32 %s364, 1
      %p368 = scmp.eq.s32.totalorder %s36, 1
      %p369 = scmp.ne.s32.totalorder %s364, %s366
      %p370 = scmp.eq.s32.totalorder %s36, 0
      %p371 = por %p369, %p370
      %p372 = scmp.ne.s32.totalorder %s364, %s366
      %p373 = scmp.eq.s32.totalorder %s41, 1
      %p374 = por %p372, %p373
      %p375 = scmp.ne.s32.totalorder %s366, %s367
      %p376 = scmp.eq.s32.totalorder %s41, 0
      %p377 = por %p375, %p376
      %p378 = scmp.ne.s32.totalorder %s366, %s367
      %p379 = scmp.eq.s32.totalorder %s42, 1
      %p380 = por %p378, %p379
      %p382 = scmp.ne.s32.totalorder %s367, %s381
      %p383 = scmp.eq.s32.totalorder %s42, 0
      %p384 = por %p382, %p383
      %s386 = sadd.s32 %s385, 1
      %p389 = scmp.eq.s32.totalorder %s36, 1
      %p390 = scmp.ne.s32.totalorder %s385, %s387
      %p391 = scmp.eq.s32.totalorder %s36, 0
      %p392 = por %p390, %p391
      %p393 = scmp.ne.s32.totalorder %s385, %s387
      %p394 = scmp.eq.s32.totalorder %s41, 1
      %p395 = por %p393, %p394
      %p396 = scmp.ne.s32.totalorder %s387, %s388
      %p397 = scmp.eq.s32.totalorder %s41, 0
      %p398 = por %p396, %p397
      %p399 = scmp.ne.s32.totalorder %s387, %s388
      %p400 = scmp.eq.s32.totalorder %s42, 1
      %p401 = por %p399, %p400
      %p403 = scmp.ne.s32.totalorder %s388, %s402
      %p404 = scmp.eq.s32.totalorder %s42, 0
      %p405 = por %p403, %p404
      %s407 = sadd.s32 %s406, 1
      %p410 = scmp.eq.s32.totalorder %s36, 1
      %p411 = scmp.ne.s32.totalorder %s406, %s408
      %p412 = scmp.eq.s32.totalorder %s36, 0
      %p413 = por %p411, %p412
      %p414 = scmp.ne.s32.totalorder %s406, %s408
      %p415 = scmp.eq.s32.totalorder %s41, 1
      %p416 = por %p414, %p415
      %p417 = scmp.ne.s32.totalorder %s408, %s409
      %p418 = scmp.eq.s32.totalorder %s41, 0
      %p419 = por %p417, %p418
      %p420 = scmp.ne.s32.totalorder %s408, %s409
      %p421 = scmp.eq.s32.totalorder %s42, 1
      %p422 = por %p420, %p421
      %p424 = scmp.ne.s32.totalorder %s409, %s423
      %p425 = scmp.eq.s32.totalorder %s42, 0
      %p426 = por %p424, %p425
      %s428 = sadd.s32 %s427, 1
      %p431 = scmp.eq.s32.totalorder %s36, 1
      %p432 = scmp.ne.s32.totalorder %s427, %s429
      %p433 = scmp.eq.s32.totalorder %s36, 0
      %p434 = por %p432, %p433
      %p435 = scmp.ne.s32.totalorder %s427, %s429
      %p436 = scmp.eq.s32.totalorder %s41, 1
      %p437 = por %p435, %p436
      %p438 = scmp.ne.s32.totalorder %s429, %s430
      %p439 = scmp.eq.s32.totalorder %s41, 0
      %p440 = por %p438, %p439
      %p441 = scmp.ne.s32.totalorder %s429, %s430
      %p442 = scmp.eq.s32.totalorder %s42, 1
      %p443 = por %p441, %p442
      %p445 = scmp.ne.s32.totalorder %s430, %s444
      %p446 = scmp.eq.s32.totalorder %s42, 0
      %p447 = por %p445, %p446
      %s449 = sadd.s32 %s448, 1
      %p452 = scmp.eq.s32.totalorder %s36, 1
      %p453 = scmp.ne.s32.totalorder %s448, %s450
      %p454 = scmp.eq.s32.totalorder %s36, 0
      %p455 = por %p453, %p454
      %p456 = scmp.ne.s32.totalorder %s448, %s450
      %p457 = scmp.eq.s32.totalorder %s41, 1
      %p458 = por %p456, %p457
      %p459 = scmp.ne.s32.totalorder %s450, %s451
      %p460 = scmp.eq.s32.totalorder %s41, 0
      %p461 = por %p459, %p460
      %p462 = scmp.ne.s32.totalorder %s450, %s451
      %p463 = scmp.eq.s32.totalorder %s42, 1
      %p464 = por %p462, %p463
      %p466 = scmp.ne.s32.totalorder %s451, %s465
      %p467 = scmp.eq.s32.totalorder %s42, 0
      %p468 = por %p466, %p467
      %s470 = sadd.s32 %s469, 1
      %p473 = scmp.eq.s32.totalorder %s36, 1
      %p474 = scmp.ne.s32.totalorder %s469, %s471
      %p475 = scmp.eq.s32.totalorder %s36, 0
      %p476 = por %p474, %p475
      %p477 = scmp.ne.s32.totalorder %s469, %s471
      %p478 = scmp.eq.s32.totalorder %s41, 1
      %p479 = por %p477, %p478
      %p480 = scmp.ne.s32.totalorder %s471, %s472
      %p481 = scmp.eq.s32.totalorder %s41, 0
      %p482 = por %p480, %p481
      %p483 = scmp.ne.s32.totalorder %s471, %s472
      %p484 = scmp.eq.s32.totalorder %s42, 1
      %p485 = por %p483, %p484
      %p487 = scmp.ne.s32.totalorder %s472, %s486
      %p488 = scmp.eq.s32.totalorder %s42, 0
      %p489 = por %p487, %p488
      %s491 = sadd.s32 %s490, 1
      %p494 = scmp.eq.s32.totalorder %s36, 1
      %p495 = scmp.ne.s32.totalorder %s490, %s492
      %p496 = scmp.eq.s32.totalorder %s36, 0
      %p497 = por %p495, %p496
      %p498 = scmp.ne.s32.totalorder %s490, %s492
      %p499 = scmp.eq.s32.totalorder %s41, 1
      %p500 = por %p498, %p499
      %p501 = scmp.ne.s32.totalorder %s492, %s493
      %p502 = scmp.eq.s32.totalorder %s41, 0
      %p503 = por %p501, %p502
      %p504 = scmp.ne.s32.totalorder %s492, %s493
      %p505 = scmp.eq.s32.totalorder %s42, 1
      %p506 = por %p504, %p505
      %p508 = scmp.ne.s32.totalorder %s493, %s507
      %p509 = scmp.eq.s32.totalorder %s42, 0
      %p510 = por %p508, %p509
      %s512 = sadd.s32 %s511, 1
      %p515 = scmp.eq.s32.totalorder %s36, 1
      %p516 = scmp.ne.s32.totalorder %s511, %s513
      %p517 = scmp.eq.s32.totalorder %s36, 0
      %p518 = por %p516, %p517
      %p519 = scmp.ne.s32.totalorder %s511, %s513
      %p520 = scmp.eq.s32.totalorder %s41, 1
      %p521 = por %p519, %p520
      %p522 = scmp.ne.s32.totalorder %s513, %s514
      %p523 = scmp.eq.s32.totalorder %s41, 0
      %p524 = por %p522, %p523
      %p525 = scmp.ne.s32.totalorder %s513, %s514
      %p526 = scmp.eq.s32.totalorder %s42, 1
      %p527 = por %p525, %p526
      %p529 = scmp.ne.s32.totalorder %s514, %s528
      %p530 = scmp.eq.s32.totalorder %s42, 0
      %p531 = por %p529, %p530
      %s533 = sadd.s32 %s532, 1
      %p536 = scmp.eq.s32.totalorder %s36, 1
      %p537 = scmp.ne.s32.totalorder %s532, %s534
      %p538 = scmp.eq.s32.totalorder %s36, 0
      %p539 = por %p537, %p538
      %p540 = scmp.ne.s32.totalorder %s532, %s534
      %p541 = scmp.eq.s32.totalorder %s41, 1
      %p542 = por %p540, %p541
      %p543 = scmp.ne.s32.totalorder %s534, %s535
      %p544 = scmp.eq.s32.totalorder %s41, 0
      %p545 = por %p543, %p544
      %p546 = scmp.ne.s32.totalorder %s534, %s535
      %p547 = scmp.eq.s32.totalorder %s42, 1
      %p548 = por %p546, %p547
      %p550 = scmp.ne.s32.totalorder %s535, %s549
      %p551 = scmp.eq.s32.totalorder %s42, 0
      %p552 = por %p550, %p551
      %s554 = sadd.s32 %s553, 1
      %p557 = scmp.eq.s32.totalorder %s36, 1
      %p558 = scmp.ne.s32.totalorder %s553, %s555
      %p559 = scmp.eq.s32.totalorder %s36, 0
      %p560 = por %p558, %p559
      %p561 = scmp.ne.s32.totalorder %s553, %s555
      %p562 = scmp.eq.s32.totalorder %s41, 1
      %p563 = por %p561, %p562
      %p564 = scmp.ne.s32.totalorder %s555, %s556
      %p565 = scmp.eq.s32.totalorder %s41, 0
      %p566 = por %p564, %p565
      %p567 = scmp.ne.s32.totalorder %s555, %s556
      %p568 = scmp.eq.s32.totalorder %s42, 1
      %p569 = por %p567, %p568
      %p571 = scmp.ne.s32.totalorder %s556, %s570
      %p572 = scmp.eq.s32.totalorder %s42, 0
      %p573 = por %p571, %p572
      %s574 = ssub.s32 %s36, %s43
      %p575 = scmp.eq.s32.totalorder %s574, 0
      %s577 = sadd.s32 %s576, 1
      %s578 = scalar_select %p575, %s576, %s577
      %p581 = pneg %p575
      %p582 = scmp.eq.s32.totalorder %s36, 1
      %p583 = por %p581, %p582
      %p584 = scmp.ne.s32.totalorder %s576, %s579
      %p585 = scmp.eq.s32.totalorder %s36, 0
      %p586 = por %p584, %p585
      %p587 = scmp.ne.s32.totalorder %s576, %s579
      %p588 = scmp.eq.s32.totalorder %s41, 1
      %p589 = por %p587, %p588
      %p590 = scmp.ne.s32.totalorder %s579, %s580
      %p591 = scmp.eq.s32.totalorder %s41, 0
      %p592 = por %p590, %p591
      %p593 = scmp.ne.s32.totalorder %s579, %s580
      %p594 = scmp.eq.s32.totalorder %s42, 1
      %p595 = por %p593, %p594
      %p597 = scmp.ne.s32.totalorder %s580, %s596
      %p598 = scmp.eq.s32.totalorder %s42, 0
      %p599 = por %p597, %p598
      %s600 = ssub.s32 %s36, %s43
      %p601 = scmp.eq.s32.totalorder %s600, 0
      %s603 = sadd.s32 %s602, 1
      %s604 = scalar_select %p601, %s602, %s603
      %p607 = pneg %p601
      %p608 = scmp.eq.s32.totalorder %s36, 1
      %p609 = por %p607, %p608
      %p610 = scmp.ne.s32.totalorder %s602, %s605
      %p611 = scmp.eq.s32.totalorder %s36, 0
      %p612 = por %p610, %p611
      %p613 = scmp.ne.s32.totalorder %s602, %s605
      %p614 = scmp.eq.s32.totalorder %s41, 1
      %p615 = por %p613, %p614
      %p616 = scmp.ne.s32.totalorder %s605, %s606
      %p617 = scmp.eq.s32.totalorder %s41, 0
      %p618 = por %p616, %p617
      %p619 = scmp.ne.s32.totalorder %s605, %s606
      %p620 = scmp.eq.s32.totalorder %s42, 1
      %p621 = por %p619, %p620
      %p623 = scmp.ne.s32.totalorder %s606, %s622
      %p624 = scmp.eq.s32.totalorder %s42, 0
      %p625 = por %p623, %p624
      %p626 = scmp.le.s32.totalorder 1, %s36
      %p627 = scmp.lt.s32.totalorder %s36, 3
      %p628 = pnand %p626, %p627
      %p629 = pneg %p628
      // Predicated region
      $region9: #{rna3d_forward.13} parent=5 // pred_check
        _
      $region10: #{rna3d_forward.13} parent=5 // pred_check_branch
        %631 = sbr.rel (%p628) target = $region12
      $region11: #{rna3d_forward.13} parent=5 // pred_region
        %s632 = ssub.s32 %s36, 1
        // Predicated region
        $region13: #{rna3d_forward.13} parent=11 // pred_check
          %p633 = pneg %p83
        $region14: #{rna3d_forward.13} parent=11 // pred_check_branch
          %635 = sbr.rel (%p633) target = $region16
        $region15: #{rna3d_forward.13} parent=11 // pred_region
          _
        $region16: #{rna3d_forward.13} parent=11 // pred_fallthru
          _
        // Predicated region
        $region17: #{rna3d_forward.13} parent=11 // pred_check
          %p636 = pneg %p104
        $region18: #{rna3d_forward.13} parent=11 // pred_check_branch
          %638 = sbr.rel (%p636) target = $region20
        $region19: #{rna3d_forward.13} parent=11 // pred_region
          _
        $region20: #{rna3d_forward.13} parent=11 // pred_fallthru
          _
        // Predicated region
        $region21: #{rna3d_forward.13} parent=11 // pred_check
          %p639 = pneg %p125
        $region22: #{rna3d_forward.13} parent=11 // pred_check_branch
          %641 = sbr.rel (%p639) target = $region24
        $region23: #{rna3d_forward.13} parent=11 // pred_region
          _
        $region24: #{rna3d_forward.13} parent=11 // pred_fallthru
          _
        // Predicated region
        $region25: #{rna3d_forward.13} parent=11 // pred_check
          %p642 = pneg %p146
        $region26: #{rna3d_forward.13} parent=11 // pred_check_branch
          %644 = sbr.rel (%p642) target = $region28
        $region27: #{rna3d_forward.13} parent=11 // pred_region
          _
        $region28: #{rna3d_forward.13} parent=11 // pred_fallthru
          _
        // Predicated region
        $region29: #{rna3d_forward.13} parent=11 // pred_check
          %p645 = pneg %p167
        $region30: #{rna3d_forward.13} parent=11 // pred_check_branch
          %647 = sbr.rel (%p645) target = $region32
        $region31: #{rna3d_forward.13} parent=11 // pred_region
          _
        $region32: #{rna3d_forward.13} parent=11 // pred_fallthru
          _
        // Predicated region
        $region33: #{rna3d_forward.13} parent=11 // pred_check
          %p648 = pneg %p188
        $region34: #{rna3d_forward.13} parent=11 // pred_check_branch
          %650 = sbr.rel (%p648) target = $region36
        $region35: #{rna3d_forward.13} parent=11 // pred_region
          _
        $region36: #{rna3d_forward.13} parent=11 // pred_fallthru
          _
        // Predicated region
        $region37: #{rna3d_forward.13} parent=11 // pred_check
          %p651 = pneg %p209
        $region38: #{rna3d_forward.13} parent=11 // pred_check_branch
          %653 = sbr.rel (%p651) target = $region40
        $region39: #{rna3d_forward.13} parent=11 // pred_region
          _
        $region40: #{rna3d_forward.13} parent=11 // pred_fallthru
          _
        // Predicated region
        $region41: #{rna3d_forward.13} parent=11 // pred_check
          %p654 = pneg %p230
        $region42: #{rna3d_forward.13} parent=11 // pred_check_branch
          %656 = sbr.rel (%p654) target = $region44
        $region43: #{rna3d_forward.13} parent=11 // pred_region
          _
        $region44: #{rna3d_forward.13} parent=11 // pred_fallthru
          _
        // Predicated region
        $region45: #{rna3d_forward.13} parent=11 // pred_check
          %p657 = pneg %p251
        $region46: #{rna3d_forward.13} parent=11 // pred_check_branch
          %659 = sbr.rel (%p657) target = $region48
        $region47: #{rna3d_forward.13} parent=11 // pred_region
          _
        $region48: #{rna3d_forward.13} parent=11 // pred_fallthru
          _
        // Predicated region
        $region49: #{rna3d_forward.13} parent=11 // pred_check
          %p660 = pneg %p272
        $region50: #{rna3d_forward.13} parent=11 // pred_check_branch
          %662 = sbr.rel (%p660) target = $region52
        $region51: #{rna3d_forward.13} parent=11 // pred_region
          _
        $region52: #{rna3d_forward.13} parent=11 // pred_fallthru
          _
        // Predicated region
        $region53: #{rna3d_forward.13} parent=11 // pred_check
          %p663 = pneg %p293
        $region54: #{rna3d_forward.13} parent=11 // pred_check_branch
          %665 = sbr.rel (%p663) target = $region56
        $region55: #{rna3d_forward.13} parent=11 // pred_region
          _
        $region56: #{rna3d_forward.13} parent=11 // pred_fallthru
          _
        // Predicated region
        $region57: #{rna3d_forward.13} parent=11 // pred_check
          %p666 = pneg %p314
        $region58: #{rna3d_forward.13} parent=11 // pred_check_branch
          %668 = sbr.rel (%p666) target = $region60
        $region59: #{rna3d_forward.13} parent=11 // pred_region
          _
        $region60: #{rna3d_forward.13} parent=11 // pred_fallthru
          _
        // Predicated region
        $region61: #{rna3d_forward.13} parent=11 // pred_check
          %p669 = pneg %p335
        $region62: #{rna3d_forward.13} parent=11 // pred_check_branch
          %671 = sbr.rel (%p669) target = $region64
        $region63: #{rna3d_forward.13} parent=11 // pred_region
          _
        $region64: #{rna3d_forward.13} parent=11 // pred_fallthru
          _
        // Predicated region
        $region65: #{rna3d_forward.13} parent=11 // pred_check
          %p672 = pneg %p356
        $region66: #{rna3d_forward.13} parent=11 // pred_check_branch
          %674 = sbr.rel (%p672) target = $region68
        $region67: #{rna3d_forward.13} parent=11 // pred_region
          _
        $region68: #{rna3d_forward.13} parent=11 // pred_fallthru
          _
        // Predicated region
        $region69: #{rna3d_forward.13} parent=11 // pred_check
          %p675 = pneg %p377
        $region70: #{rna3d_forward.13} parent=11 // pred_check_branch
          %677 = sbr.rel (%p675) target = $region72
        $region71: #{rna3d_forward.13} parent=11 // pred_region
          _
        $region72: #{rna3d_forward.13} parent=11 // pred_fallthru
          _
        // Predicated region
        $region73: #{rna3d_forward.13} parent=11 // pred_check
          %p678 = pneg %p398
        $region74: #{rna3d_forward.13} parent=11 // pred_check_branch
          %680 = sbr.rel (%p678) target = $region76
        $region75: #{rna3d_forward.13} parent=11 // pred_region
          _
        $region76: #{rna3d_forward.13} parent=11 // pred_fallthru
          _
        // Predicated region
        $region77: #{rna3d_forward.13} parent=11 // pred_check
          %p681 = pneg %p419
        $region78: #{rna3d_forward.13} parent=11 // pred_check_branch
          %683 = sbr.rel (%p681) target = $region80
        $region79: #{rna3d_forward.13} parent=11 // pred_region
          _
        $region80: #{rna3d_forward.13} parent=11 // pred_fallthru
          _
        // Predicated region
        $region81: #{rna3d_forward.13} parent=11 // pred_check
          %p684 = pneg %p440
        $region82: #{rna3d_forward.13} parent=11 // pred_check_branch
          %686 = sbr.rel (%p684) target = $region84
        $region83: #{rna3d_forward.13} parent=11 // pred_region
          _
        $region84: #{rna3d_forward.13} parent=11 // pred_fallthru
          _
        // Predicated region
        $region85: #{rna3d_forward.13} parent=11 // pred_check
          %p687 = pneg %p461
        $region86: #{rna3d_forward.13} parent=11 // pred_check_branch
          %689 = sbr.rel (%p687) target = $region88
        $region87: #{rna3d_forward.13} parent=11 // pred_region
          _
        $region88: #{rna3d_forward.13} parent=11 // pred_fallthru
          _
        // Predicated region
        $region89: #{rna3d_forward.13} parent=11 // pred_check
          %p690 = pneg %p482
        $region90: #{rna3d_forward.13} parent=11 // pred_check_branch
          %692 = sbr.rel (%p690) target = $region92
        $region91: #{rna3d_forward.13} parent=11 // pred_region
          _
        $region92: #{rna3d_forward.13} parent=11 // pred_fallthru
          _
        // Predicated region
        $region93: #{rna3d_forward.13} parent=11 // pred_check
          %p693 = pneg %p503
        $region94: #{rna3d_forward.13} parent=11 // pred_check_branch
          %695 = sbr.rel (%p693) target = $region96
        $region95: #{rna3d_forward.13} parent=11 // pred_region
          _
        $region96: #{rna3d_forward.13} parent=11 // pred_fallthru
          _
        // Predicated region
        $region97: #{rna3d_forward.13} parent=11 // pred_check
          %p696 = pneg %p524
        $region98: #{rna3d_forward.13} parent=11 // pred_check_branch
          %698 = sbr.rel (%p696) target = $region100
        $region99: #{rna3d_forward.13} parent=11 // pred_region
          _
        $region100: #{rna3d_forward.13} parent=11 // pred_fallthru
          _
        // Predicated region
        $region101: #{rna3d_forward.13} parent=11 // pred_check
          %p699 = pneg %p545
        $region102: #{rna3d_forward.13} parent=11 // pred_check_branch
          %701 = sbr.rel (%p699) target = $region104
        $region103: #{rna3d_forward.13} parent=11 // pred_region
          _
        $region104: #{rna3d_forward.13} parent=11 // pred_fallthru
          _
        // Predicated region
        $region105: #{rna3d_forward.13} parent=11 // pred_check
          %p702 = pneg %p566
        $region106: #{rna3d_forward.13} parent=11 // pred_check_branch
          %704 = sbr.rel (%p702) target = $region108
        $region107: #{rna3d_forward.13} parent=11 // pred_region
          _
        $region108: #{rna3d_forward.13} parent=11 // pred_fallthru
          _
      $region12: #{rna3d_forward.13} parent=5 // pred_fallthru
        _
      %p705 = scmp.lt.s32.totalorder %s36, 2
      // Predicated region
      $region109: #{rna3d_forward.13} parent=5 // pred_check
        %p706 = pneg %p705
      $region110: #{rna3d_forward.13} parent=5 // pred_check_branch
        %708 = sbr.rel (%p706) target = $region112
      $region111: #{rna3d_forward.13} parent=5 // pred_region
        // Predicated region
        $region113: #{rna3d_forward.13} parent=111 // pred_check
          %p709 = pneg %p56
        $region114: #{rna3d_forward.13} parent=111 // pred_check_branch
          %711 = sbr.rel (%p709) target = $region116
        $region115: #{rna3d_forward.13} parent=111 // pred_region
          %p712 = scmp.lt.s32.totalorder %s36, 1
          %s713 = scalar_select %p712, %s36, 1
          %s714 = smul.addr %s713, 8
          %s715 = scalar_lea.vmem %s0, %s714
        $region116: #{rna3d_forward.13} parent=111 // pred_fallthru
          _
      $region112: #{rna3d_forward.13} parent=5 // pred_fallthru
        _
      %p716 = scmp.le.s32.totalorder 1, %s36
      %p717 = scmp.lt.s32.totalorder %s36, 3
      %p718 = pnand %p716, %p717
      %p719 = pneg %p718
      // Predicated region
      $region117: #{rna3d_forward.13} parent=5 // pred_check
        _
      $region118: #{rna3d_forward.13} parent=5 // pred_check_branch
        %721 = sbr.rel (%p718) target = $region120
      $region119: #{rna3d_forward.13} parent=5 // pred_region
        %s722 = ssub.s32 %s36, 1
        %p723 = scmp.lt.s32.totalorder %s41, 1
        %s724 = scalar_select %p723, %s41, 1
        %s725 = smul.addr %s724, 8
        %s726 = scalar_lea.vmem %s0, %s725
        %p727 = pneg %p62
        %p728 = pneg %p59
        %p729 = pneg %p83
        %p730 = pneg %p80
        %p731 = pneg %p104
        %p732 = pneg %p101
        %p733 = pneg %p125
        %p734 = pneg %p122
        %p735 = pneg %p146
        %p736 = pneg %p143
        %p737 = pneg %p167
        %p738 = pneg %p164
        %p739 = pneg %p188
        %p740 = pneg %p185
        %p741 = pneg %p209
        %p742 = pneg %p206
        %p743 = pneg %p230
        %p744 = pneg %p227
        %p745 = pneg %p251
        %p746 = pneg %p248
        %p747 = pneg %p272
        %p748 = pneg %p269
        %p749 = pneg %p293
        %p750 = pneg %p290
        %p751 = pneg %p314
        %p752 = pneg %p311
        %p753 = pneg %p335
        %p754 = pneg %p332
        %p755 = pneg %p356
        %p756 = pneg %p353
        %p757 = pneg %p377
        %p758 = pneg %p374
        %p759 = pneg %p398
        %p760 = pneg %p395
        %p761 = pneg %p419
        %p762 = pneg %p416
        %p763 = pneg %p440
        %p764 = pneg %p437
        %p765 = pneg %p461
        %p766 = pneg %p458
        %p767 = pneg %p482
        %p768 = pneg %p479
        %p769 = pneg %p503
        %p770 = pneg %p500
        %p771 = pneg %p524
        %p772 = pneg %p521
        %p773 = pneg %p545
        %p774 = pneg %p542
        %p775 = pneg %p566
        %p776 = pneg %p563
        %p777 = pneg %p592
        %p778 = pneg %p589
        %s779 = sand.u32 %s579, 1
        %s780 = scalar_lea.sflag [#allocation3], %s779
        %s781 = sand.u32 %s579, 1
        %s782 = smul.addr %s781, 8
        %s783 = scalar_lea.vmem [#allocation2], %s782
        %p784 = pneg %p618
        %p785 = pneg %p615
        %p786 = scmp.lt.s32.totalorder %s41, 1
        %s787 = scalar_select %p786, %s41, 1
        %s788 = smul.addr %s787, 8
        %s789 = scalar_lea.vmem %s26, %s788
        %p790 = scmp.lt.s32.totalorder %s41, 1
        %s791 = scalar_select %p790, %s41, 1
        %s792 = smul.addr %s791, 8
        %s793 = scalar_lea.vmem %s0, %s792
        %p794 = scmp.lt.s32.totalorder %s41, 1
        %s795 = scalar_select %p794, %s41, 1
        %s796 = smul.addr %s795, 8
        %s797 = scalar_lea.vmem %s26, %s796
        %v798 = vld [vmem:[%s793] sm:$0xff]
        %v799 = vld [vmem:[%s1] sm:$0xff]
        %v800 = vld [vmem:[%s1 + $0x8] sm:$0xff]
        %v801 = vld [vmem:[%s1 + $0x10] sm:$0xff]
        %v802 = vld [vmem:[%s1 + $0x18] sm:$0xff]
        %v803 = vld [vmem:[%s1 + $0x20] sm:$0xff]
        %v804 = vld [vmem:[%s1 + $0x28] sm:$0xff]
        %v805 = vld [vmem:[%s1 + $0x30] sm:$0xff]
        %v806 = vld [vmem:[%s1 + $0x38] sm:$0xff]
        %v807 = vld [vmem:[%s4] sm:$0x1]
        %v809 = vlaneseq
        %v810 = vshrl.u32 %v809, 7
        %v811 = vsub.s32 0, %v810
        %v812 = vrot.slane %v807, %v811
        %vm814 = vcmask 523264
        %v816 = vsel %vm814, %v798, 0
        %818 = vmatprep.subr.mxu0 0.0
        %819 = vmatpush1.msra.mxu0 0.0
        %820 = vmatprep.subr.mxu0 0.0
        %821 = vmatpush1.msra.mxu0 0.0
        %822 = vmatprep.subr.mxu0 0.0
        %823 = vmatpush1.msra.mxu0 0.0
        %824 = vmatprep.subr.mxu0 0.0
        %825 = vmatpush1.msra.mxu0 0.0
        %826 = vmatprep.subr.mxu0 0.0
        %827 = vmatpush1.msra.mxu0 0.0
        %828 = vmatprep.subr.mxu0 0.0
        %829 = vmatpush1.msra.mxu0 0.0
        %830 = vmatprep.subr.mxu0 0.0
        %831 = vmatpush1.msra.mxu0 0.0
        %832 = vmatprep.subr.mxu0 0.0
        %833 = vmatpush1.msra.mxu0 0.0
        %834 = vmatprep.subr.mxu0 0.0
        %835 = vmatpush1.msra.mxu0 %v806
        %836 = vmatprep.subr.mxu0 0.0
        %837 = vmatpush1.msra.mxu0 %v805
        %838 = vmatprep.subr.mxu0 0.0
        %839 = vmatpush1.msra.mxu0 %v804
        %840 = vmatprep.subr.mxu0 0.0
        %841 = vmatpush1.msra.mxu0 %v803
        %842 = vmatprep.subr.mxu0 0.0
        %843 = vmatpush1.msra.mxu0 %v802
        %844 = vmatprep.subr.mxu0 0.0
        %845 = vmatpush1.msra.mxu0 %v801
        %846 = vmatprep.subr.mxu0 0.0
        %847 = vmatpush1.msra.mxu0 %v800
        %848 = vmatprep.subr.mxu0 0.0
        %849 = vmatpush1.msra.mxu0 %v799
        %850 = vmatprep.subr.mxu0 0.0
        %851 = vmatpush2.msra.mxu0 0.0
        %852 = vmatprep.subr.mxu0 0.0
        %853 = vmatpush2.msra.mxu0 0.0
        %854 = vmatprep.subr.mxu0 0.0
        %855 = vmatpush2.msra.mxu0 0.0
        %856 = vmatprep.subr.mxu0 0.0
        %857 = vmatpush2.msra.mxu0 0.0
        %858 = vmatprep.subr.mxu0 0.0
        %859 = vmatpush2.msra.mxu0 0.0
        %860 = vmatprep.subr.mxu0 0.0
        %861 = vmatpush2.msra.mxu0 0.0
        %862 = vmatprep.subr.mxu0 0.0
        %863 = vmatpush2.msra.mxu0 0.0
        %864 = vmatprep.subr.mxu0 0.0
        %865 = vmatpush2.msra.mxu0 0.0
        %866 = vmatprep.subr.mxu0 0.0
        %867 = vmatpush2.msra.mxu0 0.0
        %868 = vmatprep.subr.mxu0 0.0
        %869 = vmatpush2.msra.mxu0 0.0
        %870 = vmatprep.subr.mxu0 0.0
        %871 = vmatpush2.msra.mxu0 0.0
        %872 = vmatprep.subr.mxu0 0.0
        %873 = vmatpush2.msra.mxu0 0.0
        %874 = vmatprep.subr.mxu0 0.0
        %875 = vmatpush2.msra.mxu0 0.0
        %876 = vmatprep.subr.mxu0 0.0
        %877 = vmatpush2.msra.mxu0 0.0
        %878 = vmatprep.subr.mxu0 0.0
        %879 = vmatpush2.msra.mxu0 0.0
        %880 = vmatprep.subr.mxu0 0.0
        %881 = vmatpush2.msra.mxu0 0.0
        %882 = vmatprep.mubr.f32.mxu0 0.0
        %883 = vmatmul.mubr.f32.gmra.mxu0 %v816
        %v884 = vpop.f32.mrf.mxu0
        %v885 = vadd.f32 %v812, %v884
        %v886 = vpop.f32.mrf.mxu0
        %887 = vdwg.mxu0
        %v888 = vld [vmem:[%s2] sm:$0xff]
        %v889 = vld [vmem:[%s2 + $0x8] sm:$0xff]
        %v890 = vld [vmem:[%s2 + $0x10] sm:$0xff]
        %v891 = vld [vmem:[%s2 + $0x18] sm:$0xff]
        %v892 = vld [vmem:[%s2 + $0x20] sm:$0xff]
        %v893 = vld [vmem:[%s2 + $0x28] sm:$0xff]
        %v894 = vld [vmem:[%s2 + $0x30] sm:$0xff]
        %v895 = vld [vmem:[%s2 + $0x38] sm:$0xff]
        %v896 = vld [vmem:[%s5] sm:$0x1]
        %v898 = vlaneseq
        %v899 = vshrl.u32 %v898, 7
        %v900 = vsub.s32 0, %v899
        %v901 = vrot.slane %v896, %v900
        %903 = vmatprep.subr.mxu0 0.0
        %904 = vmatpush1.msra.mxu0 0.0
        %905 = vmatprep.subr.mxu0 0.0
        %906 = vmatpush1.msra.mxu0 0.0
        %907 = vmatprep.subr.mxu0 0.0
        %908 = vmatpush1.msra.mxu0 0.0
        %909 = vmatprep.subr.mxu0 0.0
        %910 = vmatpush1.msra.mxu0 0.0
        %911 = vmatprep.subr.mxu0 0.0
        %912 = vmatpush1.msra.mxu0 0.0
        %913 = vmatprep.subr.mxu0 0.0
        %914 = vmatpush1.msra.mxu0 0.0
        %915 = vmatprep.subr.mxu0 0.0
        %916 = vmatpush1.msra.mxu0 0.0
        %917 = vmatprep.subr.mxu0 0.0
        %918 = vmatpush1.msra.mxu0 0.0
        %919 = vmatprep.subr.mxu0 0.0
        %920 = vmatpush1.msra.mxu0 %v895
        %921 = vmatprep.subr.mxu0 0.0
        %922 = vmatpush1.msra.mxu0 %v894
        %923 = vmatprep.subr.mxu0 0.0
        %924 = vmatpush1.msra.mxu0 %v893
        %925 = vmatprep.subr.mxu0 0.0
        %926 = vmatpush1.msra.mxu0 %v892
        %927 = vmatprep.subr.mxu0 0.0
        %928 = vmatpush1.msra.mxu0 %v891
        %929 = vmatprep.subr.mxu0 0.0
        %930 = vmatpush1.msra.mxu0 %v890
        %931 = vmatprep.subr.mxu0 0.0
        %932 = vmatpush1.msra.mxu0 %v889
        %933 = vmatprep.subr.mxu0 0.0
        %934 = vmatpush1.msra.mxu0 %v888
        %935 = vmatprep.subr.mxu0 0.0
        %936 = vmatpush2.msra.mxu0 0.0
        %937 = vmatprep.subr.mxu0 0.0
        %938 = vmatpush2.msra.mxu0 0.0
        %939 = vmatprep.subr.mxu0 0.0
        %940 = vmatpush2.msra.mxu0 0.0
        %941 = vmatprep.subr.mxu0 0.0
        %942 = vmatpush2.msra.mxu0 0.0
        %943 = vmatprep.subr.mxu0 0.0
        %944 = vmatpush2.msra.mxu0 0.0
        %945 = vmatprep.subr.mxu0 0.0
        %946 = vmatpush2.msra.mxu0 0.0
        %947 = vmatprep.subr.mxu0 0.0
        %948 = vmatpush2.msra.mxu0 0.0
        %949 = vmatprep.subr.mxu0 0.0
        %950 = vmatpush2.msra.mxu0 0.0
        %951 = vmatprep.subr.mxu0 0.0
        %952 = vmatpush2.msra.mxu0 0.0
        %953 = vmatprep.subr.mxu0 0.0
        %954 = vmatpush2.msra.mxu0 0.0
        %955 = vmatprep.subr.mxu0 0.0
        %956 = vmatpush2.msra.mxu0 0.0
        %957 = vmatprep.subr.mxu0 0.0
        %958 = vmatpush2.msra.mxu0 0.0
        %959 = vmatprep.subr.mxu0 0.0
        %960 = vmatpush2.msra.mxu0 0.0
        %961 = vmatprep.subr.mxu0 0.0
        %962 = vmatpush2.msra.mxu0 0.0
        %963 = vmatprep.subr.mxu0 0.0
        %964 = vmatpush2.msra.mxu0 0.0
        %965 = vmatprep.subr.mxu0 0.0
        %966 = vmatpush2.msra.mxu0 0.0
        %967 = vmatprep.mubr.f32.mxu0 0.0
        %968 = vmatmul.mubr.f32.gmra.mxu0 %v816
        %v969 = vpop.f32.mrf.mxu0
        %v970 = vadd.f32 %v901, %v969
        %v971 = vpop.f32.mrf.mxu0
        %972 = vdwg.mxu0
        %v973 = vld [vmem:[%s3] sm:$0xff]
        %v974 = vld [vmem:[%s3 + $0x8] sm:$0xff]
        %v975 = vld [vmem:[%s3 + $0x10] sm:$0xff]
        %v976 = vld [vmem:[%s3 + $0x18] sm:$0xff]
        %v977 = vld [vmem:[%s3 + $0x20] sm:$0xff]
        %v978 = vld [vmem:[%s3 + $0x28] sm:$0xff]
        %v979 = vld [vmem:[%s3 + $0x30] sm:$0xff]
        %v980 = vld [vmem:[%s3 + $0x38] sm:$0xff]
        %v981 = vld [vmem:[%s6] sm:$0x1]
        %v983 = vlaneseq
        %v984 = vshrl.u32 %v983, 7
        %v985 = vsub.s32 0, %v984
        %v986 = vrot.slane %v981, %v985
        %988 = vmatprep.subr.mxu0 0.0
        %989 = vmatpush1.msra.mxu0 0.0
        %990 = vmatprep.subr.mxu0 0.0
        %991 = vmatpush1.msra.mxu0 0.0
        %992 = vmatprep.subr.mxu0 0.0
        %993 = vmatpush1.msra.mxu0 0.0
        %994 = vmatprep.subr.mxu0 0.0
        %995 = vmatpush1.msra.mxu0 0.0
        %996 = vmatprep.subr.mxu0 0.0
        %997 = vmatpush1.msra.mxu0 0.0
        %998 = vmatprep.subr.mxu0 0.0
        %999 = vmatpush1.msra.mxu0 0.0
        %1000 = vmatprep.subr.mxu0 0.0
        %1001 = vmatpush1.msra.mxu0 0.0
        %1002 = vmatprep.subr.mxu0 0.0
        %1003 = vmatpush1.msra.mxu0 0.0
        %1004 = vmatprep.subr.mxu0 0.0
        %1005 = vmatpush1.msra.mxu0 %v980
        %1006 = vmatprep.subr.mxu0 0.0
        %1007 = vmatpush1.msra.mxu0 %v979
        %1008 = vmatprep.subr.mxu0 0.0
        %1009 = vmatpush1.msra.mxu0 %v978
        %1010 = vmatprep.subr.mxu0 0.0
        %1011 = vmatpush1.msra.mxu0 %v977
        %1012 = vmatprep.subr.mxu0 0.0
        %1013 = vmatpush1.msra.mxu0 %v976
        %1014 = vmatprep.subr.mxu0 0.0
        %1015 = vmatpush1.msra.mxu0 %v975
        %1016 = vmatprep.subr.mxu0 0.0
        %1017 = vmatpush1.msra.mxu0 %v974
        %1018 = vmatprep.subr.mxu0 0.0
        %1019 = vmatpush1.msra.mxu0 %v973
        %1020 = vmatprep.subr.mxu0 0.0
        %1021 = vmatpush2.msra.mxu0 0.0
        %1022 = vmatprep.subr.mxu0 0.0
        %1023 = vmatpush2.msra.mxu0 0.0
        %1024 = vmatprep.subr.mxu0 0.0
        %1025 = vmatpush2.msra.mxu0 0.0
        %1026 = vmatprep.subr.mxu0 0.0
        %1027 = vmatpush2.msra.mxu0 0.0
        %1028 = vmatprep.subr.mxu0 0.0
        %1029 = vmatpush2.msra.mxu0 0.0
        %1030 = vmatprep.subr.mxu0 0.0
        %1031 = vmatpush2.msra.mxu0 0.0
        %1032 = vmatprep.subr.mxu0 0.0
        %1033 = vmatpush2.msra.mxu0 0.0
        %1034 = vmatprep.subr.mxu0 0.0
        %1035 = vmatpush2.msra.mxu0 0.0
        %1036 = vmatprep.subr.mxu0 0.0
        %1037 = vmatpush2.msra.mxu0 0.0
        %1038 = vmatprep.subr.mxu0 0.0
        %1039 = vmatpush2.msra.mxu0 0.0
        %1040 = vmatprep.subr.mxu0 0.0
        %1041 = vmatpush2.msra.mxu0 0.0
        %1042 = vmatprep.subr.mxu0 0.0
        %1043 = vmatpush2.msra.mxu0 0.0
        %1044 = vmatprep.subr.mxu0 0.0
        %1045 = vmatpush2.msra.mxu0 0.0
        %1046 = vmatprep.subr.mxu0 0.0
        %1047 = vmatpush2.msra.mxu0 0.0
        %1048 = vmatprep.subr.mxu0 0.0
        %1049 = vmatpush2.msra.mxu0 0.0
        %1050 = vmatprep.subr.mxu0 0.0
        %1051 = vmatpush2.msra.mxu0 0.0
        %1052 = vmatprep.mubr.f32.mxu0 0.0
        %1053 = vmatmul.mubr.f32.gmra.mxu0 %v816
        %v1054 = vpop.f32.mrf.mxu0
        %v1055 = vadd.f32 %v986, %v1054
        %v1056 = vpop.f32.mrf.mxu0
        %1057 = vdwg.mxu0
        %vm1058 = vcmask 64512
        %v1060 = vsel %vm1058, %v885, 0
        %v1063 = vsel %vm1058, %v970, 0
        %1065 = vmatprep.subr.mxu0 0.0
        %1066 = vmatpush1.xpose.msra.mxu0 0.0
        %1067 = vmatprep.subr.mxu0 0.0
        %1068 = vmatpush1.xpose.msra.mxu0 0.0
        %1069 = vmatprep.subr.mxu0 0.0
        %1070 = vmatpush1.xpose.msra.mxu0 0.0
        %1071 = vmatprep.subr.mxu0 0.0
        %1072 = vmatpush1.xpose.msra.mxu0 0.0
        %1073 = vmatprep.subr.mxu0 0.0
        %1074 = vmatpush1.xpose.msra.mxu0 0.0
        %1075 = vmatprep.subr.mxu0 0.0
        %1076 = vmatpush1.xpose.msra.mxu0 0.0
        %1077 = vmatprep.subr.mxu0 0.0
        %1078 = vmatpush1.xpose.msra.mxu0 0.0
        %1079 = vmatprep.subr.mxu0 0.0
        %1080 = vmatpush1.xpose.msra.mxu0 0.0
        %1081 = vmatprep.subr.mxu0 0.0
        %1082 = vmatpush1.xpose.msra.mxu0 0.0
        %1083 = vmatprep.subr.mxu0 0.0
        %1084 = vmatpush1.xpose.msra.mxu0 0.0
        %1085 = vmatprep.subr.mxu0 0.0
        %1086 = vmatpush1.xpose.msra.mxu0 0.0
        %1087 = vmatprep.subr.mxu0 0.0
        %1088 = vmatpush1.xpose.msra.mxu0 0.0
        %1089 = vmatprep.subr.mxu0 0.0
        %1090 = vmatpush1.xpose.msra.mxu0 0.0
        %1091 = vmatprep.subr.mxu0 0.0
        %1092 = vmatpush1.xpose.msra.mxu0 0.0
        %1093 = vmatprep.subr.mxu0 0.0
        %1094 = vmatpush1.xpose.msra.mxu0 0.0
        %1095 = vmatprep.subr.mxu0 0.0
        %1096 = vmatpush1.xpose.msra.mxu0 %v1063
        %1097 = vmatprep.subr.mxu0 0.0
        %1098 = vmatpush2.xpose.msra.mxu0 0.0
        %1099 = vmatprep.subr.mxu0 0.0
        %1100 = vmatpush2.xpose.msra.mxu0 0.0
        %1101 = vmatprep.subr.mxu0 0.0
        %1102 = vmatpush2.xpose.msra.mxu0 0.0
        %1103 = vmatprep.subr.mxu0 0.0
        %1104 = vmatpush2.xpose.msra.mxu0 0.0
        %1105 = vmatprep.subr.mxu0 0.0
        %1106 = vmatpush2.xpose.msra.mxu0 0.0
        %1107 = vmatprep.subr.mxu0 0.0
        %1108 = vmatpush2.xpose.msra.mxu0 0.0
        %1109 = vmatprep.subr.mxu0 0.0
        %1110 = vmatpush2.xpose.msra.mxu0 0.0
        %1111 = vmatprep.subr.mxu0 0.0
        %1112 = vmatpush2.xpose.msra.mxu0 0.0
        %1113 = vmatprep.subr.mxu0 0.0
        %1114 = vmatpush2.xpose.msra.mxu0 0.0
        %1115 = vmatprep.subr.mxu0 0.0
        %1116 = vmatpush2.xpose.msra.mxu0 0.0
        %1117 = vmatprep.subr.mxu0 0.0
        %1118 = vmatpush2.xpose.msra.mxu0 0.0
        %1119 = vmatprep.subr.mxu0 0.0
        %1120 = vmatpush2.xpose.msra.mxu0 0.0
        %1121 = vmatprep.subr.mxu0 0.0
        %1122 = vmatpush2.xpose.msra.mxu0 0.0
        %1123 = vmatprep.subr.mxu0 0.0
        %1124 = vmatpush2.xpose.msra.mxu0 0.0
        %1125 = vmatprep.subr.mxu0 0.0
        %1126 = vmatpush2.xpose.msra.mxu0 0.0
        %1127 = vmatprep.subr.mxu0 0.0
        %1128 = vmatpush2.xpose.msra.mxu0 0.0
        %1129 = vmatprep.mubr.f32.mxu0 0.0
        %1130 = vmatmul.mubr.f32.gmra.mxu0 %v1060
        %v1131 = vpop.f32.mrf.mxu0
        %v1132 = vadd.f32 0.0, %v1131
        %v1133 = vpop.f32.mrf.mxu0
        %1134 = vdwg.mxu0
        %v1135 = vmul.f32 %v1132, 0.35355338
        %v1136 = vsel %vm1058, %v1135, -inf
        %1137 = vmax.xlane.f32.xlu0 %v1136
        %v1138 = vpop.xlane.xlu0 %1137
        %v1139 = vsub.f32 %v1135, %v1138
        %v1140 = vmul.f32 %v1139, 1.442695
        %v1141 = vpow.pop %v1140
        %v1142 = vsel %vm1058, %v1141, 0.0
        %1143 = vadd.xlane.f32.xlu0 %v1142
        %v1144 = vpop.xlane.xlu0 %1143
        %v1145 = vrcp.pop %v1144
        %v1146 = vmul.f32 %v1141, %v1145
        %v1148 = vsel %vm1058, %v1146, 0
        %1150 = vmatprep.subr.mxu0 0.0
        %1151 = vmatpush1.msra.mxu0 0.0
        %1152 = vmatprep.subr.mxu0 0.0
        %1153 = vmatpush1.msra.mxu0 0.0
        %1154 = vmatprep.subr.mxu0 0.0
        %1155 = vmatpush1.msra.mxu0 0.0
        %1156 = vmatprep.subr.mxu0 0.0
        %1157 = vmatpush1.msra.mxu0 0.0
        %1158 = vmatprep.subr.mxu0 0.0
        %1159 = vmatpush1.msra.mxu0 0.0
        %1160 = vmatprep.subr.mxu0 0.0
        %1161 = vmatpush1.msra.mxu0 0.0
        %1162 = vmatprep.subr.mxu0 0.0
        %1163 = vmatpush1.msra.mxu0 0.0
        %1164 = vmatprep.subr.mxu0 0.0
        %1165 = vmatpush1.msra.mxu0 0.0
        %1166 = vmatprep.subr.mxu0 0.0
        %1167 = vmatpush1.msra.mxu0 0.0
        %1168 = vmatprep.subr.mxu0 0.0
        %1169 = vmatpush1.msra.mxu0 0.0
        %1170 = vmatprep.subr.mxu0 0.0
        %1171 = vmatpush1.msra.mxu0 0.0
        %1172 = vmatprep.subr.mxu0 0.0
        %1173 = vmatpush1.msra.mxu0 0.0
        %1174 = vmatprep.subr.mxu0 0.0
        %1175 = vmatpush1.msra.mxu0 0.0
        %1176 = vmatprep.subr.mxu0 0.0
        %1177 = vmatpush1.msra.mxu0 0.0
        %1178 = vmatprep.subr.mxu0 0.0
        %1179 = vmatpush1.msra.mxu0 0.0
        %1180 = vmatprep.subr.mxu0 0.0
        %1181 = vmatpush1.msra.mxu0 %v1055
        %1182 = vmatprep.subr.mxu0 0.0
        %1183 = vmatpush2.msra.mxu0 0.0
        %1184 = vmatprep.subr.mxu0 0.0
        %1185 = vmatpush2.msra.mxu0 0.0
        %1186 = vmatprep.subr.mxu0 0.0
        %1187 = vmatpush2.msra.mxu0 0.0
        %1188 = vmatprep.subr.mxu0 0.0
        %1189 = vmatpush2.msra.mxu0 0.0
        %1190 = vmatprep.subr.mxu0 0.0
        %1191 = vmatpush2.msra.mxu0 0.0
        %1192 = vmatprep.subr.mxu0 0.0
        %1193 = vmatpush2.msra.mxu0 0.0
        %1194 = vmatprep.subr.mxu0 0.0
        %1195 = vmatpush2.msra.mxu0 0.0
        %1196 = vmatprep.subr.mxu0 0.0
        %1197 = vmatpush2.msra.mxu0 0.0
        %1198 = vmatprep.subr.mxu0 0.0
        %1199 = vmatpush2.msra.mxu0 0.0
        %1200 = vmatprep.subr.mxu0 0.0
        %1201 = vmatpush2.msra.mxu0 0.0
        %1202 = vmatprep.subr.mxu0 0.0
        %1203 = vmatpush2.msra.mxu0 0.0
        %1204 = vmatprep.subr.mxu0 0.0
        %1205 = vmatpush2.msra.mxu0 0.0
        %1206 = vmatprep.subr.mxu0 0.0
        %1207 = vmatpush2.msra.mxu0 0.0
        %1208 = vmatprep.subr.mxu0 0.0
        %1209 = vmatpush2.msra.mxu0 0.0
        %1210 = vmatprep.subr.mxu0 0.0
        %1211 = vmatpush2.msra.mxu0 0.0
        %1212 = vmatprep.subr.mxu0 0.0
        %1213 = vmatpush2.msra.mxu0 0.0
        %1214 = vmatprep.mubr.f32.mxu0 0.0
        %1215 = vmatmul.mubr.f32.gmra.mxu0 %v1148
        %v1216 = vpop.f32.mrf.mxu0
        %v1217 = vadd.f32 0.0, %v1216
        %v1218 = vpop.f32.mrf.mxu0
        %1219 = vdwg.mxu0
        %1220 = vrot.lane.b32.xlu0 %v885, 120
        %v1221 = vpop.permute.xlu0 %1220
        %1222 = vrot.lane.b32.xlu0 %v970, 120
        %v1223 = vpop.permute.xlu0 %1222
        %v1224 = vsel %vm1058, %v1221, 0
        %v1226 = vsel %vm1058, %v1223, 0
        %1228 = vmatprep.subr.mxu0 0.0
        %1229 = vmatpush1.xpose.msra.mxu0 0.0
        %1230 = vmatprep.subr.mxu0 0.0
        %1231 = vmatpush1.xpose.msra.mxu0 0.0
        %1232 = vmatprep.subr.mxu0 0.0
        %1233 = vmatpush1.xpose.msra.mxu0 0.0
        %1234 = vmatprep.subr.mxu0 0.0
        %1235 = vmatpush1.xpose.msra.mxu0 0.0
        %1236 = vmatprep.subr.mxu0 0.0
        %1237 = vmatpush1.xpose.msra.mxu0 0.0
        %1238 = vmatprep.subr.mxu0 0.0
        %1239 = vmatpush1.xpose.msra.mxu0 0.0
        %1240 = vmatprep.subr.mxu0 0.0
        %1241 = vmatpush1.xpose.msra.mxu0 0.0
        %1242 = vmatprep.subr.mxu0 0.0
        %1243 = vmatpush1.xpose.msra.mxu0 0.0
        %1244 = vmatprep.subr.mxu0 0.0
        %1245 = vmatpush1.xpose.msra.mxu0 0.0
        %1246 = vmatprep.subr.mxu0 0.0
        %1247 = vmatpush1.xpose.msra.mxu0 0.0
        %1248 = vmatprep.subr.mxu0 0.0
        %1249 = vmatpush1.xpose.msra.mxu0 0.0
        %1250 = vmatprep.subr.mxu0 0.0
        %1251 = vmatpush1.xpose.msra.mxu0 0.0
        %1252 = vmatprep.subr.mxu0 0.0
        %1253 = vmatpush1.xpose.msra.mxu0 0.0
        %1254 = vmatprep.subr.mxu0 0.0
        %1255 = vmatpush1.xpose.msra.mxu0 0.0
        %1256 = vmatprep.subr.mxu0 0.0
        %1257 = vmatpush1.xpose.msra.mxu0 0.0
        %1258 = vmatprep.subr.mxu0 0.0
        %1259 = vmatpush1.xpose.msra.mxu0 %v1226
        %1260 = vmatprep.subr.mxu0 0.0
        %1261 = vmatpush2.xpose.msra.mxu0 0.0
        %1262 = vmatprep.subr.mxu0 0.0
        %1263 = vmatpush2.xpose.msra.mxu0 0.0
        %1264 = vmatprep.subr.mxu0 0.0
        %1265 = vmatpush2.xpose.msra.mxu0 0.0
        %1266 = vmatprep.subr.mxu0 0.0
        %1267 = vmatpush2.xpose.msra.mxu0 0.0
        %1268 = vmatprep.subr.mxu0 0.0
        %1269 = vmatpush2.xpose.msra.mxu0 0.0
        %1270 = vmatprep.subr.mxu0 0.0
        %1271 = vmatpush2.xpose.msra.mxu0 0.0
        %1272 = vmatprep.subr.mxu0 0.0
        %1273 = vmatpush2.xpose.msra.mxu0 0.0
        %1274 = vmatprep.subr.mxu0 0.0
        %1275 = vmatpush2.xpose.msra.mxu0 0.0
        %1276 = vmatprep.subr.mxu0 0.0
        %1277 = vmatpush2.xpose.msra.mxu0 0.0
        %1278 = vmatprep.subr.mxu0 0.0
        %1279 = vmatpush2.xpose.msra.mxu0 0.0
        %1280 = vmatprep.subr.mxu0 0.0
        %1281 = vmatpush2.xpose.msra.mxu0 0.0
        %1282 = vmatprep.subr.mxu0 0.0
        %1283 = vmatpush2.xpose.msra.mxu0 0.0
        %1284 = vmatprep.subr.mxu0 0.0
        %1285 = vmatpush2.xpose.msra.mxu0 0.0
        %1286 = vmatprep.subr.mxu0 0.0
        %1287 = vmatpush2.xpose.msra.mxu0 0.0
        %1288 = vmatprep.subr.mxu0 0.0
        %1289 = vmatpush2.xpose.msra.mxu0 0.0
        %1290 = vmatprep.subr.mxu0 0.0
        %1291 = vmatpush2.xpose.msra.mxu0 0.0
        %1292 = vmatprep.mubr.f32.mxu0 0.0
        %1293 = vmatmul.mubr.f32.gmra.mxu0 %v1224
        %v1294 = vpop.f32.mrf.mxu0
        %v1295 = vadd.f32 0.0, %v1294
        %v1296 = vpop.f32.mrf.mxu0
        %1297 = vdwg.mxu0
        %v1298 = vmul.f32 %v1295, 0.35355338
        %v1299 = vsel %vm1058, %v1298, -inf
        %1300 = vmax.xlane.f32.xlu0 %v1299
        %v1301 = vpop.xlane.xlu0 %1300
        %v1302 = vsub.f32 %v1298, %v1301
        %v1303 = vmul.f32 %v1302, 1.442695
        %v1304 = vpow.pop %v1303
        %v1305 = vsel %vm1058, %v1304, 0.0
        %1306 = vadd.xlane.f32.xlu0 %v1305
        %v1307 = vpop.xlane.xlu0 %1306
        %v1308 = vrcp.pop %v1307
        %v1309 = vmul.f32 %v1304, %v1308
        %1311 = vrot.lane.b32.xlu0 %v1055, 120
        %v1312 = vpop.permute.xlu0 %1311
        %v1315 = vsel %vm1058, %v1309, 0
        %1317 = vmatprep.subr.mxu0 0.0
        %1318 = vmatpush1.msra.mxu0 0.0
        %1319 = vmatprep.subr.mxu0 0.0
        %1320 = vmatpush1.msra.mxu0 0.0
        %1321 = vmatprep.subr.mxu0 0.0
        %1322 = vmatpush1.msra.mxu0 0.0
        %1323 = vmatprep.subr.mxu0 0.0
        %1324 = vmatpush1.msra.mxu0 0.0
        %1325 = vmatprep.subr.mxu0 0.0
        %1326 = vmatpush1.msra.mxu0 0.0
        %1327 = vmatprep.subr.mxu0 0.0
        %1328 = vmatpush1.msra.mxu0 0.0
        %1329 = vmatprep.subr.mxu0 0.0
        %1330 = vmatpush1.msra.mxu0 0.0
        %1331 = vmatprep.subr.mxu0 0.0
        %1332 = vmatpush1.msra.mxu0 0.0
        %1333 = vmatprep.subr.mxu0 0.0
        %1334 = vmatpush1.msra.mxu0 0.0
        %1335 = vmatprep.subr.mxu0 0.0
        %1336 = vmatpush1.msra.mxu0 0.0
        %1337 = vmatprep.subr.mxu0 0.0
        %1338 = vmatpush1.msra.mxu0 0.0
        %1339 = vmatprep.subr.mxu0 0.0
        %1340 = vmatpush1.msra.mxu0 0.0
        %1341 = vmatprep.subr.mxu0 0.0
        %1342 = vmatpush1.msra.mxu0 0.0
        %1343 = vmatprep.subr.mxu0 0.0
        %1344 = vmatpush1.msra.mxu0 0.0
        %1345 = vmatprep.subr.mxu0 0.0
        %1346 = vmatpush1.msra.mxu0 0.0
        %1347 = vmatprep.subr.mxu0 0.0
        %1348 = vmatpush1.msra.mxu0 %v1312
        %1349 = vmatprep.subr.mxu0 0.0
        %1350 = vmatpush2.msra.mxu0 0.0
        %1351 = vmatprep.subr.mxu0 0.0
        %1352 = vmatpush2.msra.mxu0 0.0
        %1353 = vmatprep.subr.mxu0 0.0
        %1354 = vmatpush2.msra.mxu0 0.0
        %1355 = vmatprep.subr.mxu0 0.0
        %1356 = vmatpush2.msra.mxu0 0.0
        %1357 = vmatprep.subr.mxu0 0.0
        %1358 = vmatpush2.msra.mxu0 0.0
        %1359 = vmatprep.subr.mxu0 0.0
        %1360 = vmatpush2.msra.mxu0 0.0
        %1361 = vmatprep.subr.mxu0 0.0
        %1362 = vmatpush2.msra.mxu0 0.0
        %1363 = vmatprep.subr.mxu0 0.0
        %1364 = vmatpush2.msra.mxu0 0.0
        %1365 = vmatprep.subr.mxu0 0.0
        %1366 = vmatpush2.msra.mxu0 0.0
        %1367 = vmatprep.subr.mxu0 0.0
        %1368 = vmatpush2.msra.mxu0 0.0
        %1369 = vmatprep.subr.mxu0 0.0
        %1370 = vmatpush2.msra.mxu0 0.0
        %1371 = vmatprep.subr.mxu0 0.0
        %1372 = vmatpush2.msra.mxu0 0.0
        %1373 = vmatprep.subr.mxu0 0.0
        %1374 = vmatpush2.msra.mxu0 0.0
        %1375 = vmatprep.subr.mxu0 0.0
        %1376 = vmatpush2.msra.mxu0 0.0
        %1377 = vmatprep.subr.mxu0 0.0
        %1378 = vmatpush2.msra.mxu0 0.0
        %1379 = vmatprep.subr.mxu0 0.0
        %1380 = vmatpush2.msra.mxu0 0.0
        %1381 = vmatprep.mubr.f32.mxu0 0.0
        %1382 = vmatmul.mubr.f32.gmra.mxu0 %v1315
        %v1383 = vpop.f32.mrf.mxu0
        %v1384 = vadd.f32 0.0, %v1383
        %v1385 = vpop.f32.mrf.mxu0
        %1386 = vdwg.mxu0
        %1387 = vrot.lane.b32.xlu0 %v885, 112
        %v1388 = vpop.permute.xlu0 %1387
        %1389 = vrot.lane.b32.xlu0 %v970, 112
        %v1390 = vpop.permute.xlu0 %1389
        %v1391 = vsel %vm1058, %v1388, 0
        %v1393 = vsel %vm1058, %v1390, 0
        %1395 = vmatprep.subr.mxu0 0.0
        %1396 = vmatpush1.xpose.msra.mxu0 0.0
        %1397 = vmatprep.subr.mxu0 0.0
        %1398 = vmatpush1.xpose.msra.mxu0 0.0
        %1399 = vmatprep.subr.mxu0 0.0
        %1400 = vmatpush1.xpose.msra.mxu0 0.0
        %1401 = vmatprep.subr.mxu0 0.0
        %1402 = vmatpush1.xpose.msra.mxu0 0.0
        %1403 = vmatprep.subr.mxu0 0.0
        %1404 = vmatpush1.xpose.msra.mxu0 0.0
        %1405 = vmatprep.subr.mxu0 0.0
        %1406 = vmatpush1.xpose.msra.mxu0 0.0
        %1407 = vmatprep.subr.mxu0 0.0
        %1408 = vmatpush1.xpose.msra.mxu0 0.0
        %1409 = vmatprep.subr.mxu0 0.0
        %1410 = vmatpush1.xpose.msra.mxu0 0.0
        %1411 = vmatprep.subr.mxu0 0.0
        %1412 = vmatpush1.xpose.msra.mxu0 0.0
        %1413 = vmatprep.subr.mxu0 0.0
        %1414 = vmatpush1.xpose.msra.mxu0 0.0
        %1415 = vmatprep.subr.mxu0 0.0
        %1416 = vmatpush1.xpose.msra.mxu0 0.0
        %1417 = vmatprep.subr.mxu0 0.0
        %1418 = vmatpush1.xpose.msra.mxu0 0.0
        %1419 = vmatprep.subr.mxu0 0.0
        %1420 = vmatpush1.xpose.msra.mxu0 0.0
        %1421 = vmatprep.subr.mxu0 0.0
        %1422 = vmatpush1.xpose.msra.mxu0 0.0
        %1423 = vmatprep.subr.mxu0 0.0
        %1424 = vmatpush1.xpose.msra.mxu0 0.0
        %1425 = vmatprep.subr.mxu0 0.0
        %1426 = vmatpush1.xpose.msra.mxu0 %v1393
        %1427 = vmatprep.subr.mxu0 0.0
        %1428 = vmatpush2.xpose.msra.mxu0 0.0
        %1429 = vmatprep.subr.mxu0 0.0
        %1430 = vmatpush2.xpose.msra.mxu0 0.0
        %1431 = vmatprep.subr.mxu0 0.0
        %1432 = vmatpush2.xpose.msra.mxu0 0.0
        %1433 = vmatprep.subr.mxu0 0.0
        %1434 = vmatpush2.xpose.msra.mxu0 0.0
        %1435 = vmatprep.subr.mxu0 0.0
        %1436 = vmatpush2.xpose.msra.mxu0 0.0
        %1437 = vmatprep.subr.mxu0 0.0
        %1438 = vmatpush2.xpose.msra.mxu0 0.0
        %1439 = vmatprep.subr.mxu0 0.0
        %1440 = vmatpush2.xpose.msra.mxu0 0.0
        %1441 = vmatprep.subr.mxu0 0.0
        %1442 = vmatpush2.xpose.msra.mxu0 0.0
        %1443 = vmatprep.subr.mxu0 0.0
        %1444 = vmatpush2.xpose.msra.mxu0 0.0
        %1445 = vmatprep.subr.mxu0 0.0
        %1446 = vmatpush2.xpose.msra.mxu0 0.0
        %1447 = vmatprep.subr.mxu0 0.0
        %1448 = vmatpush2.xpose.msra.mxu0 0.0
        %1449 = vmatprep.subr.mxu0 0.0
        %1450 = vmatpush2.xpose.msra.mxu0 0.0
        %1451 = vmatprep.subr.mxu0 0.0
        %1452 = vmatpush2.xpose.msra.mxu0 0.0
        %1453 = vmatprep.subr.mxu0 0.0
        %1454 = vmatpush2.xpose.msra.mxu0 0.0
        %1455 = vmatprep.subr.mxu0 0.0
        %1456 = vmatpush2.xpose.msra.mxu0 0.0
        %1457 = vmatprep.subr.mxu0 0.0
        %1458 = vmatpush2.xpose.msra.mxu0 0.0
        %1459 = vmatprep.mubr.f32.mxu0 0.0
        %1460 = vmatmul.mubr.f32.gmra.mxu0 %v1391
        %v1461 = vpop.f32.mrf.mxu0
        %v1462 = vadd.f32 0.0, %v1461
        %v1463 = vpop.f32.mrf.mxu0
        %1464 = vdwg.mxu0
        %v1465 = vmul.f32 %v1462, 0.35355338
        %v1466 = vsel %vm1058, %v1465, -inf
        %1467 = vmax.xlane.f32.xlu0 %v1466
        %v1468 = vpop.xlane.xlu0 %1467
        %v1469 = vsub.f32 %v1465, %v1468
        %v1470 = vmul.f32 %v1469, 1.442695
        %v1471 = vpow.pop %v1470
        %v1472 = vsel %vm1058, %v1471, 0.0
        %1473 = vadd.xlane.f32.xlu0 %v1472
        %v1474 = vpop.xlane.xlu0 %1473
        %v1475 = vrcp.pop %v1474
        %v1476 = vmul.f32 %v1471, %v1475
        %1477 = vrot.lane.b32.xlu0 %v1055, 112
        %v1478 = vpop.permute.xlu0 %1477
        %v1481 = vsel %vm1058, %v1476, 0
        %1483 = vmatprep.subr.mxu0 0.0
        %1484 = vmatpush1.msra.mxu0 0.0
        %1485 = vmatprep.subr.mxu0 0.0
        %1486 = vmatpush1.msra.mxu0 0.0
        %1487 = vmatprep.subr.mxu0 0.0
        %1488 = vmatpush1.msra.mxu0 0.0
        %1489 = vmatprep.subr.mxu0 0.0
        %1490 = vmatpush1.msra.mxu0 0.0
        %1491 = vmatprep.subr.mxu0 0.0
        %1492 = vmatpush1.msra.mxu0 0.0
        %1493 = vmatprep.subr.mxu0 0.0
        %1494 = vmatpush1.msra.mxu0 0.0
        %1495 = vmatprep.subr.mxu0 0.0
        %1496 = vmatpush1.msra.mxu0 0.0
        %1497 = vmatprep.subr.mxu0 0.0
        %1498 = vmatpush1.msra.mxu0 0.0
        %1499 = vmatprep.subr.mxu0 0.0
        %1500 = vmatpush1.msra.mxu0 0.0
        %1501 = vmatprep.subr.mxu0 0.0
        %1502 = vmatpush1.msra.mxu0 0.0
        %1503 = vmatprep.subr.mxu0 0.0
        %1504 = vmatpush1.msra.mxu0 0.0
        %1505 = vmatprep.subr.mxu0 0.0
        %1506 = vmatpush1.msra.mxu0 0.0
        %1507 = vmatprep.subr.mxu0 0.0
        %1508 = vmatpush1.msra.mxu0 0.0
        %1509 = vmatprep.subr.mxu0 0.0
        %1510 = vmatpush1.msra.mxu0 0.0
        %1511 = vmatprep.subr.mxu0 0.0
        %1512 = vmatpush1.msra.mxu0 0.0
        %1513 = vmatprep.subr.mxu0 0.0
        %1514 = vmatpush1.msra.mxu0 %v1478
        %1515 = vmatprep.subr.mxu0 0.0
        %1516 = vmatpush2.msra.mxu0 0.0
        %1517 = vmatprep.subr.mxu0 0.0
        %1518 = vmatpush2.msra.mxu0 0.0
        %1519 = vmatprep.subr.mxu0 0.0
        %1520 = vmatpush2.msra.mxu0 0.0
        %1521 = vmatprep.subr.mxu0 0.0
        %1522 = vmatpush2.msra.mxu0 0.0
        %1523 = vmatprep.subr.mxu0 0.0
        %1524 = vmatpush2.msra.mxu0 0.0
        %1525 = vmatprep.subr.mxu0 0.0
        %1526 = vmatpush2.msra.mxu0 0.0
        %1527 = vmatprep.subr.mxu0 0.0
        %1528 = vmatpush2.msra.mxu0 0.0
        %1529 = vmatprep.subr.mxu0 0.0
        %1530 = vmatpush2.msra.mxu0 0.0
        %1531 = vmatprep.subr.mxu0 0.0
        %1532 = vmatpush2.msra.mxu0 0.0
        %1533 = vmatprep.subr.mxu0 0.0
        %1534 = vmatpush2.msra.mxu0 0.0
        %1535 = vmatprep.subr.mxu0 0.0
        %1536 = vmatpush2.msra.mxu0 0.0
        %1537 = vmatprep.subr.mxu0 0.0
        %1538 = vmatpush2.msra.mxu0 0.0
        %1539 = vmatprep.subr.mxu0 0.0
        %1540 = vmatpush2.msra.mxu0 0.0
        %1541 = vmatprep.subr.mxu0 0.0
        %1542 = vmatpush2.msra.mxu0 0.0
        %1543 = vmatprep.subr.mxu0 0.0
        %1544 = vmatpush2.msra.mxu0 0.0
        %1545 = vmatprep.subr.mxu0 0.0
        %1546 = vmatpush2.msra.mxu0 0.0
        %1547 = vmatprep.mubr.f32.mxu0 0.0
        %1548 = vmatmul.mubr.f32.gmra.mxu0 %v1481
        %v1549 = vpop.f32.mrf.mxu0
        %v1550 = vadd.f32 0.0, %v1549
        %v1551 = vpop.f32.mrf.mxu0
        %1552 = vdwg.mxu0
        %1553 = vrot.lane.b32.xlu0 %v885, 104
        %v1554 = vpop.permute.xlu0 %1553
        %1555 = vrot.lane.b32.xlu0 %v970, 104
        %v1556 = vpop.permute.xlu0 %1555
        %v1557 = vsel %vm1058, %v1554, 0
        %v1559 = vsel %vm1058, %v1556, 0
        %1561 = vmatprep.subr.mxu0 0.0
        %1562 = vmatpush1.xpose.msra.mxu0 0.0
        %1563 = vmatprep.subr.mxu0 0.0
        %1564 = vmatpush1.xpose.msra.mxu0 0.0
        %1565 = vmatprep.subr.mxu0 0.0
        %1566 = vmatpush1.xpose.msra.mxu0 0.0
        %1567 = vmatprep.subr.mxu0 0.0
        %1568 = vmatpush1.xpose.msra.mxu0 0.0
        %1569 = vmatprep.subr.mxu0 0.0
        %1570 = vmatpush1.xpose.msra.mxu0 0.0
        %1571 = vmatprep.subr.mxu0 0.0
        %1572 = vmatpush1.xpose.msra.mxu0 0.0
        %1573 = vmatprep.subr.mxu0 0.0
        %1574 = vmatpush1.xpose.msra.mxu0 0.0
        %1575 = vmatprep.subr.mxu0 0.0
        %1576 = vmatpush1.xpose.msra.mxu0 0.0
        %1577 = vmatprep.subr.mxu0 0.0
        %1578 = vmatpush1.xpose.msra.mxu0 0.0
        %1579 = vmatprep.subr.mxu0 0.0
        %1580 = vmatpush1.xpose.msra.mxu0 0.0
        %1581 = vmatprep.subr.mxu0 0.0
        %1582 = vmatpush1.xpose.msra.mxu0 0.0
        %1583 = vmatprep.subr.mxu0 0.0
        %1584 = vmatpush1.xpose.msra.mxu0 0.0
        %1585 = vmatprep.subr.mxu0 0.0
        %1586 = vmatpush1.xpose.msra.mxu0 0.0
        %1587 = vmatprep.subr.mxu0 0.0
        %1588 = vmatpush1.xpose.msra.mxu0 0.0
        %1589 = vmatprep.subr.mxu0 0.0
        %1590 = vmatpush1.xpose.msra.mxu0 0.0
        %1591 = vmatprep.subr.mxu0 0.0
        %1592 = vmatpush1.xpose.msra.mxu0 %v1559
        %1593 = vmatprep.subr.mxu0 0.0
        %1594 = vmatpush2.xpose.msra.mxu0 0.0
        %1595 = vmatprep.subr.mxu0 0.0
        %1596 = vmatpush2.xpose.msra.mxu0 0.0
        %1597 = vmatprep.subr.mxu0 0.0
        %1598 = vmatpush2.xpose.msra.mxu0 0.0
        %1599 = vmatprep.subr.mxu0 0.0
        %1600 = vmatpush2.xpose.msra.mxu0 0.0
        %1601 = vmatprep.subr.mxu0 0.0
        %1602 = vmatpush2.xpose.msra.mxu0 0.0
        %1603 = vmatprep.subr.mxu0 0.0
        %1604 = vmatpush2.xpose.msra.mxu0 0.0
        %1605 = vmatprep.subr.mxu0 0.0
        %1606 = vmatpush2.xpose.msra.mxu0 0.0
        %1607 = vmatprep.subr.mxu0 0.0
        %1608 = vmatpush2.xpose.msra.mxu0 0.0
        %1609 = vmatprep.subr.mxu0 0.0
        %1610 = vmatpush2.xpose.msra.mxu0 0.0
        %1611 = vmatprep.subr.mxu0 0.0
        %1612 = vmatpush2.xpose.msra.mxu0 0.0
        %1613 = vmatprep.subr.mxu0 0.0
        %1614 = vmatpush2.xpose.msra.mxu0 0.0
        %1615 = vmatprep.subr.mxu0 0.0
        %1616 = vmatpush2.xpose.msra.mxu0 0.0
        %1617 = vmatprep.subr.mxu0 0.0
        %1618 = vmatpush2.xpose.msra.mxu0 0.0
        %1619 = vmatprep.subr.mxu0 0.0
        %1620 = vmatpush2.xpose.msra.mxu0 0.0
        %1621 = vmatprep.subr.mxu0 0.0
        %1622 = vmatpush2.xpose.msra.mxu0 0.0
        %1623 = vmatprep.subr.mxu0 0.0
        %1624 = vmatpush2.xpose.msra.mxu0 0.0
        %1625 = vmatprep.mubr.f32.mxu0 0.0
        %1626 = vmatmul.mubr.f32.gmra.mxu0 %v1557
        %v1627 = vpop.f32.mrf.mxu0
        %v1628 = vadd.f32 0.0, %v1627
        %v1629 = vpop.f32.mrf.mxu0
        %1630 = vdwg.mxu0
        %v1631 = vmul.f32 %v1628, 0.35355338
        %v1632 = vsel %vm1058, %v1631, -inf
        %1633 = vmax.xlane.f32.xlu0 %v1632
        %v1634 = vpop.xlane.xlu0 %1633
        %v1635 = vsub.f32 %v1631, %v1634
        %v1636 = vmul.f32 %v1635, 1.442695
        %v1637 = vpow.pop %v1636
        %v1638 = vsel %vm1058, %v1637, 0.0
        %1639 = vadd.xlane.f32.xlu0 %v1638
        %v1640 = vpop.xlane.xlu0 %1639
        %v1641 = vrcp.pop %v1640
        %v1642 = vmul.f32 %v1637, %v1641
        %1643 = vrot.lane.b32.xlu0 %v1055, 104
        %v1644 = vpop.permute.xlu0 %1643
        %v1647 = vsel %vm1058, %v1642, 0
        %1649 = vmatprep.subr.mxu0 0.0
        %1650 = vmatpush1.msra.mxu0 0.0
        %1651 = vmatprep.subr.mxu0 0.0
        %1652 = vmatpush1.msra.mxu0 0.0
        %1653 = vmatprep.subr.mxu0 0.0
        %1654 = vmatpush1.msra.mxu0 0.0
        %1655 = vmatprep.subr.mxu0 0.0
        %1656 = vmatpush1.msra.mxu0 0.0
        %1657 = vmatprep.subr.mxu0 0.0
        %1658 = vmatpush1.msra.mxu0 0.0
        %1659 = vmatprep.subr.mxu0 0.0
        %1660 = vmatpush1.msra.mxu0 0.0
        %1661 = vmatprep.subr.mxu0 0.0
        %1662 = vmatpush1.msra.mxu0 0.0
        %1663 = vmatprep.subr.mxu0 0.0
        %1664 = vmatpush1.msra.mxu0 0.0
        %1665 = vmatprep.subr.mxu0 0.0
        %1666 = vmatpush1.msra.mxu0 0.0
        %1667 = vmatprep.subr.mxu0 0.0
        %1668 = vmatpush1.msra.mxu0 0.0
        %1669 = vmatprep.subr.mxu0 0.0
        %1670 = vmatpush1.msra.mxu0 0.0
        %1671 = vmatprep.subr.mxu0 0.0
        %1672 = vmatpush1.msra.mxu0 0.0
        %1673 = vmatprep.subr.mxu0 0.0
        %1674 = vmatpush1.msra.mxu0 0.0
        %1675 = vmatprep.subr.mxu0 0.0
        %1676 = vmatpush1.msra.mxu0 0.0
        %1677 = vmatprep.subr.mxu0 0.0
        %1678 = vmatpush1.msra.mxu0 0.0
        %1679 = vmatprep.subr.mxu0 0.0
        %1680 = vmatpush1.msra.mxu0 %v1644
        %1681 = vmatprep.subr.mxu0 0.0
        %1682 = vmatpush2.msra.mxu0 0.0
        %1683 = vmatprep.subr.mxu0 0.0
        %1684 = vmatpush2.msra.mxu0 0.0
        %1685 = vmatprep.subr.mxu0 0.0
        %1686 = vmatpush2.msra.mxu0 0.0
        %1687 = vmatprep.subr.mxu0 0.0
        %1688 = vmatpush2.msra.mxu0 0.0
        %1689 = vmatprep.subr.mxu0 0.0
        %1690 = vmatpush2.msra.mxu0 0.0
        %1691 = vmatprep.subr.mxu0 0.0
        %1692 = vmatpush2.msra.mxu0 0.0
        %1693 = vmatprep.subr.mxu0 0.0
        %1694 = vmatpush2.msra.mxu0 0.0
        %1695 = vmatprep.subr.mxu0 0.0
        %1696 = vmatpush2.msra.mxu0 0.0
        %1697 = vmatprep.subr.mxu0 0.0
        %1698 = vmatpush2.msra.mxu0 0.0
        %1699 = vmatprep.subr.mxu0 0.0
        %1700 = vmatpush2.msra.mxu0 0.0
        %1701 = vmatprep.subr.mxu0 0.0
        %1702 = vmatpush2.msra.mxu0 0.0
        %1703 = vmatprep.subr.mxu0 0.0
        %1704 = vmatpush2.msra.mxu0 0.0
        %1705 = vmatprep.subr.mxu0 0.0
        %1706 = vmatpush2.msra.mxu0 0.0
        %1707 = vmatprep.subr.mxu0 0.0
        %1708 = vmatpush2.msra.mxu0 0.0
        %1709 = vmatprep.subr.mxu0 0.0
        %1710 = vmatpush2.msra.mxu0 0.0
        %1711 = vmatprep.subr.mxu0 0.0
        %1712 = vmatpush2.msra.mxu0 0.0
        %1713 = vmatprep.mubr.f32.mxu0 0.0
        %1714 = vmatmul.mubr.f32.gmra.mxu0 %v1647
        %v1715 = vpop.f32.mrf.mxu0
        %v1716 = vadd.f32 0.0, %v1715
        %v1717 = vpop.f32.mrf.mxu0
        %1718 = vdwg.mxu0
        %1719 = vrot.lane.b32.xlu0 %v885, 96
        %v1720 = vpop.permute.xlu0 %1719
        %1721 = vrot.lane.b32.xlu0 %v970, 96
        %v1722 = vpop.permute.xlu0 %1721
        %v1723 = vsel %vm1058, %v1720, 0
        %v1725 = vsel %vm1058, %v1722, 0
        %1727 = vmatprep.subr.mxu0 0.0
        %1728 = vmatpush1.xpose.msra.mxu0 0.0
        %1729 = vmatprep.subr.mxu0 0.0
        %1730 = vmatpush1.xpose.msra.mxu0 0.0
        %1731 = vmatprep.subr.mxu0 0.0
        %1732 = vmatpush1.xpose.msra.mxu0 0.0
        %1733 = vmatprep.subr.mxu0 0.0
        %1734 = vmatpush1.xpose.msra.mxu0 0.0
        %1735 = vmatprep.subr.mxu0 0.0
        %1736 = vmatpush1.xpose.msra.mxu0 0.0
        %1737 = vmatprep.subr.mxu0 0.0
        %1738 = vmatpush1.xpose.msra.mxu0 0.0
        %1739 = vmatprep.subr.mxu0 0.0
        %1740 = vmatpush1.xpose.msra.mxu0 0.0
        %1741 = vmatprep.subr.mxu0 0.0
        %1742 = vmatpush1.xpose.msra.mxu0 0.0
        %1743 = vmatprep.subr.mxu0 0.0
        %1744 = vmatpush1.xpose.msra.mxu0 0.0
        %1745 = vmatprep.subr.mxu0 0.0
        %1746 = vmatpush1.xpose.msra.mxu0 0.0
        %1747 = vmatprep.subr.mxu0 0.0
        %1748 = vmatpush1.xpose.msra.mxu0 0.0
        %1749 = vmatprep.subr.mxu0 0.0
        %1750 = vmatpush1.xpose.msra.mxu0 0.0
        %1751 = vmatprep.subr.mxu0 0.0
        %1752 = vmatpush1.xpose.msra.mxu0 0.0
        %1753 = vmatprep.subr.mxu0 0.0
        %1754 = vmatpush1.xpose.msra.mxu0 0.0
        %1755 = vmatprep.subr.mxu0 0.0
        %1756 = vmatpush1.xpose.msra.mxu0 0.0
        %1757 = vmatprep.subr.mxu0 0.0
        %1758 = vmatpush1.xpose.msra.mxu0 %v1725
        %1759 = vmatprep.subr.mxu0 0.0
        %1760 = vmatpush2.xpose.msra.mxu0 0.0
        %1761 = vmatprep.subr.mxu0 0.0
        %1762 = vmatpush2.xpose.msra.mxu0 0.0
        %1763 = vmatprep.subr.mxu0 0.0
        %1764 = vmatpush2.xpose.msra.mxu0 0.0
        %1765 = vmatprep.subr.mxu0 0.0
        %1766 = vmatpush2.xpose.msra.mxu0 0.0
        %1767 = vmatprep.subr.mxu0 0.0
        %1768 = vmatpush2.xpose.msra.mxu0 0.0
        %1769 = vmatprep.subr.mxu0 0.0
        %1770 = vmatpush2.xpose.msra.mxu0 0.0
        %1771 = vmatprep.subr.mxu0 0.0
        %1772 = vmatpush2.xpose.msra.mxu0 0.0
        %1773 = vmatprep.subr.mxu0 0.0
        %1774 = vmatpush2.xpose.msra.mxu0 0.0
        %1775 = vmatprep.subr.mxu0 0.0
        %1776 = vmatpush2.xpose.msra.mxu0 0.0
        %1777 = vmatprep.subr.mxu0 0.0
        %1778 = vmatpush2.xpose.msra.mxu0 0.0
        %1779 = vmatprep.subr.mxu0 0.0
        %1780 = vmatpush2.xpose.msra.mxu0 0.0
        %1781 = vmatprep.subr.mxu0 0.0
        %1782 = vmatpush2.xpose.msra.mxu0 0.0
        %1783 = vmatprep.subr.mxu0 0.0
        %1784 = vmatpush2.xpose.msra.mxu0 0.0
        %1785 = vmatprep.subr.mxu0 0.0
        %1786 = vmatpush2.xpose.msra.mxu0 0.0
        %1787 = vmatprep.subr.mxu0 0.0
        %1788 = vmatpush2.xpose.msra.mxu0 0.0
        %1789 = vmatprep.subr.mxu0 0.0
        %1790 = vmatpush2.xpose.msra.mxu0 0.0
        %1791 = vmatprep.mubr.f32.mxu0 0.0
        %1792 = vmatmul.mubr.f32.gmra.mxu0 %v1723
        %v1793 = vpop.f32.mrf.mxu0
        %v1794 = vadd.f32 0.0, %v1793
        %v1795 = vpop.f32.mrf.mxu0
        %1796 = vdwg.mxu0
        %v1797 = vmul.f32 %v1794, 0.35355338
        %v1798 = vsel %vm1058, %v1797, -inf
        %1799 = vmax.xlane.f32.xlu0 %v1798
        %v1800 = vpop.xlane.xlu0 %1799
        %v1801 = vsub.f32 %v1797, %v1800
        %v1802 = vmul.f32 %v1801, 1.442695
        %v1803 = vpow.pop %v1802
        %v1804 = vsel %vm1058, %v1803, 0.0
        %1805 = vadd.xlane.f32.xlu0 %v1804
        %v1806 = vpop.xlane.xlu0 %1805
        %v1807 = vrcp.pop %v1806
        %v1808 = vmul.f32 %v1803, %v1807
        %1809 = vrot.lane.b32.xlu0 %v1055, 96
        %v1810 = vpop.permute.xlu0 %1809
        %v1813 = vsel %vm1058, %v1808, 0
        %1815 = vmatprep.subr.mxu0 0.0
        %1816 = vmatpush1.msra.mxu0 0.0
        %1817 = vmatprep.subr.mxu0 0.0
        %1818 = vmatpush1.msra.mxu0 0.0
        %1819 = vmatprep.subr.mxu0 0.0
        %1820 = vmatpush1.msra.mxu0 0.0
        %1821 = vmatprep.subr.mxu0 0.0
        %1822 = vmatpush1.msra.mxu0 0.0
        %1823 = vmatprep.subr.mxu0 0.0
        %1824 = vmatpush1.msra.mxu0 0.0
        %1825 = vmatprep.subr.mxu0 0.0
        %1826 = vmatpush1.msra.mxu0 0.0
        %1827 = vmatprep.subr.mxu0 0.0
        %1828 = vmatpush1.msra.mxu0 0.0
        %1829 = vmatprep.subr.mxu0 0.0
        %1830 = vmatpush1.msra.mxu0 0.0
        %1831 = vmatprep.subr.mxu0 0.0
        %1832 = vmatpush1.msra.mxu0 0.0
        %1833 = vmatprep.subr.mxu0 0.0
        %1834 = vmatpush1.msra.mxu0 0.0
        %1835 = vmatprep.subr.mxu0 0.0
        %1836 = vmatpush1.msra.mxu0 0.0
        %1837 = vmatprep.subr.mxu0 0.0
        %1838 = vmatpush1.msra.mxu0 0.0
        %1839 = vmatprep.subr.mxu0 0.0
        %1840 = vmatpush1.msra.mxu0 0.0
        %1841 = vmatprep.subr.mxu0 0.0
        %1842 = vmatpush1.msra.mxu0 0.0
        %1843 = vmatprep.subr.mxu0 0.0
        %1844 = vmatpush1.msra.mxu0 0.0
        %1845 = vmatprep.subr.mxu0 0.0
        %1846 = vmatpush1.msra.mxu0 %v1810
        %1847 = vmatprep.subr.mxu0 0.0
        %1848 = vmatpush2.msra.mxu0 0.0
        %1849 = vmatprep.subr.mxu0 0.0
        %1850 = vmatpush2.msra.mxu0 0.0
        %1851 = vmatprep.subr.mxu0 0.0
        %1852 = vmatpush2.msra.mxu0 0.0
        %1853 = vmatprep.subr.mxu0 0.0
        %1854 = vmatpush2.msra.mxu0 0.0
        %1855 = vmatprep.subr.mxu0 0.0
        %1856 = vmatpush2.msra.mxu0 0.0
        %1857 = vmatprep.subr.mxu0 0.0
        %1858 = vmatpush2.msra.mxu0 0.0
        %1859 = vmatprep.subr.mxu0 0.0
        %1860 = vmatpush2.msra.mxu0 0.0
        %1861 = vmatprep.subr.mxu0 0.0
        %1862 = vmatpush2.msra.mxu0 0.0
        %1863 = vmatprep.subr.mxu0 0.0
        %1864 = vmatpush2.msra.mxu0 0.0
        %1865 = vmatprep.subr.mxu0 0.0
        %1866 = vmatpush2.msra.mxu0 0.0
        %1867 = vmatprep.subr.mxu0 0.0
        %1868 = vmatpush2.msra.mxu0 0.0
        %1869 = vmatprep.subr.mxu0 0.0
        %1870 = vmatpush2.msra.mxu0 0.0
        %1871 = vmatprep.subr.mxu0 0.0
        %1872 = vmatpush2.msra.mxu0 0.0
        %1873 = vmatprep.subr.mxu0 0.0
        %1874 = vmatpush2.msra.mxu0 0.0
        %1875 = vmatprep.subr.mxu0 0.0
        %1876 = vmatpush2.msra.mxu0 0.0
        %1877 = vmatprep.subr.mxu0 0.0
        %1878 = vmatpush2.msra.mxu0 0.0
        %1879 = vmatprep.mubr.f32.mxu0 0.0
        %1880 = vmatmul.mubr.f32.gmra.mxu0 %v1813
        %v1881 = vpop.f32.mrf.mxu0
        %v1882 = vadd.f32 0.0, %v1881
        %v1883 = vpop.f32.mrf.mxu0
        %1884 = vdwg.mxu0
        %1885 = vrot.lane.b32.xlu0 %v885, 88
        %v1886 = vpop.permute.xlu0 %1885
        %1887 = vrot.lane.b32.xlu0 %v970, 88
        %v1888 = vpop.permute.xlu0 %1887
        %v1889 = vsel %vm1058, %v1886, 0
        %v1891 = vsel %vm1058, %v1888, 0
        %1893 = vmatprep.subr.mxu0 0.0
        %1894 = vmatpush1.xpose.msra.mxu0 0.0
        %1895 = vmatprep.subr.mxu0 0.0
        %1896 = vmatpush1.xpose.msra.mxu0 0.0
        %1897 = vmatprep.subr.mxu0 0.0
        %1898 = vmatpush1.xpose.msra.mxu0 0.0
        %1899 = vmatprep.subr.mxu0 0.0
        %1900 = vmatpush1.xpose.msra.mxu0 0.0
        %1901 = vmatprep.subr.mxu0 0.0
        %1902 = vmatpush1.xpose.msra.mxu0 0.0
        %1903 = vmatprep.subr.mxu0 0.0
        %1904 = vmatpush1.xpose.msra.mxu0 0.0
        %1905 = vmatprep.subr.mxu0 0.0
        %1906 = vmatpush1.xpose.msra.mxu0 0.0
        %1907 = vmatprep.subr.mxu0 0.0
        %1908 = vmatpush1.xpose.msra.mxu0 0.0
        %1909 = vmatprep.subr.mxu0 0.0
        %1910 = vmatpush1.xpose.msra.mxu0 0.0
        %1911 = vmatprep.subr.mxu0 0.0
        %1912 = vmatpush1.xpose.msra.mxu0 0.0
        %1913 = vmatprep.subr.mxu0 0.0
        %1914 = vmatpush1.xpose.msra.mxu0 0.0
        %1915 = vmatprep.subr.mxu0 0.0
        %1916 = vmatpush1.xpose.msra.mxu0 0.0
        %1917 = vmatprep.subr.mxu0 0.0
        %1918 = vmatpush1.xpose.msra.mxu0 0.0
        %1919 = vmatprep.subr.mxu0 0.0
        %1920 = vmatpush1.xpose.msra.mxu0 0.0
        %1921 = vmatprep.subr.mxu0 0.0
        %1922 = vmatpush1.xpose.msra.mxu0 0.0
        %1923 = vmatprep.subr.mxu0 0.0
        %1924 = vmatpush1.xpose.msra.mxu0 %v1891
        %1925 = vmatprep.subr.mxu0 0.0
        %1926 = vmatpush2.xpose.msra.mxu0 0.0
        %1927 = vmatprep.subr.mxu0 0.0
        %1928 = vmatpush2.xpose.msra.mxu0 0.0
        %1929 = vmatprep.subr.mxu0 0.0
        %1930 = vmatpush2.xpose.msra.mxu0 0.0
        %1931 = vmatprep.subr.mxu0 0.0
        %1932 = vmatpush2.xpose.msra.mxu0 0.0
        %1933 = vmatprep.subr.mxu0 0.0
        %1934 = vmatpush2.xpose.msra.mxu0 0.0
        %1935 = vmatprep.subr.mxu0 0.0
        %1936 = vmatpush2.xpose.msra.mxu0 0.0
        %1937 = vmatprep.subr.mxu0 0.0
        %1938 = vmatpush2.xpose.msra.mxu0 0.0
        %1939 = vmatprep.subr.mxu0 0.0
        %1940 = vmatpush2.xpose.msra.mxu0 0.0
        %1941 = vmatprep.subr.mxu0 0.0
        %1942 = vmatpush2.xpose.msra.mxu0 0.0
        %1943 = vmatprep.subr.mxu0 0.0
        %1944 = vmatpush2.xpose.msra.mxu0 0.0
        %1945 = vmatprep.subr.mxu0 0.0
        %1946 = vmatpush2.xpose.msra.mxu0 0.0
        %1947 = vmatprep.subr.mxu0 0.0
        %1948 = vmatpush2.xpose.msra.mxu0 0.0
        %1949 = vmatprep.subr.mxu0 0.0
        %1950 = vmatpush2.xpose.msra.mxu0 0.0
        %1951 = vmatprep.subr.mxu0 0.0
        %1952 = vmatpush2.xpose.msra.mxu0 0.0
        %1953 = vmatprep.subr.mxu0 0.0
        %1954 = vmatpush2.xpose.msra.mxu0 0.0
        %1955 = vmatprep.subr.mxu0 0.0
        %1956 = vmatpush2.xpose.msra.mxu0 0.0
        %1957 = vmatprep.mubr.f32.mxu0 0.0
        %1958 = vmatmul.mubr.f32.gmra.mxu0 %v1889
        %v1959 = vpop.f32.mrf.mxu0
        %v1960 = vadd.f32 0.0, %v1959
        %v1961 = vpop.f32.mrf.mxu0
        %1962 = vdwg.mxu0
        %v1963 = vmul.f32 %v1960, 0.35355338
        %v1964 = vsel %vm1058, %v1963, -inf
        %1965 = vmax.xlane.f32.xlu0 %v1964
        %v1966 = vpop.xlane.xlu0 %1965
        %v1967 = vsub.f32 %v1963, %v1966
        %v1968 = vmul.f32 %v1967, 1.442695
        %v1969 = vpow.pop %v1968
        %v1970 = vsel %vm1058, %v1969, 0.0
        %1971 = vadd.xlane.f32.xlu0 %v1970
        %v1972 = vpop.xlane.xlu0 %1971
        %v1973 = vrcp.pop %v1972
        %v1974 = vmul.f32 %v1969, %v1973
        %1975 = vrot.lane.b32.xlu0 %v1055, 88
        %v1976 = vpop.permute.xlu0 %1975
        %v1979 = vsel %vm1058, %v1974, 0
        %1981 = vmatprep.subr.mxu0 0.0
        %1982 = vmatpush1.msra.mxu0 0.0
        %1983 = vmatprep.subr.mxu0 0.0
        %1984 = vmatpush1.msra.mxu0 0.0
        %1985 = vmatprep.subr.mxu0 0.0
        %1986 = vmatpush1.msra.mxu0 0.0
        %1987 = vmatprep.subr.mxu0 0.0
        %1988 = vmatpush1.msra.mxu0 0.0
        %1989 = vmatprep.subr.mxu0 0.0
        %1990 = vmatpush1.msra.mxu0 0.0
        %1991 = vmatprep.subr.mxu0 0.0
        %1992 = vmatpush1.msra.mxu0 0.0
        %1993 = vmatprep.subr.mxu0 0.0
        %1994 = vmatpush1.msra.mxu0 0.0
        %1995 = vmatprep.subr.mxu0 0.0
        %1996 = vmatpush1.msra.mxu0 0.0
        %1997 = vmatprep.subr.mxu0 0.0
        %1998 = vmatpush1.msra.mxu0 0.0
        %1999 = vmatprep.subr.mxu0 0.0
        %2000 = vmatpush1.msra.mxu0 0.0
        %2001 = vmatprep.subr.mxu0 0.0
        %2002 = vmatpush1.msra.mxu0 0.0
        %2003 = vmatprep.subr.mxu0 0.0
        %2004 = vmatpush1.msra.mxu0 0.0
        %2005 = vmatprep.subr.mxu0 0.0
        %2006 = vmatpush1.msra.mxu0 0.0
        %2007 = vmatprep.subr.mxu0 0.0
        %2008 = vmatpush1.msra.mxu0 0.0
        %2009 = vmatprep.subr.mxu0 0.0
        %2010 = vmatpush1.msra.mxu0 0.0
        %2011 = vmatprep.subr.mxu0 0.0
        %2012 = vmatpush1.msra.mxu0 %v1976
        %2013 = vmatprep.subr.mxu0 0.0
        %2014 = vmatpush2.msra.mxu0 0.0
        %2015 = vmatprep.subr.mxu0 0.0
        %2016 = vmatpush2.msra.mxu0 0.0
        %2017 = vmatprep.subr.mxu0 0.0
        %2018 = vmatpush2.msra.mxu0 0.0
        %2019 = vmatprep.subr.mxu0 0.0
        %2020 = vmatpush2.msra.mxu0 0.0
        %2021 = vmatprep.subr.mxu0 0.0
        %2022 = vmatpush2.msra.mxu0 0.0
        %2023 = vmatprep.subr.mxu0 0.0
        %2024 = vmatpush2.msra.mxu0 0.0
        %2025 = vmatprep.subr.mxu0 0.0
        %2026 = vmatpush2.msra.mxu0 0.0
        %2027 = vmatprep.subr.mxu0 0.0
        %2028 = vmatpush2.msra.mxu0 0.0
        %2029 = vmatprep.subr.mxu0 0.0
        %2030 = vmatpush2.msra.mxu0 0.0
        %2031 = vmatprep.subr.mxu0 0.0
        %2032 = vmatpush2.msra.mxu0 0.0
        %2033 = vmatprep.subr.mxu0 0.0
        %2034 = vmatpush2.msra.mxu0 0.0
        %2035 = vmatprep.subr.mxu0 0.0
        %2036 = vmatpush2.msra.mxu0 0.0
        %2037 = vmatprep.subr.mxu0 0.0
        %2038 = vmatpush2.msra.mxu0 0.0
        %2039 = vmatprep.subr.mxu0 0.0
        %2040 = vmatpush2.msra.mxu0 0.0
        %2041 = vmatprep.subr.mxu0 0.0
        %2042 = vmatpush2.msra.mxu0 0.0
        %2043 = vmatprep.subr.mxu0 0.0
        %2044 = vmatpush2.msra.mxu0 0.0
        %2045 = vmatprep.mubr.f32.mxu0 0.0
        %2046 = vmatmul.mubr.f32.gmra.mxu0 %v1979
        %v2047 = vpop.f32.mrf.mxu0
        %v2048 = vadd.f32 0.0, %v2047
        %v2049 = vpop.f32.mrf.mxu0
        %2050 = vdwg.mxu0
        %2051 = vrot.lane.b32.xlu0 %v885, 80
        %v2052 = vpop.permute.xlu0 %2051
        %2053 = vrot.lane.b32.xlu0 %v970, 80
        %v2054 = vpop.permute.xlu0 %2053
        %v2055 = vsel %vm1058, %v2052, 0
        %v2057 = vsel %vm1058, %v2054, 0
        %2059 = vmatprep.subr.mxu0 0.0
        %2060 = vmatpush1.xpose.msra.mxu0 0.0
        %2061 = vmatprep.subr.mxu0 0.0
        %2062 = vmatpush1.xpose.msra.mxu0 0.0
        %2063 = vmatprep.subr.mxu0 0.0
        %2064 = vmatpush1.xpose.msra.mxu0 0.0
        %2065 = vmatprep.subr.mxu0 0.0
        %2066 = vmatpush1.xpose.msra.mxu0 0.0
        %2067 = vmatprep.subr.mxu0 0.0
        %2068 = vmatpush1.xpose.msra.mxu0 0.0
        %2069 = vmatprep.subr.mxu0 0.0
        %2070 = vmatpush1.xpose.msra.mxu0 0.0
        %2071 = vmatprep.subr.mxu0 0.0
        %2072 = vmatpush1.xpose.msra.mxu0 0.0
        %2073 = vmatprep.subr.mxu0 0.0
        %2074 = vmatpush1.xpose.msra.mxu0 0.0
        %2075 = vmatprep.subr.mxu0 0.0
        %2076 = vmatpush1.xpose.msra.mxu0 0.0
        %2077 = vmatprep.subr.mxu0 0.0
        %2078 = vmatpush1.xpose.msra.mxu0 0.0
        %2079 = vmatprep.subr.mxu0 0.0
        %2080 = vmatpush1.xpose.msra.mxu0 0.0
        %2081 = vmatprep.subr.mxu0 0.0
        %2082 = vmatpush1.xpose.msra.mxu0 0.0
        %2083 = vmatprep.subr.mxu0 0.0
        %2084 = vmatpush1.xpose.msra.mxu0 0.0
        %2085 = vmatprep.subr.mxu0 0.0
        %2086 = vmatpush1.xpose.msra.mxu0 0.0
        %2087 = vmatprep.subr.mxu0 0.0
        %2088 = vmatpush1.xpose.msra.mxu0 0.0
        %2089 = vmatprep.subr.mxu0 0.0
        %2090 = vmatpush1.xpose.msra.mxu0 %v2057
        %2091 = vmatprep.subr.mxu0 0.0
        %2092 = vmatpush2.xpose.msra.mxu0 0.0
        %2093 = vmatprep.subr.mxu0 0.0
        %2094 = vmatpush2.xpose.msra.mxu0 0.0
        %2095 = vmatprep.subr.mxu0 0.0
        %2096 = vmatpush2.xpose.msra.mxu0 0.0
        %2097 = vmatprep.subr.mxu0 0.0
        %2098 = vmatpush2.xpose.msra.mxu0 0.0
        %2099 = vmatprep.subr.mxu0 0.0
        %2100 = vmatpush2.xpose.msra.mxu0 0.0
        %2101 = vmatprep.subr.mxu0 0.0
        %2102 = vmatpush2.xpose.msra.mxu0 0.0
        %2103 = vmatprep.subr.mxu0 0.0
        %2104 = vmatpush2.xpose.msra.mxu0 0.0
        %2105 = vmatprep.subr.mxu0 0.0
        %2106 = vmatpush2.xpose.msra.mxu0 0.0
        %2107 = vmatprep.subr.mxu0 0.0
        %2108 = vmatpush2.xpose.msra.mxu0 0.0
        %2109 = vmatprep.subr.mxu0 0.0
        %2110 = vmatpush2.xpose.msra.mxu0 0.0
        %2111 = vmatprep.subr.mxu0 0.0
        %2112 = vmatpush2.xpose.msra.mxu0 0.0
        %2113 = vmatprep.subr.mxu0 0.0
        %2114 = vmatpush2.xpose.msra.mxu0 0.0
        %2115 = vmatprep.subr.mxu0 0.0
        %2116 = vmatpush2.xpose.msra.mxu0 0.0
        %2117 = vmatprep.subr.mxu0 0.0
        %2118 = vmatpush2.xpose.msra.mxu0 0.0
        %2119 = vmatprep.subr.mxu0 0.0
        %2120 = vmatpush2.xpose.msra.mxu0 0.0
        %2121 = vmatprep.subr.mxu0 0.0
        %2122 = vmatpush2.xpose.msra.mxu0 0.0
        %2123 = vmatprep.mubr.f32.mxu0 0.0
        %2124 = vmatmul.mubr.f32.gmra.mxu0 %v2055
        %v2125 = vpop.f32.mrf.mxu0
        %v2126 = vadd.f32 0.0, %v2125
        %v2127 = vpop.f32.mrf.mxu0
        %2128 = vdwg.mxu0
        %v2129 = vmul.f32 %v2126, 0.35355338
        %v2130 = vsel %vm1058, %v2129, -inf
        %2131 = vmax.xlane.f32.xlu0 %v2130
        %v2132 = vpop.xlane.xlu0 %2131
        %v2133 = vsub.f32 %v2129, %v2132
        %v2134 = vmul.f32 %v2133, 1.442695
        %v2135 = vpow.pop %v2134
        %v2136 = vsel %vm1058, %v2135, 0.0
        %2137 = vadd.xlane.f32.xlu0 %v2136
        %v2138 = vpop.xlane.xlu0 %2137
        %v2139 = vrcp.pop %v2138
        %v2140 = vmul.f32 %v2135, %v2139
        %2141 = vrot.lane.b32.xlu0 %v1055, 80
        %v2142 = vpop.permute.xlu0 %2141
        %v2145 = vsel %vm1058, %v2140, 0
        %2147 = vmatprep.subr.mxu0 0.0
        %2148 = vmatpush1.msra.mxu0 0.0
        %2149 = vmatprep.subr.mxu0 0.0
        %2150 = vmatpush1.msra.mxu0 0.0
        %2151 = vmatprep.subr.mxu0 0.0
        %2152 = vmatpush1.msra.mxu0 0.0
        %2153 = vmatprep.subr.mxu0 0.0
        %2154 = vmatpush1.msra.mxu0 0.0
        %2155 = vmatprep.subr.mxu0 0.0
        %2156 = vmatpush1.msra.mxu0 0.0
        %2157 = vmatprep.subr.mxu0 0.0
        %2158 = vmatpush1.msra.mxu0 0.0
        %2159 = vmatprep.subr.mxu0 0.0
        %2160 = vmatpush1.msra.mxu0 0.0
        %2161 = vmatprep.subr.mxu0 0.0
        %2162 = vmatpush1.msra.mxu0 0.0
        %2163 = vmatprep.subr.mxu0 0.0
        %2164 = vmatpush1.msra.mxu0 0.0
        %2165 = vmatprep.subr.mxu0 0.0
        %2166 = vmatpush1.msra.mxu0 0.0
        %2167 = vmatprep.subr.mxu0 0.0
        %2168 = vmatpush1.msra.mxu0 0.0
        %2169 = vmatprep.subr.mxu0 0.0
        %2170 = vmatpush1.msra.mxu0 0.0
        %2171 = vmatprep.subr.mxu0 0.0
        %2172 = vmatpush1.msra.mxu0 0.0
        %2173 = vmatprep.subr.mxu0 0.0
        %2174 = vmatpush1.msra.mxu0 0.0
        %2175 = vmatprep.subr.mxu0 0.0
        %2176 = vmatpush1.msra.mxu0 0.0
        %2177 = vmatprep.subr.mxu0 0.0
        %2178 = vmatpush1.msra.mxu0 %v2142
        %2179 = vmatprep.subr.mxu0 0.0
        %2180 = vmatpush2.msra.mxu0 0.0
        %2181 = vmatprep.subr.mxu0 0.0
        %2182 = vmatpush2.msra.mxu0 0.0
        %2183 = vmatprep.subr.mxu0 0.0
        %2184 = vmatpush2.msra.mxu0 0.0
        %2185 = vmatprep.subr.mxu0 0.0
        %2186 = vmatpush2.msra.mxu0 0.0
        %2187 = vmatprep.subr.mxu0 0.0
        %2188 = vmatpush2.msra.mxu0 0.0
        %2189 = vmatprep.subr.mxu0 0.0
        %2190 = vmatpush2.msra.mxu0 0.0
        %2191 = vmatprep.subr.mxu0 0.0
        %2192 = vmatpush2.msra.mxu0 0.0
        %2193 = vmatprep.subr.mxu0 0.0
        %2194 = vmatpush2.msra.mxu0 0.0
        %2195 = vmatprep.subr.mxu0 0.0
        %2196 = vmatpush2.msra.mxu0 0.0
        %2197 = vmatprep.subr.mxu0 0.0
        %2198 = vmatpush2.msra.mxu0 0.0
        %2199 = vmatprep.subr.mxu0 0.0
        %2200 = vmatpush2.msra.mxu0 0.0
        %2201 = vmatprep.subr.mxu0 0.0
        %2202 = vmatpush2.msra.mxu0 0.0
        %2203 = vmatprep.subr.mxu0 0.0
        %2204 = vmatpush2.msra.mxu0 0.0
        %2205 = vmatprep.subr.mxu0 0.0
        %2206 = vmatpush2.msra.mxu0 0.0
        %2207 = vmatprep.subr.mxu0 0.0
        %2208 = vmatpush2.msra.mxu0 0.0
        %2209 = vmatprep.subr.mxu0 0.0
        %2210 = vmatpush2.msra.mxu0 0.0
        %2211 = vmatprep.mubr.f32.mxu0 0.0
        %2212 = vmatmul.mubr.f32.gmra.mxu0 %v2145
        %v2213 = vpop.f32.mrf.mxu0
        %v2214 = vadd.f32 0.0, %v2213
        %v2215 = vpop.f32.mrf.mxu0
        %2216 = vdwg.mxu0
        %2217 = vrot.lane.b32.xlu0 %v885, 72
        %v2218 = vpop.permute.xlu0 %2217
        %2219 = vrot.lane.b32.xlu0 %v970, 72
        %v2220 = vpop.permute.xlu0 %2219
        %v2221 = vsel %vm1058, %v2218, 0
        %v2223 = vsel %vm1058, %v2220, 0
        %2225 = vmatprep.subr.mxu0 0.0
        %2226 = vmatpush1.xpose.msra.mxu0 0.0
        %2227 = vmatprep.subr.mxu0 0.0
        %2228 = vmatpush1.xpose.msra.mxu0 0.0
        %2229 = vmatprep.subr.mxu0 0.0
        %2230 = vmatpush1.xpose.msra.mxu0 0.0
        %2231 = vmatprep.subr.mxu0 0.0
        %2232 = vmatpush1.xpose.msra.mxu0 0.0
        %2233 = vmatprep.subr.mxu0 0.0
        %2234 = vmatpush1.xpose.msra.mxu0 0.0
        %2235 = vmatprep.subr.mxu0 0.0
        %2236 = vmatpush1.xpose.msra.mxu0 0.0
        %2237 = vmatprep.subr.mxu0 0.0
        %2238 = vmatpush1.xpose.msra.mxu0 0.0
        %2239 = vmatprep.subr.mxu0 0.0
        %2240 = vmatpush1.xpose.msra.mxu0 0.0
        %2241 = vmatprep.subr.mxu0 0.0
        %2242 = vmatpush1.xpose.msra.mxu0 0.0
        %2243 = vmatprep.subr.mxu0 0.0
        %2244 = vmatpush1.xpose.msra.mxu0 0.0
        %2245 = vmatprep.subr.mxu0 0.0
        %2246 = vmatpush1.xpose.msra.mxu0 0.0
        %2247 = vmatprep.subr.mxu0 0.0
        %2248 = vmatpush1.xpose.msra.mxu0 0.0
        %2249 = vmatprep.subr.mxu0 0.0
        %2250 = vmatpush1.xpose.msra.mxu0 0.0
        %2251 = vmatprep.subr.mxu0 0.0
        %2252 = vmatpush1.xpose.msra.mxu0 0.0
        %2253 = vmatprep.subr.mxu0 0.0
        %2254 = vmatpush1.xpose.msra.mxu0 0.0
        %2255 = vmatprep.subr.mxu0 0.0
        %2256 = vmatpush1.xpose.msra.mxu0 %v2223
        %2257 = vmatprep.subr.mxu0 0.0
        %2258 = vmatpush2.xpose.msra.mxu0 0.0
        %2259 = vmatprep.subr.mxu0 0.0
        %2260 = vmatpush2.xpose.msra.mxu0 0.0
        %2261 = vmatprep.subr.mxu0 0.0
        %2262 = vmatpush2.xpose.msra.mxu0 0.0
        %2263 = vmatprep.subr.mxu0 0.0
        %2264 = vmatpush2.xpose.msra.mxu0 0.0
        %2265 = vmatprep.subr.mxu0 0.0
        %2266 = vmatpush2.xpose.msra.mxu0 0.0
        %2267 = vmatprep.subr.mxu0 0.0
        %2268 = vmatpush2.xpose.msra.mxu0 0.0
        %2269 = vmatprep.subr.mxu0 0.0
        %2270 = vmatpush2.xpose.msra.mxu0 0.0
        %2271 = vmatprep.subr.mxu0 0.0
        %2272 = vmatpush2.xpose.msra.mxu0 0.0
        %2273 = vmatprep.subr.mxu0 0.0
        %2274 = vmatpush2.xpose.msra.mxu0 0.0
        %2275 = vmatprep.subr.mxu0 0.0
        %2276 = vmatpush2.xpose.msra.mxu0 0.0
        %2277 = vmatprep.subr.mxu0 0.0
        %2278 = vmatpush2.xpose.msra.mxu0 0.0
        %2279 = vmatprep.subr.mxu0 0.0
        %2280 = vmatpush2.xpose.msra.mxu0 0.0
        %2281 = vmatprep.subr.mxu0 0.0
        %2282 = vmatpush2.xpose.msra.mxu0 0.0
        %2283 = vmatprep.subr.mxu0 0.0
        %2284 = vmatpush2.xpose.msra.mxu0 0.0
        %2285 = vmatprep.subr.mxu0 0.0
        %2286 = vmatpush2.xpose.msra.mxu0 0.0
        %2287 = vmatprep.subr.mxu0 0.0
        %2288 = vmatpush2.xpose.msra.mxu0 0.0
        %2289 = vmatprep.mubr.f32.mxu0 0.0
        %2290 = vmatmul.mubr.f32.gmra.mxu0 %v2221
        %v2291 = vpop.f32.mrf.mxu0
        %v2292 = vadd.f32 0.0, %v2291
        %v2293 = vpop.f32.mrf.mxu0
        %2294 = vdwg.mxu0
        %v2295 = vmul.f32 %v2292, 0.35355338
        %v2296 = vsel %vm1058, %v2295, -inf
        %2297 = vmax.xlane.f32.xlu0 %v2296
        %v2298 = vpop.xlane.xlu0 %2297
        %v2299 = vsub.f32 %v2295, %v2298
        %v2300 = vmul.f32 %v2299, 1.442695
        %v2301 = vpow.pop %v2300
        %v2302 = vsel %vm1058, %v2301, 0.0
        %2303 = vadd.xlane.f32.xlu0 %v2302
        %v2304 = vpop.xlane.xlu0 %2303
        %v2305 = vrcp.pop %v2304
        %v2306 = vmul.f32 %v2301, %v2305
        %2307 = vrot.lane.b32.xlu0 %v1055, 72
        %v2308 = vpop.permute.xlu0 %2307
        %v2311 = vsel %vm1058, %v2306, 0
        %2313 = vmatprep.subr.mxu0 0.0
        %2314 = vmatpush1.msra.mxu0 0.0
        %2315 = vmatprep.subr.mxu0 0.0
        %2316 = vmatpush1.msra.mxu0 0.0
        %2317 = vmatprep.subr.mxu0 0.0
        %2318 = vmatpush1.msra.mxu0 0.0
        %2319 = vmatprep.subr.mxu0 0.0
        %2320 = vmatpush1.msra.mxu0 0.0
        %2321 = vmatprep.subr.mxu0 0.0
        %2322 = vmatpush1.msra.mxu0 0.0
        %2323 = vmatprep.subr.mxu0 0.0
        %2324 = vmatpush1.msra.mxu0 0.0
        %2325 = vmatprep.subr.mxu0 0.0
        %2326 = vmatpush1.msra.mxu0 0.0
        %2327 = vmatprep.subr.mxu0 0.0
        %2328 = vmatpush1.msra.mxu0 0.0
        %2329 = vmatprep.subr.mxu0 0.0
        %2330 = vmatpush1.msra.mxu0 0.0
        %2331 = vmatprep.subr.mxu0 0.0
        %2332 = vmatpush1.msra.mxu0 0.0
        %2333 = vmatprep.subr.mxu0 0.0
        %2334 = vmatpush1.msra.mxu0 0.0
        %2335 = vmatprep.subr.mxu0 0.0
        %2336 = vmatpush1.msra.mxu0 0.0
        %2337 = vmatprep.subr.mxu0 0.0
        %2338 = vmatpush1.msra.mxu0 0.0
        %2339 = vmatprep.subr.mxu0 0.0
        %2340 = vmatpush1.msra.mxu0 0.0
        %2341 = vmatprep.subr.mxu0 0.0
        %2342 = vmatpush1.msra.mxu0 0.0
        %2343 = vmatprep.subr.mxu0 0.0
        %2344 = vmatpush1.msra.mxu0 %v2308
        %2345 = vmatprep.subr.mxu0 0.0
        %2346 = vmatpush2.msra.mxu0 0.0
        %2347 = vmatprep.subr.mxu0 0.0
        %2348 = vmatpush2.msra.mxu0 0.0
        %2349 = vmatprep.subr.mxu0 0.0
        %2350 = vmatpush2.msra.mxu0 0.0
        %2351 = vmatprep.subr.mxu0 0.0
        %2352 = vmatpush2.msra.mxu0 0.0
        %2353 = vmatprep.subr.mxu0 0.0
        %2354 = vmatpush2.msra.mxu0 0.0
        %2355 = vmatprep.subr.mxu0 0.0
        %2356 = vmatpush2.msra.mxu0 0.0
        %2357 = vmatprep.subr.mxu0 0.0
        %2358 = vmatpush2.msra.mxu0 0.0
        %2359 = vmatprep.subr.mxu0 0.0
        %2360 = vmatpush2.msra.mxu0 0.0
        %2361 = vmatprep.subr.mxu0 0.0
        %2362 = vmatpush2.msra.mxu0 0.0
        %2363 = vmatprep.subr.mxu0 0.0
        %2364 = vmatpush2.msra.mxu0 0.0
        %2365 = vmatprep.subr.mxu0 0.0
        %2366 = vmatpush2.msra.mxu0 0.0
        %2367 = vmatprep.subr.mxu0 0.0
        %2368 = vmatpush2.msra.mxu0 0.0
        %2369 = vmatprep.subr.mxu0 0.0
        %2370 = vmatpush2.msra.mxu0 0.0
        %2371 = vmatprep.subr.mxu0 0.0
        %2372 = vmatpush2.msra.mxu0 0.0
        %2373 = vmatprep.subr.mxu0 0.0
        %2374 = vmatpush2.msra.mxu0 0.0
        %2375 = vmatprep.subr.mxu0 0.0
        %2376 = vmatpush2.msra.mxu0 0.0
        %2377 = vmatprep.mubr.f32.mxu0 0.0
        %2378 = vmatmul.mubr.f32.gmra.mxu0 %v2311
        %v2379 = vpop.f32.mrf.mxu0
        %v2380 = vadd.f32 0.0, %v2379
        %v2381 = vpop.f32.mrf.mxu0
        %2382 = vdwg.mxu0
        %2384 = vrot.lane.b32.xlu0 %v1384, 8
        %v2385 = vpop.permute.xlu0 %2384
        %2388 = vrot.lane.b32.xlu0 %v1550, 16
        %v2389 = vpop.permute.xlu0 %2388
        %2392 = vrot.lane.b32.xlu0 %v1716, 24
        %v2393 = vpop.permute.xlu0 %2392
        %2396 = vrot.lane.b32.xlu0 %v1882, 32
        %v2397 = vpop.permute.xlu0 %2396
        %2400 = vrot.lane.b32.xlu0 %v2048, 40
        %v2401 = vpop.permute.xlu0 %2400
        %2404 = vrot.lane.b32.xlu0 %v2214, 48
        %v2405 = vpop.permute.xlu0 %2404
        %2408 = vrot.lane.b32.xlu0 %v2380, 56
        %v2409 = vpop.permute.xlu0 %2408
        %v2411 = vsel %vm1058, %v1217, %v2385
        %vm2412 = vcmask 130048
        %v2413 = vsel %vm2412, %v2411, %v2389
        %vm2414 = vcmask 195584
        %v2415 = vsel %vm2414, %v2413, %v2393
        %vm2416 = vcmask 261120
        %v2417 = vsel %vm2416, %v2415, %v2397
        %vm2418 = vcmask 326656
        %v2419 = vsel %vm2418, %v2417, %v2401
        %vm2420 = vcmask 392192
        %v2421 = vsel %vm2420, %v2419, %v2405
        %vm2422 = vcmask 457728
        %v2423 = vsel %vm2422, %v2421, %v2409
        %v2424 = vld [vmem:[%s7] sm:$0xff]
        %v2425 = vld [vmem:[%s7 + $0x8] sm:$0xff]
        %v2426 = vld [vmem:[%s7 + $0x10] sm:$0xff]
        %v2427 = vld [vmem:[%s7 + $0x18] sm:$0xff]
        %v2428 = vld [vmem:[%s7 + $0x20] sm:$0xff]
        %v2429 = vld [vmem:[%s7 + $0x28] sm:$0xff]
        %v2430 = vld [vmem:[%s7 + $0x30] sm:$0xff]
        %v2431 = vld [vmem:[%s7 + $0x38] sm:$0xff]
        %v2433 = vsel %vm814, %v2423, 0
        %2435 = vmatprep.subr.mxu0 0.0
        %2436 = vmatpush1.msra.mxu0 0.0
        %2437 = vmatprep.subr.mxu0 0.0
        %2438 = vmatpush1.msra.mxu0 0.0
        %2439 = vmatprep.subr.mxu0 0.0
        %2440 = vmatpush1.msra.mxu0 0.0
        %2441 = vmatprep.subr.mxu0 0.0
        %2442 = vmatpush1.msra.mxu0 0.0
        %2443 = vmatprep.subr.mxu0 0.0
        %2444 = vmatpush1.msra.mxu0 0.0
        %2445 = vmatprep.subr.mxu0 0.0
        %2446 = vmatpush1.msra.mxu0 0.0
        %2447 = vmatprep.subr.mxu0 0.0
        %2448 = vmatpush1.msra.mxu0 0.0
        %2449 = vmatprep.subr.mxu0 0.0
        %2450 = vmatpush1.msra.mxu0 0.0
        %2451 = vmatprep.subr.mxu0 0.0
        %2452 = vmatpush1.msra.mxu0 %v2431
        %2453 = vmatprep.subr.mxu0 0.0
        %2454 = vmatpush1.msra.mxu0 %v2430
        %2455 = vmatprep.subr.mxu0 0.0
        %2456 = vmatpush1.msra.mxu0 %v2429
        %2457 = vmatprep.subr.mxu0 0.0
        %2458 = vmatpush1.msra.mxu0 %v2428
        %2459 = vmatprep.subr.mxu0 0.0
        %2460 = vmatpush1.msra.mxu0 %v2427
        %2461 = vmatprep.subr.mxu0 0.0
        %2462 = vmatpush1.msra.mxu0 %v2426
        %2463 = vmatprep.subr.mxu0 0.0
        %2464 = vmatpush1.msra.mxu0 %v2425
        %2465 = vmatprep.subr.mxu0 0.0
        %2466 = vmatpush1.msra.mxu0 %v2424
        %2467 = vmatprep.subr.mxu0 0.0
        %2468 = vmatpush2.msra.mxu0 0.0
        %2469 = vmatprep.subr.mxu0 0.0
        %2470 = vmatpush2.msra.mxu0 0.0
        %2471 = vmatprep.subr.mxu0 0.0
        %2472 = vmatpush2.msra.mxu0 0.0
        %2473 = vmatprep.subr.mxu0 0.0
        %2474 = vmatpush2.msra.mxu0 0.0
        %2475 = vmatprep.subr.mxu0 0.0
        %2476 = vmatpush2.msra.mxu0 0.0
        %2477 = vmatprep.subr.mxu0 0.0
        %2478 = vmatpush2.msra.mxu0 0.0
        %2479 = vmatprep.subr.mxu0 0.0
        %2480 = vmatpush2.msra.mxu0 0.0
        %2481 = vmatprep.subr.mxu0 0.0
        %2482 = vmatpush2.msra.mxu0 0.0
        %2483 = vmatprep.subr.mxu0 0.0
        %2484 = vmatpush2.msra.mxu0 0.0
        %2485 = vmatprep.subr.mxu0 0.0
        %2486 = vmatpush2.msra.mxu0 0.0
        %2487 = vmatprep.subr.mxu0 0.0
        %2488 = vmatpush2.msra.mxu0 0.0
        %2489 = vmatprep.subr.mxu0 0.0
        %2490 = vmatpush2.msra.mxu0 0.0
        %2491 = vmatprep.subr.mxu0 0.0
        %2492 = vmatpush2.msra.mxu0 0.0
        %2493 = vmatprep.subr.mxu0 0.0
        %2494 = vmatpush2.msra.mxu0 0.0
        %2495 = vmatprep.subr.mxu0 0.0
        %2496 = vmatpush2.msra.mxu0 0.0
        %2497 = vmatprep.subr.mxu0 0.0
        %2498 = vmatpush2.msra.mxu0 0.0
        %2499 = vmatprep.mubr.f32.mxu0 0.0
        %2500 = vmatmul.mubr.f32.gmra.mxu0 %v2433
        %v2501 = vpop.f32.mrf.mxu0
        %v2502 = vadd.f32 0.0, %v2501
        %v2503 = vpop.f32.mrf.mxu0
        %2504 = vdwg.mxu0
        %v2505 = vadd.f32 %v798, %v2502
        %v2506 = vld [vmem:[%s8] sm:$0x1]
        %v2508 = vlaneseq
        %v2509 = vshrl.u32 %v2508, 7
        %v2510 = vsub.s32 0, %v2509
        %v2511 = vrot.slane %v2506, %v2510
        %v2513 = vadd.f32 %v2505, %v2511
        %v2514 = vld [vmem:[%s9] sm:$0x1]
        %v2515 = vld [vmem:[%s10] sm:$0x1]
        %v2516 = vsel %vm814, %v2513, 0.0
        %2517 = vadd.xlane.f32.xlu0 %v2516
        %v2518 = vpop.xlane.xlu0 %2517
        %v2519 = vrcp.pop 64.0
        %v2520 = vmul.f32 %v2518, %v2519
        %v2521 = vsub.f32 %v2513, %v2520
        %v2522 = vmul.f32 %v2521, %v2521
        %v2523 = vsel %vm814, %v2522, 0.0
        %2524 = vadd.xlane.f32.xlu0 %v2523
        %v2525 = vpop.xlane.xlu0 %2524
        %v2526 = vmul.f32 %v2525, %v2519
        %v2527 = vadd.f32 %v2526, 1e-05
        %v2528 = vrsqrt.pop %v2527
        %v2529 = vmul.f32 %v2521, %v2528
        %v2531 = vlaneseq
        %v2532 = vshrl.u32 %v2531, 7
        %v2533 = vsub.s32 0, %v2532
        %v2534 = vrot.slane %v2514, %v2533
        %v2536 = vmul.f32 %v2529, %v2534
        %v2538 = vlaneseq
        %v2539 = vshrl.u32 %v2538, 7
        %v2540 = vsub.s32 0, %v2539
        %v2541 = vrot.slane %v2515, %v2540
        %v2543 = vadd.f32 %v2536, %v2541
        %v2544 = vld [vmem:[%s11] sm:$0xff]
        %v2545 = vld [vmem:[%s11 + $0x8] sm:$0xff]
        %v2546 = vld [vmem:[%s11 + $0x10] sm:$0xff]
        %v2547 = vld [vmem:[%s11 + $0x18] sm:$0xff]
        %v2548 = vld [vmem:[%s11 + $0x20] sm:$0xff]
        %v2549 = vld [vmem:[%s11 + $0x28] sm:$0xff]
        %v2550 = vld [vmem:[%s11 + $0x30] sm:$0xff]
        %v2551 = vld [vmem:[%s11 + $0x38] sm:$0xff]
        %v2552 = vld [vmem:[%s11 + $0x40] sm:$0xff]
        %v2553 = vld [vmem:[%s11 + $0x48] sm:$0xff]
        %v2554 = vld [vmem:[%s11 + $0x50] sm:$0xff]
        %v2555 = vld [vmem:[%s11 + $0x58] sm:$0xff]
        %v2556 = vld [vmem:[%s11 + $0x60] sm:$0xff]
        %v2557 = vld [vmem:[%s11 + $0x68] sm:$0xff]
        %v2558 = vld [vmem:[%s11 + $0x70] sm:$0xff]
        %v2559 = vld [vmem:[%s11 + $0x78] sm:$0xff]
        %v2560 = vld [vmem:[%s12] sm:$0x3]
        %v2562 = vlaneseq
        %v2563 = vshrl.u32 %v2562, 7
        %v2564 = vsub.s32 0, %v2563
        %v2565 = vrot.slane %v2560, %v2564
        %v2566 = vlaneseq
        %v2567 = vshrl.u32 %v2566, 7
        %v2568 = vsub.s32 1, %v2567
        %v2569 = vrot.slane %v2560, %v2568
        %v2573 = vsel %vm814, %v2543, 0
        %2575 = vmatprep.subr.mxu0 0.0
        %2576 = vmatpush1.msra.mxu0 0.0
        %2577 = vmatprep.subr.mxu0 0.0
        %2578 = vmatpush1.msra.mxu0 0.0
        %2579 = vmatprep.subr.mxu0 0.0
        %2580 = vmatpush1.msra.mxu0 0.0
        %2581 = vmatprep.subr.mxu0 0.0
        %2582 = vmatpush1.msra.mxu0 0.0
        %2583 = vmatprep.subr.mxu0 0.0
        %2584 = vmatpush1.msra.mxu0 0.0
        %2585 = vmatprep.subr.mxu0 0.0
        %2586 = vmatpush1.msra.mxu0 0.0
        %2587 = vmatprep.subr.mxu0 0.0
        %2588 = vmatpush1.msra.mxu0 0.0
        %2589 = vmatprep.subr.mxu0 0.0
        %2590 = vmatpush1.msra.mxu0 0.0
        %2591 = vmatprep.subr.mxu0 %v2559
        %2592 = vmatpush1.msra.mxu0 %v2558
        %2593 = vmatprep.subr.mxu0 %v2557
        %2594 = vmatpush1.msra.mxu0 %v2556
        %2595 = vmatprep.subr.mxu0 %v2555
        %2596 = vmatpush1.msra.mxu0 %v2554
        %2597 = vmatprep.subr.mxu0 %v2553
        %2598 = vmatpush1.msra.mxu0 %v2552
        %2599 = vmatprep.subr.mxu0 %v2551
        %2600 = vmatpush1.msra.mxu0 %v2550
        %2601 = vmatprep.subr.mxu0 %v2549
        %2602 = vmatpush1.msra.mxu0 %v2548
        %2603 = vmatprep.subr.mxu0 %v2547
        %2604 = vmatpush1.msra.mxu0 %v2546
        %2605 = vmatprep.subr.mxu0 %v2545
        %2606 = vmatpush1.msra.mxu0 %v2544
        %2607 = vmatprep.subr.mxu0 0.0
        %2608 = vmatpush2.msra.mxu0 0.0
        %2609 = vmatprep.subr.mxu0 0.0
        %2610 = vmatpush2.msra.mxu0 0.0
        %2611 = vmatprep.subr.mxu0 0.0
        %2612 = vmatpush2.msra.mxu0 0.0
        %2613 = vmatprep.subr.mxu0 0.0
        %2614 = vmatpush2.msra.mxu0 0.0
        %2615 = vmatprep.subr.mxu0 0.0
        %2616 = vmatpush2.msra.mxu0 0.0
        %2617 = vmatprep.subr.mxu0 0.0
        %2618 = vmatpush2.msra.mxu0 0.0
        %2619 = vmatprep.subr.mxu0 0.0
        %2620 = vmatpush2.msra.mxu0 0.0
        %2621 = vmatprep.subr.mxu0 0.0
        %2622 = vmatpush2.msra.mxu0 0.0
        %2623 = vmatprep.subr.mxu0 0.0
        %2624 = vmatpush2.msra.mxu0 0.0
        %2625 = vmatprep.subr.mxu0 0.0
        %2626 = vmatpush2.msra.mxu0 0.0
        %2627 = vmatprep.subr.mxu0 0.0
        %2628 = vmatpush2.msra.mxu0 0.0
        %2629 = vmatprep.subr.mxu0 0.0
        %2630 = vmatpush2.msra.mxu0 0.0
        %2631 = vmatprep.subr.mxu0 0.0
        %2632 = vmatpush2.msra.mxu0 0.0
        %2633 = vmatprep.subr.mxu0 0.0
        %2634 = vmatpush2.msra.mxu0 0.0
        %2635 = vmatprep.subr.mxu0 0.0
        %2636 = vmatpush2.msra.mxu0 0.0
        %2637 = vmatprep.subr.mxu0 0.0
        %2638 = vmatpush2.msra.mxu0 0.0
        %2639 = vmatprep.mubr.f32.mxu0 0.0
        %2640 = vmatmul.mubr.f32.gmra.mxu0 %v2573
        %v2641 = vpop.f32.mrf.mxu0
        %v2642 = vadd.f32 %v2565, %v2641
        %v2643 = vpop.f32.mrf.mxu0
        %v2644 = vadd.f32 %v2569, %v2643
        %2645 = vdwg.mxu0
        %v2646 = vmax.f32 %v2642, 0.0
        %v2647 = vmax.f32 %v2644, 0.0
        %v2648 = vld [vmem:[%s13] sm:$0xff]
        %v2649 = vld [vmem:[%s13 + $0x8] sm:$0xff]
        %v2650 = vld [vmem:[%s13 + $0x10] sm:$0xff]
        %v2651 = vld [vmem:[%s13 + $0x18] sm:$0xff]
        %v2652 = vld [vmem:[%s13 + $0x20] sm:$0xff]
        %v2653 = vld [vmem:[%s13 + $0x28] sm:$0xff]
        %v2654 = vld [vmem:[%s13 + $0x30] sm:$0xff]
        %v2655 = vld [vmem:[%s13 + $0x38] sm:$0xff]
        %v2656 = vld [vmem:[%s13 + $0x40] sm:$0xff]
        %v2657 = vld [vmem:[%s13 + $0x48] sm:$0xff]
        %v2658 = vld [vmem:[%s13 + $0x50] sm:$0xff]
        %v2659 = vld [vmem:[%s13 + $0x58] sm:$0xff]
        %v2660 = vld [vmem:[%s13 + $0x60] sm:$0xff]
        %v2661 = vld [vmem:[%s13 + $0x68] sm:$0xff]
        %v2662 = vld [vmem:[%s13 + $0x70] sm:$0xff]
        %v2663 = vld [vmem:[%s13 + $0x78] sm:$0xff]
        %v2664 = vld [vmem:[%s13 + $0x80] sm:$0xff]
        %v2665 = vld [vmem:[%s13 + $0x88] sm:$0xff]
        %v2666 = vld [vmem:[%s13 + $0x90] sm:$0xff]
        %v2667 = vld [vmem:[%s13 + $0x98] sm:$0xff]
        %v2668 = vld [vmem:[%s13 + $0xa0] sm:$0xff]
        %v2669 = vld [vmem:[%s13 + $0xa8] sm:$0xff]
        %v2670 = vld [vmem:[%s13 + $0xb0] sm:$0xff]
        %v2671 = vld [vmem:[%s13 + $0xb8] sm:$0xff]
        %v2672 = vld [vmem:[%s13 + $0xc0] sm:$0xff]
        %v2673 = vld [vmem:[%s13 + $0xc8] sm:$0xff]
        %v2674 = vld [vmem:[%s13 + $0xd0] sm:$0xff]
        %v2675 = vld [vmem:[%s13 + $0xd8] sm:$0xff]
        %v2676 = vld [vmem:[%s13 + $0xe0] sm:$0xff]
        %v2677 = vld [vmem:[%s13 + $0xe8] sm:$0xff]
        %v2678 = vld [vmem:[%s13 + $0xf0] sm:$0xff]
        %v2679 = vld [vmem:[%s13 + $0xf8] sm:$0xff]
        %v2680 = vld [vmem:[%s14] sm:$0x1]
        %v2682 = vlaneseq
        %v2683 = vshrl.u32 %v2682, 7
        %v2684 = vsub.s32 0, %v2683
        %v2685 = vrot.slane %v2680, %v2684
        %2687 = vmatprep.subr.mxu0 0.0
        %2688 = vmatpush1.msra.mxu0 %v2663
        %2689 = vmatprep.subr.mxu0 0.0
        %2690 = vmatpush1.msra.mxu0 %v2662
        %2691 = vmatprep.subr.mxu0 0.0
        %2692 = vmatpush1.msra.mxu0 %v2661
        %2693 = vmatprep.subr.mxu0 0.0
        %2694 = vmatpush1.msra.mxu0 %v2660
        %2695 = vmatprep.subr.mxu0 0.0
        %2696 = vmatpush1.msra.mxu0 %v2659
        %2697 = vmatprep.subr.mxu0 0.0
        %2698 = vmatpush1.msra.mxu0 %v2658
        %2699 = vmatprep.subr.mxu0 0.0
        %2700 = vmatpush1.msra.mxu0 %v2657
        %2701 = vmatprep.subr.mxu0 0.0
        %2702 = vmatpush1.msra.mxu0 %v2656
        %2703 = vmatprep.subr.mxu0 0.0
        %2704 = vmatpush1.msra.mxu0 %v2655
        %2705 = vmatprep.subr.mxu0 0.0
        %2706 = vmatpush1.msra.mxu0 %v2654
        %2707 = vmatprep.subr.mxu0 0.0
        %2708 = vmatpush1.msra.mxu0 %v2653
        %2709 = vmatprep.subr.mxu0 0.0
        %2710 = vmatpush1.msra.mxu0 %v2652
        %2711 = vmatprep.subr.mxu0 0.0
        %2712 = vmatpush1.msra.mxu0 %v2651
        %2713 = vmatprep.subr.mxu0 0.0
        %2714 = vmatpush1.msra.mxu0 %v2650
        %2715 = vmatprep.subr.mxu0 0.0
        %2716 = vmatpush1.msra.mxu0 %v2649
        %2717 = vmatprep.subr.mxu0 0.0
        %2718 = vmatpush1.msra.mxu0 %v2648
        %2719 = vmatprep.subr.mxu0 0.0
        %2720 = vmatpush2.msra.mxu0 %v2679
        %2721 = vmatprep.subr.mxu0 0.0
        %2722 = vmatpush2.msra.mxu0 %v2678
        %2723 = vmatprep.subr.mxu0 0.0
        %2724 = vmatpush2.msra.mxu0 %v2677
        %2725 = vmatprep.subr.mxu0 0.0
        %2726 = vmatpush2.msra.mxu0 %v2676
        %2727 = vmatprep.subr.mxu0 0.0
        %2728 = vmatpush2.msra.mxu0 %v2675
        %2729 = vmatprep.subr.mxu0 0.0
        %2730 = vmatpush2.msra.mxu0 %v2674
        %2731 = vmatprep.subr.mxu0 0.0
        %2732 = vmatpush2.msra.mxu0 %v2673
        %2733 = vmatprep.subr.mxu0 0.0
        %2734 = vmatpush2.msra.mxu0 %v2672
        %2735 = vmatprep.subr.mxu0 0.0
        %2736 = vmatpush2.msra.mxu0 %v2671
        %2737 = vmatprep.subr.mxu0 0.0
        %2738 = vmatpush2.msra.mxu0 %v2670
        %2739 = vmatprep.subr.mxu0 0.0
        %2740 = vmatpush2.msra.mxu0 %v2669
        %2741 = vmatprep.subr.mxu0 0.0
        %2742 = vmatpush2.msra.mxu0 %v2668
        %2743 = vmatprep.subr.mxu0 0.0
        %2744 = vmatpush2.msra.mxu0 %v2667
        %2745 = vmatprep.subr.mxu0 0.0
        %2746 = vmatpush2.msra.mxu0 %v2666
        %2747 = vmatprep.subr.mxu0 0.0
        %2748 = vmatpush2.msra.mxu0 %v2665
        %2749 = vmatprep.subr.mxu0 0.0
        %2750 = vmatpush2.msra.mxu0 %v2664
        %2751 = vmatprep.mubr.f32.mxu0 %v2647
        %2752 = vmatmul.mubr.f32.gmra.mxu0 %v2646
        %v2753 = vpop.f32.mrf.mxu0
        %v2754 = vadd.f32 %v2685, %v2753
        %v2755 = vpop.f32.mrf.mxu0
        %2756 = vdwg.mxu0
        %v2757 = vadd.f32 %v2543, %v2754
        %v2758 = vld [vmem:[%s15] sm:$0x1]
        %v2759 = vld [vmem:[%s16] sm:$0x1]
        %v2760 = vsel %vm814, %v2757, 0.0
        %2761 = vadd.xlane.f32.xlu0 %v2760
        %v2762 = vpop.xlane.xlu0 %2761
        %v2763 = vmul.f32 %v2762, %v2519
        %v2764 = vsub.f32 %v2757, %v2763
        %v2765 = vmul.f32 %v2764, %v2764
        %v2766 = vsel %vm814, %v2765, 0.0
        %2767 = vadd.xlane.f32.xlu0 %v2766
        %v2768 = vpop.xlane.xlu0 %2767
        %v2769 = vmul.f32 %v2768, %v2519
        %v2770 = vadd.f32 %v2769, 1e-05
        %v2771 = vrsqrt.pop %v2770
        %v2772 = vmul.f32 %v2764, %v2771
        %v2774 = vlaneseq
        %v2775 = vshrl.u32 %v2774, 7
        %v2776 = vsub.s32 0, %v2775
        %v2777 = vrot.slane %v2758, %v2776
        %v2779 = vmul.f32 %v2772, %v2777
        %v2781 = vlaneseq
        %v2782 = vshrl.u32 %v2781, 7
        %v2783 = vsub.s32 0, %v2782
        %v2784 = vrot.slane %v2759, %v2783
        %v2786 = vadd.f32 %v2779, %v2784
        %v2787 = vld [vmem:[%s17] sm:$0xff]
        %v2788 = vld [vmem:[%s17 + $0x8] sm:$0xff]
        %v2789 = vld [vmem:[%s17 + $0x10] sm:$0xff]
        %v2790 = vld [vmem:[%s17 + $0x18] sm:$0xff]
        %v2791 = vld [vmem:[%s17 + $0x20] sm:$0xff]
        %v2792 = vld [vmem:[%s17 + $0x28] sm:$0xff]
        %v2793 = vld [vmem:[%s17 + $0x30] sm:$0xff]
        %v2794 = vld [vmem:[%s17 + $0x38] sm:$0xff]
        %v2795 = vld [vmem:[%s18] sm:$0x1]
        %v2797 = vlaneseq
        %v2798 = vshrl.u32 %v2797, 7
        %v2799 = vsub.s32 0, %v2798
        %v2800 = vrot.slane %v2795, %v2799
        %v2803 = vsel %vm814, %v2786, 0
        %2805 = vmatprep.subr.mxu0 0.0
        %2806 = vmatpush1.msra.mxu0 0.0
        %2807 = vmatprep.subr.mxu0 0.0
        %2808 = vmatpush1.msra.mxu0 0.0
        %2809 = vmatprep.subr.mxu0 0.0
        %2810 = vmatpush1.msra.mxu0 0.0
        %2811 = vmatprep.subr.mxu0 0.0
        %2812 = vmatpush1.msra.mxu0 0.0
        %2813 = vmatprep.subr.mxu0 0.0
        %2814 = vmatpush1.msra.mxu0 0.0
        %2815 = vmatprep.subr.mxu0 0.0
        %2816 = vmatpush1.msra.mxu0 0.0
        %2817 = vmatprep.subr.mxu0 0.0
        %2818 = vmatpush1.msra.mxu0 0.0
        %2819 = vmatprep.subr.mxu0 0.0
        %2820 = vmatpush1.msra.mxu0 0.0
        %2821 = vmatprep.subr.mxu0 0.0
        %2822 = vmatpush1.msra.mxu0 %v2794
        %2823 = vmatprep.subr.mxu0 0.0
        %2824 = vmatpush1.msra.mxu0 %v2793
        %2825 = vmatprep.subr.mxu0 0.0
        %2826 = vmatpush1.msra.mxu0 %v2792
        %2827 = vmatprep.subr.mxu0 0.0
        %2828 = vmatpush1.msra.mxu0 %v2791
        %2829 = vmatprep.subr.mxu0 0.0
        %2830 = vmatpush1.msra.mxu0 %v2790
        %2831 = vmatprep.subr.mxu0 0.0
        %2832 = vmatpush1.msra.mxu0 %v2789
        %2833 = vmatprep.subr.mxu0 0.0
        %2834 = vmatpush1.msra.mxu0 %v2788
        %2835 = vmatprep.subr.mxu0 0.0
        %2836 = vmatpush1.msra.mxu0 %v2787
        %2837 = vmatprep.subr.mxu0 0.0
        %2838 = vmatpush2.msra.mxu0 0.0
        %2839 = vmatprep.subr.mxu0 0.0
        %2840 = vmatpush2.msra.mxu0 0.0
        %2841 = vmatprep.subr.mxu0 0.0
        %2842 = vmatpush2.msra.mxu0 0.0
        %2843 = vmatprep.subr.mxu0 0.0
        %2844 = vmatpush2.msra.mxu0 0.0
        %2845 = vmatprep.subr.mxu0 0.0
        %2846 = vmatpush2.msra.mxu0 0.0
        %2847 = vmatprep.subr.mxu0 0.0
        %2848 = vmatpush2.msra.mxu0 0.0
        %2849 = vmatprep.subr.mxu0 0.0
        %2850 = vmatpush2.msra.mxu0 0.0
        %2851 = vmatprep.subr.mxu0 0.0
        %2852 = vmatpush2.msra.mxu0 0.0
        %2853 = vmatprep.subr.mxu0 0.0
        %2854 = vmatpush2.msra.mxu0 0.0
        %2855 = vmatprep.subr.mxu0 0.0
        %2856 = vmatpush2.msra.mxu0 0.0
        %2857 = vmatprep.subr.mxu0 0.0
        %2858 = vmatpush2.msra.mxu0 0.0
        %2859 = vmatprep.subr.mxu0 0.0
        %2860 = vmatpush2.msra.mxu0 0.0
        %2861 = vmatprep.subr.mxu0 0.0
        %2862 = vmatpush2.msra.mxu0 0.0
        %2863 = vmatprep.subr.mxu0 0.0
        %2864 = vmatpush2.msra.mxu0 0.0
        %2865 = vmatprep.subr.mxu0 0.0
        %2866 = vmatpush2.msra.mxu0 0.0
        %2867 = vmatprep.subr.mxu0 0.0
        %2868 = vmatpush2.msra.mxu0 0.0
        %2869 = vmatprep.mubr.f32.mxu0 0.0
        %2870 = vmatmul.mubr.f32.gmra.mxu0 %v2803
        %v2871 = vpop.f32.mrf.mxu0
        %v2872 = vadd.f32 %v2800, %v2871
        %v2873 = vpop.f32.mrf.mxu0
        %2874 = vdwg.mxu0
        %v2875 = vmax.f32 %v2872, 0.0
        %v2876 = vld [vmem:[%s19] sm:$0xff]
        %v2877 = vld [vmem:[%s19 + $0x8] sm:$0xff]
        %v2878 = vld [vmem:[%s19 + $0x10] sm:$0xff]
        %v2879 = vld [vmem:[%s19 + $0x18] sm:$0xff]
        %v2880 = vld [vmem:[%s19 + $0x20] sm:$0xff]
        %v2881 = vld [vmem:[%s19 + $0x28] sm:$0xff]
        %v2882 = vld [vmem:[%s19 + $0x30] sm:$0xff]
        %v2883 = vld [vmem:[%s19 + $0x38] sm:$0xff]
        %v2884 = vld [vmem:[%s20] sm:$0x1]
        %v2886 = vlaneseq
        %v2887 = vshrl.u32 %v2886, 7
        %v2888 = vsub.s32 0, %v2887
        %v2889 = vrot.slane %v2884, %v2888
        %v2892 = vsel %vm814, %v2875, 0
        %2894 = vmatprep.subr.mxu0 0.0
        %2895 = vmatpush1.msra.mxu0 0.0
        %2896 = vmatprep.subr.mxu0 0.0
        %2897 = vmatpush1.msra.mxu0 0.0
        %2898 = vmatprep.subr.mxu0 0.0
        %2899 = vmatpush1.msra.mxu0 0.0
        %2900 = vmatprep.subr.mxu0 0.0
        %2901 = vmatpush1.msra.mxu0 0.0
        %2902 = vmatprep.subr.mxu0 0.0
        %2903 = vmatpush1.msra.mxu0 0.0
        %2904 = vmatprep.subr.mxu0 0.0
        %2905 = vmatpush1.msra.mxu0 0.0
        %2906 = vmatprep.subr.mxu0 0.0
        %2907 = vmatpush1.msra.mxu0 0.0
        %2908 = vmatprep.subr.mxu0 0.0
        %2909 = vmatpush1.msra.mxu0 0.0
        %2910 = vmatprep.subr.mxu0 0.0
        %2911 = vmatpush1.msra.mxu0 %v2883
        %2912 = vmatprep.subr.mxu0 0.0
        %2913 = vmatpush1.msra.mxu0 %v2882
        %2914 = vmatprep.subr.mxu0 0.0
        %2915 = vmatpush1.msra.mxu0 %v2881
        %2916 = vmatprep.subr.mxu0 0.0
        %2917 = vmatpush1.msra.mxu0 %v2880
        %2918 = vmatprep.subr.mxu0 0.0
        %2919 = vmatpush1.msra.mxu0 %v2879
        %2920 = vmatprep.subr.mxu0 0.0
        %2921 = vmatpush1.msra.mxu0 %v2878
        %2922 = vmatprep.subr.mxu0 0.0
        %2923 = vmatpush1.msra.mxu0 %v2877
        %2924 = vmatprep.subr.mxu0 0.0
        %2925 = vmatpush1.msra.mxu0 %v2876
        %2926 = vmatprep.subr.mxu0 0.0
        %2927 = vmatpush2.msra.mxu0 0.0
        %2928 = vmatprep.subr.mxu0 0.0
        %2929 = vmatpush2.msra.mxu0 0.0
        %2930 = vmatprep.subr.mxu0 0.0
        %2931 = vmatpush2.msra.mxu0 0.0
        %2932 = vmatprep.subr.mxu0 0.0
        %2933 = vmatpush2.msra.mxu0 0.0
        %2934 = vmatprep.subr.mxu0 0.0
        %2935 = vmatpush2.msra.mxu0 0.0
        %2936 = vmatprep.subr.mxu0 0.0
        %2937 = vmatpush2.msra.mxu0 0.0
        %2938 = vmatprep.subr.mxu0 0.0
        %2939 = vmatpush2.msra.mxu0 0.0
        %2940 = vmatprep.subr.mxu0 0.0
        %2941 = vmatpush2.msra.mxu0 0.0
        %2942 = vmatprep.subr.mxu0 0.0
        %2943 = vmatpush2.msra.mxu0 0.0
        %2944 = vmatprep.subr.mxu0 0.0
        %2945 = vmatpush2.msra.mxu0 0.0
        %2946 = vmatprep.subr.mxu0 0.0
        %2947 = vmatpush2.msra.mxu0 0.0
        %2948 = vmatprep.subr.mxu0 0.0
        %2949 = vmatpush2.msra.mxu0 0.0
        %2950 = vmatprep.subr.mxu0 0.0
        %2951 = vmatpush2.msra.mxu0 0.0
        %2952 = vmatprep.subr.mxu0 0.0
        %2953 = vmatpush2.msra.mxu0 0.0
        %2954 = vmatprep.subr.mxu0 0.0
        %2955 = vmatpush2.msra.mxu0 0.0
        %2956 = vmatprep.subr.mxu0 0.0
        %2957 = vmatpush2.msra.mxu0 0.0
        %2958 = vmatprep.mubr.f32.mxu0 0.0
        %2959 = vmatmul.mubr.f32.gmra.mxu0 %v2892
        %v2960 = vpop.f32.mrf.mxu0
        %v2961 = vadd.f32 %v2889, %v2960
        %v2962 = vpop.f32.mrf.mxu0
        %2963 = vdwg.mxu0
        %2964 = vst.msk [vmem:[%s783] sm:$0xff] %vm814, %v2961
        %v2965 = vld [vmem:[%s21] sm:$0xff]
        %v2966 = vld [vmem:[%s21 + $0x8] sm:$0xff]
        %v2967 = vld [vmem:[%s21 + $0x10] sm:$0xff]
        %v2968 = vld [vmem:[%s21 + $0x18] sm:$0xff]
        %v2969 = vld [vmem:[%s21 + $0x20] sm:$0xff]
        %v2970 = vld [vmem:[%s21 + $0x28] sm:$0xff]
        %v2971 = vld [vmem:[%s21 + $0x30] sm:$0xff]
        %v2972 = vld [vmem:[%s21 + $0x38] sm:$0xff]
        %v2973 = vld [vmem:[%s22] sm:$0x1]
        %v2975 = vlaneseq
        %v2976 = vshrl.u32 %v2975, 7
        %v2977 = vsub.s32 0, %v2976
        %v2978 = vrot.slane %v2973, %v2977
        %v2981 = vsel %vm814, %v2961, 0
        %2983 = vmatprep.subr.mxu0 0.0
        %2984 = vmatpush1.msra.mxu0 0.0
        %2985 = vmatprep.subr.mxu0 0.0
        %2986 = vmatpush1.msra.mxu0 0.0
        %2987 = vmatprep.subr.mxu0 0.0
        %2988 = vmatpush1.msra.mxu0 0.0
        %2989 = vmatprep.subr.mxu0 0.0
        %2990 = vmatpush1.msra.mxu0 0.0
        %2991 = vmatprep.subr.mxu0 0.0
        %2992 = vmatpush1.msra.mxu0 0.0
        %2993 = vmatprep.subr.mxu0 0.0
        %2994 = vmatpush1.msra.mxu0 0.0
        %2995 = vmatprep.subr.mxu0 0.0
        %2996 = vmatpush1.msra.mxu0 0.0
        %2997 = vmatprep.subr.mxu0 0.0
        %2998 = vmatpush1.msra.mxu0 0.0
        %2999 = vmatprep.subr.mxu0 0.0
        %3000 = vmatpush1.msra.mxu0 %v2972
        %3001 = vmatprep.subr.mxu0 0.0
        %3002 = vmatpush1.msra.mxu0 %v2971
        %3003 = vmatprep.subr.mxu0 0.0
        %3004 = vmatpush1.msra.mxu0 %v2970
        %3005 = vmatprep.subr.mxu0 0.0
        %3006 = vmatpush1.msra.mxu0 %v2969
        %3007 = vmatprep.subr.mxu0 0.0
        %3008 = vmatpush1.msra.mxu0 %v2968
        %3009 = vmatprep.subr.mxu0 0.0
        %3010 = vmatpush1.msra.mxu0 %v2967
        %3011 = vmatprep.subr.mxu0 0.0
        %3012 = vmatpush1.msra.mxu0 %v2966
        %3013 = vmatprep.subr.mxu0 0.0
        %3014 = vmatpush1.msra.mxu0 %v2965
        %3015 = vmatprep.subr.mxu0 0.0
        %3016 = vmatpush2.msra.mxu0 0.0
        %3017 = vmatprep.subr.mxu0 0.0
        %3018 = vmatpush2.msra.mxu0 0.0
        %3019 = vmatprep.subr.mxu0 0.0
        %3020 = vmatpush2.msra.mxu0 0.0
        %3021 = vmatprep.subr.mxu0 0.0
        %3022 = vmatpush2.msra.mxu0 0.0
        %3023 = vmatprep.subr.mxu0 0.0
        %3024 = vmatpush2.msra.mxu0 0.0
        %3025 = vmatprep.subr.mxu0 0.0
        %3026 = vmatpush2.msra.mxu0 0.0
        %3027 = vmatprep.subr.mxu0 0.0
        %3028 = vmatpush2.msra.mxu0 0.0
        %3029 = vmatprep.subr.mxu0 0.0
        %3030 = vmatpush2.msra.mxu0 0.0
        %3031 = vmatprep.subr.mxu0 0.0
        %3032 = vmatpush2.msra.mxu0 0.0
        %3033 = vmatprep.subr.mxu0 0.0
        %3034 = vmatpush2.msra.mxu0 0.0
        %3035 = vmatprep.subr.mxu0 0.0
        %3036 = vmatpush2.msra.mxu0 0.0
        %3037 = vmatprep.subr.mxu0 0.0
        %3038 = vmatpush2.msra.mxu0 0.0
        %3039 = vmatprep.subr.mxu0 0.0
        %3040 = vmatpush2.msra.mxu0 0.0
        %3041 = vmatprep.subr.mxu0 0.0
        %3042 = vmatpush2.msra.mxu0 0.0
        %3043 = vmatprep.subr.mxu0 0.0
        %3044 = vmatpush2.msra.mxu0 0.0
        %3045 = vmatprep.subr.mxu0 0.0
        %3046 = vmatpush2.msra.mxu0 0.0
        %3047 = vmatprep.mubr.f32.mxu0 0.0
        %3048 = vmatmul.mubr.f32.gmra.mxu0 %v2981
        %v3049 = vpop.f32.mrf.mxu0
        %v3050 = vadd.f32 %v2978, %v3049
        %v3051 = vpop.f32.mrf.mxu0
        %3052 = vdwg.mxu0
        %v3053 = vmax.f32 %v3050, 0.0
        %v3054 = vld [vmem:[%s23] sm:$0xff]
        %v3055 = vld [vmem:[%s23 + $0x8] sm:$0xff]
        %v3056 = vld [vmem:[%s23 + $0x10] sm:$0xff]
        %v3057 = vld [vmem:[%s23 + $0x18] sm:$0xff]
        %v3058 = vld [vmem:[%s23 + $0x20] sm:$0xff]
        %v3059 = vld [vmem:[%s23 + $0x28] sm:$0xff]
        %v3060 = vld [vmem:[%s23 + $0x30] sm:$0xff]
        %v3061 = vld [vmem:[%s23 + $0x38] sm:$0xff]
        %v3062 = vld [vmem:[%s24] sm:$0x1]
        %v3064 = vlaneseq
        %v3065 = vshrl.u32 %v3064, 7
        %v3066 = vsub.s32 0, %v3065
        %v3067 = vrot.slane %v3062, %v3066
        %v3070 = vsel %vm814, %v3053, 0
        %3072 = vmatprep.subr.mxu0 0.0
        %3073 = vmatpush1.msra.mxu0 0.0
        %3074 = vmatprep.subr.mxu0 0.0
        %3075 = vmatpush1.msra.mxu0 0.0
        %3076 = vmatprep.subr.mxu0 0.0
        %3077 = vmatpush1.msra.mxu0 0.0
        %3078 = vmatprep.subr.mxu0 0.0
        %3079 = vmatpush1.msra.mxu0 0.0
        %3080 = vmatprep.subr.mxu0 0.0
        %3081 = vmatpush1.msra.mxu0 0.0
        %3082 = vmatprep.subr.mxu0 0.0
        %3083 = vmatpush1.msra.mxu0 0.0
        %3084 = vmatprep.subr.mxu0 0.0
        %3085 = vmatpush1.msra.mxu0 0.0
        %3086 = vmatprep.subr.mxu0 0.0
        %3087 = vmatpush1.msra.mxu0 0.0
        %3088 = vmatprep.subr.mxu0 0.0
        %3089 = vmatpush1.msra.mxu0 %v3061
        %3090 = vmatprep.subr.mxu0 0.0
        %3091 = vmatpush1.msra.mxu0 %v3060
        %3092 = vmatprep.subr.mxu0 0.0
        %3093 = vmatpush1.msra.mxu0 %v3059
        %3094 = vmatprep.subr.mxu0 0.0
        %3095 = vmatpush1.msra.mxu0 %v3058
        %3096 = vmatprep.subr.mxu0 0.0
        %3097 = vmatpush1.msra.mxu0 %v3057
        %3098 = vmatprep.subr.mxu0 0.0
        %3099 = vmatpush1.msra.mxu0 %v3056
        %3100 = vmatprep.subr.mxu0 0.0
        %3101 = vmatpush1.msra.mxu0 %v3055
        %3102 = vmatprep.subr.mxu0 0.0
        %3103 = vmatpush1.msra.mxu0 %v3054
        %3104 = vmatprep.subr.mxu0 0.0
        %3105 = vmatpush2.msra.mxu0 0.0
        %3106 = vmatprep.subr.mxu0 0.0
        %3107 = vmatpush2.msra.mxu0 0.0
        %3108 = vmatprep.subr.mxu0 0.0
        %3109 = vmatpush2.msra.mxu0 0.0
        %3110 = vmatprep.subr.mxu0 0.0
        %3111 = vmatpush2.msra.mxu0 0.0
        %3112 = vmatprep.subr.mxu0 0.0
        %3113 = vmatpush2.msra.mxu0 0.0
        %3114 = vmatprep.subr.mxu0 0.0
        %3115 = vmatpush2.msra.mxu0 0.0
        %3116 = vmatprep.subr.mxu0 0.0
        %3117 = vmatpush2.msra.mxu0 0.0
        %3118 = vmatprep.subr.mxu0 0.0
        %3119 = vmatpush2.msra.mxu0 0.0
        %3120 = vmatprep.subr.mxu0 0.0
        %3121 = vmatpush2.msra.mxu0 0.0
        %3122 = vmatprep.subr.mxu0 0.0
        %3123 = vmatpush2.msra.mxu0 0.0
        %3124 = vmatprep.subr.mxu0 0.0
        %3125 = vmatpush2.msra.mxu0 0.0
        %3126 = vmatprep.subr.mxu0 0.0
        %3127 = vmatpush2.msra.mxu0 0.0
        %3128 = vmatprep.subr.mxu0 0.0
        %3129 = vmatpush2.msra.mxu0 0.0
        %3130 = vmatprep.subr.mxu0 0.0
        %3131 = vmatpush2.msra.mxu0 0.0
        %3132 = vmatprep.subr.mxu0 0.0
        %3133 = vmatpush2.msra.mxu0 0.0
        %3134 = vmatprep.subr.mxu0 0.0
        %3135 = vmatpush2.msra.mxu0 0.0
        %3136 = vmatprep.mubr.f32.mxu0 0.0
        %3137 = vmatmul.mubr.f32.gmra.mxu0 %v3070
        %v3138 = vpop.f32.mrf.mxu0
        %v3139 = vadd.f32 %v3067, %v3138
        %v3140 = vpop.f32.mrf.mxu0
        %3141 = vdwg.mxu0
        %3142 = vst [vmem:[%s797] sm:$0xff] %v3139
        %s3143 = sand.u32 %s579, 1
        %s3144 = scalar_lea.sflag [#allocation3], %s3143
        %s3145 = sand.u32 %s579, 1
        %s3146 = smul.addr %s3145, 8
        %s3147 = scalar_lea.vmem [#allocation2], %s3146
        %p3148 = scmp.lt.s32.totalorder %s41, 1
        %s3149 = scalar_select %p3148, %s41, 1
        %s3150 = smul.addr %s3149, 8
        %s3151 = scalar_lea.vmem %s26, %s3150
        // Predicated region
        $region121: #{rna3d_forward.13} parent=119 // pred_check
          %p3152 = pneg %p589
        $region122: #{rna3d_forward.13} parent=119 // pred_check_branch
          %3154 = sbr.rel (%p3152) target = $region124
        $region123: #{rna3d_forward.13} parent=119 // pred_region
          %s3156 = ssub.s32 128, 128
          %3157 = vsyncadd %s3144, %s3156
          %s3158 = smul.addr %s41, 128
          %s3159 = scalar_lea.hbm %s25, %s3158
          %s3161 = sshll.u32 %s3147, 4
          %s3162 = int_to_ptr.vmem [resolvable:$true] %s3161
          %3164 = dma.vmem_to_hbm [thread:$0]  %s3162, 128, %s3159, %s3144
        $region124: #{rna3d_forward.13} parent=119 // pred_fallthru
          _
        // Predicated region
        $region125: #{rna3d_forward.13} parent=119 // pred_check
          %p3165 = pneg %p615
        $region126: #{rna3d_forward.13} parent=119 // pred_check_branch
          %3167 = sbr.rel (%p3165) target = $region128
        $region127: #{rna3d_forward.13} parent=119 // pred_region
          _
        $region128: #{rna3d_forward.13} parent=119 // pred_fallthru
          _
      $region120: #{rna3d_forward.13} parent=5 // pred_fallthru
        _
      %p3168 = scmp.le.s32.totalorder 2, %s36
      // Predicated region
      $region129: #{rna3d_forward.13} parent=5 // pred_check
        %p3169 = pneg %p3168
      $region130: #{rna3d_forward.13} parent=5 // pred_check_branch
        %3171 = sbr.rel (%p3169) target = $region132
      $region131: #{rna3d_forward.13} parent=5 // pred_region
        %s3172 = ssub.s32 %s36, 2
        // Predicated region
        $region133: #{rna3d_forward.13} parent=131 // pred_check
          %p3173 = pneg %p595
        $region134: #{rna3d_forward.13} parent=131 // pred_check_branch
          %3175 = sbr.rel (%p3173) target = $region136
        $region135: #{rna3d_forward.13} parent=131 // pred_region
          %s3176 = sand.u32 %s580, 1
          %s3177 = scalar_lea.sflag [#allocation3], %s3176
          %s3178 = sand.u32 %s580, 1
          %s3179 = smul.addr %s3178, 8
          %s3180 = scalar_lea.vmem [#allocation2], %s3179
          %3181 = dma.done %s3177, 128
        $region136: #{rna3d_forward.13} parent=131 // pred_fallthru
          _
        // Predicated region
        $region137: #{rna3d_forward.13} parent=131 // pred_check
          %p3182 = pneg %p621
        $region138: #{rna3d_forward.13} parent=131 // pred_check_branch
          %3184 = sbr.rel (%p3182) target = $region140
        $region139: #{rna3d_forward.13} parent=131 // pred_region
          %p3185 = scmp.lt.s32.totalorder %s42, 1
          %s3186 = scalar_select %p3185, %s42, 1
          %s3187 = smul.addr %s3186, 8
          %s3188 = scalar_lea.vmem %s26, %s3187
        $region140: #{rna3d_forward.13} parent=131 // pred_fallthru
          _
      $region132: #{rna3d_forward.13} parent=5 // pred_fallthru
        _
    $region6: #{rna3d_forward.13} parent=1 // loop_footer
      %s40 = sadd.s32 1, %s36
    $region7: #{rna3d_forward.13} parent=1 // loop_footer_branch
      %35 = sbr.rel target = $region3
    $region8: #{rna3d_forward.13} parent=1 // loop_exit
      _
    %3189 = vsyncpa [#allocation3], 1
    %s3190 = scalar_lea.sflag [#allocation3], 1
    %3191 = vsyncpa %s3190, 1

</llo_original>
